<compile_context>
chip_gen: v5e
topology: v5e:2x2
jax: 0.10.0
libtpu: 0.0.40
codegen_flags: <defaults>
</compile_context>

<pallas_src>
import jax
import jax.numpy as jnp
from jax import lax
from jax.experimental import pallas as pl
from jax.experimental.pallas import tpu as pltpu

OFF = 8  # interior offset along the sublane (2nd-minor) dim of padded scratch
         # -> interior stores start on a sublane-tile boundary (tile = 8 rows)

# "NT" contraction: A (m, k) . B (n, k) -> (m, n)   (standard flash-attn form)
NT_DIMS = (((1,), (1,)), ((), ()))


# ----------------------------------------------------------------------------
# Fused Pallas kernel (one grid step = one batch element)
# ----------------------------------------------------------------------------
def _make_inception_kernel(H, W, Cin):
    HW = H * W

    def zero_halo(buf, pad):
        # Zero only the halo strips read by the conv taps; the interior is
        # fully overwritten every grid step.
        rows, width, ch = buf.shape
        zr = jnp.zeros((pad, width, ch), buf.dtype)
        buf[0:pad, :, :] = zr
        buf[rows - pad:rows, :, :] = zr
        zc = jnp.zeros((rows, pad, ch), buf.dtype)
        buf[:, OFF - pad:OFF, :] = zc
        buf[:, OFF + W:OFF + W + pad, :] = zc

    def im2col(buf, pad, ch):
        # (HW, K*K*ch) operand: shifted patches concatenated along channels,
        # in (kh, kw, cin) order -- matches the pre-flattened weight layout.
        k = 2 * pad + 1
        cols = []
        for kh in range(k):
            for kw in range(k):
                cols.append(
                    buf[kh:kh + H, OFF - pad + kw:OFF - pad + kw + W, :]
                    .reshape(HW, ch))
        return jnp.concatenate(cols, axis=1)

    def kernel(x_ref, w1_ref, w5r_ref, w3r_ref, w5_ref, w3a_ref, w3b_ref,
               wp_ref, wf1_ref, wf5_ref, wf3_ref, wfp_ref, bf_ref,
               o_ref, xp5, xp3a, xp3b, xpool):
        cdt = w1_ref.dtype                    # compute dtype (f32 or bf16)

        x3d = x_ref[0]                        # (H, W, Cin)  f32
        x2d = x3d.reshape(HW, Cin)            # (HW, Cin)
        xc = x2d.astype(cdt)

        # ---- per-branch 1x1 "reduce" convs + ReLU (K = Cin each) ------------
        r1 = jnp.maximum(
            jnp.dot(xc, w1_ref[...], preferred_element_type=jnp.float32), 0.0)   # (HW,64)
        r5 = jnp.maximum(
            jnp.dot(xc, w5r_ref[...], preferred_element_type=jnp.float32), 0.0)  # (HW,48)
        r3 = jnp.maximum(
            jnp.dot(xc, w3r_ref[...], preferred_element_type=jnp.float32), 0.0)  # (HW,64)

        # ---- halo-only zeroing + interior stores -----------------------------
        zero_halo(xp5, 2)
        zero_halo(xp3a, 1)
        zero_halo(xp3b, 1)
        zero_halo(xpool, 1)
        xp5[2:2 + H, OFF:OFF + W, :] = r5.reshape(H, W, 48).astype(xp5.dtype)
        xp3a[1:1 + H, OFF:OFF + W, :] = r3.reshape(H, W, 64).astype(xp3a.dtype)
        xpool[1:1 + H, OFF:OFF + W, :] = x3d

        # ---- branch5x5_2: 5x5 conv (pad 2), 48 -> 64, one im2col matmul ------
        b5 = jnp.maximum(
            jnp.dot(im2col(xp5, 2, 48), w5_ref[...],
                    preferred_element_type=jnp.float32), 0.0)                    # (HW,64)

        # ---- branch3x3dbl_2: 3x3 conv (pad 1), 64 -> 96 -----------------------
        t3 = jnp.maximum(
            jnp.dot(im2col(xp3a, 1, 64), w3a_ref[...],
                    preferred_element_type=jnp.float32), 0.0)                    # (HW,96)
        xp3b[1:1 + H, OFF:OFF + W, :] = t3.reshape(H, W, 96).astype(xp3b.dtype)

        # ---- branch3x3dbl_3: 3x3 conv (pad 1), 96 -> 96 -----------------------
        b3 = jnp.maximum(
            jnp.dot(im2col(xp3b, 1, 96), w3b_ref[...],
                    preferred_element_type=jnp.float32), 0.0)                    # (HW,96)

        # ---- branch_pool: 3x3 avgpool (pad 1, count_include_pad) + 1x1 + ReLU -
        accp = jnp.zeros((H, W, Cin), jnp.float32)
        for kh in range(3):
            for kw in range(3):
                accp = accp + xpool[kh:kh + H, OFF - 1 + kw:OFF - 1 + kw + W, :]
        pooled = (accp * (1.0 / 9.0)).reshape(HW, Cin)                           # (HW,Cin)
        # (1,Cin) . (HW,Cin)^T -> (1,HW): lane-dense, no relayout
        bp_row = jnp.maximum(
            lax.dot_general(wp_ref[...], pooled, NT_DIMS,
                            preferred_element_type=jnp.float32), 0.0)            # (1,HW)

        # ---- final 225->1 1x1 conv (with bias), accumulated lane-dense -------
        # each contribution: (1,C) . (HW,C)^T -> (1,HW)
        out = lax.dot_general(wf1_ref[...], r1, NT_DIMS,
                              preferred_element_type=jnp.float32)
        out = out + lax.dot_general(wf5_ref[...], b5, NT_DIMS,
                                    preferred_element_type=jnp.float32)
        out = out + lax.dot_general(wf3_ref[...], b3, NT_DIMS,
                                    preferred_element_type=jnp.float32)
        out = out + bp_row * wfp_ref[...]
        out = out + bf_ref[...]
        o_ref[...] = out.reshape(1, 1, HW).astype(o_ref.dtype)

    return kernel


# ----------------------------------------------------------------------------
# Wrapper: one pallas_call for the whole module
# ----------------------------------------------------------------------------
def inception_module1_forward(params, x_nchw):
    N, Cin, H, W = x_nchw.shape
    HW = H * W
    x = jnp.transpose(x_nchw, (0, 2, 3, 1)).astype(jnp.float32)    # NHWC
    cdt = params["w5x5_2"].dtype                                   # compute dtype

    kernel = _make_inception_kernel(H, W, Cin)

    in_specs = [
        pl.BlockSpec((1, H, W, Cin), lambda n: (n, 0, 0, 0)),          # x
        pl.BlockSpec(params["w1x1"].shape, lambda n: (0, 0)),          # (Cin,64)
        pl.BlockSpec(params["w5x5_1"].shape, lambda n: (0, 0)),        # (Cin,48)
        pl.BlockSpec(params["w3x3_1"].shape, lambda n: (0, 0)),        # (Cin,64)
        pl.BlockSpec(params["w5x5_2"].shape, lambda n: (0, 0)),        # (1200,64)
        pl.BlockSpec(params["w3x3_2"].shape, lambda n: (0, 0)),        # (576,96)
        pl.BlockSpec(params["w3x3_3"].shape, lambda n: (0, 0)),        # (864,96)
        pl.BlockSpec(params["w_pool"].shape, lambda n: (0, 0)),        # (1,Cin)
        pl.BlockSpec(params["wf_1x1"].shape, lambda n: (0, 0)),        # (1,64)
        pl.BlockSpec(params["wf_5x5"].shape, lambda n: (0, 0)),        # (1,64)
        pl.BlockSpec(params["wf_3x3"].shape, lambda n: (0, 0)),        # (1,96)
        pl.BlockSpec(params["wf_pool"].shape, lambda n: (0, 0)),       # (1,1)
        pl.BlockSpec(params["b_final"].shape, lambda n: (0, 0)),       # (1,1)
    ]

    out = pl.pallas_call(
        kernel,
        out_shape=jax.ShapeDtypeStruct((N, 1, HW), jnp.float32),
        grid=(N,),
        in_specs=in_specs,
        # lane-dense output: HW (=256) on the lane axis -> unmasked stores
        out_specs=pl.BlockSpec((1, 1, HW), lambda n: (n, 0, 0)),
        scratch_shapes=[
            pltpu.VMEM((H + 4, OFF + W + 2, 48), cdt),           # 5x5 input (pad 2)
            pltpu.VMEM((H + 2, OFF + W + 1, 64), cdt),           # 3x3_2 input (pad 1)
            pltpu.VMEM((H + 2, OFF + W + 1, 96), cdt),           # 3x3_3 input (pad 1)
            pltpu.VMEM((H + 2, OFF + W + 1, Cin), jnp.float32),  # avgpool input (pad 1)
        ],
        compiler_params=pltpu.CompilerParams(
            dimension_semantics=("parallel",)),   # v7x: one batch elem per TC
    )(x, params["w1x1"], params["w5x5_1"], params["w3x3_1"],
      params["w5x5_2"], params["w3x3_2"], params["w3x3_3"],
      params["w_pool"], params["wf_1x1"], params["wf_5x5"], params["wf_3x3"],
      params["wf_pool"], params["b_final"])

    # (N, 1, HW) row-major IS NCHW (N, 1, H, W) since Cout == 1 -> free reshape.
    return out.reshape(N, 1, H, W)


# ----------------------------------------------------------------------------
# Parameter construction (PyTorch Conv2d OIHW layout, converted to the
# kernel's (Cin, Cout) / flattened-(KH*KW*Cin, Cout) / (1, C) row layouts).
# ----------------------------------------------------------------------------
def init_params(key, in_channels, pool_features, compute_dtype=jnp.float32):
    assert pool_features == 1, "conv2d(225, 1) requires 64 + 64 + 96 + pool == 225"
    ks = jax.random.split(key, 9)

    def oihw(k, cout, cin, ksz):
        return 0.1 * jax.random.normal(k, (cout, cin, ksz, ksz), dtype=jnp.float32)

    def flat_hwio(w_oihw):
        # (O, I, KH, KW) -> (KH, KW, I, O) -> (KH*KW*I, O)  matches im2col order
        kh, kw = w_oihw.shape[2], w_oihw.shape[3]
        cin, cout = w_oihw.shape[1], w_oihw.shape[0]
        return jnp.transpose(w_oihw, (2, 3, 1, 0)).reshape(kh * kw * cin, cout)

    w1x1   = oihw(ks[0], 64, in_channels, 1)[:, :, 0, 0].T         # (Cin, 64)
    w5x5_1 = oihw(ks[1], 48, in_channels, 1)[:, :, 0, 0].T         # (Cin, 48)
    w5x5_2 = flat_hwio(oihw(ks[2], 64, 48, 5))                     # (1200, 64)
    w3x3_1 = oihw(ks[3], 64, in_channels, 1)[:, :, 0, 0].T         # (Cin, 64)
    w3x3_2 = flat_hwio(oihw(ks[4], 96, 64, 3))                     # (576, 96)
    w3x3_3 = flat_hwio(oihw(ks[5], 96, 96, 3))                     # (864, 96)
    w_pool = oihw(ks[6], pool_features, in_channels, 1)[:, :, 0, 0]  # (1, Cin) row
    wf     = oihw(ks[7], 1, 225, 1)[0, :, 0, 0]                    # (225,)
    b_final = 0.1 * jax.random.normal(ks[8], (1, 1), dtype=jnp.float32)

    return {
        # branch conv weights (cast to compute_dtype; f32 by default)
        "w1x1":   w1x1.astype(compute_dtype),
        "w5x5_1": w5x5_1.astype(compute_dtype),
        "w3x3_1": w3x3_1.astype(compute_dtype),
        "w5x5_2": w5x5_2.astype(compute_dtype),
        "w3x3_2": w3x3_2.astype(compute_dtype),
        "w3x3_3": w3x3_3.astype(compute_dtype),
        # pool 1x1 + final 225->1 conv rows stay f32 (tiny, exact)
        "w_pool":  w_pool,                       # (1, Cin)
        "wf_1x1":  wf[0:64].reshape(1, 64),      # cat channels [0:64)
        "wf_5x5":  wf[64:128].reshape(1, 64),    # cat channels [64:128)
        "wf_3x3":  wf[128:224].reshape(1, 96),   # cat channels [128:224)
        "wf_pool": wf[224:225].reshape(1, 1),    # cat channel  [224]
        "b_final": b_final,                      # (1, 1)
    }


# ----------------------------------------------------------------------------
if __name__ == "__main__":
    IN_CHANNELS = 4
    POOL_FEATURES = 1   # 64 + 64 + 96 + 1 = 225, as required by self.conv2d
    N, H, W = 2, 16, 16

    key = jax.random.PRNGKey(0)
    k_params, k_x = jax.random.split(key)

    # compute_dtype=jnp.bfloat16 enables the MXU-native path (f32 accumulation)
    params = init_params(k_params, IN_CHANNELS, POOL_FEATURES,
                         compute_dtype=jnp.float32)
    x = jax.random.normal(k_x, (N, IN_CHANNELS, H, W), dtype=jnp.float32)

    fwd = jax.jit(inception_module1_forward)
    out = jax.block_until_ready(fwd(params, x))

    assert out.shape == (N, 1, H, W), out.shape
    assert out.dtype == jnp.float32
    print("KERNEL_OK")
</pallas_src>

<mosaic_0001>
module attributes {stable_mosaic.version = 11 : i64} {
  func.func @kernel(%arg0: i32, %arg1: memref<1x16x16x4xf32, #tpu.memory_space<vmem>>, %arg2: memref<4x64xf32, #tpu.memory_space<vmem>>, %arg3: memref<4x48xf32, #tpu.memory_space<vmem>>, %arg4: memref<4x64xf32, #tpu.memory_space<vmem>>, %arg5: memref<1200x64xf32, #tpu.memory_space<vmem>>, %arg6: memref<576x96xf32, #tpu.memory_space<vmem>>, %arg7: memref<864x96xf32, #tpu.memory_space<vmem>>, %arg8: memref<1x4xf32, #tpu.memory_space<vmem>>, %arg9: memref<1x64xf32, #tpu.memory_space<vmem>>, %arg10: memref<1x64xf32, #tpu.memory_space<vmem>>, %arg11: memref<1x96xf32, #tpu.memory_space<vmem>>, %arg12: memref<1x1xf32, #tpu.memory_space<vmem>>, %arg13: memref<1x1xf32, #tpu.memory_space<vmem>>, %arg14: memref<1x1x256xf32, #tpu.memory_space<vmem>>, %arg15: memref<20x26x48xf32, #tpu.memory_space<vmem>>, %arg16: memref<18x25x64xf32, #tpu.memory_space<vmem>>, %arg17: memref<18x25x96xf32, #tpu.memory_space<vmem>>, %arg18: memref<18x25x4xf32, #tpu.memory_space<vmem>>) attributes {dimension_semantics = [#tpu.dimension_semantics<parallel>], iteration_bounds = array<i64: 2>, scalar_prefetch = 0 : i64, scratch_operands = 4 : i64, tpu.core_type = #tpu.core_type<tc>, window_params = [{transform_indices = @transform_0, window_bounds = array<i64: 1, 16, 16, 4>}, {pipeline_mode = #tpu.pipeline_mode<synchronous>, transform_indices = @transform_1, window_bounds = array<i64: 4, 64>}, {pipeline_mode = #tpu.pipeline_mode<synchronous>, transform_indices = @transform_2, window_bounds = array<i64: 4, 48>}, {pipeline_mode = #tpu.pipeline_mode<synchronous>, transform_indices = @transform_3, window_bounds = array<i64: 4, 64>}, {pipeline_mode = #tpu.pipeline_mode<synchronous>, transform_indices = @transform_4, window_bounds = array<i64: 1200, 64>}, {pipeline_mode = #tpu.pipeline_mode<synchronous>, transform_indices = @transform_5, window_bounds = array<i64: 576, 96>}, {pipeline_mode = #tpu.pipeline_mode<synchronous>, transform_indices = @transform_6, window_bounds = array<i64: 864, 96>}, {pipeline_mode = #tpu.pipeline_mode<synchronous>, transform_indices = @transform_7, window_bounds = array<i64: 1, 4>}, {pipeline_mode = #tpu.pipeline_mode<synchronous>, transform_indices = @transform_8, window_bounds = array<i64: 1, 64>}, {pipeline_mode = #tpu.pipeline_mode<synchronous>, transform_indices = @transform_9, window_bounds = array<i64: 1, 64>}, {pipeline_mode = #tpu.pipeline_mode<synchronous>, transform_indices = @transform_10, window_bounds = array<i64: 1, 96>}, {pipeline_mode = #tpu.pipeline_mode<synchronous>, transform_indices = @transform_11, window_bounds = array<i64: 1, 1>}, {pipeline_mode = #tpu.pipeline_mode<synchronous>, transform_indices = @transform_12, window_bounds = array<i64: 1, 1>}, {transform_indices = @transform_13, window_bounds = array<i64: 1, 1, 256>}]} {
    %c0 = arith.constant 0 : index
    %c0_0 = arith.constant 0 : index
    %c0_1 = arith.constant 0 : index
    %c0_2 = arith.constant 0 : index
    %0 = vector.load %arg1[%c0, %c0_0, %c0_1, %c0_2] : memref<1x16x16x4xf32, #tpu.memory_space<vmem>>, vector<1x16x16x4xf32>
    %1 = vector.shape_cast %0 : vector<1x16x16x4xf32> to vector<16x16x4xf32>
    %2 = vector.shape_cast %1 : vector<16x16x4xf32> to vector<256x4xf32>
    %c0_3 = arith.constant 0 : index
    %c0_4 = arith.constant 0 : index
    %3 = vector.load %arg2[%c0_3, %c0_4] : memref<4x64xf32, #tpu.memory_space<vmem>>, vector<4x64xf32>
    %cst = arith.constant dense<0.000000e+00> : vector<256x64xf32>
    %4 = tpu.matmul %2, %3, %cst {dimension_numbers = #tpu.dot_dimension_numbers<[1], [0], [0], [1], [0, 0, 1, 1], [], []>} : vector<256x4xf32>, vector<4x64xf32>, vector<256x64xf32> -> vector<256x64xf32>
    %cst_5 = arith.constant 0.000000e+00 : f32
    %5 = vector.broadcast %cst_5 : f32 to vector<256x64xf32>
    %6 = arith.maximumf %4, %5 : vector<256x64xf32>
    %c0_6 = arith.constant 0 : index
    %c0_7 = arith.constant 0 : index
    %7 = vector.load %arg3[%c0_6, %c0_7] : memref<4x48xf32, #tpu.memory_space<vmem>>, vector<4x48xf32>
    %cst_8 = arith.constant dense<0.000000e+00> : vector<256x48xf32>
    %8 = tpu.matmul %2, %7, %cst_8 {dimension_numbers = #tpu.dot_dimension_numbers<[1], [0], [0], [1], [0, 0, 1, 1], [], []>} : vector<256x4xf32>, vector<4x48xf32>, vector<256x48xf32> -> vector<256x48xf32>
    %cst_9 = arith.constant 0.000000e+00 : f32
    %9 = vector.broadcast %cst_9 : f32 to vector<256x48xf32>
    %10 = arith.maximumf %8, %9 : vector<256x48xf32>
    %c0_10 = arith.constant 0 : index
    %c0_11 = arith.constant 0 : index
    %11 = vector.load %arg4[%c0_10, %c0_11] : memref<4x64xf32, #tpu.memory_space<vmem>>, vector<4x64xf32>
    %cst_12 = arith.constant dense<0.000000e+00> : vector<256x64xf32>
    %12 = tpu.matmul %2, %11, %cst_12 {dimension_numbers = #tpu.dot_dimension_numbers<[1], [0], [0], [1], [0, 0, 1, 1], [], []>} : vector<256x4xf32>, vector<4x64xf32>, vector<256x64xf32> -> vector<256x64xf32>
    %cst_13 = arith.constant 0.000000e+00 : f32
    %13 = vector.broadcast %cst_13 : f32 to vector<256x64xf32>
    %14 = arith.maximumf %12, %13 : vector<256x64xf32>
    %cst_14 = arith.constant 0.000000e+00 : f32
    %15 = vector.broadcast %cst_14 : f32 to vector<2x26x48xf32>
    %c0_15 = arith.constant 0 : index
    %c0_16 = arith.constant 0 : index
    %c0_17 = arith.constant 0 : index
    %16 = vector.load %arg15[%c0_15, %c0_16, %c0_17] : memref<20x26x48xf32, #tpu.memory_space<vmem>>, vector<2x26x48xf32>
    tpu.vector_store %arg15[%c0_15, %c0_16, %c0_17], %15 {strides = array<i32>} : memref<20x26x48xf32, #tpu.memory_space<vmem>>, vector<2x26x48xf32>,
    %c18 = arith.constant 18 : index
    %c0_18 = arith.constant 0 : index
    %c0_19 = arith.constant 0 : index
    %17 = vector.load %arg15[%c18, %c0_18, %c0_19] : memref<20x26x48xf32, #tpu.memory_space<vmem>>, vector<2x26x48xf32>
    tpu.vector_store %arg15[%c18, %c0_18, %c0_19], %15 {strides = array<i32>} : memref<20x26x48xf32, #tpu.memory_space<vmem>>, vector<2x26x48xf32>,
    %cst_20 = arith.constant 0.000000e+00 : f32
    %18 = vector.broadcast %cst_20 : f32 to vector<20x2x48xf32>
    %c0_21 = arith.constant 0 : index
    %c6 = arith.constant 6 : index
    %c0_22 = arith.constant 0 : index
    %19 = vector.load %arg15[%c0_21, %c6, %c0_22] : memref<20x26x48xf32, #tpu.memory_space<vmem>>, vector<20x2x48xf32>
    tpu.vector_store %arg15[%c0_21, %c6, %c0_22], %18 {strides = array<i32>} : memref<20x26x48xf32, #tpu.memory_space<vmem>>, vector<20x2x48xf32>,
    %c0_23 = arith.constant 0 : index
    %c24 = arith.constant 24 : index
    %c0_24 = arith.constant 0 : index
    %20 = vector.load %arg15[%c0_23, %c24, %c0_24] : memref<20x26x48xf32, #tpu.memory_space<vmem>>, vector<20x2x48xf32>
    tpu.vector_store %arg15[%c0_23, %c24, %c0_24], %18 {strides = array<i32>} : memref<20x26x48xf32, #tpu.memory_space<vmem>>, vector<20x2x48xf32>,
    %cst_25 = arith.constant 0.000000e+00 : f32
    %21 = vector.broadcast %cst_25 : f32 to vector<1x25x64xf32>
    %c0_26 = arith.constant 0 : index
    %c0_27 = arith.constant 0 : index
    %c0_28 = arith.constant 0 : index
    %22 = vector.load %arg16[%c0_26, %c0_27, %c0_28] : memref<18x25x64xf32, #tpu.memory_space<vmem>>, vector<1x25x64xf32>
    tpu.vector_store %arg16[%c0_26, %c0_27, %c0_28], %21 {strides = array<i32>} : memref<18x25x64xf32, #tpu.memory_space<vmem>>, vector<1x25x64xf32>,
    %c17 = arith.constant 17 : index
    %c0_29 = arith.constant 0 : index
    %c0_30 = arith.constant 0 : index
    %23 = vector.load %arg16[%c17, %c0_29, %c0_30] : memref<18x25x64xf32, #tpu.memory_space<vmem>>, vector<1x25x64xf32>
    tpu.vector_store %arg16[%c17, %c0_29, %c0_30], %21 {strides = array<i32>} : memref<18x25x64xf32, #tpu.memory_space<vmem>>, vector<1x25x64xf32>,
    %cst_31 = arith.constant 0.000000e+00 : f32
    %24 = vector.broadcast %cst_31 : f32 to vector<18x1x64xf32>
    %c0_32 = arith.constant 0 : index
    %c7 = arith.constant 7 : index
    %c0_33 = arith.constant 0 : index
    %25 = vector.load %arg16[%c0_32, %c7, %c0_33] : memref<18x25x64xf32, #tpu.memory_space<vmem>>, vector<18x1x64xf32>
    tpu.vector_store %arg16[%c0_32, %c7, %c0_33], %24 {strides = array<i32>} : memref<18x25x64xf32, #tpu.memory_space<vmem>>, vector<18x1x64xf32>,
    %c0_34 = arith.constant 0 : index
    %c24_35 = arith.constant 24 : index
    %c0_36 = arith.constant 0 : index
    %26 = vector.load %arg16[%c0_34, %c24_35, %c0_36] : memref<18x25x64xf32, #tpu.memory_space<vmem>>, vector<18x1x64xf32>
    tpu.vector_store %arg16[%c0_34, %c24_35, %c0_36], %24 {strides = array<i32>} : memref<18x25x64xf32, #tpu.memory_space<vmem>>, vector<18x1x64xf32>,
    %cst_37 = arith.constant 0.000000e+00 : f32
    %27 = vector.broadcast %cst_37 : f32 to vector<1x25x96xf32>
    %c0_38 = arith.constant 0 : index
    %c0_39 = arith.constant 0 : index
    %c0_40 = arith.constant 0 : index
    %28 = vector.load %arg17[%c0_38, %c0_39, %c0_40] : memref<18x25x96xf32, #tpu.memory_space<vmem>>, vector<1x25x96xf32>
    tpu.vector_store %arg17[%c0_38, %c0_39, %c0_40], %27 {strides = array<i32>} : memref<18x25x96xf32, #tpu.memory_space<vmem>>, vector<1x25x96xf32>,
    %c17_41 = arith.constant 17 : index
    %c0_42 = arith.constant 0 : index
    %c0_43 = arith.constant 0 : index
    %29 = vector.load %arg17[%c17_41, %c0_42, %c0_43] : memref<18x25x96xf32, #tpu.memory_space<vmem>>, vector<1x25x96xf32>
    tpu.vector_store %arg17[%c17_41, %c0_42, %c0_43], %27 {strides = array<i32>} : memref<18x25x96xf32, #tpu.memory_space<vmem>>, vector<1x25x96xf32>,
    %cst_44 = arith.constant 0.000000e+00 : f32
    %30 = vector.broadcast %cst_44 : f32 to vector<18x1x96xf32>
    %c0_45 = arith.constant 0 : index
    %c7_46 = arith.constant 7 : index
    %c0_47 = arith.constant 0 : index
    %31 = vector.load %arg17[%c0_45, %c7_46, %c0_47] : memref<18x25x96xf32, #tpu.memory_space<vmem>>, vector<18x1x96xf32>
    tpu.vector_store %arg17[%c0_45, %c7_46, %c0_47], %30 {strides = array<i32>} : memref<18x25x96xf32, #tpu.memory_space<vmem>>, vector<18x1x96xf32>,
    %c0_48 = arith.constant 0 : index
    %c24_49 = arith.constant 24 : index
    %c0_50 = arith.constant 0 : index
    %32 = vector.load %arg17[%c0_48, %c24_49, %c0_50] : memref<18x25x96xf32, #tpu.memory_space<vmem>>, vector<18x1x96xf32>
    tpu.vector_store %arg17[%c0_48, %c24_49, %c0_50], %30 {strides = array<i32>} : memref<18x25x96xf32, #tpu.memory_space<vmem>>, vector<18x1x96xf32>,
    %cst_51 = arith.constant 0.000000e+00 : f32
    %33 = vector.broadcast %cst_51 : f32 to vector<1x25x4xf32>
    %c0_52 = arith.constant 0 : index
    %c0_53 = arith.constant 0 : index
    %c0_54 = arith.constant 0 : index
    %34 = vector.load %arg18[%c0_52, %c0_53, %c0_54] : memref<18x25x4xf32, #tpu.memory_space<vmem>>, vector<1x25x4xf32>
    tpu.vector_store %arg18[%c0_52, %c0_53, %c0_54], %33 {strides = array<i32>} : memref<18x25x4xf32, #tpu.memory_space<vmem>>, vector<1x25x4xf32>,
    %c17_55 = arith.constant 17 : index
    %c0_56 = arith.constant 0 : index
    %c0_57 = arith.constant 0 : index
    %35 = vector.load %arg18[%c17_55, %c0_56, %c0_57] : memref<18x25x4xf32, #tpu.memory_space<vmem>>, vector<1x25x4xf32>
    tpu.vector_store %arg18[%c17_55, %c0_56, %c0_57], %33 {strides = array<i32>} : memref<18x25x4xf32, #tpu.memory_space<vmem>>, vector<1x25x4xf32>,
    %cst_58 = arith.constant 0.000000e+00 : f32
    %36 = vector.broadcast %cst_58 : f32 to vector<18x1x4xf32>
    %c0_59 = arith.constant 0 : index
    %c7_60 = arith.constant 7 : index
    %c0_61 = arith.constant 0 : index
    %37 = vector.load %arg18[%c0_59, %c7_60, %c0_61] : memref<18x25x4xf32, #tpu.memory_space<vmem>>, vector<18x1x4xf32>
    tpu.vector_store %arg18[%c0_59, %c7_60, %c0_61], %36 {strides = array<i32>} : memref<18x25x4xf32, #tpu.memory_space<vmem>>, vector<18x1x4xf32>,
    %c0_62 = arith.constant 0 : index
    %c24_63 = arith.constant 24 : index
    %c0_64 = arith.constant 0 : index
    %38 = vector.load %arg18[%c0_62, %c24_63, %c0_64] : memref<18x25x4xf32, #tpu.memory_space<vmem>>, vector<18x1x4xf32>
    tpu.vector_store %arg18[%c0_62, %c24_63, %c0_64], %36 {strides = array<i32>} : memref<18x25x4xf32, #tpu.memory_space<vmem>>, vector<18x1x4xf32>,
    %39 = vector.shape_cast %10 : vector<256x48xf32> to vector<16x16x48xf32>
    %c2 = arith.constant 2 : index
    %c8 = arith.constant 8 : index
    %c0_65 = arith.constant 0 : index
    %40 = vector.load %arg15[%c2, %c8, %c0_65] : memref<20x26x48xf32, #tpu.memory_space<vmem>>, vector<16x16x48xf32>
    tpu.vector_store %arg15[%c2, %c8, %c0_65], %39 {strides = array<i32>} : memref<20x26x48xf32, #tpu.memory_space<vmem>>, vector<16x16x48xf32>,
    %41 = vector.shape_cast %14 : vector<256x64xf32> to vector<16x16x64xf32>
    %c1 = arith.constant 1 : index
    %c8_66 = arith.constant 8 : index
    %c0_67 = arith.constant 0 : index
    %42 = vector.load %arg16[%c1, %c8_66, %c0_67] : memref<18x25x64xf32, #tpu.memory_space<vmem>>, vector<16x16x64xf32>
    tpu.vector_store %arg16[%c1, %c8_66, %c0_67], %41 {strides = array<i32>} : memref<18x25x64xf32, #tpu.memory_space<vmem>>, vector<16x16x64xf32>,
    %c1_68 = arith.constant 1 : index
    %c8_69 = arith.constant 8 : index
    %c0_70 = arith.constant 0 : index
    %43 = vector.load %arg18[%c1_68, %c8_69, %c0_70] : memref<18x25x4xf32, #tpu.memory_space<vmem>>, vector<16x16x4xf32>
    tpu.vector_store %arg18[%c1_68, %c8_69, %c0_70], %1 {strides = array<i32>} : memref<18x25x4xf32, #tpu.memory_space<vmem>>, vector<16x16x4xf32>,
    %c0_71 = arith.constant 0 : index
    %c6_72 = arith.constant 6 : index
    %c0_73 = arith.constant 0 : index
    %44 = vector.load %arg15[%c0_71, %c6_72, %c0_73] : memref<20x26x48xf32, #tpu.memory_space<vmem>>, vector<16x16x48xf32>
    %45 = vector.shape_cast %44 : vector<16x16x48xf32> to vector<256x48xf32>
    %c0_74 = arith.constant 0 : index
    %c7_75 = arith.constant 7 : index
    %c0_76 = arith.constant 0 : index
    %46 = vector.load %arg15[%c0_74, %c7_75, %c0_76] : memref<20x26x48xf32, #tpu.memory_space<vmem>>, vector<16x16x48xf32>
    %47 = vector.shape_cast %46 : vector<16x16x48xf32> to vector<256x48xf32>
    %c0_77 = arith.constant 0 : index
    %c8_78 = arith.constant 8 : index
    %c0_79 = arith.constant 0 : index
    %48 = vector.load %arg15[%c0_77, %c8_78, %c0_79] : memref<20x26x48xf32, #tpu.memory_space<vmem>>, vector<16x16x48xf32>
    %49 = vector.shape_cast %48 : vector<16x16x48xf32> to vector<256x48xf32>
    %c0_80 = arith.constant 0 : index
    %c9 = arith.constant 9 : index
    %c0_81 = arith.constant 0 : index
    %50 = vector.load %arg15[%c0_80, %c9, %c0_81] : memref<20x26x48xf32, #tpu.memory_space<vmem>>, vector<16x16x48xf32>
    %51 = vector.shape_cast %50 : vector<16x16x48xf32> to vector<256x48xf32>
    %c0_82 = arith.constant 0 : index
    %c10 = arith.constant 10 : index
    %c0_83 = arith.constant 0 : index
    %52 = vector.load %arg15[%c0_82, %c10, %c0_83] : memref<20x26x48xf32, #tpu.memory_space<vmem>>, vector<16x16x48xf32>
    %53 = vector.shape_cast %52 : vector<16x16x48xf32> to vector<256x48xf32>
    %c1_84 = arith.constant 1 : index
    %c6_85 = arith.constant 6 : index
    %c0_86 = arith.constant 0 : index
    %54 = vector.load %arg15[%c1_84, %c6_85, %c0_86] : memref<20x26x48xf32, #tpu.memory_space<vmem>>, vector<16x16x48xf32>
    %55 = vector.shape_cast %54 : vector<16x16x48xf32> to vector<256x48xf32>
    %c1_87 = arith.constant 1 : index
    %c7_88 = arith.constant 7 : index
    %c0_89 = arith.constant 0 : index
    %56 = vector.load %arg15[%c1_87, %c7_88, %c0_89] : memref<20x26x48xf32, #tpu.memory_space<vmem>>, vector<16x16x48xf32>
    %57 = vector.shape_cast %56 : vector<16x16x48xf32> to vector<256x48xf32>
    %c1_90 = arith.constant 1 : index
    %c8_91 = arith.constant 8 : index
    %c0_92 = arith.constant 0 : index
    %58 = vector.load %arg15[%c1_90, %c8_91, %c0_92] : memref<20x26x48xf32, #tpu.memory_space<vmem>>, vector<16x16x48xf32>
    %59 = vector.shape_cast %58 : vector<16x16x48xf32> to vector<256x48xf32>
    %c1_93 = arith.constant 1 : index
    %c9_94 = arith.constant 9 : index
    %c0_95 = arith.constant 0 : index
    %60 = vector.load %arg15[%c1_93, %c9_94, %c0_95] : memref<20x26x48xf32, #tpu.memory_space<vmem>>, vector<16x16x48xf32>
    %61 = vector.shape_cast %60 : vector<16x16x48xf32> to vector<256x48xf32>
    %c1_96 = arith.constant 1 : index
    %c10_97 = arith.constant 10 : index
    %c0_98 = arith.constant 0 : index
    %62 = vector.load %arg15[%c1_96, %c10_97, %c0_98] : memref<20x26x48xf32, #tpu.memory_space<vmem>>, vector<16x16x48xf32>
    %63 = vector.shape_cast %62 : vector<16x16x48xf32> to vector<256x48xf32>
    %c2_99 = arith.constant 2 : index
    %c6_100 = arith.constant 6 : index
    %c0_101 = arith.constant 0 : index
    %64 = vector.load %arg15[%c2_99, %c6_100, %c0_101] : memref<20x26x48xf32, #tpu.memory_space<vmem>>, vector<16x16x48xf32>
    %65 = vector.shape_cast %64 : vector<16x16x48xf32> to vector<256x48xf32>
    %c2_102 = arith.constant 2 : index
    %c7_103 = arith.constant 7 : index
    %c0_104 = arith.constant 0 : index
    %66 = vector.load %arg15[%c2_102, %c7_103, %c0_104] : memref<20x26x48xf32, #tpu.memory_space<vmem>>, vector<16x16x48xf32>
    %67 = vector.shape_cast %66 : vector<16x16x48xf32> to vector<256x48xf32>
    %c2_105 = arith.constant 2 : index
    %c8_106 = arith.constant 8 : index
    %c0_107 = arith.constant 0 : index
    %68 = vector.load %arg15[%c2_105, %c8_106, %c0_107] : memref<20x26x48xf32, #tpu.memory_space<vmem>>, vector<16x16x48xf32>
    %69 = vector.shape_cast %68 : vector<16x16x48xf32> to vector<256x48xf32>
    %c2_108 = arith.constant 2 : index
    %c9_109 = arith.constant 9 : index
    %c0_110 = arith.constant 0 : index
    %70 = vector.load %arg15[%c2_108, %c9_109, %c0_110] : memref<20x26x48xf32, #tpu.memory_space<vmem>>, vector<16x16x48xf32>
    %71 = vector.shape_cast %70 : vector<16x16x48xf32> to vector<256x48xf32>
    %c2_111 = arith.constant 2 : index
    %c10_112 = arith.constant 10 : index
    %c0_113 = arith.constant 0 : index
    %72 = vector.load %arg15[%c2_111, %c10_112, %c0_113] : memref<20x26x48xf32, #tpu.memory_space<vmem>>, vector<16x16x48xf32>
    %73 = vector.shape_cast %72 : vector<16x16x48xf32> to vector<256x48xf32>
    %c3 = arith.constant 3 : index
    %c6_114 = arith.constant 6 : index
    %c0_115 = arith.constant 0 : index
    %74 = vector.load %arg15[%c3, %c6_114, %c0_115] : memref<20x26x48xf32, #tpu.memory_space<vmem>>, vector<16x16x48xf32>
    %75 = vector.shape_cast %74 : vector<16x16x48xf32> to vector<256x48xf32>
    %c3_116 = arith.constant 3 : index
    %c7_117 = arith.constant 7 : index
    %c0_118 = arith.constant 0 : index
    %76 = vector.load %arg15[%c3_116, %c7_117, %c0_118] : memref<20x26x48xf32, #tpu.memory_space<vmem>>, vector<16x16x48xf32>
    %77 = vector.shape_cast %76 : vector<16x16x48xf32> to vector<256x48xf32>
    %c3_119 = arith.constant 3 : index
    %c8_120 = arith.constant 8 : index
    %c0_121 = arith.constant 0 : index
    %78 = vector.load %arg15[%c3_119, %c8_120, %c0_121] : memref<20x26x48xf32, #tpu.memory_space<vmem>>, vector<16x16x48xf32>
    %79 = vector.shape_cast %78 : vector<16x16x48xf32> to vector<256x48xf32>
    %c3_122 = arith.constant 3 : index
    %c9_123 = arith.constant 9 : index
    %c0_124 = arith.constant 0 : index
    %80 = vector.load %arg15[%c3_122, %c9_123, %c0_124] : memref<20x26x48xf32, #tpu.memory_space<vmem>>, vector<16x16x48xf32>
    %81 = vector.shape_cast %80 : vector<16x16x48xf32> to vector<256x48xf32>
    %c3_125 = arith.constant 3 : index
    %c10_126 = arith.constant 10 : index
    %c0_127 = arith.constant 0 : index
    %82 = vector.load %arg15[%c3_125, %c10_126, %c0_127] : memref<20x26x48xf32, #tpu.memory_space<vmem>>, vector<16x16x48xf32>
    %83 = vector.shape_cast %82 : vector<16x16x48xf32> to vector<256x48xf32>
    %c4 = arith.constant 4 : index
    %c6_128 = arith.constant 6 : index
    %c0_129 = arith.constant 0 : index
    %84 = vector.load %arg15[%c4, %c6_128, %c0_129] : memref<20x26x48xf32, #tpu.memory_space<vmem>>, vector<16x16x48xf32>
    %85 = vector.shape_cast %84 : vector<16x16x48xf32> to vector<256x48xf32>
    %c4_130 = arith.constant 4 : index
    %c7_131 = arith.constant 7 : index
    %c0_132 = arith.constant 0 : index
    %86 = vector.load %arg15[%c4_130, %c7_131, %c0_132] : memref<20x26x48xf32, #tpu.memory_space<vmem>>, vector<16x16x48xf32>
    %87 = vector.shape_cast %86 : vector<16x16x48xf32> to vector<256x48xf32>
    %c4_133 = arith.constant 4 : index
    %c8_134 = arith.constant 8 : index
    %c0_135 = arith.constant 0 : index
    %88 = vector.load %arg15[%c4_133, %c8_134, %c0_135] : memref<20x26x48xf32, #tpu.memory_space<vmem>>, vector<16x16x48xf32>
    %89 = vector.shape_cast %88 : vector<16x16x48xf32> to vector<256x48xf32>
    %c4_136 = arith.constant 4 : index
    %c9_137 = arith.constant 9 : index
    %c0_138 = arith.constant 0 : index
    %90 = vector.load %arg15[%c4_136, %c9_137, %c0_138] : memref<20x26x48xf32, #tpu.memory_space<vmem>>, vector<16x16x48xf32>
    %91 = vector.shape_cast %90 : vector<16x16x48xf32> to vector<256x48xf32>
    %c4_139 = arith.constant 4 : index
    %c10_140 = arith.constant 10 : index
    %c0_141 = arith.constant 0 : index
    %92 = vector.load %arg15[%c4_139, %c10_140, %c0_141] : memref<20x26x48xf32, #tpu.memory_space<vmem>>, vector<16x16x48xf32>
    %93 = vector.shape_cast %92 : vector<16x16x48xf32> to vector<256x48xf32>
    %94 = tpu.concatenate %45, %47, %49, %51, %53, %55, %57, %59, %61, %63, %65, %67, %69, %71, %73, %75 in 1 : vector<256x48xf32>, vector<256x48xf32>, vector<256x48xf32>, vector<256x48xf32>, vector<256x48xf32>, vector<256x48xf32>, vector<256x48xf32>, vector<256x48xf32>, vector<256x48xf32>, vector<256x48xf32>, vector<256x48xf32>, vector<256x48xf32>, vector<256x48xf32>, vector<256x48xf32>, vector<256x48xf32>, vector<256x48xf32> -> vector<256x768xf32>
    %95 = tpu.concatenate %77, %79, %81, %83, %85, %87, %89, %91, %93 in 1 : vector<256x48xf32>, vector<256x48xf32>, vector<256x48xf32>, vector<256x48xf32>, vector<256x48xf32>, vector<256x48xf32>, vector<256x48xf32>, vector<256x48xf32>, vector<256x48xf32> -> vector<256x432xf32>
    %96 = tpu.concatenate %94, %95 in 1 : vector<256x768xf32>, vector<256x432xf32> -> vector<256x1200xf32>
    %c0_142 = arith.constant 0 : index
    %c0_143 = arith.constant 0 : index
    %97 = vector.load %arg5[%c0_142, %c0_143] : memref<1200x64xf32, #tpu.memory_space<vmem>>, vector<1200x64xf32>
    %cst_144 = arith.constant dense<0.000000e+00> : vector<256x64xf32>
    %98 = tpu.matmul %96, %97, %cst_144 {dimension_numbers = #tpu.dot_dimension_numbers<[1], [0], [0], [1], [0, 0, 1, 1], [], []>} : vector<256x1200xf32>, vector<1200x64xf32>, vector<256x64xf32> -> vector<256x64xf32>
    %cst_145 = arith.constant 0.000000e+00 : f32
    %99 = vector.broadcast %cst_145 : f32 to vector<256x64xf32>
    %100 = arith.maximumf %98, %99 : vector<256x64xf32>
    %c0_146 = arith.constant 0 : index
    %c7_147 = arith.constant 7 : index
    %c0_148 = arith.constant 0 : index
    %101 = vector.load %arg16[%c0_146, %c7_147, %c0_148] : memref<18x25x64xf32, #tpu.memory_space<vmem>>, vector<16x16x64xf32>
    %102 = vector.shape_cast %101 : vector<16x16x64xf32> to vector<256x64xf32>
    %c0_149 = arith.constant 0 : index
    %c8_150 = arith.constant 8 : index
    %c0_151 = arith.constant 0 : index
    %103 = vector.load %arg16[%c0_149, %c8_150, %c0_151] : memref<18x25x64xf32, #tpu.memory_space<vmem>>, vector<16x16x64xf32>
    %104 = vector.shape_cast %103 : vector<16x16x64xf32> to vector<256x64xf32>
    %c0_152 = arith.constant 0 : index
    %c9_153 = arith.constant 9 : index
    %c0_154 = arith.constant 0 : index
    %105 = vector.load %arg16[%c0_152, %c9_153, %c0_154] : memref<18x25x64xf32, #tpu.memory_space<vmem>>, vector<16x16x64xf32>
    %106 = vector.shape_cast %105 : vector<16x16x64xf32> to vector<256x64xf32>
    %c1_155 = arith.constant 1 : index
    %c7_156 = arith.constant 7 : index
    %c0_157 = arith.constant 0 : index
    %107 = vector.load %arg16[%c1_155, %c7_156, %c0_157] : memref<18x25x64xf32, #tpu.memory_space<vmem>>, vector<16x16x64xf32>
    %108 = vector.shape_cast %107 : vector<16x16x64xf32> to vector<256x64xf32>
    %c1_158 = arith.constant 1 : index
    %c8_159 = arith.constant 8 : index
    %c0_160 = arith.constant 0 : index
    %109 = vector.load %arg16[%c1_158, %c8_159, %c0_160] : memref<18x25x64xf32, #tpu.memory_space<vmem>>, vector<16x16x64xf32>
    %110 = vector.shape_cast %109 : vector<16x16x64xf32> to vector<256x64xf32>
    %c1_161 = arith.constant 1 : index
    %c9_162 = arith.constant 9 : index
    %c0_163 = arith.constant 0 : index
    %111 = vector.load %arg16[%c1_161, %c9_162, %c0_163] : memref<18x25x64xf32, #tpu.memory_space<vmem>>, vector<16x16x64xf32>
    %112 = vector.shape_cast %111 : vector<16x16x64xf32> to vector<256x64xf32>
    %c2_164 = arith.constant 2 : index
    %c7_165 = arith.constant 7 : index
    %c0_166 = arith.constant 0 : index
    %113 = vector.load %arg16[%c2_164, %c7_165, %c0_166] : memref<18x25x64xf32, #tpu.memory_space<vmem>>, vector<16x16x64xf32>
    %114 = vector.shape_cast %113 : vector<16x16x64xf32> to vector<256x64xf32>
    %c2_167 = arith.constant 2 : index
    %c8_168 = arith.constant 8 : index
    %c0_169 = arith.constant 0 : index
    %115 = vector.load %arg16[%c2_167, %c8_168, %c0_169] : memref<18x25x64xf32, #tpu.memory_space<vmem>>, vector<16x16x64xf32>
    %116 = vector.shape_cast %115 : vector<16x16x64xf32> to vector<256x64xf32>
    %c2_170 = arith.constant 2 : index
    %c9_171 = arith.constant 9 : index
    %c0_172 = arith.constant 0 : index
    %117 = vector.load %arg16[%c2_170, %c9_171, %c0_172] : memref<18x25x64xf32, #tpu.memory_space<vmem>>, vector<16x16x64xf32>
    %118 = vector.shape_cast %117 : vector<16x16x64xf32> to vector<256x64xf32>
    %119 = tpu.concatenate %102, %104, %106, %108, %110, %112, %114, %116, %118 in 1 : vector<256x64xf32>, vector<256x64xf32>, vector<256x64xf32>, vector<256x64xf32>, vector<256x64xf32>, vector<256x64xf32>, vector<256x64xf32>, vector<256x64xf32>, vector<256x64xf32> -> vector<256x576xf32>
    %c0_173 = arith.constant 0 : index
    %c0_174 = arith.constant 0 : index
    %120 = vector.load %arg6[%c0_173, %c0_174] : memref<576x96xf32, #tpu.memory_space<vmem>>, vector<576x96xf32>
    %cst_175 = arith.constant dense<0.000000e+00> : vector<256x96xf32>
    %121 = tpu.matmul %119, %120, %cst_175 {dimension_numbers = #tpu.dot_dimension_numbers<[1], [0], [0], [1], [0, 0, 1, 1], [], []>} : vector<256x576xf32>, vector<576x96xf32>, vector<256x96xf32> -> vector<256x96xf32>
    %cst_176 = arith.constant 0.000000e+00 : f32
    %122 = vector.broadcast %cst_176 : f32 to vector<256x96xf32>
    %123 = arith.maximumf %121, %122 : vector<256x96xf32>
    %124 = vector.shape_cast %123 : vector<256x96xf32> to vector<16x16x96xf32>
    %c1_177 = arith.constant 1 : index
    %c8_178 = arith.constant 8 : index
    %c0_179 = arith.constant 0 : index
    %125 = vector.load %arg17[%c1_177, %c8_178, %c0_179] : memref<18x25x96xf32, #tpu.memory_space<vmem>>, vector<16x16x96xf32>
    tpu.vector_store %arg17[%c1_177, %c8_178, %c0_179], %124 {strides = array<i32>} : memref<18x25x96xf32, #tpu.memory_space<vmem>>, vector<16x16x96xf32>,
    %c0_180 = arith.constant 0 : index
    %c7_181 = arith.constant 7 : index
    %c0_182 = arith.constant 0 : index
    %126 = vector.load %arg17[%c0_180, %c7_181, %c0_182] : memref<18x25x96xf32, #tpu.memory_space<vmem>>, vector<16x16x96xf32>
    %127 = vector.shape_cast %126 : vector<16x16x96xf32> to vector<256x96xf32>
    %c0_183 = arith.constant 0 : index
    %c8_184 = arith.constant 8 : index
    %c0_185 = arith.constant 0 : index
    %128 = vector.load %arg17[%c0_183, %c8_184, %c0_185] : memref<18x25x96xf32, #tpu.memory_space<vmem>>, vector<16x16x96xf32>
    %129 = vector.shape_cast %128 : vector<16x16x96xf32> to vector<256x96xf32>
    %c0_186 = arith.constant 0 : index
    %c9_187 = arith.constant 9 : index
    %c0_188 = arith.constant 0 : index
    %130 = vector.load %arg17[%c0_186, %c9_187, %c0_188] : memref<18x25x96xf32, #tpu.memory_space<vmem>>, vector<16x16x96xf32>
    %131 = vector.shape_cast %130 : vector<16x16x96xf32> to vector<256x96xf32>
    %c1_189 = arith.constant 1 : index
    %c7_190 = arith.constant 7 : index
    %c0_191 = arith.constant 0 : index
    %132 = vector.load %arg17[%c1_189, %c7_190, %c0_191] : memref<18x25x96xf32, #tpu.memory_space<vmem>>, vector<16x16x96xf32>
    %133 = vector.shape_cast %132 : vector<16x16x96xf32> to vector<256x96xf32>
    %c1_192 = arith.constant 1 : index
    %c8_193 = arith.constant 8 : index
    %c0_194 = arith.constant 0 : index
    %134 = vector.load %arg17[%c1_192, %c8_193, %c0_194] : memref<18x25x96xf32, #tpu.memory_space<vmem>>, vector<16x16x96xf32>
    %135 = vector.shape_cast %134 : vector<16x16x96xf32> to vector<256x96xf32>
    %c1_195 = arith.constant 1 : index
    %c9_196 = arith.constant 9 : index
    %c0_197 = arith.constant 0 : index
    %136 = vector.load %arg17[%c1_195, %c9_196, %c0_197] : memref<18x25x96xf32, #tpu.memory_space<vmem>>, vector<16x16x96xf32>
    %137 = vector.shape_cast %136 : vector<16x16x96xf32> to vector<256x96xf32>
    %c2_198 = arith.constant 2 : index
    %c7_199 = arith.constant 7 : index
    %c0_200 = arith.constant 0 : index
    %138 = vector.load %arg17[%c2_198, %c7_199, %c0_200] : memref<18x25x96xf32, #tpu.memory_space<vmem>>, vector<16x16x96xf32>
    %139 = vector.shape_cast %138 : vector<16x16x96xf32> to vector<256x96xf32>
    %c2_201 = arith.constant 2 : index
    %c8_202 = arith.constant 8 : index
    %c0_203 = arith.constant 0 : index
    %140 = vector.load %arg17[%c2_201, %c8_202, %c0_203] : memref<18x25x96xf32, #tpu.memory_space<vmem>>, vector<16x16x96xf32>
    %141 = vector.shape_cast %140 : vector<16x16x96xf32> to vector<256x96xf32>
    %c2_204 = arith.constant 2 : index
    %c9_205 = arith.constant 9 : index
    %c0_206 = arith.constant 0 : index
    %142 = vector.load %arg17[%c2_204, %c9_205, %c0_206] : memref<18x25x96xf32, #tpu.memory_space<vmem>>, vector<16x16x96xf32>
    %143 = vector.shape_cast %142 : vector<16x16x96xf32> to vector<256x96xf32>
    %144 = tpu.concatenate %127, %129, %131, %133, %135, %137, %139, %141, %143 in 1 : vector<256x96xf32>, vector<256x96xf32>, vector<256x96xf32>, vector<256x96xf32>, vector<256x96xf32>, vector<256x96xf32>, vector<256x96xf32>, vector<256x96xf32>, vector<256x96xf32> -> vector<256x864xf32>
    %c0_207 = arith.constant 0 : index
    %c0_208 = arith.constant 0 : index
    %145 = vector.load %arg7[%c0_207, %c0_208] : memref<864x96xf32, #tpu.memory_space<vmem>>, vector<864x96xf32>
    %cst_209 = arith.constant dense<0.000000e+00> : vector<256x96xf32>
    %146 = tpu.matmul %144, %145, %cst_209 {dimension_numbers = #tpu.dot_dimension_numbers<[1], [0], [0], [1], [0, 0, 1, 1], [], []>} : vector<256x864xf32>, vector<864x96xf32>, vector<256x96xf32> -> vector<256x96xf32>
    %cst_210 = arith.constant 0.000000e+00 : f32
    %147 = vector.broadcast %cst_210 : f32 to vector<256x96xf32>
    %148 = arith.maximumf %146, %147 : vector<256x96xf32>
    %cst_211 = arith.constant 0.000000e+00 : f32
    %149 = vector.broadcast %cst_211 : f32 to vector<16x16x4xf32>
    %c0_212 = arith.constant 0 : index
    %c7_213 = arith.constant 7 : index
    %c0_214 = arith.constant 0 : index
    %150 = vector.load %arg18[%c0_212, %c7_213, %c0_214] : memref<18x25x4xf32, #tpu.memory_space<vmem>>, vector<16x16x4xf32>
    %151 = arith.addf %149, %150 : vector<16x16x4xf32>
    %c0_215 = arith.constant 0 : index
    %c8_216 = arith.constant 8 : index
    %c0_217 = arith.constant 0 : index
    %152 = vector.load %arg18[%c0_215, %c8_216, %c0_217] : memref<18x25x4xf32, #tpu.memory_space<vmem>>, vector<16x16x4xf32>
    %153 = arith.addf %151, %152 : vector<16x16x4xf32>
    %c0_218 = arith.constant 0 : index
    %c9_219 = arith.constant 9 : index
    %c0_220 = arith.constant 0 : index
    %154 = vector.load %arg18[%c0_218, %c9_219, %c0_220] : memref<18x25x4xf32, #tpu.memory_space<vmem>>, vector<16x16x4xf32>
    %155 = arith.addf %153, %154 : vector<16x16x4xf32>
    %c1_221 = arith.constant 1 : index
    %c7_222 = arith.constant 7 : index
    %c0_223 = arith.constant 0 : index
    %156 = vector.load %arg18[%c1_221, %c7_222, %c0_223] : memref<18x25x4xf32, #tpu.memory_space<vmem>>, vector<16x16x4xf32>
    %157 = arith.addf %155, %156 : vector<16x16x4xf32>
    %c1_224 = arith.constant 1 : index
    %c8_225 = arith.constant 8 : index
    %c0_226 = arith.constant 0 : index
    %158 = vector.load %arg18[%c1_224, %c8_225, %c0_226] : memref<18x25x4xf32, #tpu.memory_space<vmem>>, vector<16x16x4xf32>
    %159 = arith.addf %157, %158 : vector<16x16x4xf32>
    %c1_227 = arith.constant 1 : index
    %c9_228 = arith.constant 9 : index
    %c0_229 = arith.constant 0 : index
    %160 = vector.load %arg18[%c1_227, %c9_228, %c0_229] : memref<18x25x4xf32, #tpu.memory_space<vmem>>, vector<16x16x4xf32>
    %161 = arith.addf %159, %160 : vector<16x16x4xf32>
    %c2_230 = arith.constant 2 : index
    %c7_231 = arith.constant 7 : index
    %c0_232 = arith.constant 0 : index
    %162 = vector.load %arg18[%c2_230, %c7_231, %c0_232] : memref<18x25x4xf32, #tpu.memory_space<vmem>>, vector<16x16x4xf32>
    %163 = arith.addf %161, %162 : vector<16x16x4xf32>
    %c2_233 = arith.constant 2 : index
    %c8_234 = arith.constant 8 : index
    %c0_235 = arith.constant 0 : index
    %164 = vector.load %arg18[%c2_233, %c8_234, %c0_235] : memref<18x25x4xf32, #tpu.memory_space<vmem>>, vector<16x16x4xf32>
    %165 = arith.addf %163, %164 : vector<16x16x4xf32>
    %c2_236 = arith.constant 2 : index
    %c9_237 = arith.constant 9 : index
    %c0_238 = arith.constant 0 : index
    %166 = vector.load %arg18[%c2_236, %c9_237, %c0_238] : memref<18x25x4xf32, #tpu.memory_space<vmem>>, vector<16x16x4xf32>
    %167 = arith.addf %165, %166 : vector<16x16x4xf32>
    %cst_239 = arith.constant 0.111111112 : f32
    %168 = vector.broadcast %cst_239 : f32 to vector<16x16x4xf32>
    %169 = arith.mulf %167, %168 : vector<16x16x4xf32>
    %170 = vector.shape_cast %169 : vector<16x16x4xf32> to vector<256x4xf32>
    %c0_240 = arith.constant 0 : index
    %c0_241 = arith.constant 0 : index
    %171 = vector.load %arg8[%c0_240, %c0_241] : memref<1x4xf32, #tpu.memory_space<vmem>>, vector<1x4xf32>
    %cst_242 = arith.constant dense<0.000000e+00> : vector<1x256xf32>
    %172 = tpu.matmul %171, %170, %cst_242 {dimension_numbers = #tpu.dot_dimension_numbers<[1], [1], [0], [0], [0, 0, 1, 0], [], []>} : vector<1x4xf32>, vector<256x4xf32>, vector<1x256xf32> -> vector<1x256xf32>
    %cst_243 = arith.constant 0.000000e+00 : f32
    %173 = vector.broadcast %cst_243 : f32 to vector<1x256xf32>
    %174 = arith.maximumf %172, %173 : vector<1x256xf32>
    %c0_244 = arith.constant 0 : index
    %c0_245 = arith.constant 0 : index
    %175 = vector.load %arg9[%c0_244, %c0_245] : memref<1x64xf32, #tpu.memory_space<vmem>>, vector<1x64xf32>
    %cst_246 = arith.constant dense<0.000000e+00> : vector<1x256xf32>
    %176 = tpu.matmul %175, %6, %cst_246 {dimension_numbers = #tpu.dot_dimension_numbers<[1], [1], [0], [0], [0, 0, 1, 0], [], []>} : vector<1x64xf32>, vector<256x64xf32>, vector<1x256xf32> -> vector<1x256xf32>
    %c0_247 = arith.constant 0 : index
    %c0_248 = arith.constant 0 : index
    %177 = vector.load %arg10[%c0_247, %c0_248] : memref<1x64xf32, #tpu.memory_space<vmem>>, vector<1x64xf32>
    %cst_249 = arith.constant dense<0.000000e+00> : vector<1x256xf32>
    %178 = tpu.matmul %177, %100, %cst_249 {dimension_numbers = #tpu.dot_dimension_numbers<[1], [1], [0], [0], [0, 0, 1, 0], [], []>} : vector<1x64xf32>, vector<256x64xf32>, vector<1x256xf32> -> vector<1x256xf32>
    %179 = arith.addf %176, %178 : vector<1x256xf32>
    %c0_250 = arith.constant 0 : index
    %c0_251 = arith.constant 0 : index
    %180 = vector.load %arg11[%c0_250, %c0_251] : memref<1x96xf32, #tpu.memory_space<vmem>>, vector<1x96xf32>
    %cst_252 = arith.constant dense<0.000000e+00> : vector<1x256xf32>
    %181 = tpu.matmul %180, %148, %cst_252 {dimension_numbers = #tpu.dot_dimension_numbers<[1], [1], [0], [0], [0, 0, 1, 0], [], []>} : vector<1x96xf32>, vector<256x96xf32>, vector<1x256xf32> -> vector<1x256xf32>
    %182 = arith.addf %179, %181 : vector<1x256xf32>
    %c0_253 = arith.constant 0 : index
    %c0_254 = arith.constant 0 : index
    %183 = vector.load %arg12[%c0_253, %c0_254] : memref<1x1xf32, #tpu.memory_space<vmem>>, vector<1x1xf32>
    %184 = vector.broadcast %183 : vector<1x1xf32> to vector<1x256xf32>
    %185 = arith.mulf %174, %184 : vector<1x256xf32>
    %186 = arith.addf %182, %185 : vector<1x256xf32>
    %c0_255 = arith.constant 0 : index
    %c0_256 = arith.constant 0 : index
    %187 = vector.load %arg13[%c0_255, %c0_256] : memref<1x1xf32, #tpu.memory_space<vmem>>, vector<1x1xf32>
    %188 = vector.broadcast %187 : vector<1x1xf32> to vector<1x256xf32>
    %189 = arith.addf %186, %188 : vector<1x256xf32>
    %190 = vector.shape_cast %189 : vector<1x256xf32> to vector<1x1x256xf32>
    %c0_257 = arith.constant 0 : index
    %c0_258 = arith.constant 0 : index
    %c0_259 = arith.constant 0 : index
    %191 = vector.load %arg14[%c0_257, %c0_258, %c0_259] : memref<1x1x256xf32, #tpu.memory_space<vmem>>, vector<1x1x256xf32>
    tpu.vector_store %arg14[%c0_257, %c0_258, %c0_259], %190 {strides = array<i32>} : memref<1x1x256xf32, #tpu.memory_space<vmem>>, vector<1x1x256xf32>,
    return
  }
  func.func @transform_0(%arg0: i32) -> (i32, i32, i32, i32) {
    %c0_i32 = arith.constant 0 : i32
    %c0_i32_0 = arith.constant 0 : i32
    %c0_i32_1 = arith.constant 0 : i32
    %c0_i32_2 = arith.constant 0 : i32
    return %arg0, %c0_i32, %c0_i32_0, %c0_i32_1 : i32, i32, i32, i32
  }
  func.func @transform_1(%arg0: i32) -> (i32, i32) {
    %c0_i32 = arith.constant 0 : i32
    %c0_i32_0 = arith.constant 0 : i32
    %c0_i32_1 = arith.constant 0 : i32
    return %c0_i32, %c0_i32_0 : i32, i32
  }
  func.func @transform_2(%arg0: i32) -> (i32, i32) {
    %c0_i32 = arith.constant 0 : i32
    %c0_i32_0 = arith.constant 0 : i32
    %c0_i32_1 = arith.constant 0 : i32
    return %c0_i32, %c0_i32_0 : i32, i32
  }
  func.func @transform_3(%arg0: i32) -> (i32, i32) {
    %c0_i32 = arith.constant 0 : i32
    %c0_i32_0 = arith.constant 0 : i32
    %c0_i32_1 = arith.constant 0 : i32
    return %c0_i32, %c0_i32_0 : i32, i32
  }
  func.func @transform_4(%arg0: i32) -> (i32, i32) {
    %c0_i32 = arith.constant 0 : i32
    %c0_i32_0 = arith.constant 0 : i32
    %c0_i32_1 = arith.constant 0 : i32
    return %c0_i32, %c0_i32_0 : i32, i32
  }
  func.func @transform_5(%arg0: i32) -> (i32, i32) {
    %c0_i32 = arith.constant 0 : i32
    %c0_i32_0 = arith.constant 0 : i32
    %c0_i32_1 = arith.constant 0 : i32
    return %c0_i32, %c0_i32_0 : i32, i32
  }
  func.func @transform_6(%arg0: i32) -> (i32, i32) {
    %c0_i32 = arith.constant 0 : i32
    %c0_i32_0 = arith.constant 0 : i32
    %c0_i32_1 = arith.constant 0 : i32
    return %c0_i32, %c0_i32_0 : i32, i32
  }
  func.func @transform_7(%arg0: i32) -> (i32, i32) {
    %c0_i32 = arith.constant 0 : i32
    %c0_i32_0 = arith.constant 0 : i32
    %c0_i32_1 = arith.constant 0 : i32
    return %c0_i32, %c0_i32_0 : i32, i32
  }
  func.func @transform_8(%arg0: i32) -> (i32, i32) {
    %c0_i32 = arith.constant 0 : i32
    %c0_i32_0 = arith.constant 0 : i32
    %c0_i32_1 = arith.constant 0 : i32
    return %c0_i32, %c0_i32_0 : i32, i32
  }
  func.func @transform_9(%arg0: i32) -> (i32, i32) {
    %c0_i32 = arith.constant 0 : i32
    %c0_i32_0 = arith.constant 0 : i32
    %c0_i32_1 = arith.constant 0 : i32
    return %c0_i32, %c0_i32_0 : i32, i32
  }
  func.func @transform_10(%arg0: i32) -> (i32, i32) {
    %c0_i32 = arith.constant 0 : i32
    %c0_i32_0 = arith.constant 0 : i32
    %c0_i32_1 = arith.constant 0 : i32
    return %c0_i32, %c0_i32_0 : i32, i32
  }
  func.func @transform_11(%arg0: i32) -> (i32, i32) {
    %c0_i32 = arith.constant 0 : i32
    %c0_i32_0 = arith.constant 0 : i32
    %c0_i32_1 = arith.constant 0 : i32
    return %c0_i32, %c0_i32_0 : i32, i32
  }
  func.func @transform_12(%arg0: i32) -> (i32, i32) {
    %c0_i32 = arith.constant 0 : i32
    %c0_i32_0 = arith.constant 0 : i32
    %c0_i32_1 = arith.constant 0 : i32
    return %c0_i32, %c0_i32_0 : i32, i32
  }
  func.func @transform_13(%arg0: i32) -> (i32, i32, i32) {
    %c0_i32 = arith.constant 0 : i32
    %c0_i32_0 = arith.constant 0 : i32
    %c0_i32_1 = arith.constant 0 : i32
    return %arg0, %c0_i32, %c0_i32_0 : i32, i32, i32
  }
}

</mosaic_0001>

<llo_original>
// kernel: inception_module1_forward.1
$region0: #{inception_module1_forward.1}
  #allocation0 [shape = 'u32[]', space=smem, size = 0x4, offset = 0x4, fixed_abs, tag = 'smem constant byte address 0x4 - core index']
  #allocation1 [shape = 'u32[72,128]{1,0:T(1,128)}', space=vmem, size = 0x9000, scoped, tag = 'internal scratch']
  #allocation2 [shape = 'f32[20,26,48]{2,1,0:T(8,128)}', space=vmem, size = 0x50000, scoped, tag = 'scratch operand']
  #allocation3 [shape = 'f32[18,25,64]{2,1,0:T(8,128)}', space=vmem, size = 0x48000, scoped, tag = 'scratch operand']
  #allocation4 [shape = 'f32[18,25,96]{2,1,0:T(8,128)}', space=vmem, size = 0x48000, scoped, tag = 'scratch operand']
  #allocation5 [shape = 'f32[18,25,4]{2,1,0:T(8,128)}', space=vmem, size = 0x48000, scoped, tag = 'scratch operand']
  #allocation6 [shape = 'f32[1,1]{1,0:T(1,128)S(1)}', space=vmem, size = 0x200, scoped, tag = 'scoped memory for inception_module1_forward.1']
  #allocation7 [shape = 'f32[1,1]{1,0:T(1,128)S(1)}', space=vmem, size = 0x200, scoped, tag = 'scoped memory for inception_module1_forward.1']
  %s0 = inlined_call_operand.vmem [shape: f32[2,16,16,4], index: 0, kind: input, shape index: {}]
  %s1 = inlined_call_operand.vmem [shape: f32[4,64], index: 1, kind: input, shape index: {}]
  %s2 = inlined_call_operand.vmem [shape: f32[4,48], index: 2, kind: input, shape index: {}]
  %s3 = inlined_call_operand.vmem [shape: f32[4,64], index: 3, kind: input, shape index: {}]
  %s4 = inlined_call_operand.vmem [shape: f32[1200,64], index: 4, kind: input, shape index: {}]
  %s5 = inlined_call_operand.vmem [shape: f32[576,96], index: 5, kind: input, shape index: {}]
  %s6 = inlined_call_operand.vmem [shape: f32[864,96], index: 6, kind: input, shape index: {}]
  %s7 = inlined_call_operand.vmem [shape: f32[1,4], index: 7, kind: input, shape index: {}]
  %s8 = inlined_call_operand.vmem [shape: f32[1,64], index: 8, kind: input, shape index: {}]
  %s9 = inlined_call_operand.vmem [shape: f32[1,64], index: 9, kind: input, shape index: {}]
  %s10 = inlined_call_operand.vmem [shape: f32[1,96], index: 10, kind: input, shape index: {}]
  %s11 = inlined_call_operand.<no memory space> [shape: f32[1,1], index: 11, kind: input, shape index: {}]
  %s12 = inlined_call_operand.<no memory space> [shape: f32[1,1], index: 12, kind: input, shape index: {}]
  %s13 = inlined_call_operand.vmem [shape: f32[2,1,256], index: 13, kind: output, shape index: {}]
  %s14 = sld [smem:[#allocation0]]
  $region85: #{inception_module1_forward.1} parent=0
    _
  %s16 = ssub.s32 1, %s14
  %s17 = scalar_select 0, %s16, %s14
  %v18 = vstv %s11
  %19 = vst [vmem:[#allocation6] sm:$0x1] %v18
  %v20 = vstv %s12
  %21 = vst [vmem:[#allocation7] sm:$0x1] %v20
  loop: start=0, step=1, limit=4
  $region2: #{inception_module1_forward.1} parent=0 // loop_pre_header
    _
  $region3: #{inception_module1_forward.1} parent=0 // loop_header
    %s23 = sphi 0, %s27
    %p24 = scmp.ge.s32.totalorder %s23, 4
    %s33 = sphi 0, %s35
    %s36 = sphi 0, %s33
    %s37 = sphi 0, %s36
    %s53 = sphi 0, %s37
    %s57 = sphi 0, %s57
    %s59 = sphi 0, %s57
    %s60 = sphi 0, %s59
    %s74 = sphi 0, %s60
    %s78 = sphi 0, %s78
    %s80 = sphi 0, %s78
    %s81 = sphi 0, %s80
    %s95 = sphi 0, %s81
    %s99 = sphi 0, %s99
    %s101 = sphi 0, %s99
    %s102 = sphi 0, %s101
    %s116 = sphi 0, %s102
    %s120 = sphi 0, %s120
    %s122 = sphi 0, %s120
    %s123 = sphi 0, %s122
    %s137 = sphi 0, %s123
    %s141 = sphi 0, %s141
    %s143 = sphi 0, %s141
    %s144 = sphi 0, %s143
    %s158 = sphi 0, %s144
    %s162 = sphi 0, %s162
    %s164 = sphi 0, %s162
    %s165 = sphi 0, %s164
    %s179 = sphi 0, %s165
    %s183 = sphi 0, %s183
    %s185 = sphi 0, %s183
    %s186 = sphi 0, %s185
    %s200 = sphi 0, %s186
    %s204 = sphi 0, %s204
    %s206 = sphi 0, %s204
    %s207 = sphi 0, %s206
    %s221 = sphi 0, %s207
    %s225 = sphi 0, %s225
    %s227 = sphi 0, %s225
    %s228 = sphi 0, %s227
    %s242 = sphi 0, %s228
    %s246 = sphi 0, %s246
    %s248 = sphi 0, %s246
    %s249 = sphi 0, %s248
    %s263 = sphi 0, %s249
    %s267 = sphi 0, %s267
    %s269 = sphi 0, %s267
    %s270 = sphi 0, %s269
    %s284 = sphi 0, %s270
    %s288 = sphi 0, %s288
    %s290 = sphi 0, %s288
    %s291 = sphi 0, %s290
    %s305 = sphi 0, %s291
    %s311 = sphi 0, %s313
    %s314 = sphi 0, %s311
    %s315 = sphi 0, %s314
    %s331 = sphi 0, %s315
  $region4: #{inception_module1_forward.1} parent=0 // loop_header_branch
    %26 = sbr.rel (%p24) target = $region8
  $region5: #{inception_module1_forward.1} parent=0 // loop_body
    %s28 = ssub.s32 %s23, 1
    %s29 = ssub.s32 %s23, 2
    %s30 = sadd.s32 %s23, 1
    %s31 = ssub.s32 %s23, %s30
    %p32 = scmp.eq.s32.totalorder %s31, 0
    %s34 = sadd.s32 %s33, 1
    %s35 = scalar_select %p32, %s33, %s34
    %p38 = pneg %p32
    %p39 = scmp.eq.s32.totalorder %s23, 1
    %p40 = por %p38, %p39
    %p41 = scmp.ne.s32.totalorder %s33, %s36
    %p42 = scmp.eq.s32.totalorder %s23, 0
    %p43 = por %p41, %p42
    %p44 = scmp.ne.s32.totalorder %s33, %s36
    %p45 = scmp.eq.s32.totalorder %s28, 1
    %p46 = por %p44, %p45
    %p47 = scmp.ne.s32.totalorder %s36, %s37
    %p48 = scmp.eq.s32.totalorder %s28, 0
    %p49 = por %p47, %p48
    %p50 = scmp.ne.s32.totalorder %s36, %s37
    %p51 = scmp.eq.s32.totalorder %s29, 1
    %p52 = por %p50, %p51
    %p54 = scmp.ne.s32.totalorder %s37, %s53
    %p55 = scmp.eq.s32.totalorder %s29, 0
    %p56 = por %p54, %p55
    %s58 = sadd.s32 %s57, 1
    %p61 = scmp.eq.s32.totalorder %s23, 1
    %p62 = scmp.ne.s32.totalorder %s57, %s59
    %p63 = scmp.eq.s32.totalorder %s23, 0
    %p64 = por %p62, %p63
    %p65 = scmp.ne.s32.totalorder %s57, %s59
    %p66 = scmp.eq.s32.totalorder %s28, 1
    %p67 = por %p65, %p66
    %p68 = scmp.ne.s32.totalorder %s59, %s60
    %p69 = scmp.eq.s32.totalorder %s28, 0
    %p70 = por %p68, %p69
    %p71 = scmp.ne.s32.totalorder %s59, %s60
    %p72 = scmp.eq.s32.totalorder %s29, 1
    %p73 = por %p71, %p72
    %p75 = scmp.ne.s32.totalorder %s60, %s74
    %p76 = scmp.eq.s32.totalorder %s29, 0
    %p77 = por %p75, %p76
    %s79 = sadd.s32 %s78, 1
    %p82 = scmp.eq.s32.totalorder %s23, 1
    %p83 = scmp.ne.s32.totalorder %s78, %s80
    %p84 = scmp.eq.s32.totalorder %s23, 0
    %p85 = por %p83, %p84
    %p86 = scmp.ne.s32.totalorder %s78, %s80
    %p87 = scmp.eq.s32.totalorder %s28, 1
    %p88 = por %p86, %p87
    %p89 = scmp.ne.s32.totalorder %s80, %s81
    %p90 = scmp.eq.s32.totalorder %s28, 0
    %p91 = por %p89, %p90
    %p92 = scmp.ne.s32.totalorder %s80, %s81
    %p93 = scmp.eq.s32.totalorder %s29, 1
    %p94 = por %p92, %p93
    %p96 = scmp.ne.s32.totalorder %s81, %s95
    %p97 = scmp.eq.s32.totalorder %s29, 0
    %p98 = por %p96, %p97
    %s100 = sadd.s32 %s99, 1
    %p103 = scmp.eq.s32.totalorder %s23, 1
    %p104 = scmp.ne.s32.totalorder %s99, %s101
    %p105 = scmp.eq.s32.totalorder %s23, 0
    %p106 = por %p104, %p105
    %p107 = scmp.ne.s32.totalorder %s99, %s101
    %p108 = scmp.eq.s32.totalorder %s28, 1
    %p109 = por %p107, %p108
    %p110 = scmp.ne.s32.totalorder %s101, %s102
    %p111 = scmp.eq.s32.totalorder %s28, 0
    %p112 = por %p110, %p111
    %p113 = scmp.ne.s32.totalorder %s101, %s102
    %p114 = scmp.eq.s32.totalorder %s29, 1
    %p115 = por %p113, %p114
    %p117 = scmp.ne.s32.totalorder %s102, %s116
    %p118 = scmp.eq.s32.totalorder %s29, 0
    %p119 = por %p117, %p118
    %s121 = sadd.s32 %s120, 1
    %p124 = scmp.eq.s32.totalorder %s23, 1
    %p125 = scmp.ne.s32.totalorder %s120, %s122
    %p126 = scmp.eq.s32.totalorder %s23, 0
    %p127 = por %p125, %p126
    %p128 = scmp.ne.s32.totalorder %s120, %s122
    %p129 = scmp.eq.s32.totalorder %s28, 1
    %p130 = por %p128, %p129
    %p131 = scmp.ne.s32.totalorder %s122, %s123
    %p132 = scmp.eq.s32.totalorder %s28, 0
    %p133 = por %p131, %p132
    %p134 = scmp.ne.s32.totalorder %s122, %s123
    %p135 = scmp.eq.s32.totalorder %s29, 1
    %p136 = por %p134, %p135
    %p138 = scmp.ne.s32.totalorder %s123, %s137
    %p139 = scmp.eq.s32.totalorder %s29, 0
    %p140 = por %p138, %p139
    %s142 = sadd.s32 %s141, 1
    %p145 = scmp.eq.s32.totalorder %s23, 1
    %p146 = scmp.ne.s32.totalorder %s141, %s143
    %p147 = scmp.eq.s32.totalorder %s23, 0
    %p148 = por %p146, %p147
    %p149 = scmp.ne.s32.totalorder %s141, %s143
    %p150 = scmp.eq.s32.totalorder %s28, 1
    %p151 = por %p149, %p150
    %p152 = scmp.ne.s32.totalorder %s143, %s144
    %p153 = scmp.eq.s32.totalorder %s28, 0
    %p154 = por %p152, %p153
    %p155 = scmp.ne.s32.totalorder %s143, %s144
    %p156 = scmp.eq.s32.totalorder %s29, 1
    %p157 = por %p155, %p156
    %p159 = scmp.ne.s32.totalorder %s144, %s158
    %p160 = scmp.eq.s32.totalorder %s29, 0
    %p161 = por %p159, %p160
    %s163 = sadd.s32 %s162, 1
    %p166 = scmp.eq.s32.totalorder %s23, 1
    %p167 = scmp.ne.s32.totalorder %s162, %s164
    %p168 = scmp.eq.s32.totalorder %s23, 0
    %p169 = por %p167, %p168
    %p170 = scmp.ne.s32.totalorder %s162, %s164
    %p171 = scmp.eq.s32.totalorder %s28, 1
    %p172 = por %p170, %p171
    %p173 = scmp.ne.s32.totalorder %s164, %s165
    %p174 = scmp.eq.s32.totalorder %s28, 0
    %p175 = por %p173, %p174
    %p176 = scmp.ne.s32.totalorder %s164, %s165
    %p177 = scmp.eq.s32.totalorder %s29, 1
    %p178 = por %p176, %p177
    %p180 = scmp.ne.s32.totalorder %s165, %s179
    %p181 = scmp.eq.s32.totalorder %s29, 0
    %p182 = por %p180, %p181
    %s184 = sadd.s32 %s183, 1
    %p187 = scmp.eq.s32.totalorder %s23, 1
    %p188 = scmp.ne.s32.totalorder %s183, %s185
    %p189 = scmp.eq.s32.totalorder %s23, 0
    %p190 = por %p188, %p189
    %p191 = scmp.ne.s32.totalorder %s183, %s185
    %p192 = scmp.eq.s32.totalorder %s28, 1
    %p193 = por %p191, %p192
    %p194 = scmp.ne.s32.totalorder %s185, %s186
    %p195 = scmp.eq.s32.totalorder %s28, 0
    %p196 = por %p194, %p195
    %p197 = scmp.ne.s32.totalorder %s185, %s186
    %p198 = scmp.eq.s32.totalorder %s29, 1
    %p199 = por %p197, %p198
    %p201 = scmp.ne.s32.totalorder %s186, %s200
    %p202 = scmp.eq.s32.totalorder %s29, 0
    %p203 = por %p201, %p202
    %s205 = sadd.s32 %s204, 1
    %p208 = scmp.eq.s32.totalorder %s23, 1
    %p209 = scmp.ne.s32.totalorder %s204, %s206
    %p210 = scmp.eq.s32.totalorder %s23, 0
    %p211 = por %p209, %p210
    %p212 = scmp.ne.s32.totalorder %s204, %s206
    %p213 = scmp.eq.s32.totalorder %s28, 1
    %p214 = por %p212, %p213
    %p215 = scmp.ne.s32.totalorder %s206, %s207
    %p216 = scmp.eq.s32.totalorder %s28, 0
    %p217 = por %p215, %p216
    %p218 = scmp.ne.s32.totalorder %s206, %s207
    %p219 = scmp.eq.s32.totalorder %s29, 1
    %p220 = por %p218, %p219
    %p222 = scmp.ne.s32.totalorder %s207, %s221
    %p223 = scmp.eq.s32.totalorder %s29, 0
    %p224 = por %p222, %p223
    %s226 = sadd.s32 %s225, 1
    %p229 = scmp.eq.s32.totalorder %s23, 1
    %p230 = scmp.ne.s32.totalorder %s225, %s227
    %p231 = scmp.eq.s32.totalorder %s23, 0
    %p232 = por %p230, %p231
    %p233 = scmp.ne.s32.totalorder %s225, %s227
    %p234 = scmp.eq.s32.totalorder %s28, 1
    %p235 = por %p233, %p234
    %p236 = scmp.ne.s32.totalorder %s227, %s228
    %p237 = scmp.eq.s32.totalorder %s28, 0
    %p238 = por %p236, %p237
    %p239 = scmp.ne.s32.totalorder %s227, %s228
    %p240 = scmp.eq.s32.totalorder %s29, 1
    %p241 = por %p239, %p240
    %p243 = scmp.ne.s32.totalorder %s228, %s242
    %p244 = scmp.eq.s32.totalorder %s29, 0
    %p245 = por %p243, %p244
    %s247 = sadd.s32 %s246, 1
    %p250 = scmp.eq.s32.totalorder %s23, 1
    %p251 = scmp.ne.s32.totalorder %s246, %s248
    %p252 = scmp.eq.s32.totalorder %s23, 0
    %p253 = por %p251, %p252
    %p254 = scmp.ne.s32.totalorder %s246, %s248
    %p255 = scmp.eq.s32.totalorder %s28, 1
    %p256 = por %p254, %p255
    %p257 = scmp.ne.s32.totalorder %s248, %s249
    %p258 = scmp.eq.s32.totalorder %s28, 0
    %p259 = por %p257, %p258
    %p260 = scmp.ne.s32.totalorder %s248, %s249
    %p261 = scmp.eq.s32.totalorder %s29, 1
    %p262 = por %p260, %p261
    %p264 = scmp.ne.s32.totalorder %s249, %s263
    %p265 = scmp.eq.s32.totalorder %s29, 0
    %p266 = por %p264, %p265
    %s268 = sadd.s32 %s267, 1
    %p271 = scmp.eq.s32.totalorder %s23, 1
    %p272 = scmp.ne.s32.totalorder %s267, %s269
    %p273 = scmp.eq.s32.totalorder %s23, 0
    %p274 = por %p272, %p273
    %p275 = scmp.ne.s32.totalorder %s267, %s269
    %p276 = scmp.eq.s32.totalorder %s28, 1
    %p277 = por %p275, %p276
    %p278 = scmp.ne.s32.totalorder %s269, %s270
    %p279 = scmp.eq.s32.totalorder %s28, 0
    %p280 = por %p278, %p279
    %p281 = scmp.ne.s32.totalorder %s269, %s270
    %p282 = scmp.eq.s32.totalorder %s29, 1
    %p283 = por %p281, %p282
    %p285 = scmp.ne.s32.totalorder %s270, %s284
    %p286 = scmp.eq.s32.totalorder %s29, 0
    %p287 = por %p285, %p286
    %s289 = sadd.s32 %s288, 1
    %p292 = scmp.eq.s32.totalorder %s23, 1
    %p293 = scmp.ne.s32.totalorder %s288, %s290
    %p294 = scmp.eq.s32.totalorder %s23, 0
    %p295 = por %p293, %p294
    %p296 = scmp.ne.s32.totalorder %s288, %s290
    %p297 = scmp.eq.s32.totalorder %s28, 1
    %p298 = por %p296, %p297
    %p299 = scmp.ne.s32.totalorder %s290, %s291
    %p300 = scmp.eq.s32.totalorder %s28, 0
    %p301 = por %p299, %p300
    %p302 = scmp.ne.s32.totalorder %s290, %s291
    %p303 = scmp.eq.s32.totalorder %s29, 1
    %p304 = por %p302, %p303
    %p306 = scmp.ne.s32.totalorder %s291, %s305
    %p307 = scmp.eq.s32.totalorder %s29, 0
    %p308 = por %p306, %p307
    %s309 = ssub.s32 %s23, %s30
    %p310 = scmp.eq.s32.totalorder %s309, 0
    %s312 = sadd.s32 %s311, 1
    %s313 = scalar_select %p310, %s311, %s312
    %p316 = pneg %p310
    %p317 = scmp.eq.s32.totalorder %s23, 1
    %p318 = por %p316, %p317
    %p319 = scmp.ne.s32.totalorder %s311, %s314
    %p320 = scmp.eq.s32.totalorder %s23, 0
    %p321 = por %p319, %p320
    %p322 = scmp.ne.s32.totalorder %s311, %s314
    %p323 = scmp.eq.s32.totalorder %s28, 1
    %p324 = por %p322, %p323
    %p325 = scmp.ne.s32.totalorder %s314, %s315
    %p326 = scmp.eq.s32.totalorder %s28, 0
    %p327 = por %p325, %p326
    %p328 = scmp.ne.s32.totalorder %s314, %s315
    %p329 = scmp.eq.s32.totalorder %s29, 1
    %p330 = por %p328, %p329
    %p332 = scmp.ne.s32.totalorder %s315, %s331
    %p333 = scmp.eq.s32.totalorder %s29, 0
    %p334 = por %p332, %p333
    %p335 = scmp.le.s32.totalorder 1, %s23
    %p336 = scmp.lt.s32.totalorder %s23, 3
    %p337 = pnand %p335, %p336
    %p338 = pneg %p337
    // Predicated region
    $region9: #{inception_module1_forward.1} parent=5 // pred_check
      _
    $region10: #{inception_module1_forward.1} parent=5 // pred_check_branch
      %340 = sbr.rel (%p337) target = $region12
    $region11: #{inception_module1_forward.1} parent=5 // pred_region
      %s341 = ssub.s32 %s23, 1
      // Predicated region
      $region13: #{inception_module1_forward.1} parent=11 // pred_check
        %p342 = pneg %p70
      $region14: #{inception_module1_forward.1} parent=11 // pred_check_branch
        %344 = sbr.rel (%p342) target = $region16
      $region15: #{inception_module1_forward.1} parent=11 // pred_region
        _
      $region16: #{inception_module1_forward.1} parent=11 // pred_fallthru
        _
      // Predicated region
      $region17: #{inception_module1_forward.1} parent=11 // pred_check
        %p345 = pneg %p91
      $region18: #{inception_module1_forward.1} parent=11 // pred_check_branch
        %347 = sbr.rel (%p345) target = $region20
      $region19: #{inception_module1_forward.1} parent=11 // pred_region
        _
      $region20: #{inception_module1_forward.1} parent=11 // pred_fallthru
        _
      // Predicated region
      $region21: #{inception_module1_forward.1} parent=11 // pred_check
        %p348 = pneg %p112
      $region22: #{inception_module1_forward.1} parent=11 // pred_check_branch
        %350 = sbr.rel (%p348) target = $region24
      $region23: #{inception_module1_forward.1} parent=11 // pred_region
        _
      $region24: #{inception_module1_forward.1} parent=11 // pred_fallthru
        _
      // Predicated region
      $region25: #{inception_module1_forward.1} parent=11 // pred_check
        %p351 = pneg %p133
      $region26: #{inception_module1_forward.1} parent=11 // pred_check_branch
        %353 = sbr.rel (%p351) target = $region28
      $region27: #{inception_module1_forward.1} parent=11 // pred_region
        _
      $region28: #{inception_module1_forward.1} parent=11 // pred_fallthru
        _
      // Predicated region
      $region29: #{inception_module1_forward.1} parent=11 // pred_check
        %p354 = pneg %p154
      $region30: #{inception_module1_forward.1} parent=11 // pred_check_branch
        %356 = sbr.rel (%p354) target = $region32
      $region31: #{inception_module1_forward.1} parent=11 // pred_region
        _
      $region32: #{inception_module1_forward.1} parent=11 // pred_fallthru
        _
      // Predicated region
      $region33: #{inception_module1_forward.1} parent=11 // pred_check
        %p357 = pneg %p175
      $region34: #{inception_module1_forward.1} parent=11 // pred_check_branch
        %359 = sbr.rel (%p357) target = $region36
      $region35: #{inception_module1_forward.1} parent=11 // pred_region
        _
      $region36: #{inception_module1_forward.1} parent=11 // pred_fallthru
        _
      // Predicated region
      $region37: #{inception_module1_forward.1} parent=11 // pred_check
        %p360 = pneg %p196
      $region38: #{inception_module1_forward.1} parent=11 // pred_check_branch
        %362 = sbr.rel (%p360) target = $region40
      $region39: #{inception_module1_forward.1} parent=11 // pred_region
        _
      $region40: #{inception_module1_forward.1} parent=11 // pred_fallthru
        _
      // Predicated region
      $region41: #{inception_module1_forward.1} parent=11 // pred_check
        %p363 = pneg %p217
      $region42: #{inception_module1_forward.1} parent=11 // pred_check_branch
        %365 = sbr.rel (%p363) target = $region44
      $region43: #{inception_module1_forward.1} parent=11 // pred_region
        _
      $region44: #{inception_module1_forward.1} parent=11 // pred_fallthru
        _
      // Predicated region
      $region45: #{inception_module1_forward.1} parent=11 // pred_check
        %p366 = pneg %p238
      $region46: #{inception_module1_forward.1} parent=11 // pred_check_branch
        %368 = sbr.rel (%p366) target = $region48
      $region47: #{inception_module1_forward.1} parent=11 // pred_region
        _
      $region48: #{inception_module1_forward.1} parent=11 // pred_fallthru
        _
      // Predicated region
      $region49: #{inception_module1_forward.1} parent=11 // pred_check
        %p369 = pneg %p259
      $region50: #{inception_module1_forward.1} parent=11 // pred_check_branch
        %371 = sbr.rel (%p369) target = $region52
      $region51: #{inception_module1_forward.1} parent=11 // pred_region
        _
      $region52: #{inception_module1_forward.1} parent=11 // pred_fallthru
        _
      // Predicated region
      $region53: #{inception_module1_forward.1} parent=11 // pred_check
        %p372 = pneg %p280
      $region54: #{inception_module1_forward.1} parent=11 // pred_check_branch
        %374 = sbr.rel (%p372) target = $region56
      $region55: #{inception_module1_forward.1} parent=11 // pred_region
        _
      $region56: #{inception_module1_forward.1} parent=11 // pred_fallthru
        _
      // Predicated region
      $region57: #{inception_module1_forward.1} parent=11 // pred_check
        %p375 = pneg %p301
      $region58: #{inception_module1_forward.1} parent=11 // pred_check_branch
        %377 = sbr.rel (%p375) target = $region60
      $region59: #{inception_module1_forward.1} parent=11 // pred_region
        _
      $region60: #{inception_module1_forward.1} parent=11 // pred_fallthru
        _
    $region12: #{inception_module1_forward.1} parent=5 // pred_fallthru
      _
    %p378 = scmp.lt.s32.totalorder %s23, 2
    // Predicated region
    $region61: #{inception_module1_forward.1} parent=5 // pred_check
      %p379 = pneg %p378
    $region62: #{inception_module1_forward.1} parent=5 // pred_check_branch
      %381 = sbr.rel (%p379) target = $region64
    $region63: #{inception_module1_forward.1} parent=5 // pred_region
      // Predicated region
      $region65: #{inception_module1_forward.1} parent=63 // pred_check
        %p382 = pneg %p43
      $region66: #{inception_module1_forward.1} parent=63 // pred_check_branch
        %384 = sbr.rel (%p382) target = $region68
      $region67: #{inception_module1_forward.1} parent=63 // pred_region
        %p385 = scmp.lt.s32.totalorder %s23, 1
        %s386 = scalar_select %p385, %s23, 1
        %s387 = smul.addr %s386, 32
        %s388 = smul.addr %s387, 8
        %s389 = scalar_lea.vmem %s0, %s388
      $region68: #{inception_module1_forward.1} parent=63 // pred_fallthru
        _
    $region64: #{inception_module1_forward.1} parent=5 // pred_fallthru
      _
    %p390 = scmp.le.s32.totalorder 1, %s23
    %p391 = scmp.lt.s32.totalorder %s23, 3
    %p392 = pnand %p390, %p391
    %p393 = pneg %p392
    // Predicated region
    $region69: #{inception_module1_forward.1} parent=5 // pred_check
      _
    $region70: #{inception_module1_forward.1} parent=5 // pred_check_branch
      %395 = sbr.rel (%p392) target = $region72
    $region71: #{inception_module1_forward.1} parent=5 // pred_region
      %s396 = ssub.s32 %s23, 1
      %p397 = scmp.lt.s32.totalorder %s28, 1
      %s398 = scalar_select %p397, %s28, 1
      %s399 = smul.addr %s398, 32
      %s400 = smul.addr %s399, 8
      %s401 = scalar_lea.vmem %s0, %s400
      %p402 = pneg %p49
      %p403 = pneg %p46
      %p404 = pneg %p70
      %p405 = pneg %p67
      %p406 = pneg %p91
      %p407 = pneg %p88
      %p408 = pneg %p112
      %p409 = pneg %p109
      %p410 = pneg %p133
      %p411 = pneg %p130
      %p412 = pneg %p154
      %p413 = pneg %p151
      %p414 = pneg %p175
      %p415 = pneg %p172
      %p416 = pneg %p196
      %p417 = pneg %p193
      %p418 = pneg %p217
      %p419 = pneg %p214
      %p420 = pneg %p238
      %p421 = pneg %p235
      %p422 = pneg %p259
      %p423 = pneg %p256
      %p424 = pneg %p280
      %p425 = pneg %p277
      %p426 = pneg %p301
      %p427 = pneg %p298
      %p428 = pneg %p327
      %p429 = pneg %p324
      %p430 = scmp.lt.s32.totalorder %s28, 1
      %s431 = scalar_select %p430, %s28, 1
      %s432 = smul.addr %s431, 2
      %s433 = scalar_lea.vmem %s13, %s432
      %p434 = scmp.lt.s32.totalorder %s28, 1
      %s435 = scalar_select %p434, %s28, 1
      %s436 = smul.addr %s435, 32
      %s437 = smul.addr %s436, 8
      %s438 = scalar_lea.vmem %s0, %s437
      %p439 = scmp.lt.s32.totalorder %s28, 1
      %s440 = scalar_select %p439, %s28, 1
      %s441 = smul.addr %s440, 2
      %s442 = scalar_lea.vmem %s13, %s441
      %v443 = vld [vmem:[%s438] sm:$0xff]
      %v444 = vld [vmem:[%s438 + $0x8] sm:$0xff]
      %v445 = vld [vmem:[%s438 + $0x10] sm:$0xff]
      %v446 = vld [vmem:[%s438 + $0x18] sm:$0xff]
      %v447 = vld [vmem:[%s438 + $0x20] sm:$0xff]
      %v448 = vld [vmem:[%s438 + $0x28] sm:$0xff]
      %v449 = vld [vmem:[%s438 + $0x30] sm:$0xff]
      %v450 = vld [vmem:[%s438 + $0x38] sm:$0xff]
      %v451 = vld [vmem:[%s438 + $0x40] sm:$0xff]
      %v452 = vld [vmem:[%s438 + $0x48] sm:$0xff]
      %v453 = vld [vmem:[%s438 + $0x50] sm:$0xff]
      %v454 = vld [vmem:[%s438 + $0x58] sm:$0xff]
      %v455 = vld [vmem:[%s438 + $0x60] sm:$0xff]
      %v456 = vld [vmem:[%s438 + $0x68] sm:$0xff]
      %v457 = vld [vmem:[%s438 + $0x70] sm:$0xff]
      %v458 = vld [vmem:[%s438 + $0x78] sm:$0xff]
      %v459 = vld [vmem:[%s438 + $0x80] sm:$0xff]
      %v460 = vld [vmem:[%s438 + $0x88] sm:$0xff]
      %v461 = vld [vmem:[%s438 + $0x90] sm:$0xff]
      %v462 = vld [vmem:[%s438 + $0x98] sm:$0xff]
      %v463 = vld [vmem:[%s438 + $0xa0] sm:$0xff]
      %v464 = vld [vmem:[%s438 + $0xa8] sm:$0xff]
      %v465 = vld [vmem:[%s438 + $0xb0] sm:$0xff]
      %v466 = vld [vmem:[%s438 + $0xb8] sm:$0xff]
      %v467 = vld [vmem:[%s438 + $0xc0] sm:$0xff]
      %v468 = vld [vmem:[%s438 + $0xc8] sm:$0xff]
      %v469 = vld [vmem:[%s438 + $0xd0] sm:$0xff]
      %v470 = vld [vmem:[%s438 + $0xd8] sm:$0xff]
      %v471 = vld [vmem:[%s438 + $0xe0] sm:$0xff]
      %v472 = vld [vmem:[%s438 + $0xe8] sm:$0xff]
      %v473 = vld [vmem:[%s438 + $0xf0] sm:$0xff]
      %v474 = vld [vmem:[%s438 + $0xf8] sm:$0xff]
      %v475 = vld [vmem:[%s1] sm:$0xf]
      %vm476 = vcmask 31744
      %v478 = vsel %vm476, %v443, 0
      %v481 = vsel %vm476, %v444, 0
      %v484 = vsel %vm476, %v445, 0
      %v487 = vsel %vm476, %v446, 0
      %v490 = vsel %vm476, %v447, 0
      %v493 = vsel %vm476, %v448, 0
      %v496 = vsel %vm476, %v449, 0
      %v499 = vsel %vm476, %v450, 0
      %v502 = vsel %vm476, %v451, 0
      %v505 = vsel %vm476, %v452, 0
      %v508 = vsel %vm476, %v453, 0
      %v511 = vsel %vm476, %v454, 0
      %v514 = vsel %vm476, %v455, 0
      %v517 = vsel %vm476, %v456, 0
      %v520 = vsel %vm476, %v457, 0
      %v523 = vsel %vm476, %v458, 0
      %v526 = vsel %vm476, %v459, 0
      %v529 = vsel %vm476, %v460, 0
      %v532 = vsel %vm476, %v461, 0
      %v535 = vsel %vm476, %v462, 0
      %v538 = vsel %vm476, %v463, 0
      %v541 = vsel %vm476, %v464, 0
      %v544 = vsel %vm476, %v465, 0
      %v547 = vsel %vm476, %v466, 0
      %v550 = vsel %vm476, %v467, 0
      %v553 = vsel %vm476, %v468, 0
      %v556 = vsel %vm476, %v469, 0
      %v559 = vsel %vm476, %v470, 0
      %v562 = vsel %vm476, %v471, 0
      %v565 = vsel %vm476, %v472, 0
      %v568 = vsel %vm476, %v473, 0
      %v571 = vsel %vm476, %v474, 0
      %vm573 = vcmask 1043456
      %v575 = vsel %vm573, %v475, 0
      %577 = vmatpush.msra.mxu0 0.0
      %578 = vmatpush.msra.mxu0 0.0
      %579 = vmatpush.msra.mxu0 0.0
      %580 = vmatpush.msra.mxu0 0.0
      %581 = vmatpush.msra.mxu0 0.0
      %582 = vmatpush.msra.mxu0 0.0
      %583 = vmatpush.msra.mxu0 0.0
      %584 = vmatpush.msra.mxu0 0.0
      %585 = vmatpush.msra.mxu0 0.0
      %586 = vmatpush.msra.mxu0 0.0
      %587 = vmatpush.msra.mxu0 0.0
      %588 = vmatpush.msra.mxu0 0.0
      %589 = vmatpush.msra.mxu0 0.0
      %590 = vmatpush.msra.mxu0 0.0
      %591 = vmatpush.msra.mxu0 0.0
      %592 = vmatpush.msra.mxu0 %v575
      %593 = vmatmul.f32.gmra.mxu0 %v478
      %v594 = vpop.f32.mrf.mxu0
      %v595 = vadd.f32 0.0, %v594
      %596 = vmatmul.f32.gmra.mxu0 %v481
      %v597 = vpop.f32.mrf.mxu0
      %v598 = vadd.f32 0.0, %v597
      %599 = vmatmul.f32.gmra.mxu0 %v484
      %v600 = vpop.f32.mrf.mxu0
      %v601 = vadd.f32 0.0, %v600
      %602 = vmatmul.f32.gmra.mxu0 %v487
      %v603 = vpop.f32.mrf.mxu0
      %v604 = vadd.f32 0.0, %v603
      %605 = vmatmul.f32.gmra.mxu0 %v490
      %v606 = vpop.f32.mrf.mxu0
      %v607 = vadd.f32 0.0, %v606
      %608 = vmatmul.f32.gmra.mxu0 %v493
      %v609 = vpop.f32.mrf.mxu0
      %v610 = vadd.f32 0.0, %v609
      %611 = vmatmul.f32.gmra.mxu0 %v496
      %v612 = vpop.f32.mrf.mxu0
      %v613 = vadd.f32 0.0, %v612
      %614 = vmatmul.f32.gmra.mxu0 %v499
      %v615 = vpop.f32.mrf.mxu0
      %v616 = vadd.f32 0.0, %v615
      %617 = vmatmul.f32.gmra.mxu0 %v502
      %v618 = vpop.f32.mrf.mxu0
      %v619 = vadd.f32 0.0, %v618
      %620 = vmatmul.f32.gmra.mxu0 %v505
      %v621 = vpop.f32.mrf.mxu0
      %v622 = vadd.f32 0.0, %v621
      %623 = vmatmul.f32.gmra.mxu0 %v508
      %v624 = vpop.f32.mrf.mxu0
      %v625 = vadd.f32 0.0, %v624
      %626 = vmatmul.f32.gmra.mxu0 %v511
      %v627 = vpop.f32.mrf.mxu0
      %v628 = vadd.f32 0.0, %v627
      %629 = vmatmul.f32.gmra.mxu0 %v514
      %v630 = vpop.f32.mrf.mxu0
      %v631 = vadd.f32 0.0, %v630
      %632 = vmatmul.f32.gmra.mxu0 %v517
      %v633 = vpop.f32.mrf.mxu0
      %v634 = vadd.f32 0.0, %v633
      %635 = vmatmul.f32.gmra.mxu0 %v520
      %v636 = vpop.f32.mrf.mxu0
      %v637 = vadd.f32 0.0, %v636
      %638 = vmatmul.f32.gmra.mxu0 %v523
      %v639 = vpop.f32.mrf.mxu0
      %v640 = vadd.f32 0.0, %v639
      %641 = vmatmul.f32.gmra.mxu0 %v526
      %v642 = vpop.f32.mrf.mxu0
      %v643 = vadd.f32 0.0, %v642
      %644 = vmatmul.f32.gmra.mxu0 %v529
      %v645 = vpop.f32.mrf.mxu0
      %v646 = vadd.f32 0.0, %v645
      %647 = vmatmul.f32.gmra.mxu0 %v532
      %v648 = vpop.f32.mrf.mxu0
      %v649 = vadd.f32 0.0, %v648
      %650 = vmatmul.f32.gmra.mxu0 %v535
      %v651 = vpop.f32.mrf.mxu0
      %v652 = vadd.f32 0.0, %v651
      %653 = vmatmul.f32.gmra.mxu0 %v538
      %v654 = vpop.f32.mrf.mxu0
      %v655 = vadd.f32 0.0, %v654
      %656 = vmatmul.f32.gmra.mxu0 %v541
      %v657 = vpop.f32.mrf.mxu0
      %v658 = vadd.f32 0.0, %v657
      %659 = vmatmul.f32.gmra.mxu0 %v544
      %v660 = vpop.f32.mrf.mxu0
      %v661 = vadd.f32 0.0, %v660
      %662 = vmatmul.f32.gmra.mxu0 %v547
      %v663 = vpop.f32.mrf.mxu0
      %v664 = vadd.f32 0.0, %v663
      %665 = vmatmul.f32.gmra.mxu0 %v550
      %v666 = vpop.f32.mrf.mxu0
      %v667 = vadd.f32 0.0, %v666
      %668 = vmatmul.f32.gmra.mxu0 %v553
      %v669 = vpop.f32.mrf.mxu0
      %v670 = vadd.f32 0.0, %v669
      %671 = vmatmul.f32.gmra.mxu0 %v556
      %v672 = vpop.f32.mrf.mxu0
      %v673 = vadd.f32 0.0, %v672
      %674 = vmatmul.f32.gmra.mxu0 %v559
      %v675 = vpop.f32.mrf.mxu0
      %v676 = vadd.f32 0.0, %v675
      %677 = vmatmul.f32.gmra.mxu0 %v562
      %v678 = vpop.f32.mrf.mxu0
      %v679 = vadd.f32 0.0, %v678
      %680 = vmatmul.f32.gmra.mxu0 %v565
      %v681 = vpop.f32.mrf.mxu0
      %v682 = vadd.f32 0.0, %v681
      %683 = vmatmul.f32.gmra.mxu0 %v568
      %v684 = vpop.f32.mrf.mxu0
      %v685 = vadd.f32 0.0, %v684
      %686 = vmatmul.f32.gmra.mxu0 %v571
      %v687 = vpop.f32.mrf.mxu0
      %v688 = vadd.f32 0.0, %v687
      %689 = vdwg.mxu0
      %v690 = vmax.f32 %v595, 0.0
      %v691 = vmax.f32 %v598, 0.0
      %v692 = vmax.f32 %v601, 0.0
      %v693 = vmax.f32 %v604, 0.0
      %v694 = vmax.f32 %v607, 0.0
      %v695 = vmax.f32 %v610, 0.0
      %v696 = vmax.f32 %v613, 0.0
      %v697 = vmax.f32 %v616, 0.0
      %v698 = vmax.f32 %v619, 0.0
      %v699 = vmax.f32 %v622, 0.0
      %v700 = vmax.f32 %v625, 0.0
      %v701 = vmax.f32 %v628, 0.0
      %v702 = vmax.f32 %v631, 0.0
      %v703 = vmax.f32 %v634, 0.0
      %v704 = vmax.f32 %v637, 0.0
      %v705 = vmax.f32 %v640, 0.0
      %v706 = vmax.f32 %v643, 0.0
      %v707 = vmax.f32 %v646, 0.0
      %v708 = vmax.f32 %v649, 0.0
      %v709 = vmax.f32 %v652, 0.0
      %v710 = vmax.f32 %v655, 0.0
      %v711 = vmax.f32 %v658, 0.0
      %v712 = vmax.f32 %v661, 0.0
      %v713 = vmax.f32 %v664, 0.0
      %v714 = vmax.f32 %v667, 0.0
      %v715 = vmax.f32 %v670, 0.0
      %v716 = vmax.f32 %v673, 0.0
      %v717 = vmax.f32 %v676, 0.0
      %v718 = vmax.f32 %v679, 0.0
      %v719 = vmax.f32 %v682, 0.0
      %v720 = vmax.f32 %v685, 0.0
      %v721 = vmax.f32 %v688, 0.0
      %v722 = vld [vmem:[%s2] sm:$0xf]
      %v724 = vsel %vm573, %v722, 0
      %726 = vmatpush.msra.mxu0 0.0
      %727 = vmatpush.msra.mxu0 0.0
      %728 = vmatpush.msra.mxu0 0.0
      %729 = vmatpush.msra.mxu0 0.0
      %730 = vmatpush.msra.mxu0 0.0
      %731 = vmatpush.msra.mxu0 0.0
      %732 = vmatpush.msra.mxu0 0.0
      %733 = vmatpush.msra.mxu0 0.0
      %734 = vmatpush.msra.mxu0 0.0
      %735 = vmatpush.msra.mxu0 0.0
      %736 = vmatpush.msra.mxu0 0.0
      %737 = vmatpush.msra.mxu0 0.0
      %738 = vmatpush.msra.mxu0 0.0
      %739 = vmatpush.msra.mxu0 0.0
      %740 = vmatpush.msra.mxu0 0.0
      %741 = vmatpush.msra.mxu0 %v724
      %742 = vmatmul.f32.gmra.mxu0 %v478
      %v743 = vpop.f32.mrf.mxu0
      %v744 = vadd.f32 0.0, %v743
      %745 = vmatmul.f32.gmra.mxu0 %v481
      %v746 = vpop.f32.mrf.mxu0
      %v747 = vadd.f32 0.0, %v746
      %748 = vmatmul.f32.gmra.mxu0 %v484
      %v749 = vpop.f32.mrf.mxu0
      %v750 = vadd.f32 0.0, %v749
      %751 = vmatmul.f32.gmra.mxu0 %v487
      %v752 = vpop.f32.mrf.mxu0
      %v753 = vadd.f32 0.0, %v752
      %754 = vmatmul.f32.gmra.mxu0 %v490
      %v755 = vpop.f32.mrf.mxu0
      %v756 = vadd.f32 0.0, %v755
      %757 = vmatmul.f32.gmra.mxu0 %v493
      %v758 = vpop.f32.mrf.mxu0
      %v759 = vadd.f32 0.0, %v758
      %760 = vmatmul.f32.gmra.mxu0 %v496
      %v761 = vpop.f32.mrf.mxu0
      %v762 = vadd.f32 0.0, %v761
      %763 = vmatmul.f32.gmra.mxu0 %v499
      %v764 = vpop.f32.mrf.mxu0
      %v765 = vadd.f32 0.0, %v764
      %766 = vmatmul.f32.gmra.mxu0 %v502
      %v767 = vpop.f32.mrf.mxu0
      %v768 = vadd.f32 0.0, %v767
      %769 = vmatmul.f32.gmra.mxu0 %v505
      %v770 = vpop.f32.mrf.mxu0
      %v771 = vadd.f32 0.0, %v770
      %772 = vmatmul.f32.gmra.mxu0 %v508
      %v773 = vpop.f32.mrf.mxu0
      %v774 = vadd.f32 0.0, %v773
      %775 = vmatmul.f32.gmra.mxu0 %v511
      %v776 = vpop.f32.mrf.mxu0
      %v777 = vadd.f32 0.0, %v776
      %778 = vmatmul.f32.gmra.mxu0 %v514
      %v779 = vpop.f32.mrf.mxu0
      %v780 = vadd.f32 0.0, %v779
      %781 = vmatmul.f32.gmra.mxu0 %v517
      %v782 = vpop.f32.mrf.mxu0
      %v783 = vadd.f32 0.0, %v782
      %784 = vmatmul.f32.gmra.mxu0 %v520
      %v785 = vpop.f32.mrf.mxu0
      %v786 = vadd.f32 0.0, %v785
      %787 = vmatmul.f32.gmra.mxu0 %v523
      %v788 = vpop.f32.mrf.mxu0
      %v789 = vadd.f32 0.0, %v788
      %790 = vmatmul.f32.gmra.mxu0 %v526
      %v791 = vpop.f32.mrf.mxu0
      %v792 = vadd.f32 0.0, %v791
      %793 = vmatmul.f32.gmra.mxu0 %v529
      %v794 = vpop.f32.mrf.mxu0
      %v795 = vadd.f32 0.0, %v794
      %796 = vmatmul.f32.gmra.mxu0 %v532
      %v797 = vpop.f32.mrf.mxu0
      %v798 = vadd.f32 0.0, %v797
      %799 = vmatmul.f32.gmra.mxu0 %v535
      %v800 = vpop.f32.mrf.mxu0
      %v801 = vadd.f32 0.0, %v800
      %802 = vmatmul.f32.gmra.mxu0 %v538
      %v803 = vpop.f32.mrf.mxu0
      %v804 = vadd.f32 0.0, %v803
      %805 = vmatmul.f32.gmra.mxu0 %v541
      %v806 = vpop.f32.mrf.mxu0
      %v807 = vadd.f32 0.0, %v806
      %808 = vmatmul.f32.gmra.mxu0 %v544
      %v809 = vpop.f32.mrf.mxu0
      %v810 = vadd.f32 0.0, %v809
      %811 = vmatmul.f32.gmra.mxu0 %v547
      %v812 = vpop.f32.mrf.mxu0
      %v813 = vadd.f32 0.0, %v812
      %814 = vmatmul.f32.gmra.mxu0 %v550
      %v815 = vpop.f32.mrf.mxu0
      %v816 = vadd.f32 0.0, %v815
      %817 = vmatmul.f32.gmra.mxu0 %v553
      %v818 = vpop.f32.mrf.mxu0
      %v819 = vadd.f32 0.0, %v818
      %820 = vmatmul.f32.gmra.mxu0 %v556
      %v821 = vpop.f32.mrf.mxu0
      %v822 = vadd.f32 0.0, %v821
      %823 = vmatmul.f32.gmra.mxu0 %v559
      %v824 = vpop.f32.mrf.mxu0
      %v825 = vadd.f32 0.0, %v824
      %826 = vmatmul.f32.gmra.mxu0 %v562
      %v827 = vpop.f32.mrf.mxu0
      %v828 = vadd.f32 0.0, %v827
      %829 = vmatmul.f32.gmra.mxu0 %v565
      %v830 = vpop.f32.mrf.mxu0
      %v831 = vadd.f32 0.0, %v830
      %832 = vmatmul.f32.gmra.mxu0 %v568
      %v833 = vpop.f32.mrf.mxu0
      %v834 = vadd.f32 0.0, %v833
      %835 = vmatmul.f32.gmra.mxu0 %v571
      %v836 = vpop.f32.mrf.mxu0
      %v837 = vadd.f32 0.0, %v836
      %838 = vdwg.mxu0
      %v839 = vmax.f32 %v744, 0.0
      %v840 = vmax.f32 %v747, 0.0
      %v841 = vmax.f32 %v750, 0.0
      %v842 = vmax.f32 %v753, 0.0
      %v843 = vmax.f32 %v756, 0.0
      %v844 = vmax.f32 %v759, 0.0
      %v845 = vmax.f32 %v762, 0.0
      %v846 = vmax.f32 %v765, 0.0
      %v847 = vmax.f32 %v768, 0.0
      %v848 = vmax.f32 %v771, 0.0
      %v849 = vmax.f32 %v774, 0.0
      %v850 = vmax.f32 %v777, 0.0
      %v851 = vmax.f32 %v780, 0.0
      %v852 = vmax.f32 %v783, 0.0
      %v853 = vmax.f32 %v786, 0.0
      %v854 = vmax.f32 %v789, 0.0
      %v855 = vmax.f32 %v792, 0.0
      %v856 = vmax.f32 %v795, 0.0
      %v857 = vmax.f32 %v798, 0.0
      %v858 = vmax.f32 %v801, 0.0
      %v859 = vmax.f32 %v804, 0.0
      %v860 = vmax.f32 %v807, 0.0
      %v861 = vmax.f32 %v810, 0.0
      %v862 = vmax.f32 %v813, 0.0
      %v863 = vmax.f32 %v816, 0.0
      %v864 = vmax.f32 %v819, 0.0
      %v865 = vmax.f32 %v822, 0.0
      %v866 = vmax.f32 %v825, 0.0
      %v867 = vmax.f32 %v828, 0.0
      %v868 = vmax.f32 %v831, 0.0
      %v869 = vmax.f32 %v834, 0.0
      %v870 = vmax.f32 %v837, 0.0
      %v871 = vld [vmem:[%s3] sm:$0xf]
      %v873 = vsel %vm573, %v871, 0
      %875 = vmatpush.msra.mxu0 0.0
      %876 = vmatpush.msra.mxu0 0.0
      %877 = vmatpush.msra.mxu0 0.0
      %878 = vmatpush.msra.mxu0 0.0
      %879 = vmatpush.msra.mxu0 0.0
      %880 = vmatpush.msra.mxu0 0.0
      %881 = vmatpush.msra.mxu0 0.0
      %882 = vmatpush.msra.mxu0 0.0
      %883 = vmatpush.msra.mxu0 0.0
      %884 = vmatpush.msra.mxu0 0.0
      %885 = vmatpush.msra.mxu0 0.0
      %886 = vmatpush.msra.mxu0 0.0
      %887 = vmatpush.msra.mxu0 0.0
      %888 = vmatpush.msra.mxu0 0.0
      %889 = vmatpush.msra.mxu0 0.0
      %890 = vmatpush.msra.mxu0 %v873
      %891 = vmatmul.f32.gmra.mxu0 %v478
      %v892 = vpop.f32.mrf.mxu0
      %v893 = vadd.f32 0.0, %v892
      %894 = vmatmul.f32.gmra.mxu0 %v481
      %v895 = vpop.f32.mrf.mxu0
      %v896 = vadd.f32 0.0, %v895
      %897 = vmatmul.f32.gmra.mxu0 %v484
      %v898 = vpop.f32.mrf.mxu0
      %v899 = vadd.f32 0.0, %v898
      %900 = vmatmul.f32.gmra.mxu0 %v487
      %v901 = vpop.f32.mrf.mxu0
      %v902 = vadd.f32 0.0, %v901
      %903 = vmatmul.f32.gmra.mxu0 %v490
      %v904 = vpop.f32.mrf.mxu0
      %v905 = vadd.f32 0.0, %v904
      %906 = vmatmul.f32.gmra.mxu0 %v493
      %v907 = vpop.f32.mrf.mxu0
      %v908 = vadd.f32 0.0, %v907
      %909 = vmatmul.f32.gmra.mxu0 %v496
      %v910 = vpop.f32.mrf.mxu0
      %v911 = vadd.f32 0.0, %v910
      %912 = vmatmul.f32.gmra.mxu0 %v499
      %v913 = vpop.f32.mrf.mxu0
      %v914 = vadd.f32 0.0, %v913
      %915 = vmatmul.f32.gmra.mxu0 %v502
      %v916 = vpop.f32.mrf.mxu0
      %v917 = vadd.f32 0.0, %v916
      %918 = vmatmul.f32.gmra.mxu0 %v505
      %v919 = vpop.f32.mrf.mxu0
      %v920 = vadd.f32 0.0, %v919
      %921 = vmatmul.f32.gmra.mxu0 %v508
      %v922 = vpop.f32.mrf.mxu0
      %v923 = vadd.f32 0.0, %v922
      %924 = vmatmul.f32.gmra.mxu0 %v511
      %v925 = vpop.f32.mrf.mxu0
      %v926 = vadd.f32 0.0, %v925
      %927 = vmatmul.f32.gmra.mxu0 %v514
      %v928 = vpop.f32.mrf.mxu0
      %v929 = vadd.f32 0.0, %v928
      %930 = vmatmul.f32.gmra.mxu0 %v517
      %v931 = vpop.f32.mrf.mxu0
      %v932 = vadd.f32 0.0, %v931
      %933 = vmatmul.f32.gmra.mxu0 %v520
      %v934 = vpop.f32.mrf.mxu0
      %v935 = vadd.f32 0.0, %v934
      %936 = vmatmul.f32.gmra.mxu0 %v523
      %v937 = vpop.f32.mrf.mxu0
      %v938 = vadd.f32 0.0, %v937
      %939 = vmatmul.f32.gmra.mxu0 %v526
      %v940 = vpop.f32.mrf.mxu0
      %v941 = vadd.f32 0.0, %v940
      %942 = vmatmul.f32.gmra.mxu0 %v529
      %v943 = vpop.f32.mrf.mxu0
      %v944 = vadd.f32 0.0, %v943
      %945 = vmatmul.f32.gmra.mxu0 %v532
      %v946 = vpop.f32.mrf.mxu0
      %v947 = vadd.f32 0.0, %v946
      %948 = vmatmul.f32.gmra.mxu0 %v535
      %v949 = vpop.f32.mrf.mxu0
      %v950 = vadd.f32 0.0, %v949
      %951 = vmatmul.f32.gmra.mxu0 %v538
      %v952 = vpop.f32.mrf.mxu0
      %v953 = vadd.f32 0.0, %v952
      %954 = vmatmul.f32.gmra.mxu0 %v541
      %v955 = vpop.f32.mrf.mxu0
      %v956 = vadd.f32 0.0, %v955
      %957 = vmatmul.f32.gmra.mxu0 %v544
      %v958 = vpop.f32.mrf.mxu0
      %v959 = vadd.f32 0.0, %v958
      %960 = vmatmul.f32.gmra.mxu0 %v547
      %v961 = vpop.f32.mrf.mxu0
      %v962 = vadd.f32 0.0, %v961
      %963 = vmatmul.f32.gmra.mxu0 %v550
      %v964 = vpop.f32.mrf.mxu0
      %v965 = vadd.f32 0.0, %v964
      %966 = vmatmul.f32.gmra.mxu0 %v553
      %v967 = vpop.f32.mrf.mxu0
      %v968 = vadd.f32 0.0, %v967
      %969 = vmatmul.f32.gmra.mxu0 %v556
      %v970 = vpop.f32.mrf.mxu0
      %v971 = vadd.f32 0.0, %v970
      %972 = vmatmul.f32.gmra.mxu0 %v559
      %v973 = vpop.f32.mrf.mxu0
      %v974 = vadd.f32 0.0, %v973
      %975 = vmatmul.f32.gmra.mxu0 %v562
      %v976 = vpop.f32.mrf.mxu0
      %v977 = vadd.f32 0.0, %v976
      %978 = vmatmul.f32.gmra.mxu0 %v565
      %v979 = vpop.f32.mrf.mxu0
      %v980 = vadd.f32 0.0, %v979
      %981 = vmatmul.f32.gmra.mxu0 %v568
      %v982 = vpop.f32.mrf.mxu0
      %v983 = vadd.f32 0.0, %v982
      %984 = vmatmul.f32.gmra.mxu0 %v571
      %v985 = vpop.f32.mrf.mxu0
      %v986 = vadd.f32 0.0, %v985
      %987 = vdwg.mxu0
      %v988 = vmax.f32 %v893, 0.0
      %v989 = vmax.f32 %v896, 0.0
      %v990 = vmax.f32 %v899, 0.0
      %v991 = vmax.f32 %v902, 0.0
      %v992 = vmax.f32 %v905, 0.0
      %v993 = vmax.f32 %v908, 0.0
      %v994 = vmax.f32 %v911, 0.0
      %v995 = vmax.f32 %v914, 0.0
      %v996 = vmax.f32 %v917, 0.0
      %v997 = vmax.f32 %v920, 0.0
      %v998 = vmax.f32 %v923, 0.0
      %v999 = vmax.f32 %v926, 0.0
      %v1000 = vmax.f32 %v929, 0.0
      %v1001 = vmax.f32 %v932, 0.0
      %v1002 = vmax.f32 %v935, 0.0
      %v1003 = vmax.f32 %v938, 0.0
      %v1004 = vmax.f32 %v941, 0.0
      %v1005 = vmax.f32 %v944, 0.0
      %v1006 = vmax.f32 %v947, 0.0
      %v1007 = vmax.f32 %v950, 0.0
      %v1008 = vmax.f32 %v953, 0.0
      %v1009 = vmax.f32 %v956, 0.0
      %v1010 = vmax.f32 %v959, 0.0
      %v1011 = vmax.f32 %v962, 0.0
      %v1012 = vmax.f32 %v965, 0.0
      %v1013 = vmax.f32 %v968, 0.0
      %v1014 = vmax.f32 %v971, 0.0
      %v1015 = vmax.f32 %v974, 0.0
      %v1016 = vmax.f32 %v977, 0.0
      %v1017 = vmax.f32 %v980, 0.0
      %v1018 = vmax.f32 %v983, 0.0
      %v1019 = vmax.f32 %v986, 0.0
      %vm1020 = vcmask 392192
      %1021 = vst.msk [vmem:[#allocation2] sm:$0xff] %vm1020, 0.0
      %1022 = vst.msk [vmem:[#allocation2 + $0x8] sm:$0xff] %vm1020, 0.0
      %1023 = vst.msk [vmem:[#allocation2 + $0x10] sm:$0xff] %vm1020, 0.0
      %vm1024 = vcmask 386048
      %1025 = vst.msk [vmem:[#allocation2 + $0x18] sm:$0x3] %vm1024, 0.0
      %1026 = vst.msk [vmem:[#allocation2 + $0x20] sm:$0xff] %vm1020, 0.0
      %1027 = vst.msk [vmem:[#allocation2 + $0x28] sm:$0xff] %vm1020, 0.0
      %1028 = vst.msk [vmem:[#allocation2 + $0x30] sm:$0xff] %vm1020, 0.0
      %1029 = vst.msk [vmem:[#allocation2 + $0x38] sm:$0x3] %vm1024, 0.0
      %s1030 = scalar_lea.vmem [#allocation2], 576
      %1031 = vst.msk [vmem:[%s1030] sm:$0xff] %vm1020, 0.0
      %1032 = vst.msk [vmem:[%s1030 + $0x8] sm:$0xff] %vm1020, 0.0
      %1033 = vst.msk [vmem:[%s1030 + $0x10] sm:$0xff] %vm1020, 0.0
      %1034 = vst.msk [vmem:[%s1030 + $0x18] sm:$0x3] %vm1024, 0.0
      %1035 = vst.msk [vmem:[%s1030 + $0x20] sm:$0xff] %vm1020, 0.0
      %1036 = vst.msk [vmem:[%s1030 + $0x28] sm:$0xff] %vm1020, 0.0
      %1037 = vst.msk [vmem:[%s1030 + $0x30] sm:$0xff] %vm1020, 0.0
      %1038 = vst.msk [vmem:[%s1030 + $0x38] sm:$0x3] %vm1024, 0.0
      %1039 = vst.msk [vmem:[#allocation2 + $0x6] sm:$0x3] %vm1024, 0.0
      %1040 = vst.msk [vmem:[#allocation2 + $0x26] sm:$0x3] %vm1024, 0.0
      %1041 = vst.msk [vmem:[#allocation2 + $0x46] sm:$0x3] %vm1024, 0.0
      %1042 = vst.msk [vmem:[#allocation2 + $0x66] sm:$0x3] %vm1024, 0.0
      %1043 = vst.msk [vmem:[#allocation2 + $0x86] sm:$0x3] %vm1024, 0.0
      %1044 = vst.msk [vmem:[#allocation2 + $0xa6] sm:$0x3] %vm1024, 0.0
      %1045 = vst.msk [vmem:[#allocation2 + $0xc6] sm:$0x3] %vm1024, 0.0
      %1046 = vst.msk [vmem:[#allocation2 + $0xe6] sm:$0x3] %vm1024, 0.0
      %1047 = vst.msk [vmem:[#allocation2 + $0x106] sm:$0x3] %vm1024, 0.0
      %1048 = vst.msk [vmem:[#allocation2 + $0x126] sm:$0x3] %vm1024, 0.0
      %1049 = vst.msk [vmem:[#allocation2 + $0x146] sm:$0x3] %vm1024, 0.0
      %1050 = vst.msk [vmem:[#allocation2 + $0x166] sm:$0x3] %vm1024, 0.0
      %1051 = vst.msk [vmem:[#allocation2 + $0x186] sm:$0x3] %vm1024, 0.0
      %1052 = vst.msk [vmem:[#allocation2 + $0x1a6] sm:$0x3] %vm1024, 0.0
      %1053 = vst.msk [vmem:[#allocation2 + $0x1c6] sm:$0x3] %vm1024, 0.0
      %1054 = vst.msk [vmem:[#allocation2 + $0x1e6] sm:$0x3] %vm1024, 0.0
      %1055 = vst.msk [vmem:[#allocation2 + $0x206] sm:$0x3] %vm1024, 0.0
      %1056 = vst.msk [vmem:[#allocation2 + $0x226] sm:$0x3] %vm1024, 0.0
      %1057 = vst.msk [vmem:[#allocation2 + $0x246] sm:$0x3] %vm1024, 0.0
      %1058 = vst.msk [vmem:[#allocation2 + $0x266] sm:$0x3] %vm1024, 0.0
      %1059 = vst.msk [vmem:[#allocation2 + $0x18] sm:$0x3] %vm1024, 0.0
      %1060 = vst.msk [vmem:[#allocation2 + $0x38] sm:$0x3] %vm1024, 0.0
      %1061 = vst.msk [vmem:[#allocation2 + $0x58] sm:$0x3] %vm1024, 0.0
      %1062 = vst.msk [vmem:[#allocation2 + $0x78] sm:$0x3] %vm1024, 0.0
      %1063 = vst.msk [vmem:[#allocation2 + $0x98] sm:$0x3] %vm1024, 0.0
      %1064 = vst.msk [vmem:[#allocation2 + $0xb8] sm:$0x3] %vm1024, 0.0
      %1065 = vst.msk [vmem:[#allocation2 + $0xd8] sm:$0x3] %vm1024, 0.0
      %1066 = vst.msk [vmem:[#allocation2 + $0xf8] sm:$0x3] %vm1024, 0.0
      %1067 = vst.msk [vmem:[#allocation2 + $0x118] sm:$0x3] %vm1024, 0.0
      %1068 = vst.msk [vmem:[#allocation2 + $0x138] sm:$0x3] %vm1024, 0.0
      %1069 = vst.msk [vmem:[#allocation2 + $0x158] sm:$0x3] %vm1024, 0.0
      %1070 = vst.msk [vmem:[#allocation2 + $0x178] sm:$0x3] %vm1024, 0.0
      %1071 = vst.msk [vmem:[#allocation2 + $0x198] sm:$0x3] %vm1024, 0.0
      %1072 = vst.msk [vmem:[#allocation2 + $0x1b8] sm:$0x3] %vm1024, 0.0
      %1073 = vst.msk [vmem:[#allocation2 + $0x1d8] sm:$0x3] %vm1024, 0.0
      %1074 = vst.msk [vmem:[#allocation2 + $0x1f8] sm:$0x3] %vm1024, 0.0
      %1075 = vst.msk [vmem:[#allocation2 + $0x218] sm:$0x3] %vm1024, 0.0
      %1076 = vst.msk [vmem:[#allocation2 + $0x238] sm:$0x3] %vm1024, 0.0
      %1077 = vst.msk [vmem:[#allocation2 + $0x258] sm:$0x3] %vm1024, 0.0
      %1078 = vst.msk [vmem:[#allocation2 + $0x278] sm:$0x3] %vm1024, 0.0
      %vm1079 = vcmask 523264
      %1080 = vst.msk [vmem:[#allocation3] sm:$0xff] %vm1079, 0.0
      %1081 = vst.msk [vmem:[#allocation3 + $0x8] sm:$0xff] %vm1079, 0.0
      %1082 = vst.msk [vmem:[#allocation3 + $0x10] sm:$0xff] %vm1079, 0.0
      %vm1083 = vcmask 516096
      %1084 = vst.msk [vmem:[#allocation3 + $0x18] sm:$0x1] %vm1083, 0.0
      %s1085 = scalar_lea.vmem [#allocation3], 544
      %1086 = vst.msk [vmem:[%s1085] sm:$0xff] %vm1079, 0.0
      %1087 = vst.msk [vmem:[%s1085 + $0x8] sm:$0xff] %vm1079, 0.0
      %1088 = vst.msk [vmem:[%s1085 + $0x10] sm:$0xff] %vm1079, 0.0
      %1089 = vst.msk [vmem:[%s1085 + $0x18] sm:$0x1] %vm1083, 0.0
      %1090 = vst.msk [vmem:[#allocation3 + $0x7] sm:$0x1] %vm1083, 0.0
      %1091 = vst.msk [vmem:[#allocation3 + $0x27] sm:$0x1] %vm1083, 0.0
      %1092 = vst.msk [vmem:[#allocation3 + $0x47] sm:$0x1] %vm1083, 0.0
      %1093 = vst.msk [vmem:[#allocation3 + $0x67] sm:$0x1] %vm1083, 0.0
      %1094 = vst.msk [vmem:[#allocation3 + $0x87] sm:$0x1] %vm1083, 0.0
      %1095 = vst.msk [vmem:[#allocation3 + $0xa7] sm:$0x1] %vm1083, 0.0
      %1096 = vst.msk [vmem:[#allocation3 + $0xc7] sm:$0x1] %vm1083, 0.0
      %1097 = vst.msk [vmem:[#allocation3 + $0xe7] sm:$0x1] %vm1083, 0.0
      %1098 = vst.msk [vmem:[#allocation3 + $0x107] sm:$0x1] %vm1083, 0.0
      %1099 = vst.msk [vmem:[#allocation3 + $0x127] sm:$0x1] %vm1083, 0.0
      %1100 = vst.msk [vmem:[#allocation3 + $0x147] sm:$0x1] %vm1083, 0.0
      %1101 = vst.msk [vmem:[#allocation3 + $0x167] sm:$0x1] %vm1083, 0.0
      %1102 = vst.msk [vmem:[#allocation3 + $0x187] sm:$0x1] %vm1083, 0.0
      %1103 = vst.msk [vmem:[#allocation3 + $0x1a7] sm:$0x1] %vm1083, 0.0
      %1104 = vst.msk [vmem:[#allocation3 + $0x1c7] sm:$0x1] %vm1083, 0.0
      %1105 = vst.msk [vmem:[#allocation3 + $0x1e7] sm:$0x1] %vm1083, 0.0
      %1106 = vst.msk [vmem:[#allocation3 + $0x207] sm:$0x1] %vm1083, 0.0
      %1107 = vst.msk [vmem:[#allocation3 + $0x227] sm:$0x1] %vm1083, 0.0
      %1108 = vst.msk [vmem:[#allocation3 + $0x18] sm:$0x1] %vm1083, 0.0
      %1109 = vst.msk [vmem:[#allocation3 + $0x38] sm:$0x1] %vm1083, 0.0
      %1110 = vst.msk [vmem:[#allocation3 + $0x58] sm:$0x1] %vm1083, 0.0
      %1111 = vst.msk [vmem:[#allocation3 + $0x78] sm:$0x1] %vm1083, 0.0
      %1112 = vst.msk [vmem:[#allocation3 + $0x98] sm:$0x1] %vm1083, 0.0
      %1113 = vst.msk [vmem:[#allocation3 + $0xb8] sm:$0x1] %vm1083, 0.0
      %1114 = vst.msk [vmem:[#allocation3 + $0xd8] sm:$0x1] %vm1083, 0.0
      %1115 = vst.msk [vmem:[#allocation3 + $0xf8] sm:$0x1] %vm1083, 0.0
      %1116 = vst.msk [vmem:[#allocation3 + $0x118] sm:$0x1] %vm1083, 0.0
      %1117 = vst.msk [vmem:[#allocation3 + $0x138] sm:$0x1] %vm1083, 0.0
      %1118 = vst.msk [vmem:[#allocation3 + $0x158] sm:$0x1] %vm1083, 0.0
      %1119 = vst.msk [vmem:[#allocation3 + $0x178] sm:$0x1] %vm1083, 0.0
      %1120 = vst.msk [vmem:[#allocation3 + $0x198] sm:$0x1] %vm1083, 0.0
      %1121 = vst.msk [vmem:[#allocation3 + $0x1b8] sm:$0x1] %vm1083, 0.0
      %1122 = vst.msk [vmem:[#allocation3 + $0x1d8] sm:$0x1] %vm1083, 0.0
      %1123 = vst.msk [vmem:[#allocation3 + $0x1f8] sm:$0x1] %vm1083, 0.0
      %1124 = vst.msk [vmem:[#allocation3 + $0x218] sm:$0x1] %vm1083, 0.0
      %1125 = vst.msk [vmem:[#allocation3 + $0x238] sm:$0x1] %vm1083, 0.0
      %vm1126 = vcmask 785408
      %1127 = vst.msk [vmem:[#allocation4] sm:$0xff] %vm1126, 0.0
      %1128 = vst.msk [vmem:[#allocation4 + $0x8] sm:$0xff] %vm1126, 0.0
      %1129 = vst.msk [vmem:[#allocation4 + $0x10] sm:$0xff] %vm1126, 0.0
      %vm1130 = vcmask 778240
      %1131 = vst.msk [vmem:[#allocation4 + $0x18] sm:$0x1] %vm1130, 0.0
      %s1132 = scalar_lea.vmem [#allocation4], 544
      %1133 = vst.msk [vmem:[%s1132] sm:$0xff] %vm1126, 0.0
      %1134 = vst.msk [vmem:[%s1132 + $0x8] sm:$0xff] %vm1126, 0.0
      %1135 = vst.msk [vmem:[%s1132 + $0x10] sm:$0xff] %vm1126, 0.0
      %1136 = vst.msk [vmem:[%s1132 + $0x18] sm:$0x1] %vm1130, 0.0
      %1137 = vst.msk [vmem:[#allocation4 + $0x7] sm:$0x1] %vm1130, 0.0
      %1138 = vst.msk [vmem:[#allocation4 + $0x27] sm:$0x1] %vm1130, 0.0
      %1139 = vst.msk [vmem:[#allocation4 + $0x47] sm:$0x1] %vm1130, 0.0
      %1140 = vst.msk [vmem:[#allocation4 + $0x67] sm:$0x1] %vm1130, 0.0
      %1141 = vst.msk [vmem:[#allocation4 + $0x87] sm:$0x1] %vm1130, 0.0
      %1142 = vst.msk [vmem:[#allocation4 + $0xa7] sm:$0x1] %vm1130, 0.0
      %1143 = vst.msk [vmem:[#allocation4 + $0xc7] sm:$0x1] %vm1130, 0.0
      %1144 = vst.msk [vmem:[#allocation4 + $0xe7] sm:$0x1] %vm1130, 0.0
      %1145 = vst.msk [vmem:[#allocation4 + $0x107] sm:$0x1] %vm1130, 0.0
      %1146 = vst.msk [vmem:[#allocation4 + $0x127] sm:$0x1] %vm1130, 0.0
      %1147 = vst.msk [vmem:[#allocation4 + $0x147] sm:$0x1] %vm1130, 0.0
      %1148 = vst.msk [vmem:[#allocation4 + $0x167] sm:$0x1] %vm1130, 0.0
      %1149 = vst.msk [vmem:[#allocation4 + $0x187] sm:$0x1] %vm1130, 0.0
      %1150 = vst.msk [vmem:[#allocation4 + $0x1a7] sm:$0x1] %vm1130, 0.0
      %1151 = vst.msk [vmem:[#allocation4 + $0x1c7] sm:$0x1] %vm1130, 0.0
      %1152 = vst.msk [vmem:[#allocation4 + $0x1e7] sm:$0x1] %vm1130, 0.0
      %1153 = vst.msk [vmem:[#allocation4 + $0x207] sm:$0x1] %vm1130, 0.0
      %1154 = vst.msk [vmem:[#allocation4 + $0x227] sm:$0x1] %vm1130, 0.0
      %1155 = vst.msk [vmem:[#allocation4 + $0x18] sm:$0x1] %vm1130, 0.0
      %1156 = vst.msk [vmem:[#allocation4 + $0x38] sm:$0x1] %vm1130, 0.0
      %1157 = vst.msk [vmem:[#allocation4 + $0x58] sm:$0x1] %vm1130, 0.0
      %1158 = vst.msk [vmem:[#allocation4 + $0x78] sm:$0x1] %vm1130, 0.0
      %1159 = vst.msk [vmem:[#allocation4 + $0x98] sm:$0x1] %vm1130, 0.0
      %1160 = vst.msk [vmem:[#allocation4 + $0xb8] sm:$0x1] %vm1130, 0.0
      %1161 = vst.msk [vmem:[#allocation4 + $0xd8] sm:$0x1] %vm1130, 0.0
      %1162 = vst.msk [vmem:[#allocation4 + $0xf8] sm:$0x1] %vm1130, 0.0
      %1163 = vst.msk [vmem:[#allocation4 + $0x118] sm:$0x1] %vm1130, 0.0
      %1164 = vst.msk [vmem:[#allocation4 + $0x138] sm:$0x1] %vm1130, 0.0
      %1165 = vst.msk [vmem:[#allocation4 + $0x158] sm:$0x1] %vm1130, 0.0
      %1166 = vst.msk [vmem:[#allocation4 + $0x178] sm:$0x1] %vm1130, 0.0
      %1167 = vst.msk [vmem:[#allocation4 + $0x198] sm:$0x1] %vm1130, 0.0
      %1168 = vst.msk [vmem:[#allocation4 + $0x1b8] sm:$0x1] %vm1130, 0.0
      %1169 = vst.msk [vmem:[#allocation4 + $0x1d8] sm:$0x1] %vm1130, 0.0
      %1170 = vst.msk [vmem:[#allocation4 + $0x1f8] sm:$0x1] %vm1130, 0.0
      %1171 = vst.msk [vmem:[#allocation4 + $0x218] sm:$0x1] %vm1130, 0.0
      %1172 = vst.msk [vmem:[#allocation4 + $0x238] sm:$0x1] %vm1130, 0.0
      %1173 = vst.msk [vmem:[#allocation5] sm:$0xff] %vm476, 0.0
      %1174 = vst.msk [vmem:[#allocation5 + $0x8] sm:$0xff] %vm476, 0.0
      %1175 = vst.msk [vmem:[#allocation5 + $0x10] sm:$0xff] %vm476, 0.0
      %vm1176 = vcmask 24576
      %1177 = vst.msk [vmem:[#allocation5 + $0x18] sm:$0x1] %vm1176, 0.0
      %s1178 = scalar_lea.vmem [#allocation5], 544
      %1179 = vst.msk [vmem:[%s1178] sm:$0xff] %vm476, 0.0
      %1180 = vst.msk [vmem:[%s1178 + $0x8] sm:$0xff] %vm476, 0.0
      %1181 = vst.msk [vmem:[%s1178 + $0x10] sm:$0xff] %vm476, 0.0
      %1182 = vst.msk [vmem:[%s1178 + $0x18] sm:$0x1] %vm1176, 0.0
      %1183 = vst.msk [vmem:[#allocation5 + $0x7] sm:$0x1] %vm1176, 0.0
      %1184 = vst.msk [vmem:[#allocation5 + $0x27] sm:$0x1] %vm1176, 0.0
      %1185 = vst.msk [vmem:[#allocation5 + $0x47] sm:$0x1] %vm1176, 0.0
      %1186 = vst.msk [vmem:[#allocation5 + $0x67] sm:$0x1] %vm1176, 0.0
      %1187 = vst.msk [vmem:[#allocation5 + $0x87] sm:$0x1] %vm1176, 0.0
      %1188 = vst.msk [vmem:[#allocation5 + $0xa7] sm:$0x1] %vm1176, 0.0
      %1189 = vst.msk [vmem:[#allocation5 + $0xc7] sm:$0x1] %vm1176, 0.0
      %1190 = vst.msk [vmem:[#allocation5 + $0xe7] sm:$0x1] %vm1176, 0.0
      %1191 = vst.msk [vmem:[#allocation5 + $0x107] sm:$0x1] %vm1176, 0.0
      %1192 = vst.msk [vmem:[#allocation5 + $0x127] sm:$0x1] %vm1176, 0.0
      %1193 = vst.msk [vmem:[#allocation5 + $0x147] sm:$0x1] %vm1176, 0.0
      %1194 = vst.msk [vmem:[#allocation5 + $0x167] sm:$0x1] %vm1176, 0.0
      %1195 = vst.msk [vmem:[#allocation5 + $0x187] sm:$0x1] %vm1176, 0.0
      %1196 = vst.msk [vmem:[#allocation5 + $0x1a7] sm:$0x1] %vm1176, 0.0
      %1197 = vst.msk [vmem:[#allocation5 + $0x1c7] sm:$0x1] %vm1176, 0.0
      %1198 = vst.msk [vmem:[#allocation5 + $0x1e7] sm:$0x1] %vm1176, 0.0
      %1199 = vst.msk [vmem:[#allocation5 + $0x207] sm:$0x1] %vm1176, 0.0
      %1200 = vst.msk [vmem:[#allocation5 + $0x227] sm:$0x1] %vm1176, 0.0
      %1201 = vst.msk [vmem:[#allocation5 + $0x18] sm:$0x1] %vm1176, 0.0
      %1202 = vst.msk [vmem:[#allocation5 + $0x38] sm:$0x1] %vm1176, 0.0
      %1203 = vst.msk [vmem:[#allocation5 + $0x58] sm:$0x1] %vm1176, 0.0
      %1204 = vst.msk [vmem:[#allocation5 + $0x78] sm:$0x1] %vm1176, 0.0
      %1205 = vst.msk [vmem:[#allocation5 + $0x98] sm:$0x1] %vm1176, 0.0
      %1206 = vst.msk [vmem:[#allocation5 + $0xb8] sm:$0x1] %vm1176, 0.0
      %1207 = vst.msk [vmem:[#allocation5 + $0xd8] sm:$0x1] %vm1176, 0.0
      %1208 = vst.msk [vmem:[#allocation5 + $0xf8] sm:$0x1] %vm1176, 0.0
      %1209 = vst.msk [vmem:[#allocation5 + $0x118] sm:$0x1] %vm1176, 0.0
      %1210 = vst.msk [vmem:[#allocation5 + $0x138] sm:$0x1] %vm1176, 0.0
      %1211 = vst.msk [vmem:[#allocation5 + $0x158] sm:$0x1] %vm1176, 0.0
      %1212 = vst.msk [vmem:[#allocation5 + $0x178] sm:$0x1] %vm1176, 0.0
      %1213 = vst.msk [vmem:[#allocation5 + $0x198] sm:$0x1] %vm1176, 0.0
      %1214 = vst.msk [vmem:[#allocation5 + $0x1b8] sm:$0x1] %vm1176, 0.0
      %1215 = vst.msk [vmem:[#allocation5 + $0x1d8] sm:$0x1] %vm1176, 0.0
      %1216 = vst.msk [vmem:[#allocation5 + $0x1f8] sm:$0x1] %vm1176, 0.0
      %1217 = vst.msk [vmem:[#allocation5 + $0x218] sm:$0x1] %vm1176, 0.0
      %1218 = vst.msk [vmem:[#allocation5 + $0x238] sm:$0x1] %vm1176, 0.0
      %s1219 = scalar_lea.vmem [#allocation2], 64
      %1220 = vst.msk [vmem:[%s1219 + $0x8] sm:$0xff] %vm1020, %v839
      %1221 = vst.msk [vmem:[%s1219 + $0x10] sm:$0xff] %vm1020, %v840
      %1222 = vst.msk [vmem:[%s1219 + $0x28] sm:$0xff] %vm1020, %v841
      %1223 = vst.msk [vmem:[%s1219 + $0x30] sm:$0xff] %vm1020, %v842
      %1224 = vst.msk [vmem:[%s1219 + $0x48] sm:$0xff] %vm1020, %v843
      %1225 = vst.msk [vmem:[%s1219 + $0x50] sm:$0xff] %vm1020, %v844
      %1226 = vst.msk [vmem:[%s1219 + $0x68] sm:$0xff] %vm1020, %v845
      %1227 = vst.msk [vmem:[%s1219 + $0x70] sm:$0xff] %vm1020, %v846
      %1228 = vst.msk [vmem:[%s1219 + $0x88] sm:$0xff] %vm1020, %v847
      %1229 = vst.msk [vmem:[%s1219 + $0x90] sm:$0xff] %vm1020, %v848
      %1230 = vst.msk [vmem:[%s1219 + $0xa8] sm:$0xff] %vm1020, %v849
      %1231 = vst.msk [vmem:[%s1219 + $0xb0] sm:$0xff] %vm1020, %v850
      %1232 = vst.msk [vmem:[%s1219 + $0xc8] sm:$0xff] %vm1020, %v851
      %1233 = vst.msk [vmem:[%s1219 + $0xd0] sm:$0xff] %vm1020, %v852
      %1234 = vst.msk [vmem:[%s1219 + $0xe8] sm:$0xff] %vm1020, %v853
      %1235 = vst.msk [vmem:[%s1219 + $0xf0] sm:$0xff] %vm1020, %v854
      %1236 = vst.msk [vmem:[%s1219 + $0x108] sm:$0xff] %vm1020, %v855
      %1237 = vst.msk [vmem:[%s1219 + $0x110] sm:$0xff] %vm1020, %v856
      %1238 = vst.msk [vmem:[%s1219 + $0x128] sm:$0xff] %vm1020, %v857
      %1239 = vst.msk [vmem:[%s1219 + $0x130] sm:$0xff] %vm1020, %v858
      %1240 = vst.msk [vmem:[%s1219 + $0x148] sm:$0xff] %vm1020, %v859
      %1241 = vst.msk [vmem:[%s1219 + $0x150] sm:$0xff] %vm1020, %v860
      %1242 = vst.msk [vmem:[%s1219 + $0x168] sm:$0xff] %vm1020, %v861
      %1243 = vst.msk [vmem:[%s1219 + $0x170] sm:$0xff] %vm1020, %v862
      %1244 = vst.msk [vmem:[%s1219 + $0x188] sm:$0xff] %vm1020, %v863
      %1245 = vst.msk [vmem:[%s1219 + $0x190] sm:$0xff] %vm1020, %v864
      %1246 = vst.msk [vmem:[%s1219 + $0x1a8] sm:$0xff] %vm1020, %v865
      %1247 = vst.msk [vmem:[%s1219 + $0x1b0] sm:$0xff] %vm1020, %v866
      %1248 = vst.msk [vmem:[%s1219 + $0x1c8] sm:$0xff] %vm1020, %v867
      %1249 = vst.msk [vmem:[%s1219 + $0x1d0] sm:$0xff] %vm1020, %v868
      %1250 = vst.msk [vmem:[%s1219 + $0x1e8] sm:$0xff] %vm1020, %v869
      %1251 = vst.msk [vmem:[%s1219 + $0x1f0] sm:$0xff] %vm1020, %v870
      %s1252 = scalar_lea.vmem [#allocation3], 32
      %1253 = vst.msk [vmem:[%s1252 + $0x8] sm:$0xff] %vm1079, %v988
      %1254 = vst.msk [vmem:[%s1252 + $0x10] sm:$0xff] %vm1079, %v989
      %1255 = vst.msk [vmem:[%s1252 + $0x28] sm:$0xff] %vm1079, %v990
      %1256 = vst.msk [vmem:[%s1252 + $0x30] sm:$0xff] %vm1079, %v991
      %1257 = vst.msk [vmem:[%s1252 + $0x48] sm:$0xff] %vm1079, %v992
      %1258 = vst.msk [vmem:[%s1252 + $0x50] sm:$0xff] %vm1079, %v993
      %1259 = vst.msk [vmem:[%s1252 + $0x68] sm:$0xff] %vm1079, %v994
      %1260 = vst.msk [vmem:[%s1252 + $0x70] sm:$0xff] %vm1079, %v995
      %1261 = vst.msk [vmem:[%s1252 + $0x88] sm:$0xff] %vm1079, %v996
      %1262 = vst.msk [vmem:[%s1252 + $0x90] sm:$0xff] %vm1079, %v997
      %1263 = vst.msk [vmem:[%s1252 + $0xa8] sm:$0xff] %vm1079, %v998
      %1264 = vst.msk [vmem:[%s1252 + $0xb0] sm:$0xff] %vm1079, %v999
      %1265 = vst.msk [vmem:[%s1252 + $0xc8] sm:$0xff] %vm1079, %v1000
      %1266 = vst.msk [vmem:[%s1252 + $0xd0] sm:$0xff] %vm1079, %v1001
      %1267 = vst.msk [vmem:[%s1252 + $0xe8] sm:$0xff] %vm1079, %v1002
      %1268 = vst.msk [vmem:[%s1252 + $0xf0] sm:$0xff] %vm1079, %v1003
      %1269 = vst.msk [vmem:[%s1252 + $0x108] sm:$0xff] %vm1079, %v1004
      %1270 = vst.msk [vmem:[%s1252 + $0x110] sm:$0xff] %vm1079, %v1005
      %1271 = vst.msk [vmem:[%s1252 + $0x128] sm:$0xff] %vm1079, %v1006
      %1272 = vst.msk [vmem:[%s1252 + $0x130] sm:$0xff] %vm1079, %v1007
      %1273 = vst.msk [vmem:[%s1252 + $0x148] sm:$0xff] %vm1079, %v1008
      %1274 = vst.msk [vmem:[%s1252 + $0x150] sm:$0xff] %vm1079, %v1009
      %1275 = vst.msk [vmem:[%s1252 + $0x168] sm:$0xff] %vm1079, %v1010
      %1276 = vst.msk [vmem:[%s1252 + $0x170] sm:$0xff] %vm1079, %v1011
      %1277 = vst.msk [vmem:[%s1252 + $0x188] sm:$0xff] %vm1079, %v1012
      %1278 = vst.msk [vmem:[%s1252 + $0x190] sm:$0xff] %vm1079, %v1013
      %1279 = vst.msk [vmem:[%s1252 + $0x1a8] sm:$0xff] %vm1079, %v1014
      %1280 = vst.msk [vmem:[%s1252 + $0x1b0] sm:$0xff] %vm1079, %v1015
      %1281 = vst.msk [vmem:[%s1252 + $0x1c8] sm:$0xff] %vm1079, %v1016
      %1282 = vst.msk [vmem:[%s1252 + $0x1d0] sm:$0xff] %vm1079, %v1017
      %1283 = vst.msk [vmem:[%s1252 + $0x1e8] sm:$0xff] %vm1079, %v1018
      %1284 = vst.msk [vmem:[%s1252 + $0x1f0] sm:$0xff] %vm1079, %v1019
      %s1285 = scalar_lea.vmem [#allocation5], 32
      %1286 = vst.msk [vmem:[%s1285 + $0x8] sm:$0xff] %vm476, %v443
      %1287 = vst.msk [vmem:[%s1285 + $0x10] sm:$0xff] %vm476, %v444
      %1288 = vst.msk [vmem:[%s1285 + $0x28] sm:$0xff] %vm476, %v445
      %1289 = vst.msk [vmem:[%s1285 + $0x30] sm:$0xff] %vm476, %v446
      %1290 = vst.msk [vmem:[%s1285 + $0x48] sm:$0xff] %vm476, %v447
      %1291 = vst.msk [vmem:[%s1285 + $0x50] sm:$0xff] %vm476, %v448
      %1292 = vst.msk [vmem:[%s1285 + $0x68] sm:$0xff] %vm476, %v449
      %1293 = vst.msk [vmem:[%s1285 + $0x70] sm:$0xff] %vm476, %v450
      %1294 = vst.msk [vmem:[%s1285 + $0x88] sm:$0xff] %vm476, %v451
      %1295 = vst.msk [vmem:[%s1285 + $0x90] sm:$0xff] %vm476, %v452
      %1296 = vst.msk [vmem:[%s1285 + $0xa8] sm:$0xff] %vm476, %v453
      %1297 = vst.msk [vmem:[%s1285 + $0xb0] sm:$0xff] %vm476, %v454
      %1298 = vst.msk [vmem:[%s1285 + $0xc8] sm:$0xff] %vm476, %v455
      %1299 = vst.msk [vmem:[%s1285 + $0xd0] sm:$0xff] %vm476, %v456
      %1300 = vst.msk [vmem:[%s1285 + $0xe8] sm:$0xff] %vm476, %v457
      %1301 = vst.msk [vmem:[%s1285 + $0xf0] sm:$0xff] %vm476, %v458
      %1302 = vst.msk [vmem:[%s1285 + $0x108] sm:$0xff] %vm476, %v459
      %1303 = vst.msk [vmem:[%s1285 + $0x110] sm:$0xff] %vm476, %v460
      %1304 = vst.msk [vmem:[%s1285 + $0x128] sm:$0xff] %vm476, %v461
      %1305 = vst.msk [vmem:[%s1285 + $0x130] sm:$0xff] %vm476, %v462
      %1306 = vst.msk [vmem:[%s1285 + $0x148] sm:$0xff] %vm476, %v463
      %1307 = vst.msk [vmem:[%s1285 + $0x150] sm:$0xff] %vm476, %v464
      %1308 = vst.msk [vmem:[%s1285 + $0x168] sm:$0xff] %vm476, %v465
      %1309 = vst.msk [vmem:[%s1285 + $0x170] sm:$0xff] %vm476, %v466
      %1310 = vst.msk [vmem:[%s1285 + $0x188] sm:$0xff] %vm476, %v467
      %1311 = vst.msk [vmem:[%s1285 + $0x190] sm:$0xff] %vm476, %v468
      %1312 = vst.msk [vmem:[%s1285 + $0x1a8] sm:$0xff] %vm476, %v469
      %1313 = vst.msk [vmem:[%s1285 + $0x1b0] sm:$0xff] %vm476, %v470
      %1314 = vst.msk [vmem:[%s1285 + $0x1c8] sm:$0xff] %vm476, %v471
      %1315 = vst.msk [vmem:[%s1285 + $0x1d0] sm:$0xff] %vm476, %v472
      %1316 = vst.msk [vmem:[%s1285 + $0x1e8] sm:$0xff] %vm476, %v473
      %1317 = vst.msk [vmem:[%s1285 + $0x1f0] sm:$0xff] %vm476, %v474
      %v1318 = vld [vmem:[#allocation2 + $0x6] sm:$0xff]
      %v1319 = vld [vmem:[#allocation2 + $0xe] sm:$0xff]
      %v1320 = vld [vmem:[#allocation2 + $0x26] sm:$0xff]
      %v1321 = vld [vmem:[#allocation2 + $0x2e] sm:$0xff]
      %v1322 = vld [vmem:[#allocation2 + $0x46] sm:$0xff]
      %v1323 = vld [vmem:[#allocation2 + $0x4e] sm:$0xff]
      %v1324 = vld [vmem:[#allocation2 + $0x66] sm:$0xff]
      %v1325 = vld [vmem:[#allocation2 + $0x6e] sm:$0xff]
      %v1326 = vld [vmem:[#allocation2 + $0x86] sm:$0xff]
      %v1327 = vld [vmem:[#allocation2 + $0x8e] sm:$0xff]
      %v1328 = vld [vmem:[#allocation2 + $0xa6] sm:$0xff]
      %v1329 = vld [vmem:[#allocation2 + $0xae] sm:$0xff]
      %v1330 = vld [vmem:[#allocation2 + $0xc6] sm:$0xff]
      %v1331 = vld [vmem:[#allocation2 + $0xce] sm:$0xff]
      %v1332 = vld [vmem:[#allocation2 + $0xe6] sm:$0xff]
      %v1333 = vld [vmem:[#allocation2 + $0xee] sm:$0xff]
      %v1334 = vld [vmem:[#allocation2 + $0x106] sm:$0xff]
      %v1335 = vld [vmem:[#allocation2 + $0x10e] sm:$0xff]
      %v1336 = vld [vmem:[#allocation2 + $0x126] sm:$0xff]
      %v1337 = vld [vmem:[#allocation2 + $0x12e] sm:$0xff]
      %v1338 = vld [vmem:[#allocation2 + $0x146] sm:$0xff]
      %v1339 = vld [vmem:[#allocation2 + $0x14e] sm:$0xff]
      %v1340 = vld [vmem:[#allocation2 + $0x166] sm:$0xff]
      %v1341 = vld [vmem:[#allocation2 + $0x16e] sm:$0xff]
      %v1342 = vld [vmem:[#allocation2 + $0x186] sm:$0xff]
      %v1343 = vld [vmem:[#allocation2 + $0x18e] sm:$0xff]
      %v1344 = vld [vmem:[#allocation2 + $0x1a6] sm:$0xff]
      %v1345 = vld [vmem:[#allocation2 + $0x1ae] sm:$0xff]
      %v1346 = vld [vmem:[#allocation2 + $0x1c6] sm:$0xff]
      %v1347 = vld [vmem:[#allocation2 + $0x1ce] sm:$0xff]
      %v1348 = vld [vmem:[#allocation2 + $0x1e6] sm:$0xff]
      %v1349 = vld [vmem:[#allocation2 + $0x1ee] sm:$0xff]
      %v1350 = vld [vmem:[#allocation2 + $0x7] sm:$0xff]
      %v1351 = vld [vmem:[#allocation2 + $0xf] sm:$0xff]
      %v1352 = vld [vmem:[#allocation2 + $0x27] sm:$0xff]
      %v1353 = vld [vmem:[#allocation2 + $0x2f] sm:$0xff]
      %v1354 = vld [vmem:[#allocation2 + $0x47] sm:$0xff]
      %v1355 = vld [vmem:[#allocation2 + $0x4f] sm:$0xff]
      %v1356 = vld [vmem:[#allocation2 + $0x67] sm:$0xff]
      %v1357 = vld [vmem:[#allocation2 + $0x6f] sm:$0xff]
      %v1358 = vld [vmem:[#allocation2 + $0x87] sm:$0xff]
      %v1359 = vld [vmem:[#allocation2 + $0x8f] sm:$0xff]
      %v1360 = vld [vmem:[#allocation2 + $0xa7] sm:$0xff]
      %v1361 = vld [vmem:[#allocation2 + $0xaf] sm:$0xff]
      %v1362 = vld [vmem:[#allocation2 + $0xc7] sm:$0xff]
      %v1363 = vld [vmem:[#allocation2 + $0xcf] sm:$0xff]
      %v1364 = vld [vmem:[#allocation2 + $0xe7] sm:$0xff]
      %v1365 = vld [vmem:[#allocation2 + $0xef] sm:$0xff]
      %v1366 = vld [vmem:[#allocation2 + $0x107] sm:$0xff]
      %v1367 = vld [vmem:[#allocation2 + $0x10f] sm:$0xff]
      %v1368 = vld [vmem:[#allocation2 + $0x127] sm:$0xff]
      %v1369 = vld [vmem:[#allocation2 + $0x12f] sm:$0xff]
      %v1370 = vld [vmem:[#allocation2 + $0x147] sm:$0xff]
      %v1371 = vld [vmem:[#allocation2 + $0x14f] sm:$0xff]
      %v1372 = vld [vmem:[#allocation2 + $0x167] sm:$0xff]
      %v1373 = vld [vmem:[#allocation2 + $0x16f] sm:$0xff]
      %v1374 = vld [vmem:[#allocation2 + $0x187] sm:$0xff]
      %v1375 = vld [vmem:[#allocation2 + $0x18f] sm:$0xff]
      %v1376 = vld [vmem:[#allocation2 + $0x1a7] sm:$0xff]
      %v1377 = vld [vmem:[#allocation2 + $0x1af] sm:$0xff]
      %v1378 = vld [vmem:[#allocation2 + $0x1c7] sm:$0xff]
      %v1379 = vld [vmem:[#allocation2 + $0x1cf] sm:$0xff]
      %v1380 = vld [vmem:[#allocation2 + $0x1e7] sm:$0xff]
      %v1381 = vld [vmem:[#allocation2 + $0x1ef] sm:$0xff]
      %v1382 = vld [vmem:[#allocation2 + $0x8] sm:$0xff]
      %v1383 = vld [vmem:[#allocation2 + $0x10] sm:$0xff]
      %v1384 = vld [vmem:[#allocation2 + $0x28] sm:$0xff]
      %v1385 = vld [vmem:[#allocation2 + $0x30] sm:$0xff]
      %v1386 = vld [vmem:[#allocation2 + $0x48] sm:$0xff]
      %v1387 = vld [vmem:[#allocation2 + $0x50] sm:$0xff]
      %v1388 = vld [vmem:[#allocation2 + $0x68] sm:$0xff]
      %v1389 = vld [vmem:[#allocation2 + $0x70] sm:$0xff]
      %v1390 = vld [vmem:[#allocation2 + $0x88] sm:$0xff]
      %v1391 = vld [vmem:[#allocation2 + $0x90] sm:$0xff]
      %v1392 = vld [vmem:[#allocation2 + $0xa8] sm:$0xff]
      %v1393 = vld [vmem:[#allocation2 + $0xb0] sm:$0xff]
      %v1394 = vld [vmem:[#allocation2 + $0xc8] sm:$0xff]
      %v1395 = vld [vmem:[#allocation2 + $0xd0] sm:$0xff]
      %v1396 = vld [vmem:[#allocation2 + $0xe8] sm:$0xff]
      %v1397 = vld [vmem:[#allocation2 + $0xf0] sm:$0xff]
      %v1398 = vld [vmem:[#allocation2 + $0x108] sm:$0xff]
      %v1399 = vld [vmem:[#allocation2 + $0x110] sm:$0xff]
      %v1400 = vld [vmem:[#allocation2 + $0x128] sm:$0xff]
      %v1401 = vld [vmem:[#allocation2 + $0x130] sm:$0xff]
      %v1402 = vld [vmem:[#allocation2 + $0x148] sm:$0xff]
      %v1403 = vld [vmem:[#allocation2 + $0x150] sm:$0xff]
      %v1404 = vld [vmem:[#allocation2 + $0x168] sm:$0xff]
      %v1405 = vld [vmem:[#allocation2 + $0x170] sm:$0xff]
      %v1406 = vld [vmem:[#allocation2 + $0x188] sm:$0xff]
      %v1407 = vld [vmem:[#allocation2 + $0x190] sm:$0xff]
      %v1408 = vld [vmem:[#allocation2 + $0x1a8] sm:$0xff]
      %v1409 = vld [vmem:[#allocation2 + $0x1b0] sm:$0xff]
      %v1410 = vld [vmem:[#allocation2 + $0x1c8] sm:$0xff]
      %v1411 = vld [vmem:[#allocation2 + $0x1d0] sm:$0xff]
      %v1412 = vld [vmem:[#allocation2 + $0x1e8] sm:$0xff]
      %v1413 = vld [vmem:[#allocation2 + $0x1f0] sm:$0xff]
      %v1414 = vld [vmem:[#allocation2 + $0x9] sm:$0xff]
      %v1415 = vld [vmem:[#allocation2 + $0x11] sm:$0xff]
      %v1416 = vld [vmem:[#allocation2 + $0x29] sm:$0xff]
      %v1417 = vld [vmem:[#allocation2 + $0x31] sm:$0xff]
      %v1418 = vld [vmem:[#allocation2 + $0x49] sm:$0xff]
      %v1419 = vld [vmem:[#allocation2 + $0x51] sm:$0xff]
      %v1420 = vld [vmem:[#allocation2 + $0x69] sm:$0xff]
      %v1421 = vld [vmem:[#allocation2 + $0x71] sm:$0xff]
      %v1422 = vld [vmem:[#allocation2 + $0x89] sm:$0xff]
      %v1423 = vld [vmem:[#allocation2 + $0x91] sm:$0xff]
      %v1424 = vld [vmem:[#allocation2 + $0xa9] sm:$0xff]
      %v1425 = vld [vmem:[#allocation2 + $0xb1] sm:$0xff]
      %v1426 = vld [vmem:[#allocation2 + $0xc9] sm:$0xff]
      %v1427 = vld [vmem:[#allocation2 + $0xd1] sm:$0xff]
      %v1428 = vld [vmem:[#allocation2 + $0xe9] sm:$0xff]
      %v1429 = vld [vmem:[#allocation2 + $0xf1] sm:$0xff]
      %v1430 = vld [vmem:[#allocation2 + $0x109] sm:$0xff]
      %v1431 = vld [vmem:[#allocation2 + $0x111] sm:$0xff]
      %v1432 = vld [vmem:[#allocation2 + $0x129] sm:$0xff]
      %v1433 = vld [vmem:[#allocation2 + $0x131] sm:$0xff]
      %v1434 = vld [vmem:[#allocation2 + $0x149] sm:$0xff]
      %v1435 = vld [vmem:[#allocation2 + $0x151] sm:$0xff]
      %v1436 = vld [vmem:[#allocation2 + $0x169] sm:$0xff]
      %v1437 = vld [vmem:[#allocation2 + $0x171] sm:$0xff]
      %v1438 = vld [vmem:[#allocation2 + $0x189] sm:$0xff]
      %v1439 = vld [vmem:[#allocation2 + $0x191] sm:$0xff]
      %v1440 = vld [vmem:[#allocation2 + $0x1a9] sm:$0xff]
      %v1441 = vld [vmem:[#allocation2 + $0x1b1] sm:$0xff]
      %v1442 = vld [vmem:[#allocation2 + $0x1c9] sm:$0xff]
      %v1443 = vld [vmem:[#allocation2 + $0x1d1] sm:$0xff]
      %v1444 = vld [vmem:[#allocation2 + $0x1e9] sm:$0xff]
      %v1445 = vld [vmem:[#allocation2 + $0x1f1] sm:$0xff]
      %v1446 = vld [vmem:[#allocation2 + $0xa] sm:$0xff]
      %v1447 = vld [vmem:[#allocation2 + $0x12] sm:$0xff]
      %v1448 = vld [vmem:[#allocation2 + $0x2a] sm:$0xff]
      %v1449 = vld [vmem:[#allocation2 + $0x32] sm:$0xff]
      %v1450 = vld [vmem:[#allocation2 + $0x4a] sm:$0xff]
      %v1451 = vld [vmem:[#allocation2 + $0x52] sm:$0xff]
      %v1452 = vld [vmem:[#allocation2 + $0x6a] sm:$0xff]
      %v1453 = vld [vmem:[#allocation2 + $0x72] sm:$0xff]
      %v1454 = vld [vmem:[#allocation2 + $0x8a] sm:$0xff]
      %v1455 = vld [vmem:[#allocation2 + $0x92] sm:$0xff]
      %v1456 = vld [vmem:[#allocation2 + $0xaa] sm:$0xff]
      %v1457 = vld [vmem:[#allocation2 + $0xb2] sm:$0xff]
      %v1458 = vld [vmem:[#allocation2 + $0xca] sm:$0xff]
      %v1459 = vld [vmem:[#allocation2 + $0xd2] sm:$0xff]
      %v1460 = vld [vmem:[#allocation2 + $0xea] sm:$0xff]
      %v1461 = vld [vmem:[#allocation2 + $0xf2] sm:$0xff]
      %v1462 = vld [vmem:[#allocation2 + $0x10a] sm:$0xff]
      %v1463 = vld [vmem:[#allocation2 + $0x112] sm:$0xff]
      %v1464 = vld [vmem:[#allocation2 + $0x12a] sm:$0xff]
      %v1465 = vld [vmem:[#allocation2 + $0x132] sm:$0xff]
      %v1466 = vld [vmem:[#allocation2 + $0x14a] sm:$0xff]
      %v1467 = vld [vmem:[#allocation2 + $0x152] sm:$0xff]
      %v1468 = vld [vmem:[#allocation2 + $0x16a] sm:$0xff]
      %v1469 = vld [vmem:[#allocation2 + $0x172] sm:$0xff]
      %v1470 = vld [vmem:[#allocation2 + $0x18a] sm:$0xff]
      %v1471 = vld [vmem:[#allocation2 + $0x192] sm:$0xff]
      %v1472 = vld [vmem:[#allocation2 + $0x1aa] sm:$0xff]
      %v1473 = vld [vmem:[#allocation2 + $0x1b2] sm:$0xff]
      %v1474 = vld [vmem:[#allocation2 + $0x1ca] sm:$0xff]
      %v1475 = vld [vmem:[#allocation2 + $0x1d2] sm:$0xff]
      %v1476 = vld [vmem:[#allocation2 + $0x1ea] sm:$0xff]
      %v1477 = vld [vmem:[#allocation2 + $0x1f2] sm:$0xff]
      %s1478 = scalar_lea.vmem [#allocation2], 32
      %v1479 = vld [vmem:[%s1478 + $0x6] sm:$0xff]
      %v1480 = vld [vmem:[%s1478 + $0xe] sm:$0xff]
      %v1481 = vld [vmem:[%s1478 + $0x26] sm:$0xff]
      %v1482 = vld [vmem:[%s1478 + $0x2e] sm:$0xff]
      %v1483 = vld [vmem:[%s1478 + $0x46] sm:$0xff]
      %v1484 = vld [vmem:[%s1478 + $0x4e] sm:$0xff]
      %v1485 = vld [vmem:[%s1478 + $0x66] sm:$0xff]
      %v1486 = vld [vmem:[%s1478 + $0x6e] sm:$0xff]
      %v1487 = vld [vmem:[%s1478 + $0x86] sm:$0xff]
      %v1488 = vld [vmem:[%s1478 + $0x8e] sm:$0xff]
      %v1489 = vld [vmem:[%s1478 + $0xa6] sm:$0xff]
      %v1490 = vld [vmem:[%s1478 + $0xae] sm:$0xff]
      %v1491 = vld [vmem:[%s1478 + $0xc6] sm:$0xff]
      %v1492 = vld [vmem:[%s1478 + $0xce] sm:$0xff]
      %v1493 = vld [vmem:[%s1478 + $0xe6] sm:$0xff]
      %v1494 = vld [vmem:[%s1478 + $0xee] sm:$0xff]
      %v1495 = vld [vmem:[%s1478 + $0x106] sm:$0xff]
      %v1496 = vld [vmem:[%s1478 + $0x10e] sm:$0xff]
      %v1497 = vld [vmem:[%s1478 + $0x126] sm:$0xff]
      %v1498 = vld [vmem:[%s1478 + $0x12e] sm:$0xff]
      %v1499 = vld [vmem:[%s1478 + $0x146] sm:$0xff]
      %v1500 = vld [vmem:[%s1478 + $0x14e] sm:$0xff]
      %v1501 = vld [vmem:[%s1478 + $0x166] sm:$0xff]
      %v1502 = vld [vmem:[%s1478 + $0x16e] sm:$0xff]
      %v1503 = vld [vmem:[%s1478 + $0x186] sm:$0xff]
      %v1504 = vld [vmem:[%s1478 + $0x18e] sm:$0xff]
      %v1505 = vld [vmem:[%s1478 + $0x1a6] sm:$0xff]
      %v1506 = vld [vmem:[%s1478 + $0x1ae] sm:$0xff]
      %v1507 = vld [vmem:[%s1478 + $0x1c6] sm:$0xff]
      %v1508 = vld [vmem:[%s1478 + $0x1ce] sm:$0xff]
      %v1509 = vld [vmem:[%s1478 + $0x1e6] sm:$0xff]
      %v1510 = vld [vmem:[%s1478 + $0x1ee] sm:$0xff]
      %v1511 = vld [vmem:[%s1478 + $0x7] sm:$0xff]
      %v1512 = vld [vmem:[%s1478 + $0xf] sm:$0xff]
      %v1513 = vld [vmem:[%s1478 + $0x27] sm:$0xff]
      %v1514 = vld [vmem:[%s1478 + $0x2f] sm:$0xff]
      %v1515 = vld [vmem:[%s1478 + $0x47] sm:$0xff]
      %v1516 = vld [vmem:[%s1478 + $0x4f] sm:$0xff]
      %v1517 = vld [vmem:[%s1478 + $0x67] sm:$0xff]
      %v1518 = vld [vmem:[%s1478 + $0x6f] sm:$0xff]
      %v1519 = vld [vmem:[%s1478 + $0x87] sm:$0xff]
      %v1520 = vld [vmem:[%s1478 + $0x8f] sm:$0xff]
      %v1521 = vld [vmem:[%s1478 + $0xa7] sm:$0xff]
      %v1522 = vld [vmem:[%s1478 + $0xaf] sm:$0xff]
      %v1523 = vld [vmem:[%s1478 + $0xc7] sm:$0xff]
      %v1524 = vld [vmem:[%s1478 + $0xcf] sm:$0xff]
      %v1525 = vld [vmem:[%s1478 + $0xe7] sm:$0xff]
      %v1526 = vld [vmem:[%s1478 + $0xef] sm:$0xff]
      %v1527 = vld [vmem:[%s1478 + $0x107] sm:$0xff]
      %v1528 = vld [vmem:[%s1478 + $0x10f] sm:$0xff]
      %v1529 = vld [vmem:[%s1478 + $0x127] sm:$0xff]
      %v1530 = vld [vmem:[%s1478 + $0x12f] sm:$0xff]
      %v1531 = vld [vmem:[%s1478 + $0x147] sm:$0xff]
      %v1532 = vld [vmem:[%s1478 + $0x14f] sm:$0xff]
      %v1533 = vld [vmem:[%s1478 + $0x167] sm:$0xff]
      %v1534 = vld [vmem:[%s1478 + $0x16f] sm:$0xff]
      %v1535 = vld [vmem:[%s1478 + $0x187] sm:$0xff]
      %v1536 = vld [vmem:[%s1478 + $0x18f] sm:$0xff]
      %v1537 = vld [vmem:[%s1478 + $0x1a7] sm:$0xff]
      %v1538 = vld [vmem:[%s1478 + $0x1af] sm:$0xff]
      %v1539 = vld [vmem:[%s1478 + $0x1c7] sm:$0xff]
      %v1540 = vld [vmem:[%s1478 + $0x1cf] sm:$0xff]
      %v1541 = vld [vmem:[%s1478 + $0x1e7] sm:$0xff]
      %v1542 = vld [vmem:[%s1478 + $0x1ef] sm:$0xff]
      %v1543 = vld [vmem:[%s1478 + $0x8] sm:$0xff]
      %v1544 = vld [vmem:[%s1478 + $0x10] sm:$0xff]
      %v1545 = vld [vmem:[%s1478 + $0x28] sm:$0xff]
      %v1546 = vld [vmem:[%s1478 + $0x30] sm:$0xff]
      %v1547 = vld [vmem:[%s1478 + $0x48] sm:$0xff]
      %v1548 = vld [vmem:[%s1478 + $0x50] sm:$0xff]
      %v1549 = vld [vmem:[%s1478 + $0x68] sm:$0xff]
      %v1550 = vld [vmem:[%s1478 + $0x70] sm:$0xff]
      %v1551 = vld [vmem:[%s1478 + $0x88] sm:$0xff]
      %v1552 = vld [vmem:[%s1478 + $0x90] sm:$0xff]
      %v1553 = vld [vmem:[%s1478 + $0xa8] sm:$0xff]
      %v1554 = vld [vmem:[%s1478 + $0xb0] sm:$0xff]
      %v1555 = vld [vmem:[%s1478 + $0xc8] sm:$0xff]
      %v1556 = vld [vmem:[%s1478 + $0xd0] sm:$0xff]
      %v1557 = vld [vmem:[%s1478 + $0xe8] sm:$0xff]
      %v1558 = vld [vmem:[%s1478 + $0xf0] sm:$0xff]
      %v1559 = vld [vmem:[%s1478 + $0x108] sm:$0xff]
      %v1560 = vld [vmem:[%s1478 + $0x110] sm:$0xff]
      %v1561 = vld [vmem:[%s1478 + $0x128] sm:$0xff]
      %v1562 = vld [vmem:[%s1478 + $0x130] sm:$0xff]
      %v1563 = vld [vmem:[%s1478 + $0x148] sm:$0xff]
      %v1564 = vld [vmem:[%s1478 + $0x150] sm:$0xff]
      %v1565 = vld [vmem:[%s1478 + $0x168] sm:$0xff]
      %v1566 = vld [vmem:[%s1478 + $0x170] sm:$0xff]
      %v1567 = vld [vmem:[%s1478 + $0x188] sm:$0xff]
      %v1568 = vld [vmem:[%s1478 + $0x190] sm:$0xff]
      %v1569 = vld [vmem:[%s1478 + $0x1a8] sm:$0xff]
      %v1570 = vld [vmem:[%s1478 + $0x1b0] sm:$0xff]
      %v1571 = vld [vmem:[%s1478 + $0x1c8] sm:$0xff]
      %v1572 = vld [vmem:[%s1478 + $0x1d0] sm:$0xff]
      %v1573 = vld [vmem:[%s1478 + $0x1e8] sm:$0xff]
      %v1574 = vld [vmem:[%s1478 + $0x1f0] sm:$0xff]
      %v1575 = vld [vmem:[%s1478 + $0x9] sm:$0xff]
      %v1576 = vld [vmem:[%s1478 + $0x11] sm:$0xff]
      %v1577 = vld [vmem:[%s1478 + $0x29] sm:$0xff]
      %v1578 = vld [vmem:[%s1478 + $0x31] sm:$0xff]
      %v1579 = vld [vmem:[%s1478 + $0x49] sm:$0xff]
      %v1580 = vld [vmem:[%s1478 + $0x51] sm:$0xff]
      %v1581 = vld [vmem:[%s1478 + $0x69] sm:$0xff]
      %v1582 = vld [vmem:[%s1478 + $0x71] sm:$0xff]
      %v1583 = vld [vmem:[%s1478 + $0x89] sm:$0xff]
      %v1584 = vld [vmem:[%s1478 + $0x91] sm:$0xff]
      %v1585 = vld [vmem:[%s1478 + $0xa9] sm:$0xff]
      %v1586 = vld [vmem:[%s1478 + $0xb1] sm:$0xff]
      %v1587 = vld [vmem:[%s1478 + $0xc9] sm:$0xff]
      %v1588 = vld [vmem:[%s1478 + $0xd1] sm:$0xff]
      %v1589 = vld [vmem:[%s1478 + $0xe9] sm:$0xff]
      %v1590 = vld [vmem:[%s1478 + $0xf1] sm:$0xff]
      %v1591 = vld [vmem:[%s1478 + $0x109] sm:$0xff]
      %v1592 = vld [vmem:[%s1478 + $0x111] sm:$0xff]
      %v1593 = vld [vmem:[%s1478 + $0x129] sm:$0xff]
      %v1594 = vld [vmem:[%s1478 + $0x131] sm:$0xff]
      %v1595 = vld [vmem:[%s1478 + $0x149] sm:$0xff]
      %v1596 = vld [vmem:[%s1478 + $0x151] sm:$0xff]
      %v1597 = vld [vmem:[%s1478 + $0x169] sm:$0xff]
      %v1598 = vld [vmem:[%s1478 + $0x171] sm:$0xff]
      %v1599 = vld [vmem:[%s1478 + $0x189] sm:$0xff]
      %v1600 = vld [vmem:[%s1478 + $0x191] sm:$0xff]
      %v1601 = vld [vmem:[%s1478 + $0x1a9] sm:$0xff]
      %v1602 = vld [vmem:[%s1478 + $0x1b1] sm:$0xff]
      %v1603 = vld [vmem:[%s1478 + $0x1c9] sm:$0xff]
      %v1604 = vld [vmem:[%s1478 + $0x1d1] sm:$0xff]
      %v1605 = vld [vmem:[%s1478 + $0x1e9] sm:$0xff]
      %v1606 = vld [vmem:[%s1478 + $0x1f1] sm:$0xff]
      %v1607 = vld [vmem:[%s1478 + $0xa] sm:$0xff]
      %v1608 = vld [vmem:[%s1478 + $0x12] sm:$0xff]
      %v1609 = vld [vmem:[%s1478 + $0x2a] sm:$0xff]
      %v1610 = vld [vmem:[%s1478 + $0x32] sm:$0xff]
      %v1611 = vld [vmem:[%s1478 + $0x4a] sm:$0xff]
      %v1612 = vld [vmem:[%s1478 + $0x52] sm:$0xff]
      %v1613 = vld [vmem:[%s1478 + $0x6a] sm:$0xff]
      %v1614 = vld [vmem:[%s1478 + $0x72] sm:$0xff]
      %v1615 = vld [vmem:[%s1478 + $0x8a] sm:$0xff]
      %v1616 = vld [vmem:[%s1478 + $0x92] sm:$0xff]
      %v1617 = vld [vmem:[%s1478 + $0xaa] sm:$0xff]
      %v1618 = vld [vmem:[%s1478 + $0xb2] sm:$0xff]
      %v1619 = vld [vmem:[%s1478 + $0xca] sm:$0xff]
      %v1620 = vld [vmem:[%s1478 + $0xd2] sm:$0xff]
      %v1621 = vld [vmem:[%s1478 + $0xea] sm:$0xff]
      %v1622 = vld [vmem:[%s1478 + $0xf2] sm:$0xff]
      %v1623 = vld [vmem:[%s1478 + $0x10a] sm:$0xff]
      %v1624 = vld [vmem:[%s1478 + $0x112] sm:$0xff]
      %v1625 = vld [vmem:[%s1478 + $0x12a] sm:$0xff]
      %v1626 = vld [vmem:[%s1478 + $0x132] sm:$0xff]
      %v1627 = vld [vmem:[%s1478 + $0x14a] sm:$0xff]
      %v1628 = vld [vmem:[%s1478 + $0x152] sm:$0xff]
      %v1629 = vld [vmem:[%s1478 + $0x16a] sm:$0xff]
      %v1630 = vld [vmem:[%s1478 + $0x172] sm:$0xff]
      %v1631 = vld [vmem:[%s1478 + $0x18a] sm:$0xff]
      %v1632 = vld [vmem:[%s1478 + $0x192] sm:$0xff]
      %v1633 = vld [vmem:[%s1478 + $0x1aa] sm:$0xff]
      %v1634 = vld [vmem:[%s1478 + $0x1b2] sm:$0xff]
      %v1635 = vld [vmem:[%s1478 + $0x1ca] sm:$0xff]
      %v1636 = vld [vmem:[%s1478 + $0x1d2] sm:$0xff]
      %v1637 = vld [vmem:[%s1478 + $0x1ea] sm:$0xff]
      %v1638 = vld [vmem:[%s1478 + $0x1f2] sm:$0xff]
      %v1639 = vld [vmem:[%s1219 + $0x6] sm:$0xff]
      %v1640 = vld [vmem:[%s1219 + $0xe] sm:$0xff]
      %v1641 = vld [vmem:[%s1219 + $0x26] sm:$0xff]
      %v1642 = vld [vmem:[%s1219 + $0x2e] sm:$0xff]
      %v1643 = vld [vmem:[%s1219 + $0x46] sm:$0xff]
      %v1644 = vld [vmem:[%s1219 + $0x4e] sm:$0xff]
      %v1645 = vld [vmem:[%s1219 + $0x66] sm:$0xff]
      %v1646 = vld [vmem:[%s1219 + $0x6e] sm:$0xff]
      %v1647 = vld [vmem:[%s1219 + $0x86] sm:$0xff]
      %v1648 = vld [vmem:[%s1219 + $0x8e] sm:$0xff]
      %v1649 = vld [vmem:[%s1219 + $0xa6] sm:$0xff]
      %v1650 = vld [vmem:[%s1219 + $0xae] sm:$0xff]
      %v1651 = vld [vmem:[%s1219 + $0xc6] sm:$0xff]
      %v1652 = vld [vmem:[%s1219 + $0xce] sm:$0xff]
      %v1653 = vld [vmem:[%s1219 + $0xe6] sm:$0xff]
      %v1654 = vld [vmem:[%s1219 + $0xee] sm:$0xff]
      %v1655 = vld [vmem:[%s1219 + $0x106] sm:$0xff]
      %v1656 = vld [vmem:[%s1219 + $0x10e] sm:$0xff]
      %v1657 = vld [vmem:[%s1219 + $0x126] sm:$0xff]
      %v1658 = vld [vmem:[%s1219 + $0x12e] sm:$0xff]
      %v1659 = vld [vmem:[%s1219 + $0x146] sm:$0xff]
      %v1660 = vld [vmem:[%s1219 + $0x14e] sm:$0xff]
      %v1661 = vld [vmem:[%s1219 + $0x166] sm:$0xff]
      %v1662 = vld [vmem:[%s1219 + $0x16e] sm:$0xff]
      %v1663 = vld [vmem:[%s1219 + $0x186] sm:$0xff]
      %v1664 = vld [vmem:[%s1219 + $0x18e] sm:$0xff]
      %v1665 = vld [vmem:[%s1219 + $0x1a6] sm:$0xff]
      %v1666 = vld [vmem:[%s1219 + $0x1ae] sm:$0xff]
      %v1667 = vld [vmem:[%s1219 + $0x1c6] sm:$0xff]
      %v1668 = vld [vmem:[%s1219 + $0x1ce] sm:$0xff]
      %v1669 = vld [vmem:[%s1219 + $0x1e6] sm:$0xff]
      %v1670 = vld [vmem:[%s1219 + $0x1ee] sm:$0xff]
      %v1671 = vld [vmem:[%s1219 + $0x7] sm:$0xff]
      %v1672 = vld [vmem:[%s1219 + $0xf] sm:$0xff]
      %v1673 = vld [vmem:[%s1219 + $0x27] sm:$0xff]
      %v1674 = vld [vmem:[%s1219 + $0x2f] sm:$0xff]
      %v1675 = vld [vmem:[%s1219 + $0x47] sm:$0xff]
      %v1676 = vld [vmem:[%s1219 + $0x4f] sm:$0xff]
      %v1677 = vld [vmem:[%s1219 + $0x67] sm:$0xff]
      %v1678 = vld [vmem:[%s1219 + $0x6f] sm:$0xff]
      %v1679 = vld [vmem:[%s1219 + $0x87] sm:$0xff]
      %v1680 = vld [vmem:[%s1219 + $0x8f] sm:$0xff]
      %v1681 = vld [vmem:[%s1219 + $0xa7] sm:$0xff]
      %v1682 = vld [vmem:[%s1219 + $0xaf] sm:$0xff]
      %v1683 = vld [vmem:[%s1219 + $0xc7] sm:$0xff]
      %v1684 = vld [vmem:[%s1219 + $0xcf] sm:$0xff]
      %v1685 = vld [vmem:[%s1219 + $0xe7] sm:$0xff]
      %v1686 = vld [vmem:[%s1219 + $0xef] sm:$0xff]
      %v1687 = vld [vmem:[%s1219 + $0x107] sm:$0xff]
      %v1688 = vld [vmem:[%s1219 + $0x10f] sm:$0xff]
      %v1689 = vld [vmem:[%s1219 + $0x127] sm:$0xff]
      %v1690 = vld [vmem:[%s1219 + $0x12f] sm:$0xff]
      %v1691 = vld [vmem:[%s1219 + $0x147] sm:$0xff]
      %v1692 = vld [vmem:[%s1219 + $0x14f] sm:$0xff]
      %v1693 = vld [vmem:[%s1219 + $0x167] sm:$0xff]
      %v1694 = vld [vmem:[%s1219 + $0x16f] sm:$0xff]
      %v1695 = vld [vmem:[%s1219 + $0x187] sm:$0xff]
      %v1696 = vld [vmem:[%s1219 + $0x18f] sm:$0xff]
      %v1697 = vld [vmem:[%s1219 + $0x1a7] sm:$0xff]
      %v1698 = vld [vmem:[%s1219 + $0x1af] sm:$0xff]
      %v1699 = vld [vmem:[%s1219 + $0x1c7] sm:$0xff]
      %v1700 = vld [vmem:[%s1219 + $0x1cf] sm:$0xff]
      %v1701 = vld [vmem:[%s1219 + $0x1e7] sm:$0xff]
      %v1702 = vld [vmem:[%s1219 + $0x1ef] sm:$0xff]
      %v1703 = vld [vmem:[%s1219 + $0x8] sm:$0xff]
      %v1704 = vld [vmem:[%s1219 + $0x10] sm:$0xff]
      %v1705 = vld [vmem:[%s1219 + $0x28] sm:$0xff]
      %v1706 = vld [vmem:[%s1219 + $0x30] sm:$0xff]
      %v1707 = vld [vmem:[%s1219 + $0x48] sm:$0xff]
      %v1708 = vld [vmem:[%s1219 + $0x50] sm:$0xff]
      %v1709 = vld [vmem:[%s1219 + $0x68] sm:$0xff]
      %v1710 = vld [vmem:[%s1219 + $0x70] sm:$0xff]
      %v1711 = vld [vmem:[%s1219 + $0x88] sm:$0xff]
      %v1712 = vld [vmem:[%s1219 + $0x90] sm:$0xff]
      %v1713 = vld [vmem:[%s1219 + $0xa8] sm:$0xff]
      %v1714 = vld [vmem:[%s1219 + $0xb0] sm:$0xff]
      %v1715 = vld [vmem:[%s1219 + $0xc8] sm:$0xff]
      %v1716 = vld [vmem:[%s1219 + $0xd0] sm:$0xff]
      %v1717 = vld [vmem:[%s1219 + $0xe8] sm:$0xff]
      %v1718 = vld [vmem:[%s1219 + $0xf0] sm:$0xff]
      %v1719 = vld [vmem:[%s1219 + $0x108] sm:$0xff]
      %v1720 = vld [vmem:[%s1219 + $0x110] sm:$0xff]
      %v1721 = vld [vmem:[%s1219 + $0x128] sm:$0xff]
      %v1722 = vld [vmem:[%s1219 + $0x130] sm:$0xff]
      %v1723 = vld [vmem:[%s1219 + $0x148] sm:$0xff]
      %v1724 = vld [vmem:[%s1219 + $0x150] sm:$0xff]
      %v1725 = vld [vmem:[%s1219 + $0x168] sm:$0xff]
      %v1726 = vld [vmem:[%s1219 + $0x170] sm:$0xff]
      %v1727 = vld [vmem:[%s1219 + $0x188] sm:$0xff]
      %v1728 = vld [vmem:[%s1219 + $0x190] sm:$0xff]
      %v1729 = vld [vmem:[%s1219 + $0x1a8] sm:$0xff]
      %v1730 = vld [vmem:[%s1219 + $0x1b0] sm:$0xff]
      %v1731 = vld [vmem:[%s1219 + $0x1c8] sm:$0xff]
      %v1732 = vld [vmem:[%s1219 + $0x1d0] sm:$0xff]
      %v1733 = vld [vmem:[%s1219 + $0x1e8] sm:$0xff]
      %v1734 = vld [vmem:[%s1219 + $0x1f0] sm:$0xff]
      %v1735 = vld [vmem:[%s1219 + $0x9] sm:$0xff]
      %v1736 = vld [vmem:[%s1219 + $0x11] sm:$0xff]
      %v1737 = vld [vmem:[%s1219 + $0x29] sm:$0xff]
      %v1738 = vld [vmem:[%s1219 + $0x31] sm:$0xff]
      %v1739 = vld [vmem:[%s1219 + $0x49] sm:$0xff]
      %v1740 = vld [vmem:[%s1219 + $0x51] sm:$0xff]
      %v1741 = vld [vmem:[%s1219 + $0x69] sm:$0xff]
      %v1742 = vld [vmem:[%s1219 + $0x71] sm:$0xff]
      %v1743 = vld [vmem:[%s1219 + $0x89] sm:$0xff]
      %v1744 = vld [vmem:[%s1219 + $0x91] sm:$0xff]
      %v1745 = vld [vmem:[%s1219 + $0xa9] sm:$0xff]
      %v1746 = vld [vmem:[%s1219 + $0xb1] sm:$0xff]
      %v1747 = vld [vmem:[%s1219 + $0xc9] sm:$0xff]
      %v1748 = vld [vmem:[%s1219 + $0xd1] sm:$0xff]
      %v1749 = vld [vmem:[%s1219 + $0xe9] sm:$0xff]
      %v1750 = vld [vmem:[%s1219 + $0xf1] sm:$0xff]
      %v1751 = vld [vmem:[%s1219 + $0x109] sm:$0xff]
      %v1752 = vld [vmem:[%s1219 + $0x111] sm:$0xff]
      %v1753 = vld [vmem:[%s1219 + $0x129] sm:$0xff]
      %v1754 = vld [vmem:[%s1219 + $0x131] sm:$0xff]
      %v1755 = vld [vmem:[%s1219 + $0x149] sm:$0xff]
      %v1756 = vld [vmem:[%s1219 + $0x151] sm:$0xff]
      %v1757 = vld [vmem:[%s1219 + $0x169] sm:$0xff]
      %v1758 = vld [vmem:[%s1219 + $0x171] sm:$0xff]
      %v1759 = vld [vmem:[%s1219 + $0x189] sm:$0xff]
      %v1760 = vld [vmem:[%s1219 + $0x191] sm:$0xff]
      %v1761 = vld [vmem:[%s1219 + $0x1a9] sm:$0xff]
      %v1762 = vld [vmem:[%s1219 + $0x1b1] sm:$0xff]
      %v1763 = vld [vmem:[%s1219 + $0x1c9] sm:$0xff]
      %v1764 = vld [vmem:[%s1219 + $0x1d1] sm:$0xff]
      %v1765 = vld [vmem:[%s1219 + $0x1e9] sm:$0xff]
      %v1766 = vld [vmem:[%s1219 + $0x1f1] sm:$0xff]
      %v1767 = vld [vmem:[%s1219 + $0xa] sm:$0xff]
      %v1768 = vld [vmem:[%s1219 + $0x12] sm:$0xff]
      %v1769 = vld [vmem:[%s1219 + $0x2a] sm:$0xff]
      %v1770 = vld [vmem:[%s1219 + $0x32] sm:$0xff]
      %v1771 = vld [vmem:[%s1219 + $0x4a] sm:$0xff]
      %v1772 = vld [vmem:[%s1219 + $0x52] sm:$0xff]
      %v1773 = vld [vmem:[%s1219 + $0x6a] sm:$0xff]
      %v1774 = vld [vmem:[%s1219 + $0x72] sm:$0xff]
      %v1775 = vld [vmem:[%s1219 + $0x8a] sm:$0xff]
      %v1776 = vld [vmem:[%s1219 + $0x92] sm:$0xff]
      %v1777 = vld [vmem:[%s1219 + $0xaa] sm:$0xff]
      %v1778 = vld [vmem:[%s1219 + $0xb2] sm:$0xff]
      %v1779 = vld [vmem:[%s1219 + $0xca] sm:$0xff]
      %v1780 = vld [vmem:[%s1219 + $0xd2] sm:$0xff]
      %v1781 = vld [vmem:[%s1219 + $0xea] sm:$0xff]
      %v1782 = vld [vmem:[%s1219 + $0xf2] sm:$0xff]
      %v1783 = vld [vmem:[%s1219 + $0x10a] sm:$0xff]
      %v1784 = vld [vmem:[%s1219 + $0x112] sm:$0xff]
      %v1785 = vld [vmem:[%s1219 + $0x12a] sm:$0xff]
      %v1786 = vld [vmem:[%s1219 + $0x132] sm:$0xff]
      %v1787 = vld [vmem:[%s1219 + $0x14a] sm:$0xff]
      %v1788 = vld [vmem:[%s1219 + $0x152] sm:$0xff]
      %v1789 = vld [vmem:[%s1219 + $0x16a] sm:$0xff]
      %v1790 = vld [vmem:[%s1219 + $0x172] sm:$0xff]
      %v1791 = vld [vmem:[%s1219 + $0x18a] sm:$0xff]
      %v1792 = vld [vmem:[%s1219 + $0x192] sm:$0xff]
      %v1793 = vld [vmem:[%s1219 + $0x1aa] sm:$0xff]
      %v1794 = vld [vmem:[%s1219 + $0x1b2] sm:$0xff]
      %v1795 = vld [vmem:[%s1219 + $0x1ca] sm:$0xff]
      %v1796 = vld [vmem:[%s1219 + $0x1d2] sm:$0xff]
      %v1797 = vld [vmem:[%s1219 + $0x1ea] sm:$0xff]
      %v1798 = vld [vmem:[%s1219 + $0x1f2] sm:$0xff]
      %s1799 = scalar_lea.vmem [#allocation2], 96
      %v1800 = vld [vmem:[%s1799 + $0x6] sm:$0xff]
      %v1801 = vld [vmem:[%s1799 + $0xe] sm:$0xff]
      %v1802 = vld [vmem:[%s1799 + $0x26] sm:$0xff]
      %v1803 = vld [vmem:[%s1799 + $0x2e] sm:$0xff]
      %v1804 = vld [vmem:[%s1799 + $0x46] sm:$0xff]
      %v1805 = vld [vmem:[%s1799 + $0x4e] sm:$0xff]
      %v1806 = vld [vmem:[%s1799 + $0x66] sm:$0xff]
      %v1807 = vld [vmem:[%s1799 + $0x6e] sm:$0xff]
      %v1808 = vld [vmem:[%s1799 + $0x86] sm:$0xff]
      %v1809 = vld [vmem:[%s1799 + $0x8e] sm:$0xff]
      %v1810 = vld [vmem:[%s1799 + $0xa6] sm:$0xff]
      %v1811 = vld [vmem:[%s1799 + $0xae] sm:$0xff]
      %v1812 = vld [vmem:[%s1799 + $0xc6] sm:$0xff]
      %v1813 = vld [vmem:[%s1799 + $0xce] sm:$0xff]
      %v1814 = vld [vmem:[%s1799 + $0xe6] sm:$0xff]
      %v1815 = vld [vmem:[%s1799 + $0xee] sm:$0xff]
      %v1816 = vld [vmem:[%s1799 + $0x106] sm:$0xff]
      %v1817 = vld [vmem:[%s1799 + $0x10e] sm:$0xff]
      %v1818 = vld [vmem:[%s1799 + $0x126] sm:$0xff]
      %v1819 = vld [vmem:[%s1799 + $0x12e] sm:$0xff]
      %v1820 = vld [vmem:[%s1799 + $0x146] sm:$0xff]
      %v1821 = vld [vmem:[%s1799 + $0x14e] sm:$0xff]
      %v1822 = vld [vmem:[%s1799 + $0x166] sm:$0xff]
      %v1823 = vld [vmem:[%s1799 + $0x16e] sm:$0xff]
      %v1824 = vld [vmem:[%s1799 + $0x186] sm:$0xff]
      %v1825 = vld [vmem:[%s1799 + $0x18e] sm:$0xff]
      %v1826 = vld [vmem:[%s1799 + $0x1a6] sm:$0xff]
      %v1827 = vld [vmem:[%s1799 + $0x1ae] sm:$0xff]
      %v1828 = vld [vmem:[%s1799 + $0x1c6] sm:$0xff]
      %v1829 = vld [vmem:[%s1799 + $0x1ce] sm:$0xff]
      %v1830 = vld [vmem:[%s1799 + $0x1e6] sm:$0xff]
      %v1831 = vld [vmem:[%s1799 + $0x1ee] sm:$0xff]
      %v1832 = vld [vmem:[%s1799 + $0x7] sm:$0xff]
      %v1833 = vld [vmem:[%s1799 + $0xf] sm:$0xff]
      %v1834 = vld [vmem:[%s1799 + $0x27] sm:$0xff]
      %v1835 = vld [vmem:[%s1799 + $0x2f] sm:$0xff]
      %v1836 = vld [vmem:[%s1799 + $0x47] sm:$0xff]
      %v1837 = vld [vmem:[%s1799 + $0x4f] sm:$0xff]
      %v1838 = vld [vmem:[%s1799 + $0x67] sm:$0xff]
      %v1839 = vld [vmem:[%s1799 + $0x6f] sm:$0xff]
      %v1840 = vld [vmem:[%s1799 + $0x87] sm:$0xff]
      %v1841 = vld [vmem:[%s1799 + $0x8f] sm:$0xff]
      %v1842 = vld [vmem:[%s1799 + $0xa7] sm:$0xff]
      %v1843 = vld [vmem:[%s1799 + $0xaf] sm:$0xff]
      %v1844 = vld [vmem:[%s1799 + $0xc7] sm:$0xff]
      %v1845 = vld [vmem:[%s1799 + $0xcf] sm:$0xff]
      %v1846 = vld [vmem:[%s1799 + $0xe7] sm:$0xff]
      %v1847 = vld [vmem:[%s1799 + $0xef] sm:$0xff]
      %v1848 = vld [vmem:[%s1799 + $0x107] sm:$0xff]
      %v1849 = vld [vmem:[%s1799 + $0x10f] sm:$0xff]
      %v1850 = vld [vmem:[%s1799 + $0x127] sm:$0xff]
      %v1851 = vld [vmem:[%s1799 + $0x12f] sm:$0xff]
      %v1852 = vld [vmem:[%s1799 + $0x147] sm:$0xff]
      %v1853 = vld [vmem:[%s1799 + $0x14f] sm:$0xff]
      %v1854 = vld [vmem:[%s1799 + $0x167] sm:$0xff]
      %v1855 = vld [vmem:[%s1799 + $0x16f] sm:$0xff]
      %v1856 = vld [vmem:[%s1799 + $0x187] sm:$0xff]
      %v1857 = vld [vmem:[%s1799 + $0x18f] sm:$0xff]
      %v1858 = vld [vmem:[%s1799 + $0x1a7] sm:$0xff]
      %v1859 = vld [vmem:[%s1799 + $0x1af] sm:$0xff]
      %v1860 = vld [vmem:[%s1799 + $0x1c7] sm:$0xff]
      %v1861 = vld [vmem:[%s1799 + $0x1cf] sm:$0xff]
      %v1862 = vld [vmem:[%s1799 + $0x1e7] sm:$0xff]
      %v1863 = vld [vmem:[%s1799 + $0x1ef] sm:$0xff]
      %v1864 = vld [vmem:[%s1799 + $0x8] sm:$0xff]
      %v1865 = vld [vmem:[%s1799 + $0x10] sm:$0xff]
      %v1866 = vld [vmem:[%s1799 + $0x28] sm:$0xff]
      %v1867 = vld [vmem:[%s1799 + $0x30] sm:$0xff]
      %v1868 = vld [vmem:[%s1799 + $0x48] sm:$0xff]
      %v1869 = vld [vmem:[%s1799 + $0x50] sm:$0xff]
      %v1870 = vld [vmem:[%s1799 + $0x68] sm:$0xff]
      %v1871 = vld [vmem:[%s1799 + $0x70] sm:$0xff]
      %v1872 = vld [vmem:[%s1799 + $0x88] sm:$0xff]
      %v1873 = vld [vmem:[%s1799 + $0x90] sm:$0xff]
      %v1874 = vld [vmem:[%s1799 + $0xa8] sm:$0xff]
      %v1875 = vld [vmem:[%s1799 + $0xb0] sm:$0xff]
      %v1876 = vld [vmem:[%s1799 + $0xc8] sm:$0xff]
      %v1877 = vld [vmem:[%s1799 + $0xd0] sm:$0xff]
      %v1878 = vld [vmem:[%s1799 + $0xe8] sm:$0xff]
      %v1879 = vld [vmem:[%s1799 + $0xf0] sm:$0xff]
      %v1880 = vld [vmem:[%s1799 + $0x108] sm:$0xff]
      %v1881 = vld [vmem:[%s1799 + $0x110] sm:$0xff]
      %v1882 = vld [vmem:[%s1799 + $0x128] sm:$0xff]
      %v1883 = vld [vmem:[%s1799 + $0x130] sm:$0xff]
      %v1884 = vld [vmem:[%s1799 + $0x148] sm:$0xff]
      %v1885 = vld [vmem:[%s1799 + $0x150] sm:$0xff]
      %v1886 = vld [vmem:[%s1799 + $0x168] sm:$0xff]
      %v1887 = vld [vmem:[%s1799 + $0x170] sm:$0xff]
      %v1888 = vld [vmem:[%s1799 + $0x188] sm:$0xff]
      %v1889 = vld [vmem:[%s1799 + $0x190] sm:$0xff]
      %v1890 = vld [vmem:[%s1799 + $0x1a8] sm:$0xff]
      %v1891 = vld [vmem:[%s1799 + $0x1b0] sm:$0xff]
      %v1892 = vld [vmem:[%s1799 + $0x1c8] sm:$0xff]
      %v1893 = vld [vmem:[%s1799 + $0x1d0] sm:$0xff]
      %v1894 = vld [vmem:[%s1799 + $0x1e8] sm:$0xff]
      %v1895 = vld [vmem:[%s1799 + $0x1f0] sm:$0xff]
      %v1896 = vld [vmem:[%s1799 + $0x9] sm:$0xff]
      %v1897 = vld [vmem:[%s1799 + $0x11] sm:$0xff]
      %v1898 = vld [vmem:[%s1799 + $0x29] sm:$0xff]
      %v1899 = vld [vmem:[%s1799 + $0x31] sm:$0xff]
      %v1900 = vld [vmem:[%s1799 + $0x49] sm:$0xff]
      %v1901 = vld [vmem:[%s1799 + $0x51] sm:$0xff]
      %v1902 = vld [vmem:[%s1799 + $0x69] sm:$0xff]
      %v1903 = vld [vmem:[%s1799 + $0x71] sm:$0xff]
      %v1904 = vld [vmem:[%s1799 + $0x89] sm:$0xff]
      %v1905 = vld [vmem:[%s1799 + $0x91] sm:$0xff]
      %v1906 = vld [vmem:[%s1799 + $0xa9] sm:$0xff]
      %v1907 = vld [vmem:[%s1799 + $0xb1] sm:$0xff]
      %v1908 = vld [vmem:[%s1799 + $0xc9] sm:$0xff]
      %v1909 = vld [vmem:[%s1799 + $0xd1] sm:$0xff]
      %v1910 = vld [vmem:[%s1799 + $0xe9] sm:$0xff]
      %v1911 = vld [vmem:[%s1799 + $0xf1] sm:$0xff]
      %v1912 = vld [vmem:[%s1799 + $0x109] sm:$0xff]
      %v1913 = vld [vmem:[%s1799 + $0x111] sm:$0xff]
      %v1914 = vld [vmem:[%s1799 + $0x129] sm:$0xff]
      %v1915 = vld [vmem:[%s1799 + $0x131] sm:$0xff]
      %v1916 = vld [vmem:[%s1799 + $0x149] sm:$0xff]
      %v1917 = vld [vmem:[%s1799 + $0x151] sm:$0xff]
      %v1918 = vld [vmem:[%s1799 + $0x169] sm:$0xff]
      %v1919 = vld [vmem:[%s1799 + $0x171] sm:$0xff]
      %v1920 = vld [vmem:[%s1799 + $0x189] sm:$0xff]
      %v1921 = vld [vmem:[%s1799 + $0x191] sm:$0xff]
      %v1922 = vld [vmem:[%s1799 + $0x1a9] sm:$0xff]
      %v1923 = vld [vmem:[%s1799 + $0x1b1] sm:$0xff]
      %v1924 = vld [vmem:[%s1799 + $0x1c9] sm:$0xff]
      %v1925 = vld [vmem:[%s1799 + $0x1d1] sm:$0xff]
      %v1926 = vld [vmem:[%s1799 + $0x1e9] sm:$0xff]
      %v1927 = vld [vmem:[%s1799 + $0x1f1] sm:$0xff]
      %v1928 = vld [vmem:[%s1799 + $0xa] sm:$0xff]
      %v1929 = vld [vmem:[%s1799 + $0x12] sm:$0xff]
      %v1930 = vld [vmem:[%s1799 + $0x2a] sm:$0xff]
      %v1931 = vld [vmem:[%s1799 + $0x32] sm:$0xff]
      %v1932 = vld [vmem:[%s1799 + $0x4a] sm:$0xff]
      %v1933 = vld [vmem:[%s1799 + $0x52] sm:$0xff]
      %v1934 = vld [vmem:[%s1799 + $0x6a] sm:$0xff]
      %v1935 = vld [vmem:[%s1799 + $0x72] sm:$0xff]
      %v1936 = vld [vmem:[%s1799 + $0x8a] sm:$0xff]
      %v1937 = vld [vmem:[%s1799 + $0x92] sm:$0xff]
      %v1938 = vld [vmem:[%s1799 + $0xaa] sm:$0xff]
      %v1939 = vld [vmem:[%s1799 + $0xb2] sm:$0xff]
      %v1940 = vld [vmem:[%s1799 + $0xca] sm:$0xff]
      %v1941 = vld [vmem:[%s1799 + $0xd2] sm:$0xff]
      %v1942 = vld [vmem:[%s1799 + $0xea] sm:$0xff]
      %v1943 = vld [vmem:[%s1799 + $0xf2] sm:$0xff]
      %v1944 = vld [vmem:[%s1799 + $0x10a] sm:$0xff]
      %v1945 = vld [vmem:[%s1799 + $0x112] sm:$0xff]
      %v1946 = vld [vmem:[%s1799 + $0x12a] sm:$0xff]
      %v1947 = vld [vmem:[%s1799 + $0x132] sm:$0xff]
      %v1948 = vld [vmem:[%s1799 + $0x14a] sm:$0xff]
      %v1949 = vld [vmem:[%s1799 + $0x152] sm:$0xff]
      %v1950 = vld [vmem:[%s1799 + $0x16a] sm:$0xff]
      %v1951 = vld [vmem:[%s1799 + $0x172] sm:$0xff]
      %v1952 = vld [vmem:[%s1799 + $0x18a] sm:$0xff]
      %v1953 = vld [vmem:[%s1799 + $0x192] sm:$0xff]
      %v1954 = vld [vmem:[%s1799 + $0x1aa] sm:$0xff]
      %v1955 = vld [vmem:[%s1799 + $0x1b2] sm:$0xff]
      %v1956 = vld [vmem:[%s1799 + $0x1ca] sm:$0xff]
      %v1957 = vld [vmem:[%s1799 + $0x1d2] sm:$0xff]
      %v1958 = vld [vmem:[%s1799 + $0x1ea] sm:$0xff]
      %v1959 = vld [vmem:[%s1799 + $0x1f2] sm:$0xff]
      %s1960 = scalar_lea.vmem [#allocation2], 128
      %v1961 = vld [vmem:[%s1960 + $0x6] sm:$0xff]
      %v1962 = vld [vmem:[%s1960 + $0xe] sm:$0xff]
      %v1963 = vld [vmem:[%s1960 + $0x26] sm:$0xff]
      %v1964 = vld [vmem:[%s1960 + $0x2e] sm:$0xff]
      %v1965 = vld [vmem:[%s1960 + $0x46] sm:$0xff]
      %v1966 = vld [vmem:[%s1960 + $0x4e] sm:$0xff]
      %v1967 = vld [vmem:[%s1960 + $0x66] sm:$0xff]
      %v1968 = vld [vmem:[%s1960 + $0x6e] sm:$0xff]
      %v1969 = vld [vmem:[%s1960 + $0x86] sm:$0xff]
      %v1970 = vld [vmem:[%s1960 + $0x8e] sm:$0xff]
      %v1971 = vld [vmem:[%s1960 + $0xa6] sm:$0xff]
      %v1972 = vld [vmem:[%s1960 + $0xae] sm:$0xff]
      %v1973 = vld [vmem:[%s1960 + $0xc6] sm:$0xff]
      %v1974 = vld [vmem:[%s1960 + $0xce] sm:$0xff]
      %v1975 = vld [vmem:[%s1960 + $0xe6] sm:$0xff]
      %v1976 = vld [vmem:[%s1960 + $0xee] sm:$0xff]
      %v1977 = vld [vmem:[%s1960 + $0x106] sm:$0xff]
      %v1978 = vld [vmem:[%s1960 + $0x10e] sm:$0xff]
      %v1979 = vld [vmem:[%s1960 + $0x126] sm:$0xff]
      %v1980 = vld [vmem:[%s1960 + $0x12e] sm:$0xff]
      %v1981 = vld [vmem:[%s1960 + $0x146] sm:$0xff]
      %v1982 = vld [vmem:[%s1960 + $0x14e] sm:$0xff]
      %v1983 = vld [vmem:[%s1960 + $0x166] sm:$0xff]
      %v1984 = vld [vmem:[%s1960 + $0x16e] sm:$0xff]
      %v1985 = vld [vmem:[%s1960 + $0x186] sm:$0xff]
      %v1986 = vld [vmem:[%s1960 + $0x18e] sm:$0xff]
      %v1987 = vld [vmem:[%s1960 + $0x1a6] sm:$0xff]
      %v1988 = vld [vmem:[%s1960 + $0x1ae] sm:$0xff]
      %v1989 = vld [vmem:[%s1960 + $0x1c6] sm:$0xff]
      %v1990 = vld [vmem:[%s1960 + $0x1ce] sm:$0xff]
      %v1991 = vld [vmem:[%s1960 + $0x1e6] sm:$0xff]
      %v1992 = vld [vmem:[%s1960 + $0x1ee] sm:$0xff]
      %v1993 = vld [vmem:[%s1960 + $0x7] sm:$0xff]
      %v1994 = vld [vmem:[%s1960 + $0xf] sm:$0xff]
      %v1995 = vld [vmem:[%s1960 + $0x27] sm:$0xff]
      %v1996 = vld [vmem:[%s1960 + $0x2f] sm:$0xff]
      %v1997 = vld [vmem:[%s1960 + $0x47] sm:$0xff]
      %v1998 = vld [vmem:[%s1960 + $0x4f] sm:$0xff]
      %v1999 = vld [vmem:[%s1960 + $0x67] sm:$0xff]
      %v2000 = vld [vmem:[%s1960 + $0x6f] sm:$0xff]
      %v2001 = vld [vmem:[%s1960 + $0x87] sm:$0xff]
      %v2002 = vld [vmem:[%s1960 + $0x8f] sm:$0xff]
      %v2003 = vld [vmem:[%s1960 + $0xa7] sm:$0xff]
      %v2004 = vld [vmem:[%s1960 + $0xaf] sm:$0xff]
      %v2005 = vld [vmem:[%s1960 + $0xc7] sm:$0xff]
      %v2006 = vld [vmem:[%s1960 + $0xcf] sm:$0xff]
      %v2007 = vld [vmem:[%s1960 + $0xe7] sm:$0xff]
      %v2008 = vld [vmem:[%s1960 + $0xef] sm:$0xff]
      %v2009 = vld [vmem:[%s1960 + $0x107] sm:$0xff]
      %v2010 = vld [vmem:[%s1960 + $0x10f] sm:$0xff]
      %v2011 = vld [vmem:[%s1960 + $0x127] sm:$0xff]
      %v2012 = vld [vmem:[%s1960 + $0x12f] sm:$0xff]
      %v2013 = vld [vmem:[%s1960 + $0x147] sm:$0xff]
      %v2014 = vld [vmem:[%s1960 + $0x14f] sm:$0xff]
      %v2015 = vld [vmem:[%s1960 + $0x167] sm:$0xff]
      %v2016 = vld [vmem:[%s1960 + $0x16f] sm:$0xff]
      %v2017 = vld [vmem:[%s1960 + $0x187] sm:$0xff]
      %v2018 = vld [vmem:[%s1960 + $0x18f] sm:$0xff]
      %v2019 = vld [vmem:[%s1960 + $0x1a7] sm:$0xff]
      %v2020 = vld [vmem:[%s1960 + $0x1af] sm:$0xff]
      %v2021 = vld [vmem:[%s1960 + $0x1c7] sm:$0xff]
      %v2022 = vld [vmem:[%s1960 + $0x1cf] sm:$0xff]
      %v2023 = vld [vmem:[%s1960 + $0x1e7] sm:$0xff]
      %v2024 = vld [vmem:[%s1960 + $0x1ef] sm:$0xff]
      %v2025 = vld [vmem:[%s1960 + $0x8] sm:$0xff]
      %v2026 = vld [vmem:[%s1960 + $0x10] sm:$0xff]
      %v2027 = vld [vmem:[%s1960 + $0x28] sm:$0xff]
      %v2028 = vld [vmem:[%s1960 + $0x30] sm:$0xff]
      %v2029 = vld [vmem:[%s1960 + $0x48] sm:$0xff]
      %v2030 = vld [vmem:[%s1960 + $0x50] sm:$0xff]
      %v2031 = vld [vmem:[%s1960 + $0x68] sm:$0xff]
      %v2032 = vld [vmem:[%s1960 + $0x70] sm:$0xff]
      %v2033 = vld [vmem:[%s1960 + $0x88] sm:$0xff]
      %v2034 = vld [vmem:[%s1960 + $0x90] sm:$0xff]
      %v2035 = vld [vmem:[%s1960 + $0xa8] sm:$0xff]
      %v2036 = vld [vmem:[%s1960 + $0xb0] sm:$0xff]
      %v2037 = vld [vmem:[%s1960 + $0xc8] sm:$0xff]
      %v2038 = vld [vmem:[%s1960 + $0xd0] sm:$0xff]
      %v2039 = vld [vmem:[%s1960 + $0xe8] sm:$0xff]
      %v2040 = vld [vmem:[%s1960 + $0xf0] sm:$0xff]
      %v2041 = vld [vmem:[%s1960 + $0x108] sm:$0xff]
      %v2042 = vld [vmem:[%s1960 + $0x110] sm:$0xff]
      %v2043 = vld [vmem:[%s1960 + $0x128] sm:$0xff]
      %v2044 = vld [vmem:[%s1960 + $0x130] sm:$0xff]
      %v2045 = vld [vmem:[%s1960 + $0x148] sm:$0xff]
      %v2046 = vld [vmem:[%s1960 + $0x150] sm:$0xff]
      %v2047 = vld [vmem:[%s1960 + $0x168] sm:$0xff]
      %v2048 = vld [vmem:[%s1960 + $0x170] sm:$0xff]
      %v2049 = vld [vmem:[%s1960 + $0x188] sm:$0xff]
      %v2050 = vld [vmem:[%s1960 + $0x190] sm:$0xff]
      %v2051 = vld [vmem:[%s1960 + $0x1a8] sm:$0xff]
      %v2052 = vld [vmem:[%s1960 + $0x1b0] sm:$0xff]
      %v2053 = vld [vmem:[%s1960 + $0x1c8] sm:$0xff]
      %v2054 = vld [vmem:[%s1960 + $0x1d0] sm:$0xff]
      %v2055 = vld [vmem:[%s1960 + $0x1e8] sm:$0xff]
      %v2056 = vld [vmem:[%s1960 + $0x1f0] sm:$0xff]
      %v2057 = vld [vmem:[%s1960 + $0x9] sm:$0xff]
      %v2058 = vld [vmem:[%s1960 + $0x11] sm:$0xff]
      %v2059 = vld [vmem:[%s1960 + $0x29] sm:$0xff]
      %v2060 = vld [vmem:[%s1960 + $0x31] sm:$0xff]
      %v2061 = vld [vmem:[%s1960 + $0x49] sm:$0xff]
      %v2062 = vld [vmem:[%s1960 + $0x51] sm:$0xff]
      %v2063 = vld [vmem:[%s1960 + $0x69] sm:$0xff]
      %v2064 = vld [vmem:[%s1960 + $0x71] sm:$0xff]
      %v2065 = vld [vmem:[%s1960 + $0x89] sm:$0xff]
      %v2066 = vld [vmem:[%s1960 + $0x91] sm:$0xff]
      %v2067 = vld [vmem:[%s1960 + $0xa9] sm:$0xff]
      %v2068 = vld [vmem:[%s1960 + $0xb1] sm:$0xff]
      %v2069 = vld [vmem:[%s1960 + $0xc9] sm:$0xff]
      %v2070 = vld [vmem:[%s1960 + $0xd1] sm:$0xff]
      %v2071 = vld [vmem:[%s1960 + $0xe9] sm:$0xff]
      %v2072 = vld [vmem:[%s1960 + $0xf1] sm:$0xff]
      %v2073 = vld [vmem:[%s1960 + $0x109] sm:$0xff]
      %v2074 = vld [vmem:[%s1960 + $0x111] sm:$0xff]
      %v2075 = vld [vmem:[%s1960 + $0x129] sm:$0xff]
      %v2076 = vld [vmem:[%s1960 + $0x131] sm:$0xff]
      %v2077 = vld [vmem:[%s1960 + $0x149] sm:$0xff]
      %v2078 = vld [vmem:[%s1960 + $0x151] sm:$0xff]
      %v2079 = vld [vmem:[%s1960 + $0x169] sm:$0xff]
      %v2080 = vld [vmem:[%s1960 + $0x171] sm:$0xff]
      %v2081 = vld [vmem:[%s1960 + $0x189] sm:$0xff]
      %v2082 = vld [vmem:[%s1960 + $0x191] sm:$0xff]
      %v2083 = vld [vmem:[%s1960 + $0x1a9] sm:$0xff]
      %v2084 = vld [vmem:[%s1960 + $0x1b1] sm:$0xff]
      %v2085 = vld [vmem:[%s1960 + $0x1c9] sm:$0xff]
      %v2086 = vld [vmem:[%s1960 + $0x1d1] sm:$0xff]
      %v2087 = vld [vmem:[%s1960 + $0x1e9] sm:$0xff]
      %v2088 = vld [vmem:[%s1960 + $0x1f1] sm:$0xff]
      %v2089 = vld [vmem:[%s1960 + $0xa] sm:$0xff]
      %v2090 = vld [vmem:[%s1960 + $0x12] sm:$0xff]
      %v2091 = vld [vmem:[%s1960 + $0x2a] sm:$0xff]
      %v2092 = vld [vmem:[%s1960 + $0x32] sm:$0xff]
      %v2093 = vld [vmem:[%s1960 + $0x4a] sm:$0xff]
      %v2094 = vld [vmem:[%s1960 + $0x52] sm:$0xff]
      %v2095 = vld [vmem:[%s1960 + $0x6a] sm:$0xff]
      %v2096 = vld [vmem:[%s1960 + $0x72] sm:$0xff]
      %v2097 = vld [vmem:[%s1960 + $0x8a] sm:$0xff]
      %v2098 = vld [vmem:[%s1960 + $0x92] sm:$0xff]
      %v2099 = vld [vmem:[%s1960 + $0xaa] sm:$0xff]
      %v2100 = vld [vmem:[%s1960 + $0xb2] sm:$0xff]
      %v2101 = vld [vmem:[%s1960 + $0xca] sm:$0xff]
      %v2102 = vld [vmem:[%s1960 + $0xd2] sm:$0xff]
      %v2103 = vld [vmem:[%s1960 + $0xea] sm:$0xff]
      %v2104 = vld [vmem:[%s1960 + $0xf2] sm:$0xff]
      %v2105 = vld [vmem:[%s1960 + $0x10a] sm:$0xff]
      %v2106 = vld [vmem:[%s1960 + $0x112] sm:$0xff]
      %v2107 = vld [vmem:[%s1960 + $0x12a] sm:$0xff]
      %v2108 = vld [vmem:[%s1960 + $0x132] sm:$0xff]
      %v2109 = vld [vmem:[%s1960 + $0x14a] sm:$0xff]
      %v2110 = vld [vmem:[%s1960 + $0x152] sm:$0xff]
      %v2111 = vld [vmem:[%s1960 + $0x16a] sm:$0xff]
      %v2112 = vld [vmem:[%s1960 + $0x172] sm:$0xff]
      %v2113 = vld [vmem:[%s1960 + $0x18a] sm:$0xff]
      %v2114 = vld [vmem:[%s1960 + $0x192] sm:$0xff]
      %v2115 = vld [vmem:[%s1960 + $0x1aa] sm:$0xff]
      %v2116 = vld [vmem:[%s1960 + $0x1b2] sm:$0xff]
      %v2117 = vld [vmem:[%s1960 + $0x1ca] sm:$0xff]
      %v2118 = vld [vmem:[%s1960 + $0x1d2] sm:$0xff]
      %v2119 = vld [vmem:[%s1960 + $0x1ea] sm:$0xff]
      %v2120 = vld [vmem:[%s1960 + $0x1f2] sm:$0xff]
      %2153 = vrot.lane.b32.xlu0 %v1350, 48
      %v2154 = vpop.permute.xlu0 %2153
      %2155 = vrot.lane.b32.xlu0 %v1351, 48
      %v2156 = vpop.permute.xlu0 %2155
      %2157 = vrot.lane.b32.xlu0 %v1352, 48
      %v2158 = vpop.permute.xlu0 %2157
      %2159 = vrot.lane.b32.xlu0 %v1353, 48
      %v2160 = vpop.permute.xlu0 %2159
      %2161 = vrot.lane.b32.xlu0 %v1354, 48
      %v2162 = vpop.permute.xlu0 %2161
      %2163 = vrot.lane.b32.xlu0 %v1355, 48
      %v2164 = vpop.permute.xlu0 %2163
      %2165 = vrot.lane.b32.xlu0 %v1356, 48
      %v2166 = vpop.permute.xlu0 %2165
      %2167 = vrot.lane.b32.xlu0 %v1357, 48
      %v2168 = vpop.permute.xlu0 %2167
      %2169 = vrot.lane.b32.xlu0 %v1358, 48
      %v2170 = vpop.permute.xlu0 %2169
      %2171 = vrot.lane.b32.xlu0 %v1359, 48
      %v2172 = vpop.permute.xlu0 %2171
      %2173 = vrot.lane.b32.xlu0 %v1360, 48
      %v2174 = vpop.permute.xlu0 %2173
      %2175 = vrot.lane.b32.xlu0 %v1361, 48
      %v2176 = vpop.permute.xlu0 %2175
      %2177 = vrot.lane.b32.xlu0 %v1362, 48
      %v2178 = vpop.permute.xlu0 %2177
      %2179 = vrot.lane.b32.xlu0 %v1363, 48
      %v2180 = vpop.permute.xlu0 %2179
      %2181 = vrot.lane.b32.xlu0 %v1364, 48
      %v2182 = vpop.permute.xlu0 %2181
      %2183 = vrot.lane.b32.xlu0 %v1365, 48
      %v2184 = vpop.permute.xlu0 %2183
      %2185 = vrot.lane.b32.xlu0 %v1366, 48
      %v2186 = vpop.permute.xlu0 %2185
      %2187 = vrot.lane.b32.xlu0 %v1367, 48
      %v2188 = vpop.permute.xlu0 %2187
      %2189 = vrot.lane.b32.xlu0 %v1368, 48
      %v2190 = vpop.permute.xlu0 %2189
      %2191 = vrot.lane.b32.xlu0 %v1369, 48
      %v2192 = vpop.permute.xlu0 %2191
      %2193 = vrot.lane.b32.xlu0 %v1370, 48
      %v2194 = vpop.permute.xlu0 %2193
      %2195 = vrot.lane.b32.xlu0 %v1371, 48
      %v2196 = vpop.permute.xlu0 %2195
      %2197 = vrot.lane.b32.xlu0 %v1372, 48
      %v2198 = vpop.permute.xlu0 %2197
      %2199 = vrot.lane.b32.xlu0 %v1373, 48
      %v2200 = vpop.permute.xlu0 %2199
      %2201 = vrot.lane.b32.xlu0 %v1374, 48
      %v2202 = vpop.permute.xlu0 %2201
      %2203 = vrot.lane.b32.xlu0 %v1375, 48
      %v2204 = vpop.permute.xlu0 %2203
      %2205 = vrot.lane.b32.xlu0 %v1376, 48
      %v2206 = vpop.permute.xlu0 %2205
      %2207 = vrot.lane.b32.xlu0 %v1377, 48
      %v2208 = vpop.permute.xlu0 %2207
      %2209 = vrot.lane.b32.xlu0 %v1378, 48
      %v2210 = vpop.permute.xlu0 %2209
      %2211 = vrot.lane.b32.xlu0 %v1379, 48
      %v2212 = vpop.permute.xlu0 %2211
      %2213 = vrot.lane.b32.xlu0 %v1380, 48
      %v2214 = vpop.permute.xlu0 %2213
      %2215 = vrot.lane.b32.xlu0 %v1381, 48
      %v2216 = vpop.permute.xlu0 %2215
      %2281 = vrot.lane.b32.xlu0 %v1382, 96
      %v2282 = vpop.permute.xlu0 %2281
      %2283 = vrot.lane.b32.xlu0 %v1383, 96
      %v2284 = vpop.permute.xlu0 %2283
      %2285 = vrot.lane.b32.xlu0 %v1384, 96
      %v2286 = vpop.permute.xlu0 %2285
      %2287 = vrot.lane.b32.xlu0 %v1385, 96
      %v2288 = vpop.permute.xlu0 %2287
      %2289 = vrot.lane.b32.xlu0 %v1386, 96
      %v2290 = vpop.permute.xlu0 %2289
      %2291 = vrot.lane.b32.xlu0 %v1387, 96
      %v2292 = vpop.permute.xlu0 %2291
      %2293 = vrot.lane.b32.xlu0 %v1388, 96
      %v2294 = vpop.permute.xlu0 %2293
      %2295 = vrot.lane.b32.xlu0 %v1389, 96
      %v2296 = vpop.permute.xlu0 %2295
      %2297 = vrot.lane.b32.xlu0 %v1390, 96
      %v2298 = vpop.permute.xlu0 %2297
      %2299 = vrot.lane.b32.xlu0 %v1391, 96
      %v2300 = vpop.permute.xlu0 %2299
      %2301 = vrot.lane.b32.xlu0 %v1392, 96
      %v2302 = vpop.permute.xlu0 %2301
      %2303 = vrot.lane.b32.xlu0 %v1393, 96
      %v2304 = vpop.permute.xlu0 %2303
      %2305 = vrot.lane.b32.xlu0 %v1394, 96
      %v2306 = vpop.permute.xlu0 %2305
      %2307 = vrot.lane.b32.xlu0 %v1395, 96
      %v2308 = vpop.permute.xlu0 %2307
      %2309 = vrot.lane.b32.xlu0 %v1396, 96
      %v2310 = vpop.permute.xlu0 %2309
      %2311 = vrot.lane.b32.xlu0 %v1397, 96
      %v2312 = vpop.permute.xlu0 %2311
      %2313 = vrot.lane.b32.xlu0 %v1398, 96
      %v2314 = vpop.permute.xlu0 %2313
      %2315 = vrot.lane.b32.xlu0 %v1399, 96
      %v2316 = vpop.permute.xlu0 %2315
      %2317 = vrot.lane.b32.xlu0 %v1400, 96
      %v2318 = vpop.permute.xlu0 %2317
      %2319 = vrot.lane.b32.xlu0 %v1401, 96
      %v2320 = vpop.permute.xlu0 %2319
      %2321 = vrot.lane.b32.xlu0 %v1402, 96
      %v2322 = vpop.permute.xlu0 %2321
      %2323 = vrot.lane.b32.xlu0 %v1403, 96
      %v2324 = vpop.permute.xlu0 %2323
      %2325 = vrot.lane.b32.xlu0 %v1404, 96
      %v2326 = vpop.permute.xlu0 %2325
      %2327 = vrot.lane.b32.xlu0 %v1405, 96
      %v2328 = vpop.permute.xlu0 %2327
      %2329 = vrot.lane.b32.xlu0 %v1406, 96
      %v2330 = vpop.permute.xlu0 %2329
      %2331 = vrot.lane.b32.xlu0 %v1407, 96
      %v2332 = vpop.permute.xlu0 %2331
      %2333 = vrot.lane.b32.xlu0 %v1408, 96
      %v2334 = vpop.permute.xlu0 %2333
      %2335 = vrot.lane.b32.xlu0 %v1409, 96
      %v2336 = vpop.permute.xlu0 %2335
      %2337 = vrot.lane.b32.xlu0 %v1410, 96
      %v2338 = vpop.permute.xlu0 %2337
      %2339 = vrot.lane.b32.xlu0 %v1411, 96
      %v2340 = vpop.permute.xlu0 %2339
      %2341 = vrot.lane.b32.xlu0 %v1412, 96
      %v2342 = vpop.permute.xlu0 %2341
      %2343 = vrot.lane.b32.xlu0 %v1413, 96
      %v2344 = vpop.permute.xlu0 %2343
      %2409 = vrot.lane.b32.xlu0 %v1414, 16
      %v2410 = vpop.permute.xlu0 %2409
      %2411 = vrot.lane.b32.xlu0 %v1415, 16
      %v2412 = vpop.permute.xlu0 %2411
      %2413 = vrot.lane.b32.xlu0 %v1416, 16
      %v2414 = vpop.permute.xlu0 %2413
      %2415 = vrot.lane.b32.xlu0 %v1417, 16
      %v2416 = vpop.permute.xlu0 %2415
      %2417 = vrot.lane.b32.xlu0 %v1418, 16
      %v2418 = vpop.permute.xlu0 %2417
      %2419 = vrot.lane.b32.xlu0 %v1419, 16
      %v2420 = vpop.permute.xlu0 %2419
      %2421 = vrot.lane.b32.xlu0 %v1420, 16
      %v2422 = vpop.permute.xlu0 %2421
      %2423 = vrot.lane.b32.xlu0 %v1421, 16
      %v2424 = vpop.permute.xlu0 %2423
      %2425 = vrot.lane.b32.xlu0 %v1422, 16
      %v2426 = vpop.permute.xlu0 %2425
      %2427 = vrot.lane.b32.xlu0 %v1423, 16
      %v2428 = vpop.permute.xlu0 %2427
      %2429 = vrot.lane.b32.xlu0 %v1424, 16
      %v2430 = vpop.permute.xlu0 %2429
      %2431 = vrot.lane.b32.xlu0 %v1425, 16
      %v2432 = vpop.permute.xlu0 %2431
      %2433 = vrot.lane.b32.xlu0 %v1426, 16
      %v2434 = vpop.permute.xlu0 %2433
      %2435 = vrot.lane.b32.xlu0 %v1427, 16
      %v2436 = vpop.permute.xlu0 %2435
      %2437 = vrot.lane.b32.xlu0 %v1428, 16
      %v2438 = vpop.permute.xlu0 %2437
      %2439 = vrot.lane.b32.xlu0 %v1429, 16
      %v2440 = vpop.permute.xlu0 %2439
      %2441 = vrot.lane.b32.xlu0 %v1430, 16
      %v2442 = vpop.permute.xlu0 %2441
      %2443 = vrot.lane.b32.xlu0 %v1431, 16
      %v2444 = vpop.permute.xlu0 %2443
      %2445 = vrot.lane.b32.xlu0 %v1432, 16
      %v2446 = vpop.permute.xlu0 %2445
      %2447 = vrot.lane.b32.xlu0 %v1433, 16
      %v2448 = vpop.permute.xlu0 %2447
      %2449 = vrot.lane.b32.xlu0 %v1434, 16
      %v2450 = vpop.permute.xlu0 %2449
      %2451 = vrot.lane.b32.xlu0 %v1435, 16
      %v2452 = vpop.permute.xlu0 %2451
      %2453 = vrot.lane.b32.xlu0 %v1436, 16
      %v2454 = vpop.permute.xlu0 %2453
      %2455 = vrot.lane.b32.xlu0 %v1437, 16
      %v2456 = vpop.permute.xlu0 %2455
      %2457 = vrot.lane.b32.xlu0 %v1438, 16
      %v2458 = vpop.permute.xlu0 %2457
      %2459 = vrot.lane.b32.xlu0 %v1439, 16
      %v2460 = vpop.permute.xlu0 %2459
      %2461 = vrot.lane.b32.xlu0 %v1440, 16
      %v2462 = vpop.permute.xlu0 %2461
      %2463 = vrot.lane.b32.xlu0 %v1441, 16
      %v2464 = vpop.permute.xlu0 %2463
      %2465 = vrot.lane.b32.xlu0 %v1442, 16
      %v2466 = vpop.permute.xlu0 %2465
      %2467 = vrot.lane.b32.xlu0 %v1443, 16
      %v2468 = vpop.permute.xlu0 %2467
      %2469 = vrot.lane.b32.xlu0 %v1444, 16
      %v2470 = vpop.permute.xlu0 %2469
      %2471 = vrot.lane.b32.xlu0 %v1445, 16
      %v2472 = vpop.permute.xlu0 %2471
      %2537 = vrot.lane.b32.xlu0 %v1446, 64
      %v2538 = vpop.permute.xlu0 %2537
      %2539 = vrot.lane.b32.xlu0 %v1447, 64
      %v2540 = vpop.permute.xlu0 %2539
      %2541 = vrot.lane.b32.xlu0 %v1448, 64
      %v2542 = vpop.permute.xlu0 %2541
      %2543 = vrot.lane.b32.xlu0 %v1449, 64
      %v2544 = vpop.permute.xlu0 %2543
      %2545 = vrot.lane.b32.xlu0 %v1450, 64
      %v2546 = vpop.permute.xlu0 %2545
      %2547 = vrot.lane.b32.xlu0 %v1451, 64
      %v2548 = vpop.permute.xlu0 %2547
      %2549 = vrot.lane.b32.xlu0 %v1452, 64
      %v2550 = vpop.permute.xlu0 %2549
      %2551 = vrot.lane.b32.xlu0 %v1453, 64
      %v2552 = vpop.permute.xlu0 %2551
      %2553 = vrot.lane.b32.xlu0 %v1454, 64
      %v2554 = vpop.permute.xlu0 %2553
      %2555 = vrot.lane.b32.xlu0 %v1455, 64
      %v2556 = vpop.permute.xlu0 %2555
      %2557 = vrot.lane.b32.xlu0 %v1456, 64
      %v2558 = vpop.permute.xlu0 %2557
      %2559 = vrot.lane.b32.xlu0 %v1457, 64
      %v2560 = vpop.permute.xlu0 %2559
      %2561 = vrot.lane.b32.xlu0 %v1458, 64
      %v2562 = vpop.permute.xlu0 %2561
      %2563 = vrot.lane.b32.xlu0 %v1459, 64
      %v2564 = vpop.permute.xlu0 %2563
      %2565 = vrot.lane.b32.xlu0 %v1460, 64
      %v2566 = vpop.permute.xlu0 %2565
      %2567 = vrot.lane.b32.xlu0 %v1461, 64
      %v2568 = vpop.permute.xlu0 %2567
      %2569 = vrot.lane.b32.xlu0 %v1462, 64
      %v2570 = vpop.permute.xlu0 %2569
      %2571 = vrot.lane.b32.xlu0 %v1463, 64
      %v2572 = vpop.permute.xlu0 %2571
      %2573 = vrot.lane.b32.xlu0 %v1464, 64
      %v2574 = vpop.permute.xlu0 %2573
      %2575 = vrot.lane.b32.xlu0 %v1465, 64
      %v2576 = vpop.permute.xlu0 %2575
      %2577 = vrot.lane.b32.xlu0 %v1466, 64
      %v2578 = vpop.permute.xlu0 %2577
      %2579 = vrot.lane.b32.xlu0 %v1467, 64
      %v2580 = vpop.permute.xlu0 %2579
      %2581 = vrot.lane.b32.xlu0 %v1468, 64
      %v2582 = vpop.permute.xlu0 %2581
      %2583 = vrot.lane.b32.xlu0 %v1469, 64
      %v2584 = vpop.permute.xlu0 %2583
      %2585 = vrot.lane.b32.xlu0 %v1470, 64
      %v2586 = vpop.permute.xlu0 %2585
      %2587 = vrot.lane.b32.xlu0 %v1471, 64
      %v2588 = vpop.permute.xlu0 %2587
      %2589 = vrot.lane.b32.xlu0 %v1472, 64
      %v2590 = vpop.permute.xlu0 %2589
      %2591 = vrot.lane.b32.xlu0 %v1473, 64
      %v2592 = vpop.permute.xlu0 %2591
      %2593 = vrot.lane.b32.xlu0 %v1474, 64
      %v2594 = vpop.permute.xlu0 %2593
      %2595 = vrot.lane.b32.xlu0 %v1475, 64
      %v2596 = vpop.permute.xlu0 %2595
      %2597 = vrot.lane.b32.xlu0 %v1476, 64
      %v2598 = vpop.permute.xlu0 %2597
      %2599 = vrot.lane.b32.xlu0 %v1477, 64
      %v2600 = vpop.permute.xlu0 %2599
      %2665 = vrot.lane.b32.xlu0 %v1479, 112
      %v2666 = vpop.permute.xlu0 %2665
      %2667 = vrot.lane.b32.xlu0 %v1480, 112
      %v2668 = vpop.permute.xlu0 %2667
      %2669 = vrot.lane.b32.xlu0 %v1481, 112
      %v2670 = vpop.permute.xlu0 %2669
      %2671 = vrot.lane.b32.xlu0 %v1482, 112
      %v2672 = vpop.permute.xlu0 %2671
      %2673 = vrot.lane.b32.xlu0 %v1483, 112
      %v2674 = vpop.permute.xlu0 %2673
      %2675 = vrot.lane.b32.xlu0 %v1484, 112
      %v2676 = vpop.permute.xlu0 %2675
      %2677 = vrot.lane.b32.xlu0 %v1485, 112
      %v2678 = vpop.permute.xlu0 %2677
      %2679 = vrot.lane.b32.xlu0 %v1486, 112
      %v2680 = vpop.permute.xlu0 %2679
      %2681 = vrot.lane.b32.xlu0 %v1487, 112
      %v2682 = vpop.permute.xlu0 %2681
      %2683 = vrot.lane.b32.xlu0 %v1488, 112
      %v2684 = vpop.permute.xlu0 %2683
      %2685 = vrot.lane.b32.xlu0 %v1489, 112
      %v2686 = vpop.permute.xlu0 %2685
      %2687 = vrot.lane.b32.xlu0 %v1490, 112
      %v2688 = vpop.permute.xlu0 %2687
      %2689 = vrot.lane.b32.xlu0 %v1491, 112
      %v2690 = vpop.permute.xlu0 %2689
      %2691 = vrot.lane.b32.xlu0 %v1492, 112
      %v2692 = vpop.permute.xlu0 %2691
      %2693 = vrot.lane.b32.xlu0 %v1493, 112
      %v2694 = vpop.permute.xlu0 %2693
      %2695 = vrot.lane.b32.xlu0 %v1494, 112
      %v2696 = vpop.permute.xlu0 %2695
      %2697 = vrot.lane.b32.xlu0 %v1495, 112
      %v2698 = vpop.permute.xlu0 %2697
      %2699 = vrot.lane.b32.xlu0 %v1496, 112
      %v2700 = vpop.permute.xlu0 %2699
      %2701 = vrot.lane.b32.xlu0 %v1497, 112
      %v2702 = vpop.permute.xlu0 %2701
      %2703 = vrot.lane.b32.xlu0 %v1498, 112
      %v2704 = vpop.permute.xlu0 %2703
      %2705 = vrot.lane.b32.xlu0 %v1499, 112
      %v2706 = vpop.permute.xlu0 %2705
      %2707 = vrot.lane.b32.xlu0 %v1500, 112
      %v2708 = vpop.permute.xlu0 %2707
      %2709 = vrot.lane.b32.xlu0 %v1501, 112
      %v2710 = vpop.permute.xlu0 %2709
      %2711 = vrot.lane.b32.xlu0 %v1502, 112
      %v2712 = vpop.permute.xlu0 %2711
      %2713 = vrot.lane.b32.xlu0 %v1503, 112
      %v2714 = vpop.permute.xlu0 %2713
      %2715 = vrot.lane.b32.xlu0 %v1504, 112
      %v2716 = vpop.permute.xlu0 %2715
      %2717 = vrot.lane.b32.xlu0 %v1505, 112
      %v2718 = vpop.permute.xlu0 %2717
      %2719 = vrot.lane.b32.xlu0 %v1506, 112
      %v2720 = vpop.permute.xlu0 %2719
      %2721 = vrot.lane.b32.xlu0 %v1507, 112
      %v2722 = vpop.permute.xlu0 %2721
      %2723 = vrot.lane.b32.xlu0 %v1508, 112
      %v2724 = vpop.permute.xlu0 %2723
      %2725 = vrot.lane.b32.xlu0 %v1509, 112
      %v2726 = vpop.permute.xlu0 %2725
      %2727 = vrot.lane.b32.xlu0 %v1510, 112
      %v2728 = vpop.permute.xlu0 %2727
      %2793 = vrot.lane.b32.xlu0 %v1511, 32
      %v2794 = vpop.permute.xlu0 %2793
      %2795 = vrot.lane.b32.xlu0 %v1512, 32
      %v2796 = vpop.permute.xlu0 %2795
      %2797 = vrot.lane.b32.xlu0 %v1513, 32
      %v2798 = vpop.permute.xlu0 %2797
      %2799 = vrot.lane.b32.xlu0 %v1514, 32
      %v2800 = vpop.permute.xlu0 %2799
      %2801 = vrot.lane.b32.xlu0 %v1515, 32
      %v2802 = vpop.permute.xlu0 %2801
      %2803 = vrot.lane.b32.xlu0 %v1516, 32
      %v2804 = vpop.permute.xlu0 %2803
      %2805 = vrot.lane.b32.xlu0 %v1517, 32
      %v2806 = vpop.permute.xlu0 %2805
      %2807 = vrot.lane.b32.xlu0 %v1518, 32
      %v2808 = vpop.permute.xlu0 %2807
      %2809 = vrot.lane.b32.xlu0 %v1519, 32
      %v2810 = vpop.permute.xlu0 %2809
      %2811 = vrot.lane.b32.xlu0 %v1520, 32
      %v2812 = vpop.permute.xlu0 %2811
      %2813 = vrot.lane.b32.xlu0 %v1521, 32
      %v2814 = vpop.permute.xlu0 %2813
      %2815 = vrot.lane.b32.xlu0 %v1522, 32
      %v2816 = vpop.permute.xlu0 %2815
      %2817 = vrot.lane.b32.xlu0 %v1523, 32
      %v2818 = vpop.permute.xlu0 %2817
      %2819 = vrot.lane.b32.xlu0 %v1524, 32
      %v2820 = vpop.permute.xlu0 %2819
      %2821 = vrot.lane.b32.xlu0 %v1525, 32
      %v2822 = vpop.permute.xlu0 %2821
      %2823 = vrot.lane.b32.xlu0 %v1526, 32
      %v2824 = vpop.permute.xlu0 %2823
      %2825 = vrot.lane.b32.xlu0 %v1527, 32
      %v2826 = vpop.permute.xlu0 %2825
      %2827 = vrot.lane.b32.xlu0 %v1528, 32
      %v2828 = vpop.permute.xlu0 %2827
      %2829 = vrot.lane.b32.xlu0 %v1529, 32
      %v2830 = vpop.permute.xlu0 %2829
      %2831 = vrot.lane.b32.xlu0 %v1530, 32
      %v2832 = vpop.permute.xlu0 %2831
      %2833 = vrot.lane.b32.xlu0 %v1531, 32
      %v2834 = vpop.permute.xlu0 %2833
      %2835 = vrot.lane.b32.xlu0 %v1532, 32
      %v2836 = vpop.permute.xlu0 %2835
      %2837 = vrot.lane.b32.xlu0 %v1533, 32
      %v2838 = vpop.permute.xlu0 %2837
      %2839 = vrot.lane.b32.xlu0 %v1534, 32
      %v2840 = vpop.permute.xlu0 %2839
      %2841 = vrot.lane.b32.xlu0 %v1535, 32
      %v2842 = vpop.permute.xlu0 %2841
      %2843 = vrot.lane.b32.xlu0 %v1536, 32
      %v2844 = vpop.permute.xlu0 %2843
      %2845 = vrot.lane.b32.xlu0 %v1537, 32
      %v2846 = vpop.permute.xlu0 %2845
      %2847 = vrot.lane.b32.xlu0 %v1538, 32
      %v2848 = vpop.permute.xlu0 %2847
      %2849 = vrot.lane.b32.xlu0 %v1539, 32
      %v2850 = vpop.permute.xlu0 %2849
      %2851 = vrot.lane.b32.xlu0 %v1540, 32
      %v2852 = vpop.permute.xlu0 %2851
      %2853 = vrot.lane.b32.xlu0 %v1541, 32
      %v2854 = vpop.permute.xlu0 %2853
      %2855 = vrot.lane.b32.xlu0 %v1542, 32
      %v2856 = vpop.permute.xlu0 %2855
      %2921 = vrot.lane.b32.xlu0 %v1543, 80
      %v2922 = vpop.permute.xlu0 %2921
      %2923 = vrot.lane.b32.xlu0 %v1544, 80
      %v2924 = vpop.permute.xlu0 %2923
      %2925 = vrot.lane.b32.xlu0 %v1545, 80
      %v2926 = vpop.permute.xlu0 %2925
      %2927 = vrot.lane.b32.xlu0 %v1546, 80
      %v2928 = vpop.permute.xlu0 %2927
      %2929 = vrot.lane.b32.xlu0 %v1547, 80
      %v2930 = vpop.permute.xlu0 %2929
      %2931 = vrot.lane.b32.xlu0 %v1548, 80
      %v2932 = vpop.permute.xlu0 %2931
      %2933 = vrot.lane.b32.xlu0 %v1549, 80
      %v2934 = vpop.permute.xlu0 %2933
      %2935 = vrot.lane.b32.xlu0 %v1550, 80
      %v2936 = vpop.permute.xlu0 %2935
      %2937 = vrot.lane.b32.xlu0 %v1551, 80
      %v2938 = vpop.permute.xlu0 %2937
      %2939 = vrot.lane.b32.xlu0 %v1552, 80
      %v2940 = vpop.permute.xlu0 %2939
      %2941 = vrot.lane.b32.xlu0 %v1553, 80
      %v2942 = vpop.permute.xlu0 %2941
      %2943 = vrot.lane.b32.xlu0 %v1554, 80
      %v2944 = vpop.permute.xlu0 %2943
      %2945 = vrot.lane.b32.xlu0 %v1555, 80
      %v2946 = vpop.permute.xlu0 %2945
      %2947 = vrot.lane.b32.xlu0 %v1556, 80
      %v2948 = vpop.permute.xlu0 %2947
      %2949 = vrot.lane.b32.xlu0 %v1557, 80
      %v2950 = vpop.permute.xlu0 %2949
      %2951 = vrot.lane.b32.xlu0 %v1558, 80
      %v2952 = vpop.permute.xlu0 %2951
      %2953 = vrot.lane.b32.xlu0 %v1559, 80
      %v2954 = vpop.permute.xlu0 %2953
      %2955 = vrot.lane.b32.xlu0 %v1560, 80
      %v2956 = vpop.permute.xlu0 %2955
      %2957 = vrot.lane.b32.xlu0 %v1561, 80
      %v2958 = vpop.permute.xlu0 %2957
      %2959 = vrot.lane.b32.xlu0 %v1562, 80
      %v2960 = vpop.permute.xlu0 %2959
      %2961 = vrot.lane.b32.xlu0 %v1563, 80
      %v2962 = vpop.permute.xlu0 %2961
      %2963 = vrot.lane.b32.xlu0 %v1564, 80
      %v2964 = vpop.permute.xlu0 %2963
      %2965 = vrot.lane.b32.xlu0 %v1565, 80
      %v2966 = vpop.permute.xlu0 %2965
      %2967 = vrot.lane.b32.xlu0 %v1566, 80
      %v2968 = vpop.permute.xlu0 %2967
      %2969 = vrot.lane.b32.xlu0 %v1567, 80
      %v2970 = vpop.permute.xlu0 %2969
      %2971 = vrot.lane.b32.xlu0 %v1568, 80
      %v2972 = vpop.permute.xlu0 %2971
      %2973 = vrot.lane.b32.xlu0 %v1569, 80
      %v2974 = vpop.permute.xlu0 %2973
      %2975 = vrot.lane.b32.xlu0 %v1570, 80
      %v2976 = vpop.permute.xlu0 %2975
      %2977 = vrot.lane.b32.xlu0 %v1571, 80
      %v2978 = vpop.permute.xlu0 %2977
      %2979 = vrot.lane.b32.xlu0 %v1572, 80
      %v2980 = vpop.permute.xlu0 %2979
      %2981 = vrot.lane.b32.xlu0 %v1573, 80
      %v2982 = vpop.permute.xlu0 %2981
      %2983 = vrot.lane.b32.xlu0 %v1574, 80
      %v2984 = vpop.permute.xlu0 %2983
      %3049 = vrot.lane.b32.xlu0 %v1607, 48
      %v3050 = vpop.permute.xlu0 %3049
      %3051 = vrot.lane.b32.xlu0 %v1608, 48
      %v3052 = vpop.permute.xlu0 %3051
      %3053 = vrot.lane.b32.xlu0 %v1609, 48
      %v3054 = vpop.permute.xlu0 %3053
      %3055 = vrot.lane.b32.xlu0 %v1610, 48
      %v3056 = vpop.permute.xlu0 %3055
      %3057 = vrot.lane.b32.xlu0 %v1611, 48
      %v3058 = vpop.permute.xlu0 %3057
      %3059 = vrot.lane.b32.xlu0 %v1612, 48
      %v3060 = vpop.permute.xlu0 %3059
      %3061 = vrot.lane.b32.xlu0 %v1613, 48
      %v3062 = vpop.permute.xlu0 %3061
      %3063 = vrot.lane.b32.xlu0 %v1614, 48
      %v3064 = vpop.permute.xlu0 %3063
      %3065 = vrot.lane.b32.xlu0 %v1615, 48
      %v3066 = vpop.permute.xlu0 %3065
      %3067 = vrot.lane.b32.xlu0 %v1616, 48
      %v3068 = vpop.permute.xlu0 %3067
      %3069 = vrot.lane.b32.xlu0 %v1617, 48
      %v3070 = vpop.permute.xlu0 %3069
      %3071 = vrot.lane.b32.xlu0 %v1618, 48
      %v3072 = vpop.permute.xlu0 %3071
      %3073 = vrot.lane.b32.xlu0 %v1619, 48
      %v3074 = vpop.permute.xlu0 %3073
      %3075 = vrot.lane.b32.xlu0 %v1620, 48
      %v3076 = vpop.permute.xlu0 %3075
      %3077 = vrot.lane.b32.xlu0 %v1621, 48
      %v3078 = vpop.permute.xlu0 %3077
      %3079 = vrot.lane.b32.xlu0 %v1622, 48
      %v3080 = vpop.permute.xlu0 %3079
      %3081 = vrot.lane.b32.xlu0 %v1623, 48
      %v3082 = vpop.permute.xlu0 %3081
      %3083 = vrot.lane.b32.xlu0 %v1624, 48
      %v3084 = vpop.permute.xlu0 %3083
      %3085 = vrot.lane.b32.xlu0 %v1625, 48
      %v3086 = vpop.permute.xlu0 %3085
      %3087 = vrot.lane.b32.xlu0 %v1626, 48
      %v3088 = vpop.permute.xlu0 %3087
      %3089 = vrot.lane.b32.xlu0 %v1627, 48
      %v3090 = vpop.permute.xlu0 %3089
      %3091 = vrot.lane.b32.xlu0 %v1628, 48
      %v3092 = vpop.permute.xlu0 %3091
      %3093 = vrot.lane.b32.xlu0 %v1629, 48
      %v3094 = vpop.permute.xlu0 %3093
      %3095 = vrot.lane.b32.xlu0 %v1630, 48
      %v3096 = vpop.permute.xlu0 %3095
      %3097 = vrot.lane.b32.xlu0 %v1631, 48
      %v3098 = vpop.permute.xlu0 %3097
      %3099 = vrot.lane.b32.xlu0 %v1632, 48
      %v3100 = vpop.permute.xlu0 %3099
      %3101 = vrot.lane.b32.xlu0 %v1633, 48
      %v3102 = vpop.permute.xlu0 %3101
      %3103 = vrot.lane.b32.xlu0 %v1634, 48
      %v3104 = vpop.permute.xlu0 %3103
      %3105 = vrot.lane.b32.xlu0 %v1635, 48
      %v3106 = vpop.permute.xlu0 %3105
      %3107 = vrot.lane.b32.xlu0 %v1636, 48
      %v3108 = vpop.permute.xlu0 %3107
      %3109 = vrot.lane.b32.xlu0 %v1637, 48
      %v3110 = vpop.permute.xlu0 %3109
      %3111 = vrot.lane.b32.xlu0 %v1638, 48
      %v3112 = vpop.permute.xlu0 %3111
      %3177 = vrot.lane.b32.xlu0 %v1639, 96
      %v3178 = vpop.permute.xlu0 %3177
      %3179 = vrot.lane.b32.xlu0 %v1640, 96
      %v3180 = vpop.permute.xlu0 %3179
      %3181 = vrot.lane.b32.xlu0 %v1641, 96
      %v3182 = vpop.permute.xlu0 %3181
      %3183 = vrot.lane.b32.xlu0 %v1642, 96
      %v3184 = vpop.permute.xlu0 %3183
      %3185 = vrot.lane.b32.xlu0 %v1643, 96
      %v3186 = vpop.permute.xlu0 %3185
      %3187 = vrot.lane.b32.xlu0 %v1644, 96
      %v3188 = vpop.permute.xlu0 %3187
      %3189 = vrot.lane.b32.xlu0 %v1645, 96
      %v3190 = vpop.permute.xlu0 %3189
      %3191 = vrot.lane.b32.xlu0 %v1646, 96
      %v3192 = vpop.permute.xlu0 %3191
      %3193 = vrot.lane.b32.xlu0 %v1647, 96
      %v3194 = vpop.permute.xlu0 %3193
      %3195 = vrot.lane.b32.xlu0 %v1648, 96
      %v3196 = vpop.permute.xlu0 %3195
      %3197 = vrot.lane.b32.xlu0 %v1649, 96
      %v3198 = vpop.permute.xlu0 %3197
      %3199 = vrot.lane.b32.xlu0 %v1650, 96
      %v3200 = vpop.permute.xlu0 %3199
      %3201 = vrot.lane.b32.xlu0 %v1651, 96
      %v3202 = vpop.permute.xlu0 %3201
      %3203 = vrot.lane.b32.xlu0 %v1652, 96
      %v3204 = vpop.permute.xlu0 %3203
      %3205 = vrot.lane.b32.xlu0 %v1653, 96
      %v3206 = vpop.permute.xlu0 %3205
      %3207 = vrot.lane.b32.xlu0 %v1654, 96
      %v3208 = vpop.permute.xlu0 %3207
      %3209 = vrot.lane.b32.xlu0 %v1655, 96
      %v3210 = vpop.permute.xlu0 %3209
      %3211 = vrot.lane.b32.xlu0 %v1656, 96
      %v3212 = vpop.permute.xlu0 %3211
      %3213 = vrot.lane.b32.xlu0 %v1657, 96
      %v3214 = vpop.permute.xlu0 %3213
      %3215 = vrot.lane.b32.xlu0 %v1658, 96
      %v3216 = vpop.permute.xlu0 %3215
      %3217 = vrot.lane.b32.xlu0 %v1659, 96
      %v3218 = vpop.permute.xlu0 %3217
      %3219 = vrot.lane.b32.xlu0 %v1660, 96
      %v3220 = vpop.permute.xlu0 %3219
      %3221 = vrot.lane.b32.xlu0 %v1661, 96
      %v3222 = vpop.permute.xlu0 %3221
      %3223 = vrot.lane.b32.xlu0 %v1662, 96
      %v3224 = vpop.permute.xlu0 %3223
      %3225 = vrot.lane.b32.xlu0 %v1663, 96
      %v3226 = vpop.permute.xlu0 %3225
      %3227 = vrot.lane.b32.xlu0 %v1664, 96
      %v3228 = vpop.permute.xlu0 %3227
      %3229 = vrot.lane.b32.xlu0 %v1665, 96
      %v3230 = vpop.permute.xlu0 %3229
      %3231 = vrot.lane.b32.xlu0 %v1666, 96
      %v3232 = vpop.permute.xlu0 %3231
      %3233 = vrot.lane.b32.xlu0 %v1667, 96
      %v3234 = vpop.permute.xlu0 %3233
      %3235 = vrot.lane.b32.xlu0 %v1668, 96
      %v3236 = vpop.permute.xlu0 %3235
      %3237 = vrot.lane.b32.xlu0 %v1669, 96
      %v3238 = vpop.permute.xlu0 %3237
      %3239 = vrot.lane.b32.xlu0 %v1670, 96
      %v3240 = vpop.permute.xlu0 %3239
      %3305 = vrot.lane.b32.xlu0 %v1671, 16
      %v3306 = vpop.permute.xlu0 %3305
      %3307 = vrot.lane.b32.xlu0 %v1672, 16
      %v3308 = vpop.permute.xlu0 %3307
      %3309 = vrot.lane.b32.xlu0 %v1673, 16
      %v3310 = vpop.permute.xlu0 %3309
      %3311 = vrot.lane.b32.xlu0 %v1674, 16
      %v3312 = vpop.permute.xlu0 %3311
      %3313 = vrot.lane.b32.xlu0 %v1675, 16
      %v3314 = vpop.permute.xlu0 %3313
      %3315 = vrot.lane.b32.xlu0 %v1676, 16
      %v3316 = vpop.permute.xlu0 %3315
      %3317 = vrot.lane.b32.xlu0 %v1677, 16
      %v3318 = vpop.permute.xlu0 %3317
      %3319 = vrot.lane.b32.xlu0 %v1678, 16
      %v3320 = vpop.permute.xlu0 %3319
      %3321 = vrot.lane.b32.xlu0 %v1679, 16
      %v3322 = vpop.permute.xlu0 %3321
      %3323 = vrot.lane.b32.xlu0 %v1680, 16
      %v3324 = vpop.permute.xlu0 %3323
      %3325 = vrot.lane.b32.xlu0 %v1681, 16
      %v3326 = vpop.permute.xlu0 %3325
      %3327 = vrot.lane.b32.xlu0 %v1682, 16
      %v3328 = vpop.permute.xlu0 %3327
      %3329 = vrot.lane.b32.xlu0 %v1683, 16
      %v3330 = vpop.permute.xlu0 %3329
      %3331 = vrot.lane.b32.xlu0 %v1684, 16
      %v3332 = vpop.permute.xlu0 %3331
      %3333 = vrot.lane.b32.xlu0 %v1685, 16
      %v3334 = vpop.permute.xlu0 %3333
      %3335 = vrot.lane.b32.xlu0 %v1686, 16
      %v3336 = vpop.permute.xlu0 %3335
      %3337 = vrot.lane.b32.xlu0 %v1687, 16
      %v3338 = vpop.permute.xlu0 %3337
      %3339 = vrot.lane.b32.xlu0 %v1688, 16
      %v3340 = vpop.permute.xlu0 %3339
      %3341 = vrot.lane.b32.xlu0 %v1689, 16
      %v3342 = vpop.permute.xlu0 %3341
      %3343 = vrot.lane.b32.xlu0 %v1690, 16
      %v3344 = vpop.permute.xlu0 %3343
      %3345 = vrot.lane.b32.xlu0 %v1691, 16
      %v3346 = vpop.permute.xlu0 %3345
      %3347 = vrot.lane.b32.xlu0 %v1692, 16
      %v3348 = vpop.permute.xlu0 %3347
      %3349 = vrot.lane.b32.xlu0 %v1693, 16
      %v3350 = vpop.permute.xlu0 %3349
      %3351 = vrot.lane.b32.xlu0 %v1694, 16
      %v3352 = vpop.permute.xlu0 %3351
      %3353 = vrot.lane.b32.xlu0 %v1695, 16
      %v3354 = vpop.permute.xlu0 %3353
      %3355 = vrot.lane.b32.xlu0 %v1696, 16
      %v3356 = vpop.permute.xlu0 %3355
      %3357 = vrot.lane.b32.xlu0 %v1697, 16
      %v3358 = vpop.permute.xlu0 %3357
      %3359 = vrot.lane.b32.xlu0 %v1698, 16
      %v3360 = vpop.permute.xlu0 %3359
      %3361 = vrot.lane.b32.xlu0 %v1699, 16
      %v3362 = vpop.permute.xlu0 %3361
      %3363 = vrot.lane.b32.xlu0 %v1700, 16
      %v3364 = vpop.permute.xlu0 %3363
      %3365 = vrot.lane.b32.xlu0 %v1701, 16
      %v3366 = vpop.permute.xlu0 %3365
      %3367 = vrot.lane.b32.xlu0 %v1702, 16
      %v3368 = vpop.permute.xlu0 %3367
      %3433 = vrot.lane.b32.xlu0 %v1703, 64
      %v3434 = vpop.permute.xlu0 %3433
      %3435 = vrot.lane.b32.xlu0 %v1704, 64
      %v3436 = vpop.permute.xlu0 %3435
      %3437 = vrot.lane.b32.xlu0 %v1705, 64
      %v3438 = vpop.permute.xlu0 %3437
      %3439 = vrot.lane.b32.xlu0 %v1706, 64
      %v3440 = vpop.permute.xlu0 %3439
      %3441 = vrot.lane.b32.xlu0 %v1707, 64
      %v3442 = vpop.permute.xlu0 %3441
      %3443 = vrot.lane.b32.xlu0 %v1708, 64
      %v3444 = vpop.permute.xlu0 %3443
      %3445 = vrot.lane.b32.xlu0 %v1709, 64
      %v3446 = vpop.permute.xlu0 %3445
      %3447 = vrot.lane.b32.xlu0 %v1710, 64
      %v3448 = vpop.permute.xlu0 %3447
      %3449 = vrot.lane.b32.xlu0 %v1711, 64
      %v3450 = vpop.permute.xlu0 %3449
      %3451 = vrot.lane.b32.xlu0 %v1712, 64
      %v3452 = vpop.permute.xlu0 %3451
      %3453 = vrot.lane.b32.xlu0 %v1713, 64
      %v3454 = vpop.permute.xlu0 %3453
      %3455 = vrot.lane.b32.xlu0 %v1714, 64
      %v3456 = vpop.permute.xlu0 %3455
      %3457 = vrot.lane.b32.xlu0 %v1715, 64
      %v3458 = vpop.permute.xlu0 %3457
      %3459 = vrot.lane.b32.xlu0 %v1716, 64
      %v3460 = vpop.permute.xlu0 %3459
      %3461 = vrot.lane.b32.xlu0 %v1717, 64
      %v3462 = vpop.permute.xlu0 %3461
      %3463 = vrot.lane.b32.xlu0 %v1718, 64
      %v3464 = vpop.permute.xlu0 %3463
      %3465 = vrot.lane.b32.xlu0 %v1719, 64
      %v3466 = vpop.permute.xlu0 %3465
      %3467 = vrot.lane.b32.xlu0 %v1720, 64
      %v3468 = vpop.permute.xlu0 %3467
      %3469 = vrot.lane.b32.xlu0 %v1721, 64
      %v3470 = vpop.permute.xlu0 %3469
      %3471 = vrot.lane.b32.xlu0 %v1722, 64
      %v3472 = vpop.permute.xlu0 %3471
      %3473 = vrot.lane.b32.xlu0 %v1723, 64
      %v3474 = vpop.permute.xlu0 %3473
      %3475 = vrot.lane.b32.xlu0 %v1724, 64
      %v3476 = vpop.permute.xlu0 %3475
      %3477 = vrot.lane.b32.xlu0 %v1725, 64
      %v3478 = vpop.permute.xlu0 %3477
      %3479 = vrot.lane.b32.xlu0 %v1726, 64
      %v3480 = vpop.permute.xlu0 %3479
      %3481 = vrot.lane.b32.xlu0 %v1727, 64
      %v3482 = vpop.permute.xlu0 %3481
      %3483 = vrot.lane.b32.xlu0 %v1728, 64
      %v3484 = vpop.permute.xlu0 %3483
      %3485 = vrot.lane.b32.xlu0 %v1729, 64
      %v3486 = vpop.permute.xlu0 %3485
      %3487 = vrot.lane.b32.xlu0 %v1730, 64
      %v3488 = vpop.permute.xlu0 %3487
      %3489 = vrot.lane.b32.xlu0 %v1731, 64
      %v3490 = vpop.permute.xlu0 %3489
      %3491 = vrot.lane.b32.xlu0 %v1732, 64
      %v3492 = vpop.permute.xlu0 %3491
      %3493 = vrot.lane.b32.xlu0 %v1733, 64
      %v3494 = vpop.permute.xlu0 %3493
      %3495 = vrot.lane.b32.xlu0 %v1734, 64
      %v3496 = vpop.permute.xlu0 %3495
      %3561 = vrot.lane.b32.xlu0 %v1735, 112
      %v3562 = vpop.permute.xlu0 %3561
      %3563 = vrot.lane.b32.xlu0 %v1736, 112
      %v3564 = vpop.permute.xlu0 %3563
      %3565 = vrot.lane.b32.xlu0 %v1737, 112
      %v3566 = vpop.permute.xlu0 %3565
      %3567 = vrot.lane.b32.xlu0 %v1738, 112
      %v3568 = vpop.permute.xlu0 %3567
      %3569 = vrot.lane.b32.xlu0 %v1739, 112
      %v3570 = vpop.permute.xlu0 %3569
      %3571 = vrot.lane.b32.xlu0 %v1740, 112
      %v3572 = vpop.permute.xlu0 %3571
      %3573 = vrot.lane.b32.xlu0 %v1741, 112
      %v3574 = vpop.permute.xlu0 %3573
      %3575 = vrot.lane.b32.xlu0 %v1742, 112
      %v3576 = vpop.permute.xlu0 %3575
      %3577 = vrot.lane.b32.xlu0 %v1743, 112
      %v3578 = vpop.permute.xlu0 %3577
      %3579 = vrot.lane.b32.xlu0 %v1744, 112
      %v3580 = vpop.permute.xlu0 %3579
      %3581 = vrot.lane.b32.xlu0 %v1745, 112
      %v3582 = vpop.permute.xlu0 %3581
      %3583 = vrot.lane.b32.xlu0 %v1746, 112
      %v3584 = vpop.permute.xlu0 %3583
      %3585 = vrot.lane.b32.xlu0 %v1747, 112
      %v3586 = vpop.permute.xlu0 %3585
      %3587 = vrot.lane.b32.xlu0 %v1748, 112
      %v3588 = vpop.permute.xlu0 %3587
      %3589 = vrot.lane.b32.xlu0 %v1749, 112
      %v3590 = vpop.permute.xlu0 %3589
      %3591 = vrot.lane.b32.xlu0 %v1750, 112
      %v3592 = vpop.permute.xlu0 %3591
      %3593 = vrot.lane.b32.xlu0 %v1751, 112
      %v3594 = vpop.permute.xlu0 %3593
      %3595 = vrot.lane.b32.xlu0 %v1752, 112
      %v3596 = vpop.permute.xlu0 %3595
      %3597 = vrot.lane.b32.xlu0 %v1753, 112
      %v3598 = vpop.permute.xlu0 %3597
      %3599 = vrot.lane.b32.xlu0 %v1754, 112
      %v3600 = vpop.permute.xlu0 %3599
      %3601 = vrot.lane.b32.xlu0 %v1755, 112
      %v3602 = vpop.permute.xlu0 %3601
      %3603 = vrot.lane.b32.xlu0 %v1756, 112
      %v3604 = vpop.permute.xlu0 %3603
      %3605 = vrot.lane.b32.xlu0 %v1757, 112
      %v3606 = vpop.permute.xlu0 %3605
      %3607 = vrot.lane.b32.xlu0 %v1758, 112
      %v3608 = vpop.permute.xlu0 %3607
      %3609 = vrot.lane.b32.xlu0 %v1759, 112
      %v3610 = vpop.permute.xlu0 %3609
      %3611 = vrot.lane.b32.xlu0 %v1760, 112
      %v3612 = vpop.permute.xlu0 %3611
      %3613 = vrot.lane.b32.xlu0 %v1761, 112
      %v3614 = vpop.permute.xlu0 %3613
      %3615 = vrot.lane.b32.xlu0 %v1762, 112
      %v3616 = vpop.permute.xlu0 %3615
      %3617 = vrot.lane.b32.xlu0 %v1763, 112
      %v3618 = vpop.permute.xlu0 %3617
      %3619 = vrot.lane.b32.xlu0 %v1764, 112
      %v3620 = vpop.permute.xlu0 %3619
      %3621 = vrot.lane.b32.xlu0 %v1765, 112
      %v3622 = vpop.permute.xlu0 %3621
      %3623 = vrot.lane.b32.xlu0 %v1766, 112
      %v3624 = vpop.permute.xlu0 %3623
      %3689 = vrot.lane.b32.xlu0 %v1767, 32
      %v3690 = vpop.permute.xlu0 %3689
      %3691 = vrot.lane.b32.xlu0 %v1768, 32
      %v3692 = vpop.permute.xlu0 %3691
      %3693 = vrot.lane.b32.xlu0 %v1769, 32
      %v3694 = vpop.permute.xlu0 %3693
      %3695 = vrot.lane.b32.xlu0 %v1770, 32
      %v3696 = vpop.permute.xlu0 %3695
      %3697 = vrot.lane.b32.xlu0 %v1771, 32
      %v3698 = vpop.permute.xlu0 %3697
      %3699 = vrot.lane.b32.xlu0 %v1772, 32
      %v3700 = vpop.permute.xlu0 %3699
      %3701 = vrot.lane.b32.xlu0 %v1773, 32
      %v3702 = vpop.permute.xlu0 %3701
      %3703 = vrot.lane.b32.xlu0 %v1774, 32
      %v3704 = vpop.permute.xlu0 %3703
      %3705 = vrot.lane.b32.xlu0 %v1775, 32
      %v3706 = vpop.permute.xlu0 %3705
      %3707 = vrot.lane.b32.xlu0 %v1776, 32
      %v3708 = vpop.permute.xlu0 %3707
      %3709 = vrot.lane.b32.xlu0 %v1777, 32
      %v3710 = vpop.permute.xlu0 %3709
      %3711 = vrot.lane.b32.xlu0 %v1778, 32
      %v3712 = vpop.permute.xlu0 %3711
      %3713 = vrot.lane.b32.xlu0 %v1779, 32
      %v3714 = vpop.permute.xlu0 %3713
      %3715 = vrot.lane.b32.xlu0 %v1780, 32
      %v3716 = vpop.permute.xlu0 %3715
      %3717 = vrot.lane.b32.xlu0 %v1781, 32
      %v3718 = vpop.permute.xlu0 %3717
      %3719 = vrot.lane.b32.xlu0 %v1782, 32
      %v3720 = vpop.permute.xlu0 %3719
      %3721 = vrot.lane.b32.xlu0 %v1783, 32
      %v3722 = vpop.permute.xlu0 %3721
      %3723 = vrot.lane.b32.xlu0 %v1784, 32
      %v3724 = vpop.permute.xlu0 %3723
      %3725 = vrot.lane.b32.xlu0 %v1785, 32
      %v3726 = vpop.permute.xlu0 %3725
      %3727 = vrot.lane.b32.xlu0 %v1786, 32
      %v3728 = vpop.permute.xlu0 %3727
      %3729 = vrot.lane.b32.xlu0 %v1787, 32
      %v3730 = vpop.permute.xlu0 %3729
      %3731 = vrot.lane.b32.xlu0 %v1788, 32
      %v3732 = vpop.permute.xlu0 %3731
      %3733 = vrot.lane.b32.xlu0 %v1789, 32
      %v3734 = vpop.permute.xlu0 %3733
      %3735 = vrot.lane.b32.xlu0 %v1790, 32
      %v3736 = vpop.permute.xlu0 %3735
      %3737 = vrot.lane.b32.xlu0 %v1791, 32
      %v3738 = vpop.permute.xlu0 %3737
      %3739 = vrot.lane.b32.xlu0 %v1792, 32
      %v3740 = vpop.permute.xlu0 %3739
      %3741 = vrot.lane.b32.xlu0 %v1793, 32
      %v3742 = vpop.permute.xlu0 %3741
      %3743 = vrot.lane.b32.xlu0 %v1794, 32
      %v3744 = vpop.permute.xlu0 %3743
      %3745 = vrot.lane.b32.xlu0 %v1795, 32
      %v3746 = vpop.permute.xlu0 %3745
      %3747 = vrot.lane.b32.xlu0 %v1796, 32
      %v3748 = vpop.permute.xlu0 %3747
      %3749 = vrot.lane.b32.xlu0 %v1797, 32
      %v3750 = vpop.permute.xlu0 %3749
      %3751 = vrot.lane.b32.xlu0 %v1798, 32
      %v3752 = vpop.permute.xlu0 %3751
      %3817 = vrot.lane.b32.xlu0 %v1800, 80
      %v3818 = vpop.permute.xlu0 %3817
      %3819 = vrot.lane.b32.xlu0 %v1801, 80
      %v3820 = vpop.permute.xlu0 %3819
      %3821 = vrot.lane.b32.xlu0 %v1802, 80
      %v3822 = vpop.permute.xlu0 %3821
      %3823 = vrot.lane.b32.xlu0 %v1803, 80
      %v3824 = vpop.permute.xlu0 %3823
      %3825 = vrot.lane.b32.xlu0 %v1804, 80
      %v3826 = vpop.permute.xlu0 %3825
      %3827 = vrot.lane.b32.xlu0 %v1805, 80
      %v3828 = vpop.permute.xlu0 %3827
      %3829 = vrot.lane.b32.xlu0 %v1806, 80
      %v3830 = vpop.permute.xlu0 %3829
      %3831 = vrot.lane.b32.xlu0 %v1807, 80
      %v3832 = vpop.permute.xlu0 %3831
      %3833 = vrot.lane.b32.xlu0 %v1808, 80
      %v3834 = vpop.permute.xlu0 %3833
      %3835 = vrot.lane.b32.xlu0 %v1809, 80
      %v3836 = vpop.permute.xlu0 %3835
      %3837 = vrot.lane.b32.xlu0 %v1810, 80
      %v3838 = vpop.permute.xlu0 %3837
      %3839 = vrot.lane.b32.xlu0 %v1811, 80
      %v3840 = vpop.permute.xlu0 %3839
      %3841 = vrot.lane.b32.xlu0 %v1812, 80
      %v3842 = vpop.permute.xlu0 %3841
      %3843 = vrot.lane.b32.xlu0 %v1813, 80
      %v3844 = vpop.permute.xlu0 %3843
      %3845 = vrot.lane.b32.xlu0 %v1814, 80
      %v3846 = vpop.permute.xlu0 %3845
      %3847 = vrot.lane.b32.xlu0 %v1815, 80
      %v3848 = vpop.permute.xlu0 %3847
      %3849 = vrot.lane.b32.xlu0 %v1816, 80
      %v3850 = vpop.permute.xlu0 %3849
      %3851 = vrot.lane.b32.xlu0 %v1817, 80
      %v3852 = vpop.permute.xlu0 %3851
      %3853 = vrot.lane.b32.xlu0 %v1818, 80
      %v3854 = vpop.permute.xlu0 %3853
      %3855 = vrot.lane.b32.xlu0 %v1819, 80
      %v3856 = vpop.permute.xlu0 %3855
      %3857 = vrot.lane.b32.xlu0 %v1820, 80
      %v3858 = vpop.permute.xlu0 %3857
      %3859 = vrot.lane.b32.xlu0 %v1821, 80
      %v3860 = vpop.permute.xlu0 %3859
      %3861 = vrot.lane.b32.xlu0 %v1822, 80
      %v3862 = vpop.permute.xlu0 %3861
      %3863 = vrot.lane.b32.xlu0 %v1823, 80
      %v3864 = vpop.permute.xlu0 %3863
      %3865 = vrot.lane.b32.xlu0 %v1824, 80
      %v3866 = vpop.permute.xlu0 %3865
      %3867 = vrot.lane.b32.xlu0 %v1825, 80
      %v3868 = vpop.permute.xlu0 %3867
      %3869 = vrot.lane.b32.xlu0 %v1826, 80
      %v3870 = vpop.permute.xlu0 %3869
      %3871 = vrot.lane.b32.xlu0 %v1827, 80
      %v3872 = vpop.permute.xlu0 %3871
      %3873 = vrot.lane.b32.xlu0 %v1828, 80
      %v3874 = vpop.permute.xlu0 %3873
      %3875 = vrot.lane.b32.xlu0 %v1829, 80
      %v3876 = vpop.permute.xlu0 %3875
      %3877 = vrot.lane.b32.xlu0 %v1830, 80
      %v3878 = vpop.permute.xlu0 %3877
      %3879 = vrot.lane.b32.xlu0 %v1831, 80
      %v3880 = vpop.permute.xlu0 %3879
      %v3913 = vsel %vm1020, %v1318, %v2154
      %v3914 = vsel %vm1020, %v1319, %v2156
      %v3915 = vsel %vm1020, %v1320, %v2158
      %v3916 = vsel %vm1020, %v1321, %v2160
      %v3917 = vsel %vm1020, %v1322, %v2162
      %v3918 = vsel %vm1020, %v1323, %v2164
      %v3919 = vsel %vm1020, %v1324, %v2166
      %v3920 = vsel %vm1020, %v1325, %v2168
      %v3921 = vsel %vm1020, %v1326, %v2170
      %v3922 = vsel %vm1020, %v1327, %v2172
      %v3923 = vsel %vm1020, %v1328, %v2174
      %v3924 = vsel %vm1020, %v1329, %v2176
      %v3925 = vsel %vm1020, %v1330, %v2178
      %v3926 = vsel %vm1020, %v1331, %v2180
      %v3927 = vsel %vm1020, %v1332, %v2182
      %v3928 = vsel %vm1020, %v1333, %v2184
      %v3929 = vsel %vm1020, %v1334, %v2186
      %v3930 = vsel %vm1020, %v1335, %v2188
      %v3931 = vsel %vm1020, %v1336, %v2190
      %v3932 = vsel %vm1020, %v1337, %v2192
      %v3933 = vsel %vm1020, %v1338, %v2194
      %v3934 = vsel %vm1020, %v1339, %v2196
      %v3935 = vsel %vm1020, %v1340, %v2198
      %v3936 = vsel %vm1020, %v1341, %v2200
      %v3937 = vsel %vm1020, %v1342, %v2202
      %v3938 = vsel %vm1020, %v1343, %v2204
      %v3939 = vsel %vm1020, %v1344, %v2206
      %v3940 = vsel %vm1020, %v1345, %v2208
      %v3941 = vsel %vm1020, %v1346, %v2210
      %v3942 = vsel %vm1020, %v1347, %v2212
      %v3943 = vsel %vm1020, %v1348, %v2214
      %v3944 = vsel %vm1020, %v1349, %v2216
      %v3945 = vsel %vm1126, %v3913, %v2282
      %v3946 = vsel %vm1126, %v3914, %v2284
      %v3947 = vsel %vm1126, %v3915, %v2286
      %v3948 = vsel %vm1126, %v3916, %v2288
      %v3949 = vsel %vm1126, %v3917, %v2290
      %v3950 = vsel %vm1126, %v3918, %v2292
      %v3951 = vsel %vm1126, %v3919, %v2294
      %v3952 = vsel %vm1126, %v3920, %v2296
      %v3953 = vsel %vm1126, %v3921, %v2298
      %v3954 = vsel %vm1126, %v3922, %v2300
      %v3955 = vsel %vm1126, %v3923, %v2302
      %v3956 = vsel %vm1126, %v3924, %v2304
      %v3957 = vsel %vm1126, %v3925, %v2306
      %v3958 = vsel %vm1126, %v3926, %v2308
      %v3959 = vsel %vm1126, %v3927, %v2310
      %v3960 = vsel %vm1126, %v3928, %v2312
      %v3961 = vsel %vm1126, %v3929, %v2314
      %v3962 = vsel %vm1126, %v3930, %v2316
      %v3963 = vsel %vm1126, %v3931, %v2318
      %v3964 = vsel %vm1126, %v3932, %v2320
      %v3965 = vsel %vm1126, %v3933, %v2322
      %v3966 = vsel %vm1126, %v3934, %v2324
      %v3967 = vsel %vm1126, %v3935, %v2326
      %v3968 = vsel %vm1126, %v3936, %v2328
      %v3969 = vsel %vm1126, %v3937, %v2330
      %v3970 = vsel %vm1126, %v3938, %v2332
      %v3971 = vsel %vm1126, %v3939, %v2334
      %v3972 = vsel %vm1126, %v3940, %v2336
      %v3973 = vsel %vm1126, %v3941, %v2338
      %v3974 = vsel %vm1126, %v3942, %v2340
      %v3975 = vsel %vm1126, %v3943, %v2342
      %v3976 = vsel %vm1126, %v3944, %v2344
      %vm3977 = vcmask 130048
      %v3978 = vsel %vm3977, %v2282, %v2410
      %v3979 = vsel %vm3977, %v2284, %v2412
      %v3980 = vsel %vm3977, %v2286, %v2414
      %v3981 = vsel %vm3977, %v2288, %v2416
      %v3982 = vsel %vm3977, %v2290, %v2418
      %v3983 = vsel %vm3977, %v2292, %v2420
      %v3984 = vsel %vm3977, %v2294, %v2422
      %v3985 = vsel %vm3977, %v2296, %v2424
      %v3986 = vsel %vm3977, %v2298, %v2426
      %v3987 = vsel %vm3977, %v2300, %v2428
      %v3988 = vsel %vm3977, %v2302, %v2430
      %v3989 = vsel %vm3977, %v2304, %v2432
      %v3990 = vsel %vm3977, %v2306, %v2434
      %v3991 = vsel %vm3977, %v2308, %v2436
      %v3992 = vsel %vm3977, %v2310, %v2438
      %v3993 = vsel %vm3977, %v2312, %v2440
      %v3994 = vsel %vm3977, %v2314, %v2442
      %v3995 = vsel %vm3977, %v2316, %v2444
      %v3996 = vsel %vm3977, %v2318, %v2446
      %v3997 = vsel %vm3977, %v2320, %v2448
      %v3998 = vsel %vm3977, %v2322, %v2450
      %v3999 = vsel %vm3977, %v2324, %v2452
      %v4000 = vsel %vm3977, %v2326, %v2454
      %v4001 = vsel %vm3977, %v2328, %v2456
      %v4002 = vsel %vm3977, %v2330, %v2458
      %v4003 = vsel %vm3977, %v2332, %v2460
      %v4004 = vsel %vm3977, %v2334, %v2462
      %v4005 = vsel %vm3977, %v2336, %v2464
      %v4006 = vsel %vm3977, %v2338, %v2466
      %v4007 = vsel %vm3977, %v2340, %v2468
      %v4008 = vsel %vm3977, %v2342, %v2470
      %v4009 = vsel %vm3977, %v2344, %v2472
      %v4010 = vsel %vm1079, %v3978, %v2538
      %v4011 = vsel %vm1079, %v3979, %v2540
      %v4012 = vsel %vm1079, %v3980, %v2542
      %v4013 = vsel %vm1079, %v3981, %v2544
      %v4014 = vsel %vm1079, %v3982, %v2546
      %v4015 = vsel %vm1079, %v3983, %v2548
      %v4016 = vsel %vm1079, %v3984, %v2550
      %v4017 = vsel %vm1079, %v3985, %v2552
      %v4018 = vsel %vm1079, %v3986, %v2554
      %v4019 = vsel %vm1079, %v3987, %v2556
      %v4020 = vsel %vm1079, %v3988, %v2558
      %v4021 = vsel %vm1079, %v3989, %v2560
      %v4022 = vsel %vm1079, %v3990, %v2562
      %v4023 = vsel %vm1079, %v3991, %v2564
      %v4024 = vsel %vm1079, %v3992, %v2566
      %v4025 = vsel %vm1079, %v3993, %v2568
      %v4026 = vsel %vm1079, %v3994, %v2570
      %v4027 = vsel %vm1079, %v3995, %v2572
      %v4028 = vsel %vm1079, %v3996, %v2574
      %v4029 = vsel %vm1079, %v3997, %v2576
      %v4030 = vsel %vm1079, %v3998, %v2578
      %v4031 = vsel %vm1079, %v3999, %v2580
      %v4032 = vsel %vm1079, %v4000, %v2582
      %v4033 = vsel %vm1079, %v4001, %v2584
      %v4034 = vsel %vm1079, %v4002, %v2586
      %v4035 = vsel %vm1079, %v4003, %v2588
      %v4036 = vsel %vm1079, %v4004, %v2590
      %v4037 = vsel %vm1079, %v4005, %v2592
      %v4038 = vsel %vm1079, %v4006, %v2594
      %v4039 = vsel %vm1079, %v4007, %v2596
      %v4040 = vsel %vm1079, %v4008, %v2598
      %v4041 = vsel %vm1079, %v4009, %v2600
      %vm4042 = vcmask 916480
      %v4043 = vsel %vm4042, %v4010, %v2666
      %v4044 = vsel %vm4042, %v4011, %v2668
      %v4045 = vsel %vm4042, %v4012, %v2670
      %v4046 = vsel %vm4042, %v4013, %v2672
      %v4047 = vsel %vm4042, %v4014, %v2674
      %v4048 = vsel %vm4042, %v4015, %v2676
      %v4049 = vsel %vm4042, %v4016, %v2678
      %v4050 = vsel %vm4042, %v4017, %v2680
      %v4051 = vsel %vm4042, %v4018, %v2682
      %v4052 = vsel %vm4042, %v4019, %v2684
      %v4053 = vsel %vm4042, %v4020, %v2686
      %v4054 = vsel %vm4042, %v4021, %v2688
      %v4055 = vsel %vm4042, %v4022, %v2690
      %v4056 = vsel %vm4042, %v4023, %v2692
      %v4057 = vsel %vm4042, %v4024, %v2694
      %v4058 = vsel %vm4042, %v4025, %v2696
      %v4059 = vsel %vm4042, %v4026, %v2698
      %v4060 = vsel %vm4042, %v4027, %v2700
      %v4061 = vsel %vm4042, %v4028, %v2702
      %v4062 = vsel %vm4042, %v4029, %v2704
      %v4063 = vsel %vm4042, %v4030, %v2706
      %v4064 = vsel %vm4042, %v4031, %v2708
      %v4065 = vsel %vm4042, %v4032, %v2710
      %v4066 = vsel %vm4042, %v4033, %v2712
      %v4067 = vsel %vm4042, %v4034, %v2714
      %v4068 = vsel %vm4042, %v4035, %v2716
      %v4069 = vsel %vm4042, %v4036, %v2718
      %v4070 = vsel %vm4042, %v4037, %v2720
      %v4071 = vsel %vm4042, %v4038, %v2722
      %v4072 = vsel %vm4042, %v4039, %v2724
      %v4073 = vsel %vm4042, %v4040, %v2726
      %v4074 = vsel %vm4042, %v4041, %v2728
      %vm4075 = vcmask 261120
      %v4076 = vsel %vm4075, %v2666, %v2794
      %v4077 = vsel %vm4075, %v2668, %v2796
      %v4078 = vsel %vm4075, %v2670, %v2798
      %v4079 = vsel %vm4075, %v2672, %v2800
      %v4080 = vsel %vm4075, %v2674, %v2802
      %v4081 = vsel %vm4075, %v2676, %v2804
      %v4082 = vsel %vm4075, %v2678, %v2806
      %v4083 = vsel %vm4075, %v2680, %v2808
      %v4084 = vsel %vm4075, %v2682, %v2810
      %v4085 = vsel %vm4075, %v2684, %v2812
      %v4086 = vsel %vm4075, %v2686, %v2814
      %v4087 = vsel %vm4075, %v2688, %v2816
      %v4088 = vsel %vm4075, %v2690, %v2818
      %v4089 = vsel %vm4075, %v2692, %v2820
      %v4090 = vsel %vm4075, %v2694, %v2822
      %v4091 = vsel %vm4075, %v2696, %v2824
      %v4092 = vsel %vm4075, %v2698, %v2826
      %v4093 = vsel %vm4075, %v2700, %v2828
      %v4094 = vsel %vm4075, %v2702, %v2830
      %v4095 = vsel %vm4075, %v2704, %v2832
      %v4096 = vsel %vm4075, %v2706, %v2834
      %v4097 = vsel %vm4075, %v2708, %v2836
      %v4098 = vsel %vm4075, %v2710, %v2838
      %v4099 = vsel %vm4075, %v2712, %v2840
      %v4100 = vsel %vm4075, %v2714, %v2842
      %v4101 = vsel %vm4075, %v2716, %v2844
      %v4102 = vsel %vm4075, %v2718, %v2846
      %v4103 = vsel %vm4075, %v2720, %v2848
      %v4104 = vsel %vm4075, %v2722, %v2850
      %v4105 = vsel %vm4075, %v2724, %v2852
      %v4106 = vsel %vm4075, %v2726, %v2854
      %v4107 = vsel %vm4075, %v2728, %v2856
      %vm4108 = vcmask 654336
      %v4109 = vsel %vm4108, %v4076, %v2922
      %v4110 = vsel %vm4108, %v4077, %v2924
      %v4111 = vsel %vm4108, %v4078, %v2926
      %v4112 = vsel %vm4108, %v4079, %v2928
      %v4113 = vsel %vm4108, %v4080, %v2930
      %v4114 = vsel %vm4108, %v4081, %v2932
      %v4115 = vsel %vm4108, %v4082, %v2934
      %v4116 = vsel %vm4108, %v4083, %v2936
      %v4117 = vsel %vm4108, %v4084, %v2938
      %v4118 = vsel %vm4108, %v4085, %v2940
      %v4119 = vsel %vm4108, %v4086, %v2942
      %v4120 = vsel %vm4108, %v4087, %v2944
      %v4121 = vsel %vm4108, %v4088, %v2946
      %v4122 = vsel %vm4108, %v4089, %v2948
      %v4123 = vsel %vm4108, %v4090, %v2950
      %v4124 = vsel %vm4108, %v4091, %v2952
      %v4125 = vsel %vm4108, %v4092, %v2954
      %v4126 = vsel %vm4108, %v4093, %v2956
      %v4127 = vsel %vm4108, %v4094, %v2958
      %v4128 = vsel %vm4108, %v4095, %v2960
      %v4129 = vsel %vm4108, %v4096, %v2962
      %v4130 = vsel %vm4108, %v4097, %v2964
      %v4131 = vsel %vm4108, %v4098, %v2966
      %v4132 = vsel %vm4108, %v4099, %v2968
      %v4133 = vsel %vm4108, %v4100, %v2970
      %v4134 = vsel %vm4108, %v4101, %v2972
      %v4135 = vsel %vm4108, %v4102, %v2974
      %v4136 = vsel %vm4108, %v4103, %v2976
      %v4137 = vsel %vm4108, %v4104, %v2978
      %v4138 = vsel %vm4108, %v4105, %v2980
      %v4139 = vsel %vm4108, %v4106, %v2982
      %v4140 = vsel %vm4108, %v4107, %v2984
      %v4141 = vsel %vm1020, %v1575, %v3050
      %v4142 = vsel %vm1020, %v1576, %v3052
      %v4143 = vsel %vm1020, %v1577, %v3054
      %v4144 = vsel %vm1020, %v1578, %v3056
      %v4145 = vsel %vm1020, %v1579, %v3058
      %v4146 = vsel %vm1020, %v1580, %v3060
      %v4147 = vsel %vm1020, %v1581, %v3062
      %v4148 = vsel %vm1020, %v1582, %v3064
      %v4149 = vsel %vm1020, %v1583, %v3066
      %v4150 = vsel %vm1020, %v1584, %v3068
      %v4151 = vsel %vm1020, %v1585, %v3070
      %v4152 = vsel %vm1020, %v1586, %v3072
      %v4153 = vsel %vm1020, %v1587, %v3074
      %v4154 = vsel %vm1020, %v1588, %v3076
      %v4155 = vsel %vm1020, %v1589, %v3078
      %v4156 = vsel %vm1020, %v1590, %v3080
      %v4157 = vsel %vm1020, %v1591, %v3082
      %v4158 = vsel %vm1020, %v1592, %v3084
      %v4159 = vsel %vm1020, %v1593, %v3086
      %v4160 = vsel %vm1020, %v1594, %v3088
      %v4161 = vsel %vm1020, %v1595, %v3090
      %v4162 = vsel %vm1020, %v1596, %v3092
      %v4163 = vsel %vm1020, %v1597, %v3094
      %v4164 = vsel %vm1020, %v1598, %v3096
      %v4165 = vsel %vm1020, %v1599, %v3098
      %v4166 = vsel %vm1020, %v1600, %v3100
      %v4167 = vsel %vm1020, %v1601, %v3102
      %v4168 = vsel %vm1020, %v1602, %v3104
      %v4169 = vsel %vm1020, %v1603, %v3106
      %v4170 = vsel %vm1020, %v1604, %v3108
      %v4171 = vsel %vm1020, %v1605, %v3110
      %v4172 = vsel %vm1020, %v1606, %v3112
      %v4173 = vsel %vm1126, %v4141, %v3178
      %v4174 = vsel %vm1126, %v4142, %v3180
      %v4175 = vsel %vm1126, %v4143, %v3182
      %v4176 = vsel %vm1126, %v4144, %v3184
      %v4177 = vsel %vm1126, %v4145, %v3186
      %v4178 = vsel %vm1126, %v4146, %v3188
      %v4179 = vsel %vm1126, %v4147, %v3190
      %v4180 = vsel %vm1126, %v4148, %v3192
      %v4181 = vsel %vm1126, %v4149, %v3194
      %v4182 = vsel %vm1126, %v4150, %v3196
      %v4183 = vsel %vm1126, %v4151, %v3198
      %v4184 = vsel %vm1126, %v4152, %v3200
      %v4185 = vsel %vm1126, %v4153, %v3202
      %v4186 = vsel %vm1126, %v4154, %v3204
      %v4187 = vsel %vm1126, %v4155, %v3206
      %v4188 = vsel %vm1126, %v4156, %v3208
      %v4189 = vsel %vm1126, %v4157, %v3210
      %v4190 = vsel %vm1126, %v4158, %v3212
      %v4191 = vsel %vm1126, %v4159, %v3214
      %v4192 = vsel %vm1126, %v4160, %v3216
      %v4193 = vsel %vm1126, %v4161, %v3218
      %v4194 = vsel %vm1126, %v4162, %v3220
      %v4195 = vsel %vm1126, %v4163, %v3222
      %v4196 = vsel %vm1126, %v4164, %v3224
      %v4197 = vsel %vm1126, %v4165, %v3226
      %v4198 = vsel %vm1126, %v4166, %v3228
      %v4199 = vsel %vm1126, %v4167, %v3230
      %v4200 = vsel %vm1126, %v4168, %v3232
      %v4201 = vsel %vm1126, %v4169, %v3234
      %v4202 = vsel %vm1126, %v4170, %v3236
      %v4203 = vsel %vm1126, %v4171, %v3238
      %v4204 = vsel %vm1126, %v4172, %v3240
      %v4205 = vsel %vm3977, %v3178, %v3306
      %v4206 = vsel %vm3977, %v3180, %v3308
      %v4207 = vsel %vm3977, %v3182, %v3310
      %v4208 = vsel %vm3977, %v3184, %v3312
      %v4209 = vsel %vm3977, %v3186, %v3314
      %v4210 = vsel %vm3977, %v3188, %v3316
      %v4211 = vsel %vm3977, %v3190, %v3318
      %v4212 = vsel %vm3977, %v3192, %v3320
      %v4213 = vsel %vm3977, %v3194, %v3322
      %v4214 = vsel %vm3977, %v3196, %v3324
      %v4215 = vsel %vm3977, %v3198, %v3326
      %v4216 = vsel %vm3977, %v3200, %v3328
      %v4217 = vsel %vm3977, %v3202, %v3330
      %v4218 = vsel %vm3977, %v3204, %v3332
      %v4219 = vsel %vm3977, %v3206, %v3334
      %v4220 = vsel %vm3977, %v3208, %v3336
      %v4221 = vsel %vm3977, %v3210, %v3338
      %v4222 = vsel %vm3977, %v3212, %v3340
      %v4223 = vsel %vm3977, %v3214, %v3342
      %v4224 = vsel %vm3977, %v3216, %v3344
      %v4225 = vsel %vm3977, %v3218, %v3346
      %v4226 = vsel %vm3977, %v3220, %v3348
      %v4227 = vsel %vm3977, %v3222, %v3350
      %v4228 = vsel %vm3977, %v3224, %v3352
      %v4229 = vsel %vm3977, %v3226, %v3354
      %v4230 = vsel %vm3977, %v3228, %v3356
      %v4231 = vsel %vm3977, %v3230, %v3358
      %v4232 = vsel %vm3977, %v3232, %v3360
      %v4233 = vsel %vm3977, %v3234, %v3362
      %v4234 = vsel %vm3977, %v3236, %v3364
      %v4235 = vsel %vm3977, %v3238, %v3366
      %v4236 = vsel %vm3977, %v3240, %v3368
      %v4237 = vsel %vm1079, %v4205, %v3434
      %v4238 = vsel %vm1079, %v4206, %v3436
      %v4239 = vsel %vm1079, %v4207, %v3438
      %v4240 = vsel %vm1079, %v4208, %v3440
      %v4241 = vsel %vm1079, %v4209, %v3442
      %v4242 = vsel %vm1079, %v4210, %v3444
      %v4243 = vsel %vm1079, %v4211, %v3446
      %v4244 = vsel %vm1079, %v4212, %v3448
      %v4245 = vsel %vm1079, %v4213, %v3450
      %v4246 = vsel %vm1079, %v4214, %v3452
      %v4247 = vsel %vm1079, %v4215, %v3454
      %v4248 = vsel %vm1079, %v4216, %v3456
      %v4249 = vsel %vm1079, %v4217, %v3458
      %v4250 = vsel %vm1079, %v4218, %v3460
      %v4251 = vsel %vm1079, %v4219, %v3462
      %v4252 = vsel %vm1079, %v4220, %v3464
      %v4253 = vsel %vm1079, %v4221, %v3466
      %v4254 = vsel %vm1079, %v4222, %v3468
      %v4255 = vsel %vm1079, %v4223, %v3470
      %v4256 = vsel %vm1079, %v4224, %v3472
      %v4257 = vsel %vm1079, %v4225, %v3474
      %v4258 = vsel %vm1079, %v4226, %v3476
      %v4259 = vsel %vm1079, %v4227, %v3478
      %v4260 = vsel %vm1079, %v4228, %v3480
      %v4261 = vsel %vm1079, %v4229, %v3482
      %v4262 = vsel %vm1079, %v4230, %v3484
      %v4263 = vsel %vm1079, %v4231, %v3486
      %v4264 = vsel %vm1079, %v4232, %v3488
      %v4265 = vsel %vm1079, %v4233, %v3490
      %v4266 = vsel %vm1079, %v4234, %v3492
      %v4267 = vsel %vm1079, %v4235, %v3494
      %v4268 = vsel %vm1079, %v4236, %v3496
      %v4269 = vsel %vm4042, %v4237, %v3562
      %v4270 = vsel %vm4042, %v4238, %v3564
      %v4271 = vsel %vm4042, %v4239, %v3566
      %v4272 = vsel %vm4042, %v4240, %v3568
      %v4273 = vsel %vm4042, %v4241, %v3570
      %v4274 = vsel %vm4042, %v4242, %v3572
      %v4275 = vsel %vm4042, %v4243, %v3574
      %v4276 = vsel %vm4042, %v4244, %v3576
      %v4277 = vsel %vm4042, %v4245, %v3578
      %v4278 = vsel %vm4042, %v4246, %v3580
      %v4279 = vsel %vm4042, %v4247, %v3582
      %v4280 = vsel %vm4042, %v4248, %v3584
      %v4281 = vsel %vm4042, %v4249, %v3586
      %v4282 = vsel %vm4042, %v4250, %v3588
      %v4283 = vsel %vm4042, %v4251, %v3590
      %v4284 = vsel %vm4042, %v4252, %v3592
      %v4285 = vsel %vm4042, %v4253, %v3594
      %v4286 = vsel %vm4042, %v4254, %v3596
      %v4287 = vsel %vm4042, %v4255, %v3598
      %v4288 = vsel %vm4042, %v4256, %v3600
      %v4289 = vsel %vm4042, %v4257, %v3602
      %v4290 = vsel %vm4042, %v4258, %v3604
      %v4291 = vsel %vm4042, %v4259, %v3606
      %v4292 = vsel %vm4042, %v4260, %v3608
      %v4293 = vsel %vm4042, %v4261, %v3610
      %v4294 = vsel %vm4042, %v4262, %v3612
      %v4295 = vsel %vm4042, %v4263, %v3614
      %v4296 = vsel %vm4042, %v4264, %v3616
      %v4297 = vsel %vm4042, %v4265, %v3618
      %v4298 = vsel %vm4042, %v4266, %v3620
      %v4299 = vsel %vm4042, %v4267, %v3622
      %v4300 = vsel %vm4042, %v4268, %v3624
      %v4301 = vsel %vm4075, %v3562, %v3690
      %v4302 = vsel %vm4075, %v3564, %v3692
      %v4303 = vsel %vm4075, %v3566, %v3694
      %v4304 = vsel %vm4075, %v3568, %v3696
      %v4305 = vsel %vm4075, %v3570, %v3698
      %v4306 = vsel %vm4075, %v3572, %v3700
      %v4307 = vsel %vm4075, %v3574, %v3702
      %v4308 = vsel %vm4075, %v3576, %v3704
      %v4309 = vsel %vm4075, %v3578, %v3706
      %v4310 = vsel %vm4075, %v3580, %v3708
      %v4311 = vsel %vm4075, %v3582, %v3710
      %v4312 = vsel %vm4075, %v3584, %v3712
      %v4313 = vsel %vm4075, %v3586, %v3714
      %v4314 = vsel %vm4075, %v3588, %v3716
      %v4315 = vsel %vm4075, %v3590, %v3718
      %v4316 = vsel %vm4075, %v3592, %v3720
      %v4317 = vsel %vm4075, %v3594, %v3722
      %v4318 = vsel %vm4075, %v3596, %v3724
      %v4319 = vsel %vm4075, %v3598, %v3726
      %v4320 = vsel %vm4075, %v3600, %v3728
      %v4321 = vsel %vm4075, %v3602, %v3730
      %v4322 = vsel %vm4075, %v3604, %v3732
      %v4323 = vsel %vm4075, %v3606, %v3734
      %v4324 = vsel %vm4075, %v3608, %v3736
      %v4325 = vsel %vm4075, %v3610, %v3738
      %v4326 = vsel %vm4075, %v3612, %v3740
      %v4327 = vsel %vm4075, %v3614, %v3742
      %v4328 = vsel %vm4075, %v3616, %v3744
      %v4329 = vsel %vm4075, %v3618, %v3746
      %v4330 = vsel %vm4075, %v3620, %v3748
      %v4331 = vsel %vm4075, %v3622, %v3750
      %v4332 = vsel %vm4075, %v3624, %v3752
      %v4333 = vsel %vm4108, %v4301, %v3818
      %v4334 = vsel %vm4108, %v4302, %v3820
      %v4335 = vsel %vm4108, %v4303, %v3822
      %v4336 = vsel %vm4108, %v4304, %v3824
      %v4337 = vsel %vm4108, %v4305, %v3826
      %v4338 = vsel %vm4108, %v4306, %v3828
      %v4339 = vsel %vm4108, %v4307, %v3830
      %v4340 = vsel %vm4108, %v4308, %v3832
      %v4341 = vsel %vm4108, %v4309, %v3834
      %v4342 = vsel %vm4108, %v4310, %v3836
      %v4343 = vsel %vm4108, %v4311, %v3838
      %v4344 = vsel %vm4108, %v4312, %v3840
      %v4345 = vsel %vm4108, %v4313, %v3842
      %v4346 = vsel %vm4108, %v4314, %v3844
      %v4347 = vsel %vm4108, %v4315, %v3846
      %v4348 = vsel %vm4108, %v4316, %v3848
      %v4349 = vsel %vm4108, %v4317, %v3850
      %v4350 = vsel %vm4108, %v4318, %v3852
      %v4351 = vsel %vm4108, %v4319, %v3854
      %v4352 = vsel %vm4108, %v4320, %v3856
      %v4353 = vsel %vm4108, %v4321, %v3858
      %v4354 = vsel %vm4108, %v4322, %v3860
      %v4355 = vsel %vm4108, %v4323, %v3862
      %v4356 = vsel %vm4108, %v4324, %v3864
      %v4357 = vsel %vm4108, %v4325, %v3866
      %v4358 = vsel %vm4108, %v4326, %v3868
      %v4359 = vsel %vm4108, %v4327, %v3870
      %v4360 = vsel %vm4108, %v4328, %v3872
      %v4361 = vsel %vm4108, %v4329, %v3874
      %v4362 = vsel %vm4108, %v4330, %v3876
      %v4363 = vsel %vm4108, %v4331, %v3878
      %v4364 = vsel %vm4108, %v4332, %v3880
      %4397 = vrot.lane.b32.xlu0 %v1864, 48
      %v4398 = vpop.permute.xlu0 %4397
      %4399 = vrot.lane.b32.xlu0 %v1865, 48
      %v4400 = vpop.permute.xlu0 %4399
      %4401 = vrot.lane.b32.xlu0 %v1866, 48
      %v4402 = vpop.permute.xlu0 %4401
      %4403 = vrot.lane.b32.xlu0 %v1867, 48
      %v4404 = vpop.permute.xlu0 %4403
      %4405 = vrot.lane.b32.xlu0 %v1868, 48
      %v4406 = vpop.permute.xlu0 %4405
      %4407 = vrot.lane.b32.xlu0 %v1869, 48
      %v4408 = vpop.permute.xlu0 %4407
      %4409 = vrot.lane.b32.xlu0 %v1870, 48
      %v4410 = vpop.permute.xlu0 %4409
      %4411 = vrot.lane.b32.xlu0 %v1871, 48
      %v4412 = vpop.permute.xlu0 %4411
      %4413 = vrot.lane.b32.xlu0 %v1872, 48
      %v4414 = vpop.permute.xlu0 %4413
      %4415 = vrot.lane.b32.xlu0 %v1873, 48
      %v4416 = vpop.permute.xlu0 %4415
      %4417 = vrot.lane.b32.xlu0 %v1874, 48
      %v4418 = vpop.permute.xlu0 %4417
      %4419 = vrot.lane.b32.xlu0 %v1875, 48
      %v4420 = vpop.permute.xlu0 %4419
      %4421 = vrot.lane.b32.xlu0 %v1876, 48
      %v4422 = vpop.permute.xlu0 %4421
      %4423 = vrot.lane.b32.xlu0 %v1877, 48
      %v4424 = vpop.permute.xlu0 %4423
      %4425 = vrot.lane.b32.xlu0 %v1878, 48
      %v4426 = vpop.permute.xlu0 %4425
      %4427 = vrot.lane.b32.xlu0 %v1879, 48
      %v4428 = vpop.permute.xlu0 %4427
      %4429 = vrot.lane.b32.xlu0 %v1880, 48
      %v4430 = vpop.permute.xlu0 %4429
      %4431 = vrot.lane.b32.xlu0 %v1881, 48
      %v4432 = vpop.permute.xlu0 %4431
      %4433 = vrot.lane.b32.xlu0 %v1882, 48
      %v4434 = vpop.permute.xlu0 %4433
      %4435 = vrot.lane.b32.xlu0 %v1883, 48
      %v4436 = vpop.permute.xlu0 %4435
      %4437 = vrot.lane.b32.xlu0 %v1884, 48
      %v4438 = vpop.permute.xlu0 %4437
      %4439 = vrot.lane.b32.xlu0 %v1885, 48
      %v4440 = vpop.permute.xlu0 %4439
      %4441 = vrot.lane.b32.xlu0 %v1886, 48
      %v4442 = vpop.permute.xlu0 %4441
      %4443 = vrot.lane.b32.xlu0 %v1887, 48
      %v4444 = vpop.permute.xlu0 %4443
      %4445 = vrot.lane.b32.xlu0 %v1888, 48
      %v4446 = vpop.permute.xlu0 %4445
      %4447 = vrot.lane.b32.xlu0 %v1889, 48
      %v4448 = vpop.permute.xlu0 %4447
      %4449 = vrot.lane.b32.xlu0 %v1890, 48
      %v4450 = vpop.permute.xlu0 %4449
      %4451 = vrot.lane.b32.xlu0 %v1891, 48
      %v4452 = vpop.permute.xlu0 %4451
      %4453 = vrot.lane.b32.xlu0 %v1892, 48
      %v4454 = vpop.permute.xlu0 %4453
      %4455 = vrot.lane.b32.xlu0 %v1893, 48
      %v4456 = vpop.permute.xlu0 %4455
      %4457 = vrot.lane.b32.xlu0 %v1894, 48
      %v4458 = vpop.permute.xlu0 %4457
      %4459 = vrot.lane.b32.xlu0 %v1895, 48
      %v4460 = vpop.permute.xlu0 %4459
      %4525 = vrot.lane.b32.xlu0 %v1896, 96
      %v4526 = vpop.permute.xlu0 %4525
      %4527 = vrot.lane.b32.xlu0 %v1897, 96
      %v4528 = vpop.permute.xlu0 %4527
      %4529 = vrot.lane.b32.xlu0 %v1898, 96
      %v4530 = vpop.permute.xlu0 %4529
      %4531 = vrot.lane.b32.xlu0 %v1899, 96
      %v4532 = vpop.permute.xlu0 %4531
      %4533 = vrot.lane.b32.xlu0 %v1900, 96
      %v4534 = vpop.permute.xlu0 %4533
      %4535 = vrot.lane.b32.xlu0 %v1901, 96
      %v4536 = vpop.permute.xlu0 %4535
      %4537 = vrot.lane.b32.xlu0 %v1902, 96
      %v4538 = vpop.permute.xlu0 %4537
      %4539 = vrot.lane.b32.xlu0 %v1903, 96
      %v4540 = vpop.permute.xlu0 %4539
      %4541 = vrot.lane.b32.xlu0 %v1904, 96
      %v4542 = vpop.permute.xlu0 %4541
      %4543 = vrot.lane.b32.xlu0 %v1905, 96
      %v4544 = vpop.permute.xlu0 %4543
      %4545 = vrot.lane.b32.xlu0 %v1906, 96
      %v4546 = vpop.permute.xlu0 %4545
      %4547 = vrot.lane.b32.xlu0 %v1907, 96
      %v4548 = vpop.permute.xlu0 %4547
      %4549 = vrot.lane.b32.xlu0 %v1908, 96
      %v4550 = vpop.permute.xlu0 %4549
      %4551 = vrot.lane.b32.xlu0 %v1909, 96
      %v4552 = vpop.permute.xlu0 %4551
      %4553 = vrot.lane.b32.xlu0 %v1910, 96
      %v4554 = vpop.permute.xlu0 %4553
      %4555 = vrot.lane.b32.xlu0 %v1911, 96
      %v4556 = vpop.permute.xlu0 %4555
      %4557 = vrot.lane.b32.xlu0 %v1912, 96
      %v4558 = vpop.permute.xlu0 %4557
      %4559 = vrot.lane.b32.xlu0 %v1913, 96
      %v4560 = vpop.permute.xlu0 %4559
      %4561 = vrot.lane.b32.xlu0 %v1914, 96
      %v4562 = vpop.permute.xlu0 %4561
      %4563 = vrot.lane.b32.xlu0 %v1915, 96
      %v4564 = vpop.permute.xlu0 %4563
      %4565 = vrot.lane.b32.xlu0 %v1916, 96
      %v4566 = vpop.permute.xlu0 %4565
      %4567 = vrot.lane.b32.xlu0 %v1917, 96
      %v4568 = vpop.permute.xlu0 %4567
      %4569 = vrot.lane.b32.xlu0 %v1918, 96
      %v4570 = vpop.permute.xlu0 %4569
      %4571 = vrot.lane.b32.xlu0 %v1919, 96
      %v4572 = vpop.permute.xlu0 %4571
      %4573 = vrot.lane.b32.xlu0 %v1920, 96
      %v4574 = vpop.permute.xlu0 %4573
      %4575 = vrot.lane.b32.xlu0 %v1921, 96
      %v4576 = vpop.permute.xlu0 %4575
      %4577 = vrot.lane.b32.xlu0 %v1922, 96
      %v4578 = vpop.permute.xlu0 %4577
      %4579 = vrot.lane.b32.xlu0 %v1923, 96
      %v4580 = vpop.permute.xlu0 %4579
      %4581 = vrot.lane.b32.xlu0 %v1924, 96
      %v4582 = vpop.permute.xlu0 %4581
      %4583 = vrot.lane.b32.xlu0 %v1925, 96
      %v4584 = vpop.permute.xlu0 %4583
      %4585 = vrot.lane.b32.xlu0 %v1926, 96
      %v4586 = vpop.permute.xlu0 %4585
      %4587 = vrot.lane.b32.xlu0 %v1927, 96
      %v4588 = vpop.permute.xlu0 %4587
      %4653 = vrot.lane.b32.xlu0 %v1928, 16
      %v4654 = vpop.permute.xlu0 %4653
      %4655 = vrot.lane.b32.xlu0 %v1929, 16
      %v4656 = vpop.permute.xlu0 %4655
      %4657 = vrot.lane.b32.xlu0 %v1930, 16
      %v4658 = vpop.permute.xlu0 %4657
      %4659 = vrot.lane.b32.xlu0 %v1931, 16
      %v4660 = vpop.permute.xlu0 %4659
      %4661 = vrot.lane.b32.xlu0 %v1932, 16
      %v4662 = vpop.permute.xlu0 %4661
      %4663 = vrot.lane.b32.xlu0 %v1933, 16
      %v4664 = vpop.permute.xlu0 %4663
      %4665 = vrot.lane.b32.xlu0 %v1934, 16
      %v4666 = vpop.permute.xlu0 %4665
      %4667 = vrot.lane.b32.xlu0 %v1935, 16
      %v4668 = vpop.permute.xlu0 %4667
      %4669 = vrot.lane.b32.xlu0 %v1936, 16
      %v4670 = vpop.permute.xlu0 %4669
      %4671 = vrot.lane.b32.xlu0 %v1937, 16
      %v4672 = vpop.permute.xlu0 %4671
      %4673 = vrot.lane.b32.xlu0 %v1938, 16
      %v4674 = vpop.permute.xlu0 %4673
      %4675 = vrot.lane.b32.xlu0 %v1939, 16
      %v4676 = vpop.permute.xlu0 %4675
      %4677 = vrot.lane.b32.xlu0 %v1940, 16
      %v4678 = vpop.permute.xlu0 %4677
      %4679 = vrot.lane.b32.xlu0 %v1941, 16
      %v4680 = vpop.permute.xlu0 %4679
      %4681 = vrot.lane.b32.xlu0 %v1942, 16
      %v4682 = vpop.permute.xlu0 %4681
      %4683 = vrot.lane.b32.xlu0 %v1943, 16
      %v4684 = vpop.permute.xlu0 %4683
      %4685 = vrot.lane.b32.xlu0 %v1944, 16
      %v4686 = vpop.permute.xlu0 %4685
      %4687 = vrot.lane.b32.xlu0 %v1945, 16
      %v4688 = vpop.permute.xlu0 %4687
      %4689 = vrot.lane.b32.xlu0 %v1946, 16
      %v4690 = vpop.permute.xlu0 %4689
      %4691 = vrot.lane.b32.xlu0 %v1947, 16
      %v4692 = vpop.permute.xlu0 %4691
      %4693 = vrot.lane.b32.xlu0 %v1948, 16
      %v4694 = vpop.permute.xlu0 %4693
      %4695 = vrot.lane.b32.xlu0 %v1949, 16
      %v4696 = vpop.permute.xlu0 %4695
      %4697 = vrot.lane.b32.xlu0 %v1950, 16
      %v4698 = vpop.permute.xlu0 %4697
      %4699 = vrot.lane.b32.xlu0 %v1951, 16
      %v4700 = vpop.permute.xlu0 %4699
      %4701 = vrot.lane.b32.xlu0 %v1952, 16
      %v4702 = vpop.permute.xlu0 %4701
      %4703 = vrot.lane.b32.xlu0 %v1953, 16
      %v4704 = vpop.permute.xlu0 %4703
      %4705 = vrot.lane.b32.xlu0 %v1954, 16
      %v4706 = vpop.permute.xlu0 %4705
      %4707 = vrot.lane.b32.xlu0 %v1955, 16
      %v4708 = vpop.permute.xlu0 %4707
      %4709 = vrot.lane.b32.xlu0 %v1956, 16
      %v4710 = vpop.permute.xlu0 %4709
      %4711 = vrot.lane.b32.xlu0 %v1957, 16
      %v4712 = vpop.permute.xlu0 %4711
      %4713 = vrot.lane.b32.xlu0 %v1958, 16
      %v4714 = vpop.permute.xlu0 %4713
      %4715 = vrot.lane.b32.xlu0 %v1959, 16
      %v4716 = vpop.permute.xlu0 %4715
      %4781 = vrot.lane.b32.xlu0 %v1961, 64
      %v4782 = vpop.permute.xlu0 %4781
      %4783 = vrot.lane.b32.xlu0 %v1962, 64
      %v4784 = vpop.permute.xlu0 %4783
      %4785 = vrot.lane.b32.xlu0 %v1963, 64
      %v4786 = vpop.permute.xlu0 %4785
      %4787 = vrot.lane.b32.xlu0 %v1964, 64
      %v4788 = vpop.permute.xlu0 %4787
      %4789 = vrot.lane.b32.xlu0 %v1965, 64
      %v4790 = vpop.permute.xlu0 %4789
      %4791 = vrot.lane.b32.xlu0 %v1966, 64
      %v4792 = vpop.permute.xlu0 %4791
      %4793 = vrot.lane.b32.xlu0 %v1967, 64
      %v4794 = vpop.permute.xlu0 %4793
      %4795 = vrot.lane.b32.xlu0 %v1968, 64
      %v4796 = vpop.permute.xlu0 %4795
      %4797 = vrot.lane.b32.xlu0 %v1969, 64
      %v4798 = vpop.permute.xlu0 %4797
      %4799 = vrot.lane.b32.xlu0 %v1970, 64
      %v4800 = vpop.permute.xlu0 %4799
      %4801 = vrot.lane.b32.xlu0 %v1971, 64
      %v4802 = vpop.permute.xlu0 %4801
      %4803 = vrot.lane.b32.xlu0 %v1972, 64
      %v4804 = vpop.permute.xlu0 %4803
      %4805 = vrot.lane.b32.xlu0 %v1973, 64
      %v4806 = vpop.permute.xlu0 %4805
      %4807 = vrot.lane.b32.xlu0 %v1974, 64
      %v4808 = vpop.permute.xlu0 %4807
      %4809 = vrot.lane.b32.xlu0 %v1975, 64
      %v4810 = vpop.permute.xlu0 %4809
      %4811 = vrot.lane.b32.xlu0 %v1976, 64
      %v4812 = vpop.permute.xlu0 %4811
      %4813 = vrot.lane.b32.xlu0 %v1977, 64
      %v4814 = vpop.permute.xlu0 %4813
      %4815 = vrot.lane.b32.xlu0 %v1978, 64
      %v4816 = vpop.permute.xlu0 %4815
      %4817 = vrot.lane.b32.xlu0 %v1979, 64
      %v4818 = vpop.permute.xlu0 %4817
      %4819 = vrot.lane.b32.xlu0 %v1980, 64
      %v4820 = vpop.permute.xlu0 %4819
      %4821 = vrot.lane.b32.xlu0 %v1981, 64
      %v4822 = vpop.permute.xlu0 %4821
      %4823 = vrot.lane.b32.xlu0 %v1982, 64
      %v4824 = vpop.permute.xlu0 %4823
      %4825 = vrot.lane.b32.xlu0 %v1983, 64
      %v4826 = vpop.permute.xlu0 %4825
      %4827 = vrot.lane.b32.xlu0 %v1984, 64
      %v4828 = vpop.permute.xlu0 %4827
      %4829 = vrot.lane.b32.xlu0 %v1985, 64
      %v4830 = vpop.permute.xlu0 %4829
      %4831 = vrot.lane.b32.xlu0 %v1986, 64
      %v4832 = vpop.permute.xlu0 %4831
      %4833 = vrot.lane.b32.xlu0 %v1987, 64
      %v4834 = vpop.permute.xlu0 %4833
      %4835 = vrot.lane.b32.xlu0 %v1988, 64
      %v4836 = vpop.permute.xlu0 %4835
      %4837 = vrot.lane.b32.xlu0 %v1989, 64
      %v4838 = vpop.permute.xlu0 %4837
      %4839 = vrot.lane.b32.xlu0 %v1990, 64
      %v4840 = vpop.permute.xlu0 %4839
      %4841 = vrot.lane.b32.xlu0 %v1991, 64
      %v4842 = vpop.permute.xlu0 %4841
      %4843 = vrot.lane.b32.xlu0 %v1992, 64
      %v4844 = vpop.permute.xlu0 %4843
      %4909 = vrot.lane.b32.xlu0 %v1993, 112
      %v4910 = vpop.permute.xlu0 %4909
      %4911 = vrot.lane.b32.xlu0 %v1994, 112
      %v4912 = vpop.permute.xlu0 %4911
      %4913 = vrot.lane.b32.xlu0 %v1995, 112
      %v4914 = vpop.permute.xlu0 %4913
      %4915 = vrot.lane.b32.xlu0 %v1996, 112
      %v4916 = vpop.permute.xlu0 %4915
      %4917 = vrot.lane.b32.xlu0 %v1997, 112
      %v4918 = vpop.permute.xlu0 %4917
      %4919 = vrot.lane.b32.xlu0 %v1998, 112
      %v4920 = vpop.permute.xlu0 %4919
      %4921 = vrot.lane.b32.xlu0 %v1999, 112
      %v4922 = vpop.permute.xlu0 %4921
      %4923 = vrot.lane.b32.xlu0 %v2000, 112
      %v4924 = vpop.permute.xlu0 %4923
      %4925 = vrot.lane.b32.xlu0 %v2001, 112
      %v4926 = vpop.permute.xlu0 %4925
      %4927 = vrot.lane.b32.xlu0 %v2002, 112
      %v4928 = vpop.permute.xlu0 %4927
      %4929 = vrot.lane.b32.xlu0 %v2003, 112
      %v4930 = vpop.permute.xlu0 %4929
      %4931 = vrot.lane.b32.xlu0 %v2004, 112
      %v4932 = vpop.permute.xlu0 %4931
      %4933 = vrot.lane.b32.xlu0 %v2005, 112
      %v4934 = vpop.permute.xlu0 %4933
      %4935 = vrot.lane.b32.xlu0 %v2006, 112
      %v4936 = vpop.permute.xlu0 %4935
      %4937 = vrot.lane.b32.xlu0 %v2007, 112
      %v4938 = vpop.permute.xlu0 %4937
      %4939 = vrot.lane.b32.xlu0 %v2008, 112
      %v4940 = vpop.permute.xlu0 %4939
      %4941 = vrot.lane.b32.xlu0 %v2009, 112
      %v4942 = vpop.permute.xlu0 %4941
      %4943 = vrot.lane.b32.xlu0 %v2010, 112
      %v4944 = vpop.permute.xlu0 %4943
      %4945 = vrot.lane.b32.xlu0 %v2011, 112
      %v4946 = vpop.permute.xlu0 %4945
      %4947 = vrot.lane.b32.xlu0 %v2012, 112
      %v4948 = vpop.permute.xlu0 %4947
      %4949 = vrot.lane.b32.xlu0 %v2013, 112
      %v4950 = vpop.permute.xlu0 %4949
      %4951 = vrot.lane.b32.xlu0 %v2014, 112
      %v4952 = vpop.permute.xlu0 %4951
      %4953 = vrot.lane.b32.xlu0 %v2015, 112
      %v4954 = vpop.permute.xlu0 %4953
      %4955 = vrot.lane.b32.xlu0 %v2016, 112
      %v4956 = vpop.permute.xlu0 %4955
      %4957 = vrot.lane.b32.xlu0 %v2017, 112
      %v4958 = vpop.permute.xlu0 %4957
      %4959 = vrot.lane.b32.xlu0 %v2018, 112
      %v4960 = vpop.permute.xlu0 %4959
      %4961 = vrot.lane.b32.xlu0 %v2019, 112
      %v4962 = vpop.permute.xlu0 %4961
      %4963 = vrot.lane.b32.xlu0 %v2020, 112
      %v4964 = vpop.permute.xlu0 %4963
      %4965 = vrot.lane.b32.xlu0 %v2021, 112
      %v4966 = vpop.permute.xlu0 %4965
      %4967 = vrot.lane.b32.xlu0 %v2022, 112
      %v4968 = vpop.permute.xlu0 %4967
      %4969 = vrot.lane.b32.xlu0 %v2023, 112
      %v4970 = vpop.permute.xlu0 %4969
      %4971 = vrot.lane.b32.xlu0 %v2024, 112
      %v4972 = vpop.permute.xlu0 %4971
      %5037 = vrot.lane.b32.xlu0 %v2025, 32
      %v5038 = vpop.permute.xlu0 %5037
      %5039 = vrot.lane.b32.xlu0 %v2026, 32
      %v5040 = vpop.permute.xlu0 %5039
      %5041 = vrot.lane.b32.xlu0 %v2027, 32
      %v5042 = vpop.permute.xlu0 %5041
      %5043 = vrot.lane.b32.xlu0 %v2028, 32
      %v5044 = vpop.permute.xlu0 %5043
      %5045 = vrot.lane.b32.xlu0 %v2029, 32
      %v5046 = vpop.permute.xlu0 %5045
      %5047 = vrot.lane.b32.xlu0 %v2030, 32
      %v5048 = vpop.permute.xlu0 %5047
      %5049 = vrot.lane.b32.xlu0 %v2031, 32
      %v5050 = vpop.permute.xlu0 %5049
      %5051 = vrot.lane.b32.xlu0 %v2032, 32
      %v5052 = vpop.permute.xlu0 %5051
      %5053 = vrot.lane.b32.xlu0 %v2033, 32
      %v5054 = vpop.permute.xlu0 %5053
      %5055 = vrot.lane.b32.xlu0 %v2034, 32
      %v5056 = vpop.permute.xlu0 %5055
      %5057 = vrot.lane.b32.xlu0 %v2035, 32
      %v5058 = vpop.permute.xlu0 %5057
      %5059 = vrot.lane.b32.xlu0 %v2036, 32
      %v5060 = vpop.permute.xlu0 %5059
      %5061 = vrot.lane.b32.xlu0 %v2037, 32
      %v5062 = vpop.permute.xlu0 %5061
      %5063 = vrot.lane.b32.xlu0 %v2038, 32
      %v5064 = vpop.permute.xlu0 %5063
      %5065 = vrot.lane.b32.xlu0 %v2039, 32
      %v5066 = vpop.permute.xlu0 %5065
      %5067 = vrot.lane.b32.xlu0 %v2040, 32
      %v5068 = vpop.permute.xlu0 %5067
      %5069 = vrot.lane.b32.xlu0 %v2041, 32
      %v5070 = vpop.permute.xlu0 %5069
      %5071 = vrot.lane.b32.xlu0 %v2042, 32
      %v5072 = vpop.permute.xlu0 %5071
      %5073 = vrot.lane.b32.xlu0 %v2043, 32
      %v5074 = vpop.permute.xlu0 %5073
      %5075 = vrot.lane.b32.xlu0 %v2044, 32
      %v5076 = vpop.permute.xlu0 %5075
      %5077 = vrot.lane.b32.xlu0 %v2045, 32
      %v5078 = vpop.permute.xlu0 %5077
      %5079 = vrot.lane.b32.xlu0 %v2046, 32
      %v5080 = vpop.permute.xlu0 %5079
      %5081 = vrot.lane.b32.xlu0 %v2047, 32
      %v5082 = vpop.permute.xlu0 %5081
      %5083 = vrot.lane.b32.xlu0 %v2048, 32
      %v5084 = vpop.permute.xlu0 %5083
      %5085 = vrot.lane.b32.xlu0 %v2049, 32
      %v5086 = vpop.permute.xlu0 %5085
      %5087 = vrot.lane.b32.xlu0 %v2050, 32
      %v5088 = vpop.permute.xlu0 %5087
      %5089 = vrot.lane.b32.xlu0 %v2051, 32
      %v5090 = vpop.permute.xlu0 %5089
      %5091 = vrot.lane.b32.xlu0 %v2052, 32
      %v5092 = vpop.permute.xlu0 %5091
      %5093 = vrot.lane.b32.xlu0 %v2053, 32
      %v5094 = vpop.permute.xlu0 %5093
      %5095 = vrot.lane.b32.xlu0 %v2054, 32
      %v5096 = vpop.permute.xlu0 %5095
      %5097 = vrot.lane.b32.xlu0 %v2055, 32
      %v5098 = vpop.permute.xlu0 %5097
      %5099 = vrot.lane.b32.xlu0 %v2056, 32
      %v5100 = vpop.permute.xlu0 %5099
      %5165 = vrot.lane.b32.xlu0 %v2057, 80
      %v5166 = vpop.permute.xlu0 %5165
      %5167 = vrot.lane.b32.xlu0 %v2058, 80
      %v5168 = vpop.permute.xlu0 %5167
      %5169 = vrot.lane.b32.xlu0 %v2059, 80
      %v5170 = vpop.permute.xlu0 %5169
      %5171 = vrot.lane.b32.xlu0 %v2060, 80
      %v5172 = vpop.permute.xlu0 %5171
      %5173 = vrot.lane.b32.xlu0 %v2061, 80
      %v5174 = vpop.permute.xlu0 %5173
      %5175 = vrot.lane.b32.xlu0 %v2062, 80
      %v5176 = vpop.permute.xlu0 %5175
      %5177 = vrot.lane.b32.xlu0 %v2063, 80
      %v5178 = vpop.permute.xlu0 %5177
      %5179 = vrot.lane.b32.xlu0 %v2064, 80
      %v5180 = vpop.permute.xlu0 %5179
      %5181 = vrot.lane.b32.xlu0 %v2065, 80
      %v5182 = vpop.permute.xlu0 %5181
      %5183 = vrot.lane.b32.xlu0 %v2066, 80
      %v5184 = vpop.permute.xlu0 %5183
      %5185 = vrot.lane.b32.xlu0 %v2067, 80
      %v5186 = vpop.permute.xlu0 %5185
      %5187 = vrot.lane.b32.xlu0 %v2068, 80
      %v5188 = vpop.permute.xlu0 %5187
      %5189 = vrot.lane.b32.xlu0 %v2069, 80
      %v5190 = vpop.permute.xlu0 %5189
      %5191 = vrot.lane.b32.xlu0 %v2070, 80
      %v5192 = vpop.permute.xlu0 %5191
      %5193 = vrot.lane.b32.xlu0 %v2071, 80
      %v5194 = vpop.permute.xlu0 %5193
      %5195 = vrot.lane.b32.xlu0 %v2072, 80
      %v5196 = vpop.permute.xlu0 %5195
      %5197 = vrot.lane.b32.xlu0 %v2073, 80
      %v5198 = vpop.permute.xlu0 %5197
      %5199 = vrot.lane.b32.xlu0 %v2074, 80
      %v5200 = vpop.permute.xlu0 %5199
      %5201 = vrot.lane.b32.xlu0 %v2075, 80
      %v5202 = vpop.permute.xlu0 %5201
      %5203 = vrot.lane.b32.xlu0 %v2076, 80
      %v5204 = vpop.permute.xlu0 %5203
      %5205 = vrot.lane.b32.xlu0 %v2077, 80
      %v5206 = vpop.permute.xlu0 %5205
      %5207 = vrot.lane.b32.xlu0 %v2078, 80
      %v5208 = vpop.permute.xlu0 %5207
      %5209 = vrot.lane.b32.xlu0 %v2079, 80
      %v5210 = vpop.permute.xlu0 %5209
      %5211 = vrot.lane.b32.xlu0 %v2080, 80
      %v5212 = vpop.permute.xlu0 %5211
      %5213 = vrot.lane.b32.xlu0 %v2081, 80
      %v5214 = vpop.permute.xlu0 %5213
      %5215 = vrot.lane.b32.xlu0 %v2082, 80
      %v5216 = vpop.permute.xlu0 %5215
      %5217 = vrot.lane.b32.xlu0 %v2083, 80
      %v5218 = vpop.permute.xlu0 %5217
      %5219 = vrot.lane.b32.xlu0 %v2084, 80
      %v5220 = vpop.permute.xlu0 %5219
      %5221 = vrot.lane.b32.xlu0 %v2085, 80
      %v5222 = vpop.permute.xlu0 %5221
      %5223 = vrot.lane.b32.xlu0 %v2086, 80
      %v5224 = vpop.permute.xlu0 %5223
      %5225 = vrot.lane.b32.xlu0 %v2087, 80
      %v5226 = vpop.permute.xlu0 %5225
      %5227 = vrot.lane.b32.xlu0 %v2088, 80
      %v5228 = vpop.permute.xlu0 %5227
      %v5261 = vsel %vm1020, %v1832, %v4398
      %v5262 = vsel %vm1020, %v1833, %v4400
      %v5263 = vsel %vm1020, %v1834, %v4402
      %v5264 = vsel %vm1020, %v1835, %v4404
      %v5265 = vsel %vm1020, %v1836, %v4406
      %v5266 = vsel %vm1020, %v1837, %v4408
      %v5267 = vsel %vm1020, %v1838, %v4410
      %v5268 = vsel %vm1020, %v1839, %v4412
      %v5269 = vsel %vm1020, %v1840, %v4414
      %v5270 = vsel %vm1020, %v1841, %v4416
      %v5271 = vsel %vm1020, %v1842, %v4418
      %v5272 = vsel %vm1020, %v1843, %v4420
      %v5273 = vsel %vm1020, %v1844, %v4422
      %v5274 = vsel %vm1020, %v1845, %v4424
      %v5275 = vsel %vm1020, %v1846, %v4426
      %v5276 = vsel %vm1020, %v1847, %v4428
      %v5277 = vsel %vm1020, %v1848, %v4430
      %v5278 = vsel %vm1020, %v1849, %v4432
      %v5279 = vsel %vm1020, %v1850, %v4434
      %v5280 = vsel %vm1020, %v1851, %v4436
      %v5281 = vsel %vm1020, %v1852, %v4438
      %v5282 = vsel %vm1020, %v1853, %v4440
      %v5283 = vsel %vm1020, %v1854, %v4442
      %v5284 = vsel %vm1020, %v1855, %v4444
      %v5285 = vsel %vm1020, %v1856, %v4446
      %v5286 = vsel %vm1020, %v1857, %v4448
      %v5287 = vsel %vm1020, %v1858, %v4450
      %v5288 = vsel %vm1020, %v1859, %v4452
      %v5289 = vsel %vm1020, %v1860, %v4454
      %v5290 = vsel %vm1020, %v1861, %v4456
      %v5291 = vsel %vm1020, %v1862, %v4458
      %v5292 = vsel %vm1020, %v1863, %v4460
      %v5293 = vsel %vm1126, %v5261, %v4526
      %v5294 = vsel %vm1126, %v5262, %v4528
      %v5295 = vsel %vm1126, %v5263, %v4530
      %v5296 = vsel %vm1126, %v5264, %v4532
      %v5297 = vsel %vm1126, %v5265, %v4534
      %v5298 = vsel %vm1126, %v5266, %v4536
      %v5299 = vsel %vm1126, %v5267, %v4538
      %v5300 = vsel %vm1126, %v5268, %v4540
      %v5301 = vsel %vm1126, %v5269, %v4542
      %v5302 = vsel %vm1126, %v5270, %v4544
      %v5303 = vsel %vm1126, %v5271, %v4546
      %v5304 = vsel %vm1126, %v5272, %v4548
      %v5305 = vsel %vm1126, %v5273, %v4550
      %v5306 = vsel %vm1126, %v5274, %v4552
      %v5307 = vsel %vm1126, %v5275, %v4554
      %v5308 = vsel %vm1126, %v5276, %v4556
      %v5309 = vsel %vm1126, %v5277, %v4558
      %v5310 = vsel %vm1126, %v5278, %v4560
      %v5311 = vsel %vm1126, %v5279, %v4562
      %v5312 = vsel %vm1126, %v5280, %v4564
      %v5313 = vsel %vm1126, %v5281, %v4566
      %v5314 = vsel %vm1126, %v5282, %v4568
      %v5315 = vsel %vm1126, %v5283, %v4570
      %v5316 = vsel %vm1126, %v5284, %v4572
      %v5317 = vsel %vm1126, %v5285, %v4574
      %v5318 = vsel %vm1126, %v5286, %v4576
      %v5319 = vsel %vm1126, %v5287, %v4578
      %v5320 = vsel %vm1126, %v5288, %v4580
      %v5321 = vsel %vm1126, %v5289, %v4582
      %v5322 = vsel %vm1126, %v5290, %v4584
      %v5323 = vsel %vm1126, %v5291, %v4586
      %v5324 = vsel %vm1126, %v5292, %v4588
      %v5325 = vsel %vm3977, %v4526, %v4654
      %v5326 = vsel %vm3977, %v4528, %v4656
      %v5327 = vsel %vm3977, %v4530, %v4658
      %v5328 = vsel %vm3977, %v4532, %v4660
      %v5329 = vsel %vm3977, %v4534, %v4662
      %v5330 = vsel %vm3977, %v4536, %v4664
      %v5331 = vsel %vm3977, %v4538, %v4666
      %v5332 = vsel %vm3977, %v4540, %v4668
      %v5333 = vsel %vm3977, %v4542, %v4670
      %v5334 = vsel %vm3977, %v4544, %v4672
      %v5335 = vsel %vm3977, %v4546, %v4674
      %v5336 = vsel %vm3977, %v4548, %v4676
      %v5337 = vsel %vm3977, %v4550, %v4678
      %v5338 = vsel %vm3977, %v4552, %v4680
      %v5339 = vsel %vm3977, %v4554, %v4682
      %v5340 = vsel %vm3977, %v4556, %v4684
      %v5341 = vsel %vm3977, %v4558, %v4686
      %v5342 = vsel %vm3977, %v4560, %v4688
      %v5343 = vsel %vm3977, %v4562, %v4690
      %v5344 = vsel %vm3977, %v4564, %v4692
      %v5345 = vsel %vm3977, %v4566, %v4694
      %v5346 = vsel %vm3977, %v4568, %v4696
      %v5347 = vsel %vm3977, %v4570, %v4698
      %v5348 = vsel %vm3977, %v4572, %v4700
      %v5349 = vsel %vm3977, %v4574, %v4702
      %v5350 = vsel %vm3977, %v4576, %v4704
      %v5351 = vsel %vm3977, %v4578, %v4706
      %v5352 = vsel %vm3977, %v4580, %v4708
      %v5353 = vsel %vm3977, %v4582, %v4710
      %v5354 = vsel %vm3977, %v4584, %v4712
      %v5355 = vsel %vm3977, %v4586, %v4714
      %v5356 = vsel %vm3977, %v4588, %v4716
      %v5357 = vsel %vm1079, %v5325, %v4782
      %v5358 = vsel %vm1079, %v5326, %v4784
      %v5359 = vsel %vm1079, %v5327, %v4786
      %v5360 = vsel %vm1079, %v5328, %v4788
      %v5361 = vsel %vm1079, %v5329, %v4790
      %v5362 = vsel %vm1079, %v5330, %v4792
      %v5363 = vsel %vm1079, %v5331, %v4794
      %v5364 = vsel %vm1079, %v5332, %v4796
      %v5365 = vsel %vm1079, %v5333, %v4798
      %v5366 = vsel %vm1079, %v5334, %v4800
      %v5367 = vsel %vm1079, %v5335, %v4802
      %v5368 = vsel %vm1079, %v5336, %v4804
      %v5369 = vsel %vm1079, %v5337, %v4806
      %v5370 = vsel %vm1079, %v5338, %v4808
      %v5371 = vsel %vm1079, %v5339, %v4810
      %v5372 = vsel %vm1079, %v5340, %v4812
      %v5373 = vsel %vm1079, %v5341, %v4814
      %v5374 = vsel %vm1079, %v5342, %v4816
      %v5375 = vsel %vm1079, %v5343, %v4818
      %v5376 = vsel %vm1079, %v5344, %v4820
      %v5377 = vsel %vm1079, %v5345, %v4822
      %v5378 = vsel %vm1079, %v5346, %v4824
      %v5379 = vsel %vm1079, %v5347, %v4826
      %v5380 = vsel %vm1079, %v5348, %v4828
      %v5381 = vsel %vm1079, %v5349, %v4830
      %v5382 = vsel %vm1079, %v5350, %v4832
      %v5383 = vsel %vm1079, %v5351, %v4834
      %v5384 = vsel %vm1079, %v5352, %v4836
      %v5385 = vsel %vm1079, %v5353, %v4838
      %v5386 = vsel %vm1079, %v5354, %v4840
      %v5387 = vsel %vm1079, %v5355, %v4842
      %v5388 = vsel %vm1079, %v5356, %v4844
      %v5389 = vsel %vm4042, %v5357, %v4910
      %v5390 = vsel %vm4042, %v5358, %v4912
      %v5391 = vsel %vm4042, %v5359, %v4914
      %v5392 = vsel %vm4042, %v5360, %v4916
      %v5393 = vsel %vm4042, %v5361, %v4918
      %v5394 = vsel %vm4042, %v5362, %v4920
      %v5395 = vsel %vm4042, %v5363, %v4922
      %v5396 = vsel %vm4042, %v5364, %v4924
      %v5397 = vsel %vm4042, %v5365, %v4926
      %v5398 = vsel %vm4042, %v5366, %v4928
      %v5399 = vsel %vm4042, %v5367, %v4930
      %v5400 = vsel %vm4042, %v5368, %v4932
      %v5401 = vsel %vm4042, %v5369, %v4934
      %v5402 = vsel %vm4042, %v5370, %v4936
      %v5403 = vsel %vm4042, %v5371, %v4938
      %v5404 = vsel %vm4042, %v5372, %v4940
      %v5405 = vsel %vm4042, %v5373, %v4942
      %v5406 = vsel %vm4042, %v5374, %v4944
      %v5407 = vsel %vm4042, %v5375, %v4946
      %v5408 = vsel %vm4042, %v5376, %v4948
      %v5409 = vsel %vm4042, %v5377, %v4950
      %v5410 = vsel %vm4042, %v5378, %v4952
      %v5411 = vsel %vm4042, %v5379, %v4954
      %v5412 = vsel %vm4042, %v5380, %v4956
      %v5413 = vsel %vm4042, %v5381, %v4958
      %v5414 = vsel %vm4042, %v5382, %v4960
      %v5415 = vsel %vm4042, %v5383, %v4962
      %v5416 = vsel %vm4042, %v5384, %v4964
      %v5417 = vsel %vm4042, %v5385, %v4966
      %v5418 = vsel %vm4042, %v5386, %v4968
      %v5419 = vsel %vm4042, %v5387, %v4970
      %v5420 = vsel %vm4042, %v5388, %v4972
      %v5421 = vsel %vm4075, %v4910, %v5038
      %v5422 = vsel %vm4075, %v4912, %v5040
      %v5423 = vsel %vm4075, %v4914, %v5042
      %v5424 = vsel %vm4075, %v4916, %v5044
      %v5425 = vsel %vm4075, %v4918, %v5046
      %v5426 = vsel %vm4075, %v4920, %v5048
      %v5427 = vsel %vm4075, %v4922, %v5050
      %v5428 = vsel %vm4075, %v4924, %v5052
      %v5429 = vsel %vm4075, %v4926, %v5054
      %v5430 = vsel %vm4075, %v4928, %v5056
      %v5431 = vsel %vm4075, %v4930, %v5058
      %v5432 = vsel %vm4075, %v4932, %v5060
      %v5433 = vsel %vm4075, %v4934, %v5062
      %v5434 = vsel %vm4075, %v4936, %v5064
      %v5435 = vsel %vm4075, %v4938, %v5066
      %v5436 = vsel %vm4075, %v4940, %v5068
      %v5437 = vsel %vm4075, %v4942, %v5070
      %v5438 = vsel %vm4075, %v4944, %v5072
      %v5439 = vsel %vm4075, %v4946, %v5074
      %v5440 = vsel %vm4075, %v4948, %v5076
      %v5441 = vsel %vm4075, %v4950, %v5078
      %v5442 = vsel %vm4075, %v4952, %v5080
      %v5443 = vsel %vm4075, %v4954, %v5082
      %v5444 = vsel %vm4075, %v4956, %v5084
      %v5445 = vsel %vm4075, %v4958, %v5086
      %v5446 = vsel %vm4075, %v4960, %v5088
      %v5447 = vsel %vm4075, %v4962, %v5090
      %v5448 = vsel %vm4075, %v4964, %v5092
      %v5449 = vsel %vm4075, %v4966, %v5094
      %v5450 = vsel %vm4075, %v4968, %v5096
      %v5451 = vsel %vm4075, %v4970, %v5098
      %v5452 = vsel %vm4075, %v4972, %v5100
      %v5453 = vsel %vm4108, %v5421, %v5166
      %v5454 = vsel %vm4108, %v5422, %v5168
      %v5455 = vsel %vm4108, %v5423, %v5170
      %v5456 = vsel %vm4108, %v5424, %v5172
      %v5457 = vsel %vm4108, %v5425, %v5174
      %v5458 = vsel %vm4108, %v5426, %v5176
      %v5459 = vsel %vm4108, %v5427, %v5178
      %v5460 = vsel %vm4108, %v5428, %v5180
      %v5461 = vsel %vm4108, %v5429, %v5182
      %v5462 = vsel %vm4108, %v5430, %v5184
      %v5463 = vsel %vm4108, %v5431, %v5186
      %v5464 = vsel %vm4108, %v5432, %v5188
      %v5465 = vsel %vm4108, %v5433, %v5190
      %v5466 = vsel %vm4108, %v5434, %v5192
      %v5467 = vsel %vm4108, %v5435, %v5194
      %v5468 = vsel %vm4108, %v5436, %v5196
      %v5469 = vsel %vm4108, %v5437, %v5198
      %v5470 = vsel %vm4108, %v5438, %v5200
      %v5471 = vsel %vm4108, %v5439, %v5202
      %v5472 = vsel %vm4108, %v5440, %v5204
      %v5473 = vsel %vm4108, %v5441, %v5206
      %v5474 = vsel %vm4108, %v5442, %v5208
      %v5475 = vsel %vm4108, %v5443, %v5210
      %v5476 = vsel %vm4108, %v5444, %v5212
      %v5477 = vsel %vm4108, %v5445, %v5214
      %v5478 = vsel %vm4108, %v5446, %v5216
      %v5479 = vsel %vm4108, %v5447, %v5218
      %v5480 = vsel %vm4108, %v5448, %v5220
      %v5481 = vsel %vm4108, %v5449, %v5222
      %v5482 = vsel %vm4108, %v5450, %v5224
      %v5483 = vsel %vm4108, %v5451, %v5226
      %v5484 = vsel %vm4108, %v5452, %v5228
      %v5485 = vld [vmem:[%s4] sm:$0xff]
      %v5486 = vld [vmem:[%s4 + $0x8] sm:$0xff]
      %v5487 = vld [vmem:[%s4 + $0x10] sm:$0xff]
      %v5488 = vld [vmem:[%s4 + $0x18] sm:$0xff]
      %v5489 = vld [vmem:[%s4 + $0x20] sm:$0xff]
      %v5490 = vld [vmem:[%s4 + $0x28] sm:$0xff]
      %v5491 = vld [vmem:[%s4 + $0x30] sm:$0xff]
      %v5492 = vld [vmem:[%s4 + $0x38] sm:$0xff]
      %v5493 = vld [vmem:[%s4 + $0x40] sm:$0xff]
      %v5494 = vld [vmem:[%s4 + $0x48] sm:$0xff]
      %v5495 = vld [vmem:[%s4 + $0x50] sm:$0xff]
      %v5496 = vld [vmem:[%s4 + $0x58] sm:$0xff]
      %v5497 = vld [vmem:[%s4 + $0x60] sm:$0xff]
      %v5498 = vld [vmem:[%s4 + $0x68] sm:$0xff]
      %v5499 = vld [vmem:[%s4 + $0x70] sm:$0xff]
      %v5500 = vld [vmem:[%s4 + $0x78] sm:$0xff]
      %v5501 = vld [vmem:[%s4 + $0x80] sm:$0xff]
      %v5502 = vld [vmem:[%s4 + $0x88] sm:$0xff]
      %v5503 = vld [vmem:[%s4 + $0x90] sm:$0xff]
      %v5504 = vld [vmem:[%s4 + $0x98] sm:$0xff]
      %v5505 = vld [vmem:[%s4 + $0xa0] sm:$0xff]
      %v5506 = vld [vmem:[%s4 + $0xa8] sm:$0xff]
      %v5507 = vld [vmem:[%s4 + $0xb0] sm:$0xff]
      %v5508 = vld [vmem:[%s4 + $0xb8] sm:$0xff]
      %v5509 = vld [vmem:[%s4 + $0xc0] sm:$0xff]
      %v5510 = vld [vmem:[%s4 + $0xc8] sm:$0xff]
      %v5511 = vld [vmem:[%s4 + $0xd0] sm:$0xff]
      %v5512 = vld [vmem:[%s4 + $0xd8] sm:$0xff]
      %v5513 = vld [vmem:[%s4 + $0xe0] sm:$0xff]
      %v5514 = vld [vmem:[%s4 + $0xe8] sm:$0xff]
      %v5515 = vld [vmem:[%s4 + $0xf0] sm:$0xff]
      %v5516 = vld [vmem:[%s4 + $0xf8] sm:$0xff]
      %v5517 = vld [vmem:[%s4 + $0x100] sm:$0xff]
      %v5518 = vld [vmem:[%s4 + $0x108] sm:$0xff]
      %v5519 = vld [vmem:[%s4 + $0x110] sm:$0xff]
      %v5520 = vld [vmem:[%s4 + $0x118] sm:$0xff]
      %v5521 = vld [vmem:[%s4 + $0x120] sm:$0xff]
      %v5522 = vld [vmem:[%s4 + $0x128] sm:$0xff]
      %v5523 = vld [vmem:[%s4 + $0x130] sm:$0xff]
      %v5524 = vld [vmem:[%s4 + $0x138] sm:$0xff]
      %v5525 = vld [vmem:[%s4 + $0x140] sm:$0xff]
      %v5526 = vld [vmem:[%s4 + $0x148] sm:$0xff]
      %v5527 = vld [vmem:[%s4 + $0x150] sm:$0xff]
      %v5528 = vld [vmem:[%s4 + $0x158] sm:$0xff]
      %v5529 = vld [vmem:[%s4 + $0x160] sm:$0xff]
      %v5530 = vld [vmem:[%s4 + $0x168] sm:$0xff]
      %v5531 = vld [vmem:[%s4 + $0x170] sm:$0xff]
      %v5532 = vld [vmem:[%s4 + $0x178] sm:$0xff]
      %v5533 = vld [vmem:[%s4 + $0x180] sm:$0xff]
      %v5534 = vld [vmem:[%s4 + $0x188] sm:$0xff]
      %v5535 = vld [vmem:[%s4 + $0x190] sm:$0xff]
      %v5536 = vld [vmem:[%s4 + $0x198] sm:$0xff]
      %v5537 = vld [vmem:[%s4 + $0x1a0] sm:$0xff]
      %v5538 = vld [vmem:[%s4 + $0x1a8] sm:$0xff]
      %v5539 = vld [vmem:[%s4 + $0x1b0] sm:$0xff]
      %v5540 = vld [vmem:[%s4 + $0x1b8] sm:$0xff]
      %v5541 = vld [vmem:[%s4 + $0x1c0] sm:$0xff]
      %v5542 = vld [vmem:[%s4 + $0x1c8] sm:$0xff]
      %v5543 = vld [vmem:[%s4 + $0x1d0] sm:$0xff]
      %v5544 = vld [vmem:[%s4 + $0x1d8] sm:$0xff]
      %v5545 = vld [vmem:[%s4 + $0x1e0] sm:$0xff]
      %v5546 = vld [vmem:[%s4 + $0x1e8] sm:$0xff]
      %v5547 = vld [vmem:[%s4 + $0x1f0] sm:$0xff]
      %v5548 = vld [vmem:[%s4 + $0x1f8] sm:$0xff]
      %v5549 = vld [vmem:[%s4 + $0x200] sm:$0xff]
      %v5550 = vld [vmem:[%s4 + $0x208] sm:$0xff]
      %v5551 = vld [vmem:[%s4 + $0x210] sm:$0xff]
      %v5552 = vld [vmem:[%s4 + $0x218] sm:$0xff]
      %v5553 = vld [vmem:[%s4 + $0x220] sm:$0xff]
      %v5554 = vld [vmem:[%s4 + $0x228] sm:$0xff]
      %v5555 = vld [vmem:[%s4 + $0x230] sm:$0xff]
      %v5556 = vld [vmem:[%s4 + $0x238] sm:$0xff]
      %v5557 = vld [vmem:[%s4 + $0x240] sm:$0xff]
      %v5558 = vld [vmem:[%s4 + $0x248] sm:$0xff]
      %v5559 = vld [vmem:[%s4 + $0x250] sm:$0xff]
      %v5560 = vld [vmem:[%s4 + $0x258] sm:$0xff]
      %v5561 = vld [vmem:[%s4 + $0x260] sm:$0xff]
      %v5562 = vld [vmem:[%s4 + $0x268] sm:$0xff]
      %v5563 = vld [vmem:[%s4 + $0x270] sm:$0xff]
      %v5564 = vld [vmem:[%s4 + $0x278] sm:$0xff]
      %v5565 = vld [vmem:[%s4 + $0x280] sm:$0xff]
      %v5566 = vld [vmem:[%s4 + $0x288] sm:$0xff]
      %v5567 = vld [vmem:[%s4 + $0x290] sm:$0xff]
      %v5568 = vld [vmem:[%s4 + $0x298] sm:$0xff]
      %v5569 = vld [vmem:[%s4 + $0x2a0] sm:$0xff]
      %v5570 = vld [vmem:[%s4 + $0x2a8] sm:$0xff]
      %v5571 = vld [vmem:[%s4 + $0x2b0] sm:$0xff]
      %v5572 = vld [vmem:[%s4 + $0x2b8] sm:$0xff]
      %v5573 = vld [vmem:[%s4 + $0x2c0] sm:$0xff]
      %v5574 = vld [vmem:[%s4 + $0x2c8] sm:$0xff]
      %v5575 = vld [vmem:[%s4 + $0x2d0] sm:$0xff]
      %v5576 = vld [vmem:[%s4 + $0x2d8] sm:$0xff]
      %v5577 = vld [vmem:[%s4 + $0x2e0] sm:$0xff]
      %v5578 = vld [vmem:[%s4 + $0x2e8] sm:$0xff]
      %v5579 = vld [vmem:[%s4 + $0x2f0] sm:$0xff]
      %v5580 = vld [vmem:[%s4 + $0x2f8] sm:$0xff]
      %v5581 = vld [vmem:[%s4 + $0x300] sm:$0xff]
      %v5582 = vld [vmem:[%s4 + $0x308] sm:$0xff]
      %v5583 = vld [vmem:[%s4 + $0x310] sm:$0xff]
      %v5584 = vld [vmem:[%s4 + $0x318] sm:$0xff]
      %v5585 = vld [vmem:[%s4 + $0x320] sm:$0xff]
      %v5586 = vld [vmem:[%s4 + $0x328] sm:$0xff]
      %v5587 = vld [vmem:[%s4 + $0x330] sm:$0xff]
      %v5588 = vld [vmem:[%s4 + $0x338] sm:$0xff]
      %v5589 = vld [vmem:[%s4 + $0x340] sm:$0xff]
      %v5590 = vld [vmem:[%s4 + $0x348] sm:$0xff]
      %v5591 = vld [vmem:[%s4 + $0x350] sm:$0xff]
      %v5592 = vld [vmem:[%s4 + $0x358] sm:$0xff]
      %v5593 = vld [vmem:[%s4 + $0x360] sm:$0xff]
      %v5594 = vld [vmem:[%s4 + $0x368] sm:$0xff]
      %v5595 = vld [vmem:[%s4 + $0x370] sm:$0xff]
      %v5596 = vld [vmem:[%s4 + $0x378] sm:$0xff]
      %v5597 = vld [vmem:[%s4 + $0x380] sm:$0xff]
      %v5598 = vld [vmem:[%s4 + $0x388] sm:$0xff]
      %v5599 = vld [vmem:[%s4 + $0x390] sm:$0xff]
      %v5600 = vld [vmem:[%s4 + $0x398] sm:$0xff]
      %v5601 = vld [vmem:[%s4 + $0x3a0] sm:$0xff]
      %v5602 = vld [vmem:[%s4 + $0x3a8] sm:$0xff]
      %v5603 = vld [vmem:[%s4 + $0x3b0] sm:$0xff]
      %v5604 = vld [vmem:[%s4 + $0x3b8] sm:$0xff]
      %v5605 = vld [vmem:[%s4 + $0x3c0] sm:$0xff]
      %v5606 = vld [vmem:[%s4 + $0x3c8] sm:$0xff]
      %v5607 = vld [vmem:[%s4 + $0x3d0] sm:$0xff]
      %v5608 = vld [vmem:[%s4 + $0x3d8] sm:$0xff]
      %v5609 = vld [vmem:[%s4 + $0x3e0] sm:$0xff]
      %v5610 = vld [vmem:[%s4 + $0x3e8] sm:$0xff]
      %v5611 = vld [vmem:[%s4 + $0x3f0] sm:$0xff]
      %v5612 = vld [vmem:[%s4 + $0x3f8] sm:$0xff]
      %v5613 = vld [vmem:[%s4 + $0x400] sm:$0xff]
      %v5614 = vld [vmem:[%s4 + $0x408] sm:$0xff]
      %v5615 = vld [vmem:[%s4 + $0x410] sm:$0xff]
      %v5616 = vld [vmem:[%s4 + $0x418] sm:$0xff]
      %v5617 = vld [vmem:[%s4 + $0x420] sm:$0xff]
      %v5618 = vld [vmem:[%s4 + $0x428] sm:$0xff]
      %v5619 = vld [vmem:[%s4 + $0x430] sm:$0xff]
      %v5620 = vld [vmem:[%s4 + $0x438] sm:$0xff]
      %v5621 = vld [vmem:[%s4 + $0x440] sm:$0xff]
      %v5622 = vld [vmem:[%s4 + $0x448] sm:$0xff]
      %v5623 = vld [vmem:[%s4 + $0x450] sm:$0xff]
      %v5624 = vld [vmem:[%s4 + $0x458] sm:$0xff]
      %v5625 = vld [vmem:[%s4 + $0x460] sm:$0xff]
      %v5626 = vld [vmem:[%s4 + $0x468] sm:$0xff]
      %v5627 = vld [vmem:[%s4 + $0x470] sm:$0xff]
      %v5628 = vld [vmem:[%s4 + $0x478] sm:$0xff]
      %v5629 = vld [vmem:[%s4 + $0x480] sm:$0xff]
      %v5630 = vld [vmem:[%s4 + $0x488] sm:$0xff]
      %v5631 = vld [vmem:[%s4 + $0x490] sm:$0xff]
      %v5632 = vld [vmem:[%s4 + $0x498] sm:$0xff]
      %v5633 = vld [vmem:[%s4 + $0x4a0] sm:$0xff]
      %v5634 = vld [vmem:[%s4 + $0x4a8] sm:$0xff]
      %v5636 = vsel %vm1020, %v2089, 0
      %v5639 = vsel %vm1020, %v2090, 0
      %v5642 = vsel %vm1020, %v2091, 0
      %v5645 = vsel %vm1020, %v2092, 0
      %v5648 = vsel %vm1020, %v2093, 0
      %v5651 = vsel %vm1020, %v2094, 0
      %v5654 = vsel %vm1020, %v2095, 0
      %v5657 = vsel %vm1020, %v2096, 0
      %v5660 = vsel %vm1020, %v2097, 0
      %v5663 = vsel %vm1020, %v2098, 0
      %v5666 = vsel %vm1020, %v2099, 0
      %v5669 = vsel %vm1020, %v2100, 0
      %v5672 = vsel %vm1020, %v2101, 0
      %v5675 = vsel %vm1020, %v2102, 0
      %v5678 = vsel %vm1020, %v2103, 0
      %v5681 = vsel %vm1020, %v2104, 0
      %v5684 = vsel %vm1020, %v2105, 0
      %v5687 = vsel %vm1020, %v2106, 0
      %v5690 = vsel %vm1020, %v2107, 0
      %v5693 = vsel %vm1020, %v2108, 0
      %v5696 = vsel %vm1020, %v2109, 0
      %v5699 = vsel %vm1020, %v2110, 0
      %v5702 = vsel %vm1020, %v2111, 0
      %v5705 = vsel %vm1020, %v2112, 0
      %v5708 = vsel %vm1020, %v2113, 0
      %v5711 = vsel %vm1020, %v2114, 0
      %v5714 = vsel %vm1020, %v2115, 0
      %v5717 = vsel %vm1020, %v2116, 0
      %v5720 = vsel %vm1020, %v2117, 0
      %v5723 = vsel %vm1020, %v2118, 0
      %v5726 = vsel %vm1020, %v2119, 0
      %v5729 = vsel %vm1020, %v2120, 0
      %5731 = vmatpush.msra.mxu0 %v5500
      %5732 = vmatpush.msra.mxu0 %v5499
      %5733 = vmatpush.msra.mxu0 %v5498
      %5734 = vmatpush.msra.mxu0 %v5497
      %5735 = vmatpush.msra.mxu0 %v5496
      %5736 = vmatpush.msra.mxu0 %v5495
      %5737 = vmatpush.msra.mxu0 %v5494
      %5738 = vmatpush.msra.mxu0 %v5493
      %5739 = vmatpush.msra.mxu0 %v5492
      %5740 = vmatpush.msra.mxu0 %v5491
      %5741 = vmatpush.msra.mxu0 %v5490
      %5742 = vmatpush.msra.mxu0 %v5489
      %5743 = vmatpush.msra.mxu0 %v5488
      %5744 = vmatpush.msra.mxu0 %v5487
      %5745 = vmatpush.msra.mxu0 %v5486
      %5746 = vmatpush.msra.mxu0 %v5485
      %5747 = vmatmul.f32.gmra.mxu0 %v3945
      %v5748 = vpop.f32.mrf.mxu0
      %v5749 = vadd.f32 0.0, %v5748
      %5750 = vmatmul.f32.gmra.mxu0 %v3946
      %v5751 = vpop.f32.mrf.mxu0
      %v5752 = vadd.f32 0.0, %v5751
      %5753 = vmatmul.f32.gmra.mxu0 %v3947
      %v5754 = vpop.f32.mrf.mxu0
      %v5755 = vadd.f32 0.0, %v5754
      %5756 = vmatmul.f32.gmra.mxu0 %v3948
      %v5757 = vpop.f32.mrf.mxu0
      %v5758 = vadd.f32 0.0, %v5757
      %5759 = vmatmul.f32.gmra.mxu0 %v3949
      %v5760 = vpop.f32.mrf.mxu0
      %v5761 = vadd.f32 0.0, %v5760
      %5762 = vmatmul.f32.gmra.mxu0 %v3950
      %v5763 = vpop.f32.mrf.mxu0
      %v5764 = vadd.f32 0.0, %v5763
      %5765 = vmatmul.f32.gmra.mxu0 %v3951
      %v5766 = vpop.f32.mrf.mxu0
      %v5767 = vadd.f32 0.0, %v5766
      %5768 = vmatmul.f32.gmra.mxu0 %v3952
      %v5769 = vpop.f32.mrf.mxu0
      %v5770 = vadd.f32 0.0, %v5769
      %5771 = vmatmul.f32.gmra.mxu0 %v3953
      %v5772 = vpop.f32.mrf.mxu0
      %v5773 = vadd.f32 0.0, %v5772
      %5774 = vmatmul.f32.gmra.mxu0 %v3954
      %v5775 = vpop.f32.mrf.mxu0
      %v5776 = vadd.f32 0.0, %v5775
      %5777 = vmatmul.f32.gmra.mxu0 %v3955
      %v5778 = vpop.f32.mrf.mxu0
      %v5779 = vadd.f32 0.0, %v5778
      %5780 = vmatmul.f32.gmra.mxu0 %v3956
      %v5781 = vpop.f32.mrf.mxu0
      %v5782 = vadd.f32 0.0, %v5781
      %5783 = vmatmul.f32.gmra.mxu0 %v3957
      %v5784 = vpop.f32.mrf.mxu0
      %v5785 = vadd.f32 0.0, %v5784
      %5786 = vmatmul.f32.gmra.mxu0 %v3958
      %v5787 = vpop.f32.mrf.mxu0
      %v5788 = vadd.f32 0.0, %v5787
      %5789 = vmatmul.f32.gmra.mxu0 %v3959
      %v5790 = vpop.f32.mrf.mxu0
      %v5791 = vadd.f32 0.0, %v5790
      %5792 = vmatmul.f32.gmra.mxu0 %v3960
      %v5793 = vpop.f32.mrf.mxu0
      %v5794 = vadd.f32 0.0, %v5793
      %5795 = vmatmul.f32.gmra.mxu0 %v3961
      %v5796 = vpop.f32.mrf.mxu0
      %v5797 = vadd.f32 0.0, %v5796
      %5798 = vmatmul.f32.gmra.mxu0 %v3962
      %v5799 = vpop.f32.mrf.mxu0
      %v5800 = vadd.f32 0.0, %v5799
      %5801 = vmatmul.f32.gmra.mxu0 %v3963
      %v5802 = vpop.f32.mrf.mxu0
      %v5803 = vadd.f32 0.0, %v5802
      %5804 = vmatmul.f32.gmra.mxu0 %v3964
      %v5805 = vpop.f32.mrf.mxu0
      %v5806 = vadd.f32 0.0, %v5805
      %5807 = vmatmul.f32.gmra.mxu0 %v3965
      %v5808 = vpop.f32.mrf.mxu0
      %v5809 = vadd.f32 0.0, %v5808
      %5810 = vmatmul.f32.gmra.mxu0 %v3966
      %v5811 = vpop.f32.mrf.mxu0
      %v5812 = vadd.f32 0.0, %v5811
      %5813 = vmatmul.f32.gmra.mxu0 %v3967
      %v5814 = vpop.f32.mrf.mxu0
      %v5815 = vadd.f32 0.0, %v5814
      %5816 = vmatmul.f32.gmra.mxu0 %v3968
      %v5817 = vpop.f32.mrf.mxu0
      %v5818 = vadd.f32 0.0, %v5817
      %5819 = vmatmul.f32.gmra.mxu0 %v3969
      %v5820 = vpop.f32.mrf.mxu0
      %v5821 = vadd.f32 0.0, %v5820
      %5822 = vmatmul.f32.gmra.mxu0 %v3970
      %v5823 = vpop.f32.mrf.mxu0
      %v5824 = vadd.f32 0.0, %v5823
      %5825 = vmatmul.f32.gmra.mxu0 %v3971
      %v5826 = vpop.f32.mrf.mxu0
      %v5827 = vadd.f32 0.0, %v5826
      %5828 = vmatmul.f32.gmra.mxu0 %v3972
      %v5829 = vpop.f32.mrf.mxu0
      %v5830 = vadd.f32 0.0, %v5829
      %5831 = vmatmul.f32.gmra.mxu0 %v3973
      %v5832 = vpop.f32.mrf.mxu0
      %v5833 = vadd.f32 0.0, %v5832
      %5834 = vmatmul.f32.gmra.mxu0 %v3974
      %v5835 = vpop.f32.mrf.mxu0
      %v5836 = vadd.f32 0.0, %v5835
      %5837 = vmatmul.f32.gmra.mxu0 %v3975
      %v5838 = vpop.f32.mrf.mxu0
      %v5839 = vadd.f32 0.0, %v5838
      %5840 = vmatmul.f32.gmra.mxu0 %v3976
      %v5841 = vpop.f32.mrf.mxu0
      %v5842 = vadd.f32 0.0, %v5841
      %5843 = vdwg.mxu0
      %5844 = vmatpush.msra.mxu0 %v5516
      %5845 = vmatpush.msra.mxu0 %v5515
      %5846 = vmatpush.msra.mxu0 %v5514
      %5847 = vmatpush.msra.mxu0 %v5513
      %5848 = vmatpush.msra.mxu0 %v5512
      %5849 = vmatpush.msra.mxu0 %v5511
      %5850 = vmatpush.msra.mxu0 %v5510
      %5851 = vmatpush.msra.mxu0 %v5509
      %5852 = vmatpush.msra.mxu0 %v5508
      %5853 = vmatpush.msra.mxu0 %v5507
      %5854 = vmatpush.msra.mxu0 %v5506
      %5855 = vmatpush.msra.mxu0 %v5505
      %5856 = vmatpush.msra.mxu0 %v5504
      %5857 = vmatpush.msra.mxu0 %v5503
      %5858 = vmatpush.msra.mxu0 %v5502
      %5859 = vmatpush.msra.mxu0 %v5501
      %5860 = vmatmul.f32.gmra.mxu0 %v4043
      %v5861 = vpop.f32.mrf.mxu0
      %v5862 = vadd.f32 %v5749, %v5861
      %5863 = vmatmul.f32.gmra.mxu0 %v4044
      %v5864 = vpop.f32.mrf.mxu0
      %v5865 = vadd.f32 %v5752, %v5864
      %5866 = vmatmul.f32.gmra.mxu0 %v4045
      %v5867 = vpop.f32.mrf.mxu0
      %v5868 = vadd.f32 %v5755, %v5867
      %5869 = vmatmul.f32.gmra.mxu0 %v4046
      %v5870 = vpop.f32.mrf.mxu0
      %v5871 = vadd.f32 %v5758, %v5870
      %5872 = vmatmul.f32.gmra.mxu0 %v4047
      %v5873 = vpop.f32.mrf.mxu0
      %v5874 = vadd.f32 %v5761, %v5873
      %5875 = vmatmul.f32.gmra.mxu0 %v4048
      %v5876 = vpop.f32.mrf.mxu0
      %v5877 = vadd.f32 %v5764, %v5876
      %5878 = vmatmul.f32.gmra.mxu0 %v4049
      %v5879 = vpop.f32.mrf.mxu0
      %v5880 = vadd.f32 %v5767, %v5879
      %5881 = vmatmul.f32.gmra.mxu0 %v4050
      %v5882 = vpop.f32.mrf.mxu0
      %v5883 = vadd.f32 %v5770, %v5882
      %5884 = vmatmul.f32.gmra.mxu0 %v4051
      %v5885 = vpop.f32.mrf.mxu0
      %v5886 = vadd.f32 %v5773, %v5885
      %5887 = vmatmul.f32.gmra.mxu0 %v4052
      %v5888 = vpop.f32.mrf.mxu0
      %v5889 = vadd.f32 %v5776, %v5888
      %5890 = vmatmul.f32.gmra.mxu0 %v4053
      %v5891 = vpop.f32.mrf.mxu0
      %v5892 = vadd.f32 %v5779, %v5891
      %5893 = vmatmul.f32.gmra.mxu0 %v4054
      %v5894 = vpop.f32.mrf.mxu0
      %v5895 = vadd.f32 %v5782, %v5894
      %5896 = vmatmul.f32.gmra.mxu0 %v4055
      %v5897 = vpop.f32.mrf.mxu0
      %v5898 = vadd.f32 %v5785, %v5897
      %5899 = vmatmul.f32.gmra.mxu0 %v4056
      %v5900 = vpop.f32.mrf.mxu0
      %v5901 = vadd.f32 %v5788, %v5900
      %5902 = vmatmul.f32.gmra.mxu0 %v4057
      %v5903 = vpop.f32.mrf.mxu0
      %v5904 = vadd.f32 %v5791, %v5903
      %5905 = vmatmul.f32.gmra.mxu0 %v4058
      %v5906 = vpop.f32.mrf.mxu0
      %v5907 = vadd.f32 %v5794, %v5906
      %5908 = vmatmul.f32.gmra.mxu0 %v4059
      %v5909 = vpop.f32.mrf.mxu0
      %v5910 = vadd.f32 %v5797, %v5909
      %5911 = vmatmul.f32.gmra.mxu0 %v4060
      %v5912 = vpop.f32.mrf.mxu0
      %v5913 = vadd.f32 %v5800, %v5912
      %5914 = vmatmul.f32.gmra.mxu0 %v4061
      %v5915 = vpop.f32.mrf.mxu0
      %v5916 = vadd.f32 %v5803, %v5915
      %5917 = vmatmul.f32.gmra.mxu0 %v4062
      %v5918 = vpop.f32.mrf.mxu0
      %v5919 = vadd.f32 %v5806, %v5918
      %5920 = vmatmul.f32.gmra.mxu0 %v4063
      %v5921 = vpop.f32.mrf.mxu0
      %v5922 = vadd.f32 %v5809, %v5921
      %5923 = vmatmul.f32.gmra.mxu0 %v4064
      %v5924 = vpop.f32.mrf.mxu0
      %v5925 = vadd.f32 %v5812, %v5924
      %5926 = vmatmul.f32.gmra.mxu0 %v4065
      %v5927 = vpop.f32.mrf.mxu0
      %v5928 = vadd.f32 %v5815, %v5927
      %5929 = vmatmul.f32.gmra.mxu0 %v4066
      %v5930 = vpop.f32.mrf.mxu0
      %v5931 = vadd.f32 %v5818, %v5930
      %5932 = vmatmul.f32.gmra.mxu0 %v4067
      %v5933 = vpop.f32.mrf.mxu0
      %v5934 = vadd.f32 %v5821, %v5933
      %5935 = vmatmul.f32.gmra.mxu0 %v4068
      %v5936 = vpop.f32.mrf.mxu0
      %v5937 = vadd.f32 %v5824, %v5936
      %5938 = vmatmul.f32.gmra.mxu0 %v4069
      %v5939 = vpop.f32.mrf.mxu0
      %v5940 = vadd.f32 %v5827, %v5939
      %5941 = vmatmul.f32.gmra.mxu0 %v4070
      %v5942 = vpop.f32.mrf.mxu0
      %v5943 = vadd.f32 %v5830, %v5942
      %5944 = vmatmul.f32.gmra.mxu0 %v4071
      %v5945 = vpop.f32.mrf.mxu0
      %v5946 = vadd.f32 %v5833, %v5945
      %5947 = vmatmul.f32.gmra.mxu0 %v4072
      %v5948 = vpop.f32.mrf.mxu0
      %v5949 = vadd.f32 %v5836, %v5948
      %5950 = vmatmul.f32.gmra.mxu0 %v4073
      %v5951 = vpop.f32.mrf.mxu0
      %v5952 = vadd.f32 %v5839, %v5951
      %5953 = vmatmul.f32.gmra.mxu0 %v4074
      %v5954 = vpop.f32.mrf.mxu0
      %v5955 = vadd.f32 %v5842, %v5954
      %5956 = vdwg.mxu0
      %5957 = vmatpush.msra.mxu0 %v5532
      %5958 = vmatpush.msra.mxu0 %v5531
      %5959 = vmatpush.msra.mxu0 %v5530
      %5960 = vmatpush.msra.mxu0 %v5529
      %5961 = vmatpush.msra.mxu0 %v5528
      %5962 = vmatpush.msra.mxu0 %v5527
      %5963 = vmatpush.msra.mxu0 %v5526
      %5964 = vmatpush.msra.mxu0 %v5525
      %5965 = vmatpush.msra.mxu0 %v5524
      %5966 = vmatpush.msra.mxu0 %v5523
      %5967 = vmatpush.msra.mxu0 %v5522
      %5968 = vmatpush.msra.mxu0 %v5521
      %5969 = vmatpush.msra.mxu0 %v5520
      %5970 = vmatpush.msra.mxu0 %v5519
      %5971 = vmatpush.msra.mxu0 %v5518
      %5972 = vmatpush.msra.mxu0 %v5517
      %5973 = vmatmul.f32.gmra.mxu0 %v4109
      %v5974 = vpop.f32.mrf.mxu0
      %v5975 = vadd.f32 %v5862, %v5974
      %5976 = vmatmul.f32.gmra.mxu0 %v4110
      %v5977 = vpop.f32.mrf.mxu0
      %v5978 = vadd.f32 %v5865, %v5977
      %5979 = vmatmul.f32.gmra.mxu0 %v4111
      %v5980 = vpop.f32.mrf.mxu0
      %v5981 = vadd.f32 %v5868, %v5980
      %5982 = vmatmul.f32.gmra.mxu0 %v4112
      %v5983 = vpop.f32.mrf.mxu0
      %v5984 = vadd.f32 %v5871, %v5983
      %5985 = vmatmul.f32.gmra.mxu0 %v4113
      %v5986 = vpop.f32.mrf.mxu0
      %v5987 = vadd.f32 %v5874, %v5986
      %5988 = vmatmul.f32.gmra.mxu0 %v4114
      %v5989 = vpop.f32.mrf.mxu0
      %v5990 = vadd.f32 %v5877, %v5989
      %5991 = vmatmul.f32.gmra.mxu0 %v4115
      %v5992 = vpop.f32.mrf.mxu0
      %v5993 = vadd.f32 %v5880, %v5992
      %5994 = vmatmul.f32.gmra.mxu0 %v4116
      %v5995 = vpop.f32.mrf.mxu0
      %v5996 = vadd.f32 %v5883, %v5995
      %5997 = vmatmul.f32.gmra.mxu0 %v4117
      %v5998 = vpop.f32.mrf.mxu0
      %v5999 = vadd.f32 %v5886, %v5998
      %6000 = vmatmul.f32.gmra.mxu0 %v4118
      %v6001 = vpop.f32.mrf.mxu0
      %v6002 = vadd.f32 %v5889, %v6001
      %6003 = vmatmul.f32.gmra.mxu0 %v4119
      %v6004 = vpop.f32.mrf.mxu0
      %v6005 = vadd.f32 %v5892, %v6004
      %6006 = vmatmul.f32.gmra.mxu0 %v4120
      %v6007 = vpop.f32.mrf.mxu0
      %v6008 = vadd.f32 %v5895, %v6007
      %6009 = vmatmul.f32.gmra.mxu0 %v4121
      %v6010 = vpop.f32.mrf.mxu0
      %v6011 = vadd.f32 %v5898, %v6010
      %6012 = vmatmul.f32.gmra.mxu0 %v4122
      %v6013 = vpop.f32.mrf.mxu0
      %v6014 = vadd.f32 %v5901, %v6013
      %6015 = vmatmul.f32.gmra.mxu0 %v4123
      %v6016 = vpop.f32.mrf.mxu0
      %v6017 = vadd.f32 %v5904, %v6016
      %6018 = vmatmul.f32.gmra.mxu0 %v4124
      %v6019 = vpop.f32.mrf.mxu0
      %v6020 = vadd.f32 %v5907, %v6019
      %6021 = vmatmul.f32.gmra.mxu0 %v4125
      %v6022 = vpop.f32.mrf.mxu0
      %v6023 = vadd.f32 %v5910, %v6022
      %6024 = vmatmul.f32.gmra.mxu0 %v4126
      %v6025 = vpop.f32.mrf.mxu0
      %v6026 = vadd.f32 %v5913, %v6025
      %6027 = vmatmul.f32.gmra.mxu0 %v4127
      %v6028 = vpop.f32.mrf.mxu0
      %v6029 = vadd.f32 %v5916, %v6028
      %6030 = vmatmul.f32.gmra.mxu0 %v4128
      %v6031 = vpop.f32.mrf.mxu0
      %v6032 = vadd.f32 %v5919, %v6031
      %6033 = vmatmul.f32.gmra.mxu0 %v4129
      %v6034 = vpop.f32.mrf.mxu0
      %v6035 = vadd.f32 %v5922, %v6034
      %6036 = vmatmul.f32.gmra.mxu0 %v4130
      %v6037 = vpop.f32.mrf.mxu0
      %v6038 = vadd.f32 %v5925, %v6037
      %6039 = vmatmul.f32.gmra.mxu0 %v4131
      %v6040 = vpop.f32.mrf.mxu0
      %v6041 = vadd.f32 %v5928, %v6040
      %6042 = vmatmul.f32.gmra.mxu0 %v4132
      %v6043 = vpop.f32.mrf.mxu0
      %v6044 = vadd.f32 %v5931, %v6043
      %6045 = vmatmul.f32.gmra.mxu0 %v4133
      %v6046 = vpop.f32.mrf.mxu0
      %v6047 = vadd.f32 %v5934, %v6046
      %6048 = vmatmul.f32.gmra.mxu0 %v4134
      %v6049 = vpop.f32.mrf.mxu0
      %v6050 = vadd.f32 %v5937, %v6049
      %6051 = vmatmul.f32.gmra.mxu0 %v4135
      %v6052 = vpop.f32.mrf.mxu0
      %v6053 = vadd.f32 %v5940, %v6052
      %6054 = vmatmul.f32.gmra.mxu0 %v4136
      %v6055 = vpop.f32.mrf.mxu0
      %v6056 = vadd.f32 %v5943, %v6055
      %6057 = vmatmul.f32.gmra.mxu0 %v4137
      %v6058 = vpop.f32.mrf.mxu0
      %v6059 = vadd.f32 %v5946, %v6058
      %6060 = vmatmul.f32.gmra.mxu0 %v4138
      %v6061 = vpop.f32.mrf.mxu0
      %v6062 = vadd.f32 %v5949, %v6061
      %6063 = vmatmul.f32.gmra.mxu0 %v4139
      %v6064 = vpop.f32.mrf.mxu0
      %v6065 = vadd.f32 %v5952, %v6064
      %6066 = vmatmul.f32.gmra.mxu0 %v4140
      %v6067 = vpop.f32.mrf.mxu0
      %v6068 = vadd.f32 %v5955, %v6067
      %6069 = vdwg.mxu0
      %6070 = vmatpush.msra.mxu0 %v5548
      %6071 = vmatpush.msra.mxu0 %v5547
      %6072 = vmatpush.msra.mxu0 %v5546
      %6073 = vmatpush.msra.mxu0 %v5545
      %6074 = vmatpush.msra.mxu0 %v5544
      %6075 = vmatpush.msra.mxu0 %v5543
      %6076 = vmatpush.msra.mxu0 %v5542
      %6077 = vmatpush.msra.mxu0 %v5541
      %6078 = vmatpush.msra.mxu0 %v5540
      %6079 = vmatpush.msra.mxu0 %v5539
      %6080 = vmatpush.msra.mxu0 %v5538
      %6081 = vmatpush.msra.mxu0 %v5537
      %6082 = vmatpush.msra.mxu0 %v5536
      %6083 = vmatpush.msra.mxu0 %v5535
      %6084 = vmatpush.msra.mxu0 %v5534
      %6085 = vmatpush.msra.mxu0 %v5533
      %6086 = vmatmul.f32.gmra.mxu0 %v4173
      %v6087 = vpop.f32.mrf.mxu0
      %v6088 = vadd.f32 %v5975, %v6087
      %6089 = vmatmul.f32.gmra.mxu0 %v4174
      %v6090 = vpop.f32.mrf.mxu0
      %v6091 = vadd.f32 %v5978, %v6090
      %6092 = vmatmul.f32.gmra.mxu0 %v4175
      %v6093 = vpop.f32.mrf.mxu0
      %v6094 = vadd.f32 %v5981, %v6093
      %6095 = vmatmul.f32.gmra.mxu0 %v4176
      %v6096 = vpop.f32.mrf.mxu0
      %v6097 = vadd.f32 %v5984, %v6096
      %6098 = vmatmul.f32.gmra.mxu0 %v4177
      %v6099 = vpop.f32.mrf.mxu0
      %v6100 = vadd.f32 %v5987, %v6099
      %6101 = vmatmul.f32.gmra.mxu0 %v4178
      %v6102 = vpop.f32.mrf.mxu0
      %v6103 = vadd.f32 %v5990, %v6102
      %6104 = vmatmul.f32.gmra.mxu0 %v4179
      %v6105 = vpop.f32.mrf.mxu0
      %v6106 = vadd.f32 %v5993, %v6105
      %6107 = vmatmul.f32.gmra.mxu0 %v4180
      %v6108 = vpop.f32.mrf.mxu0
      %v6109 = vadd.f32 %v5996, %v6108
      %6110 = vmatmul.f32.gmra.mxu0 %v4181
      %v6111 = vpop.f32.mrf.mxu0
      %v6112 = vadd.f32 %v5999, %v6111
      %6113 = vmatmul.f32.gmra.mxu0 %v4182
      %v6114 = vpop.f32.mrf.mxu0
      %v6115 = vadd.f32 %v6002, %v6114
      %6116 = vmatmul.f32.gmra.mxu0 %v4183
      %v6117 = vpop.f32.mrf.mxu0
      %v6118 = vadd.f32 %v6005, %v6117
      %6119 = vmatmul.f32.gmra.mxu0 %v4184
      %v6120 = vpop.f32.mrf.mxu0
      %v6121 = vadd.f32 %v6008, %v6120
      %6122 = vmatmul.f32.gmra.mxu0 %v4185
      %v6123 = vpop.f32.mrf.mxu0
      %v6124 = vadd.f32 %v6011, %v6123
      %6125 = vmatmul.f32.gmra.mxu0 %v4186
      %v6126 = vpop.f32.mrf.mxu0
      %v6127 = vadd.f32 %v6014, %v6126
      %6128 = vmatmul.f32.gmra.mxu0 %v4187
      %v6129 = vpop.f32.mrf.mxu0
      %v6130 = vadd.f32 %v6017, %v6129
      %6131 = vmatmul.f32.gmra.mxu0 %v4188
      %v6132 = vpop.f32.mrf.mxu0
      %v6133 = vadd.f32 %v6020, %v6132
      %6134 = vmatmul.f32.gmra.mxu0 %v4189
      %v6135 = vpop.f32.mrf.mxu0
      %v6136 = vadd.f32 %v6023, %v6135
      %6137 = vmatmul.f32.gmra.mxu0 %v4190
      %v6138 = vpop.f32.mrf.mxu0
      %v6139 = vadd.f32 %v6026, %v6138
      %6140 = vmatmul.f32.gmra.mxu0 %v4191
      %v6141 = vpop.f32.mrf.mxu0
      %v6142 = vadd.f32 %v6029, %v6141
      %6143 = vmatmul.f32.gmra.mxu0 %v4192
      %v6144 = vpop.f32.mrf.mxu0
      %v6145 = vadd.f32 %v6032, %v6144
      %6146 = vmatmul.f32.gmra.mxu0 %v4193
      %v6147 = vpop.f32.mrf.mxu0
      %v6148 = vadd.f32 %v6035, %v6147
      %6149 = vmatmul.f32.gmra.mxu0 %v4194
      %v6150 = vpop.f32.mrf.mxu0
      %v6151 = vadd.f32 %v6038, %v6150
      %6152 = vmatmul.f32.gmra.mxu0 %v4195
      %v6153 = vpop.f32.mrf.mxu0
      %v6154 = vadd.f32 %v6041, %v6153
      %6155 = vmatmul.f32.gmra.mxu0 %v4196
      %v6156 = vpop.f32.mrf.mxu0
      %v6157 = vadd.f32 %v6044, %v6156
      %6158 = vmatmul.f32.gmra.mxu0 %v4197
      %v6159 = vpop.f32.mrf.mxu0
      %v6160 = vadd.f32 %v6047, %v6159
      %6161 = vmatmul.f32.gmra.mxu0 %v4198
      %v6162 = vpop.f32.mrf.mxu0
      %v6163 = vadd.f32 %v6050, %v6162
      %6164 = vmatmul.f32.gmra.mxu0 %v4199
      %v6165 = vpop.f32.mrf.mxu0
      %v6166 = vadd.f32 %v6053, %v6165
      %6167 = vmatmul.f32.gmra.mxu0 %v4200
      %v6168 = vpop.f32.mrf.mxu0
      %v6169 = vadd.f32 %v6056, %v6168
      %6170 = vmatmul.f32.gmra.mxu0 %v4201
      %v6171 = vpop.f32.mrf.mxu0
      %v6172 = vadd.f32 %v6059, %v6171
      %6173 = vmatmul.f32.gmra.mxu0 %v4202
      %v6174 = vpop.f32.mrf.mxu0
      %v6175 = vadd.f32 %v6062, %v6174
      %6176 = vmatmul.f32.gmra.mxu0 %v4203
      %v6177 = vpop.f32.mrf.mxu0
      %v6178 = vadd.f32 %v6065, %v6177
      %6179 = vmatmul.f32.gmra.mxu0 %v4204
      %v6180 = vpop.f32.mrf.mxu0
      %v6181 = vadd.f32 %v6068, %v6180
      %6182 = vdwg.mxu0
      %6183 = vmatpush.msra.mxu0 %v5564
      %6184 = vmatpush.msra.mxu0 %v5563
      %6185 = vmatpush.msra.mxu0 %v5562
      %6186 = vmatpush.msra.mxu0 %v5561
      %6187 = vmatpush.msra.mxu0 %v5560
      %6188 = vmatpush.msra.mxu0 %v5559
      %6189 = vmatpush.msra.mxu0 %v5558
      %6190 = vmatpush.msra.mxu0 %v5557
      %6191 = vmatpush.msra.mxu0 %v5556
      %6192 = vmatpush.msra.mxu0 %v5555
      %6193 = vmatpush.msra.mxu0 %v5554
      %6194 = vmatpush.msra.mxu0 %v5553
      %6195 = vmatpush.msra.mxu0 %v5552
      %6196 = vmatpush.msra.mxu0 %v5551
      %6197 = vmatpush.msra.mxu0 %v5550
      %6198 = vmatpush.msra.mxu0 %v5549
      %6199 = vmatmul.f32.gmra.mxu0 %v4269
      %v6200 = vpop.f32.mrf.mxu0
      %v6201 = vadd.f32 %v6088, %v6200
      %6202 = vmatmul.f32.gmra.mxu0 %v4270
      %v6203 = vpop.f32.mrf.mxu0
      %v6204 = vadd.f32 %v6091, %v6203
      %6205 = vmatmul.f32.gmra.mxu0 %v4271
      %v6206 = vpop.f32.mrf.mxu0
      %v6207 = vadd.f32 %v6094, %v6206
      %6208 = vmatmul.f32.gmra.mxu0 %v4272
      %v6209 = vpop.f32.mrf.mxu0
      %v6210 = vadd.f32 %v6097, %v6209
      %6211 = vmatmul.f32.gmra.mxu0 %v4273
      %v6212 = vpop.f32.mrf.mxu0
      %v6213 = vadd.f32 %v6100, %v6212
      %6214 = vmatmul.f32.gmra.mxu0 %v4274
      %v6215 = vpop.f32.mrf.mxu0
      %v6216 = vadd.f32 %v6103, %v6215
      %6217 = vmatmul.f32.gmra.mxu0 %v4275
      %v6218 = vpop.f32.mrf.mxu0
      %v6219 = vadd.f32 %v6106, %v6218
      %6220 = vmatmul.f32.gmra.mxu0 %v4276
      %v6221 = vpop.f32.mrf.mxu0
      %v6222 = vadd.f32 %v6109, %v6221
      %6223 = vmatmul.f32.gmra.mxu0 %v4277
      %v6224 = vpop.f32.mrf.mxu0
      %v6225 = vadd.f32 %v6112, %v6224
      %6226 = vmatmul.f32.gmra.mxu0 %v4278
      %v6227 = vpop.f32.mrf.mxu0
      %v6228 = vadd.f32 %v6115, %v6227
      %6229 = vmatmul.f32.gmra.mxu0 %v4279
      %v6230 = vpop.f32.mrf.mxu0
      %v6231 = vadd.f32 %v6118, %v6230
      %6232 = vmatmul.f32.gmra.mxu0 %v4280
      %v6233 = vpop.f32.mrf.mxu0
      %v6234 = vadd.f32 %v6121, %v6233
      %6235 = vmatmul.f32.gmra.mxu0 %v4281
      %v6236 = vpop.f32.mrf.mxu0
      %v6237 = vadd.f32 %v6124, %v6236
      %6238 = vmatmul.f32.gmra.mxu0 %v4282
      %v6239 = vpop.f32.mrf.mxu0
      %v6240 = vadd.f32 %v6127, %v6239
      %6241 = vmatmul.f32.gmra.mxu0 %v4283
      %v6242 = vpop.f32.mrf.mxu0
      %v6243 = vadd.f32 %v6130, %v6242
      %6244 = vmatmul.f32.gmra.mxu0 %v4284
      %v6245 = vpop.f32.mrf.mxu0
      %v6246 = vadd.f32 %v6133, %v6245
      %6247 = vmatmul.f32.gmra.mxu0 %v4285
      %v6248 = vpop.f32.mrf.mxu0
      %v6249 = vadd.f32 %v6136, %v6248
      %6250 = vmatmul.f32.gmra.mxu0 %v4286
      %v6251 = vpop.f32.mrf.mxu0
      %v6252 = vadd.f32 %v6139, %v6251
      %6253 = vmatmul.f32.gmra.mxu0 %v4287
      %v6254 = vpop.f32.mrf.mxu0
      %v6255 = vadd.f32 %v6142, %v6254
      %6256 = vmatmul.f32.gmra.mxu0 %v4288
      %v6257 = vpop.f32.mrf.mxu0
      %v6258 = vadd.f32 %v6145, %v6257
      %6259 = vmatmul.f32.gmra.mxu0 %v4289
      %v6260 = vpop.f32.mrf.mxu0
      %v6261 = vadd.f32 %v6148, %v6260
      %6262 = vmatmul.f32.gmra.mxu0 %v4290
      %v6263 = vpop.f32.mrf.mxu0
      %v6264 = vadd.f32 %v6151, %v6263
      %6265 = vmatmul.f32.gmra.mxu0 %v4291
      %v6266 = vpop.f32.mrf.mxu0
      %v6267 = vadd.f32 %v6154, %v6266
      %6268 = vmatmul.f32.gmra.mxu0 %v4292
      %v6269 = vpop.f32.mrf.mxu0
      %v6270 = vadd.f32 %v6157, %v6269
      %6271 = vmatmul.f32.gmra.mxu0 %v4293
      %v6272 = vpop.f32.mrf.mxu0
      %v6273 = vadd.f32 %v6160, %v6272
      %6274 = vmatmul.f32.gmra.mxu0 %v4294
      %v6275 = vpop.f32.mrf.mxu0
      %v6276 = vadd.f32 %v6163, %v6275
      %6277 = vmatmul.f32.gmra.mxu0 %v4295
      %v6278 = vpop.f32.mrf.mxu0
      %v6279 = vadd.f32 %v6166, %v6278
      %6280 = vmatmul.f32.gmra.mxu0 %v4296
      %v6281 = vpop.f32.mrf.mxu0
      %v6282 = vadd.f32 %v6169, %v6281
      %6283 = vmatmul.f32.gmra.mxu0 %v4297
      %v6284 = vpop.f32.mrf.mxu0
      %v6285 = vadd.f32 %v6172, %v6284
      %6286 = vmatmul.f32.gmra.mxu0 %v4298
      %v6287 = vpop.f32.mrf.mxu0
      %v6288 = vadd.f32 %v6175, %v6287
      %6289 = vmatmul.f32.gmra.mxu0 %v4299
      %v6290 = vpop.f32.mrf.mxu0
      %v6291 = vadd.f32 %v6178, %v6290
      %6292 = vmatmul.f32.gmra.mxu0 %v4300
      %v6293 = vpop.f32.mrf.mxu0
      %v6294 = vadd.f32 %v6181, %v6293
      %6295 = vdwg.mxu0
      %6296 = vmatpush.msra.mxu0 %v5580
      %6297 = vmatpush.msra.mxu0 %v5579
      %6298 = vmatpush.msra.mxu0 %v5578
      %6299 = vmatpush.msra.mxu0 %v5577
      %6300 = vmatpush.msra.mxu0 %v5576
      %6301 = vmatpush.msra.mxu0 %v5575
      %6302 = vmatpush.msra.mxu0 %v5574
      %6303 = vmatpush.msra.mxu0 %v5573
      %6304 = vmatpush.msra.mxu0 %v5572
      %6305 = vmatpush.msra.mxu0 %v5571
      %6306 = vmatpush.msra.mxu0 %v5570
      %6307 = vmatpush.msra.mxu0 %v5569
      %6308 = vmatpush.msra.mxu0 %v5568
      %6309 = vmatpush.msra.mxu0 %v5567
      %6310 = vmatpush.msra.mxu0 %v5566
      %6311 = vmatpush.msra.mxu0 %v5565
      %6312 = vmatmul.f32.gmra.mxu0 %v4333
      %v6313 = vpop.f32.mrf.mxu0
      %v6314 = vadd.f32 %v6201, %v6313
      %6315 = vmatmul.f32.gmra.mxu0 %v4334
      %v6316 = vpop.f32.mrf.mxu0
      %v6317 = vadd.f32 %v6204, %v6316
      %6318 = vmatmul.f32.gmra.mxu0 %v4335
      %v6319 = vpop.f32.mrf.mxu0
      %v6320 = vadd.f32 %v6207, %v6319
      %6321 = vmatmul.f32.gmra.mxu0 %v4336
      %v6322 = vpop.f32.mrf.mxu0
      %v6323 = vadd.f32 %v6210, %v6322
      %6324 = vmatmul.f32.gmra.mxu0 %v4337
      %v6325 = vpop.f32.mrf.mxu0
      %v6326 = vadd.f32 %v6213, %v6325
      %6327 = vmatmul.f32.gmra.mxu0 %v4338
      %v6328 = vpop.f32.mrf.mxu0
      %v6329 = vadd.f32 %v6216, %v6328
      %6330 = vmatmul.f32.gmra.mxu0 %v4339
      %v6331 = vpop.f32.mrf.mxu0
      %v6332 = vadd.f32 %v6219, %v6331
      %6333 = vmatmul.f32.gmra.mxu0 %v4340
      %v6334 = vpop.f32.mrf.mxu0
      %v6335 = vadd.f32 %v6222, %v6334
      %6336 = vmatmul.f32.gmra.mxu0 %v4341
      %v6337 = vpop.f32.mrf.mxu0
      %v6338 = vadd.f32 %v6225, %v6337
      %6339 = vmatmul.f32.gmra.mxu0 %v4342
      %v6340 = vpop.f32.mrf.mxu0
      %v6341 = vadd.f32 %v6228, %v6340
      %6342 = vmatmul.f32.gmra.mxu0 %v4343
      %v6343 = vpop.f32.mrf.mxu0
      %v6344 = vadd.f32 %v6231, %v6343
      %6345 = vmatmul.f32.gmra.mxu0 %v4344
      %v6346 = vpop.f32.mrf.mxu0
      %v6347 = vadd.f32 %v6234, %v6346
      %6348 = vmatmul.f32.gmra.mxu0 %v4345
      %v6349 = vpop.f32.mrf.mxu0
      %v6350 = vadd.f32 %v6237, %v6349
      %6351 = vmatmul.f32.gmra.mxu0 %v4346
      %v6352 = vpop.f32.mrf.mxu0
      %v6353 = vadd.f32 %v6240, %v6352
      %6354 = vmatmul.f32.gmra.mxu0 %v4347
      %v6355 = vpop.f32.mrf.mxu0
      %v6356 = vadd.f32 %v6243, %v6355
      %6357 = vmatmul.f32.gmra.mxu0 %v4348
      %v6358 = vpop.f32.mrf.mxu0
      %v6359 = vadd.f32 %v6246, %v6358
      %6360 = vmatmul.f32.gmra.mxu0 %v4349
      %v6361 = vpop.f32.mrf.mxu0
      %v6362 = vadd.f32 %v6249, %v6361
      %6363 = vmatmul.f32.gmra.mxu0 %v4350
      %v6364 = vpop.f32.mrf.mxu0
      %v6365 = vadd.f32 %v6252, %v6364
      %6366 = vmatmul.f32.gmra.mxu0 %v4351
      %v6367 = vpop.f32.mrf.mxu0
      %v6368 = vadd.f32 %v6255, %v6367
      %6369 = vmatmul.f32.gmra.mxu0 %v4352
      %v6370 = vpop.f32.mrf.mxu0
      %v6371 = vadd.f32 %v6258, %v6370
      %6372 = vmatmul.f32.gmra.mxu0 %v4353
      %v6373 = vpop.f32.mrf.mxu0
      %v6374 = vadd.f32 %v6261, %v6373
      %6375 = vmatmul.f32.gmra.mxu0 %v4354
      %v6376 = vpop.f32.mrf.mxu0
      %v6377 = vadd.f32 %v6264, %v6376
      %6378 = vmatmul.f32.gmra.mxu0 %v4355
      %v6379 = vpop.f32.mrf.mxu0
      %v6380 = vadd.f32 %v6267, %v6379
      %6381 = vmatmul.f32.gmra.mxu0 %v4356
      %v6382 = vpop.f32.mrf.mxu0
      %v6383 = vadd.f32 %v6270, %v6382
      %6384 = vmatmul.f32.gmra.mxu0 %v4357
      %v6385 = vpop.f32.mrf.mxu0
      %v6386 = vadd.f32 %v6273, %v6385
      %6387 = vmatmul.f32.gmra.mxu0 %v4358
      %v6388 = vpop.f32.mrf.mxu0
      %v6389 = vadd.f32 %v6276, %v6388
      %6390 = vmatmul.f32.gmra.mxu0 %v4359
      %v6391 = vpop.f32.mrf.mxu0
      %v6392 = vadd.f32 %v6279, %v6391
      %6393 = vmatmul.f32.gmra.mxu0 %v4360
      %v6394 = vpop.f32.mrf.mxu0
      %v6395 = vadd.f32 %v6282, %v6394
      %6396 = vmatmul.f32.gmra.mxu0 %v4361
      %v6397 = vpop.f32.mrf.mxu0
      %v6398 = vadd.f32 %v6285, %v6397
      %6399 = vmatmul.f32.gmra.mxu0 %v4362
      %v6400 = vpop.f32.mrf.mxu0
      %v6401 = vadd.f32 %v6288, %v6400
      %6402 = vmatmul.f32.gmra.mxu0 %v4363
      %v6403 = vpop.f32.mrf.mxu0
      %v6404 = vadd.f32 %v6291, %v6403
      %6405 = vmatmul.f32.gmra.mxu0 %v4364
      %v6406 = vpop.f32.mrf.mxu0
      %v6407 = vadd.f32 %v6294, %v6406
      %6408 = vdwg.mxu0
      %6409 = vmatpush.msra.mxu0 %v5596
      %6410 = vmatpush.msra.mxu0 %v5595
      %6411 = vmatpush.msra.mxu0 %v5594
      %6412 = vmatpush.msra.mxu0 %v5593
      %6413 = vmatpush.msra.mxu0 %v5592
      %6414 = vmatpush.msra.mxu0 %v5591
      %6415 = vmatpush.msra.mxu0 %v5590
      %6416 = vmatpush.msra.mxu0 %v5589
      %6417 = vmatpush.msra.mxu0 %v5588
      %6418 = vmatpush.msra.mxu0 %v5587
      %6419 = vmatpush.msra.mxu0 %v5586
      %6420 = vmatpush.msra.mxu0 %v5585
      %6421 = vmatpush.msra.mxu0 %v5584
      %6422 = vmatpush.msra.mxu0 %v5583
      %6423 = vmatpush.msra.mxu0 %v5582
      %6424 = vmatpush.msra.mxu0 %v5581
      %6425 = vmatmul.f32.gmra.mxu0 %v5293
      %v6426 = vpop.f32.mrf.mxu0
      %v6427 = vadd.f32 %v6314, %v6426
      %6428 = vmatmul.f32.gmra.mxu0 %v5294
      %v6429 = vpop.f32.mrf.mxu0
      %v6430 = vadd.f32 %v6317, %v6429
      %6431 = vmatmul.f32.gmra.mxu0 %v5295
      %v6432 = vpop.f32.mrf.mxu0
      %v6433 = vadd.f32 %v6320, %v6432
      %6434 = vmatmul.f32.gmra.mxu0 %v5296
      %v6435 = vpop.f32.mrf.mxu0
      %v6436 = vadd.f32 %v6323, %v6435
      %6437 = vmatmul.f32.gmra.mxu0 %v5297
      %v6438 = vpop.f32.mrf.mxu0
      %v6439 = vadd.f32 %v6326, %v6438
      %6440 = vmatmul.f32.gmra.mxu0 %v5298
      %v6441 = vpop.f32.mrf.mxu0
      %v6442 = vadd.f32 %v6329, %v6441
      %6443 = vmatmul.f32.gmra.mxu0 %v5299
      %v6444 = vpop.f32.mrf.mxu0
      %v6445 = vadd.f32 %v6332, %v6444
      %6446 = vmatmul.f32.gmra.mxu0 %v5300
      %v6447 = vpop.f32.mrf.mxu0
      %v6448 = vadd.f32 %v6335, %v6447
      %6449 = vmatmul.f32.gmra.mxu0 %v5301
      %v6450 = vpop.f32.mrf.mxu0
      %v6451 = vadd.f32 %v6338, %v6450
      %6452 = vmatmul.f32.gmra.mxu0 %v5302
      %v6453 = vpop.f32.mrf.mxu0
      %v6454 = vadd.f32 %v6341, %v6453
      %6455 = vmatmul.f32.gmra.mxu0 %v5303
      %v6456 = vpop.f32.mrf.mxu0
      %v6457 = vadd.f32 %v6344, %v6456
      %6458 = vmatmul.f32.gmra.mxu0 %v5304
      %v6459 = vpop.f32.mrf.mxu0
      %v6460 = vadd.f32 %v6347, %v6459
      %6461 = vmatmul.f32.gmra.mxu0 %v5305
      %v6462 = vpop.f32.mrf.mxu0
      %v6463 = vadd.f32 %v6350, %v6462
      %6464 = vmatmul.f32.gmra.mxu0 %v5306
      %v6465 = vpop.f32.mrf.mxu0
      %v6466 = vadd.f32 %v6353, %v6465
      %6467 = vmatmul.f32.gmra.mxu0 %v5307
      %v6468 = vpop.f32.mrf.mxu0
      %v6469 = vadd.f32 %v6356, %v6468
      %6470 = vmatmul.f32.gmra.mxu0 %v5308
      %v6471 = vpop.f32.mrf.mxu0
      %v6472 = vadd.f32 %v6359, %v6471
      %6473 = vmatmul.f32.gmra.mxu0 %v5309
      %v6474 = vpop.f32.mrf.mxu0
      %v6475 = vadd.f32 %v6362, %v6474
      %6476 = vmatmul.f32.gmra.mxu0 %v5310
      %v6477 = vpop.f32.mrf.mxu0
      %v6478 = vadd.f32 %v6365, %v6477
      %6479 = vmatmul.f32.gmra.mxu0 %v5311
      %v6480 = vpop.f32.mrf.mxu0
      %v6481 = vadd.f32 %v6368, %v6480
      %6482 = vmatmul.f32.gmra.mxu0 %v5312
      %v6483 = vpop.f32.mrf.mxu0
      %v6484 = vadd.f32 %v6371, %v6483
      %6485 = vmatmul.f32.gmra.mxu0 %v5313
      %v6486 = vpop.f32.mrf.mxu0
      %v6487 = vadd.f32 %v6374, %v6486
      %6488 = vmatmul.f32.gmra.mxu0 %v5314
      %v6489 = vpop.f32.mrf.mxu0
      %v6490 = vadd.f32 %v6377, %v6489
      %6491 = vmatmul.f32.gmra.mxu0 %v5315
      %v6492 = vpop.f32.mrf.mxu0
      %v6493 = vadd.f32 %v6380, %v6492
      %6494 = vmatmul.f32.gmra.mxu0 %v5316
      %v6495 = vpop.f32.mrf.mxu0
      %v6496 = vadd.f32 %v6383, %v6495
      %6497 = vmatmul.f32.gmra.mxu0 %v5317
      %v6498 = vpop.f32.mrf.mxu0
      %v6499 = vadd.f32 %v6386, %v6498
      %6500 = vmatmul.f32.gmra.mxu0 %v5318
      %v6501 = vpop.f32.mrf.mxu0
      %v6502 = vadd.f32 %v6389, %v6501
      %6503 = vmatmul.f32.gmra.mxu0 %v5319
      %v6504 = vpop.f32.mrf.mxu0
      %v6505 = vadd.f32 %v6392, %v6504
      %6506 = vmatmul.f32.gmra.mxu0 %v5320
      %v6507 = vpop.f32.mrf.mxu0
      %v6508 = vadd.f32 %v6395, %v6507
      %6509 = vmatmul.f32.gmra.mxu0 %v5321
      %v6510 = vpop.f32.mrf.mxu0
      %v6511 = vadd.f32 %v6398, %v6510
      %6512 = vmatmul.f32.gmra.mxu0 %v5322
      %v6513 = vpop.f32.mrf.mxu0
      %v6514 = vadd.f32 %v6401, %v6513
      %6515 = vmatmul.f32.gmra.mxu0 %v5323
      %v6516 = vpop.f32.mrf.mxu0
      %v6517 = vadd.f32 %v6404, %v6516
      %6518 = vmatmul.f32.gmra.mxu0 %v5324
      %v6519 = vpop.f32.mrf.mxu0
      %v6520 = vadd.f32 %v6407, %v6519
      %6521 = vdwg.mxu0
      %6522 = vmatpush.msra.mxu0 %v5612
      %6523 = vmatpush.msra.mxu0 %v5611
      %6524 = vmatpush.msra.mxu0 %v5610
      %6525 = vmatpush.msra.mxu0 %v5609
      %6526 = vmatpush.msra.mxu0 %v5608
      %6527 = vmatpush.msra.mxu0 %v5607
      %6528 = vmatpush.msra.mxu0 %v5606
      %6529 = vmatpush.msra.mxu0 %v5605
      %6530 = vmatpush.msra.mxu0 %v5604
      %6531 = vmatpush.msra.mxu0 %v5603
      %6532 = vmatpush.msra.mxu0 %v5602
      %6533 = vmatpush.msra.mxu0 %v5601
      %6534 = vmatpush.msra.mxu0 %v5600
      %6535 = vmatpush.msra.mxu0 %v5599
      %6536 = vmatpush.msra.mxu0 %v5598
      %6537 = vmatpush.msra.mxu0 %v5597
      %6538 = vmatmul.f32.gmra.mxu0 %v5389
      %v6539 = vpop.f32.mrf.mxu0
      %v6540 = vadd.f32 %v6427, %v6539
      %6541 = vmatmul.f32.gmra.mxu0 %v5390
      %v6542 = vpop.f32.mrf.mxu0
      %v6543 = vadd.f32 %v6430, %v6542
      %6544 = vmatmul.f32.gmra.mxu0 %v5391
      %v6545 = vpop.f32.mrf.mxu0
      %v6546 = vadd.f32 %v6433, %v6545
      %6547 = vmatmul.f32.gmra.mxu0 %v5392
      %v6548 = vpop.f32.mrf.mxu0
      %v6549 = vadd.f32 %v6436, %v6548
      %6550 = vmatmul.f32.gmra.mxu0 %v5393
      %v6551 = vpop.f32.mrf.mxu0
      %v6552 = vadd.f32 %v6439, %v6551
      %6553 = vmatmul.f32.gmra.mxu0 %v5394
      %v6554 = vpop.f32.mrf.mxu0
      %v6555 = vadd.f32 %v6442, %v6554
      %6556 = vmatmul.f32.gmra.mxu0 %v5395
      %v6557 = vpop.f32.mrf.mxu0
      %v6558 = vadd.f32 %v6445, %v6557
      %6559 = vmatmul.f32.gmra.mxu0 %v5396
      %v6560 = vpop.f32.mrf.mxu0
      %v6561 = vadd.f32 %v6448, %v6560
      %6562 = vmatmul.f32.gmra.mxu0 %v5397
      %v6563 = vpop.f32.mrf.mxu0
      %v6564 = vadd.f32 %v6451, %v6563
      %6565 = vmatmul.f32.gmra.mxu0 %v5398
      %v6566 = vpop.f32.mrf.mxu0
      %v6567 = vadd.f32 %v6454, %v6566
      %6568 = vmatmul.f32.gmra.mxu0 %v5399
      %v6569 = vpop.f32.mrf.mxu0
      %v6570 = vadd.f32 %v6457, %v6569
      %6571 = vmatmul.f32.gmra.mxu0 %v5400
      %v6572 = vpop.f32.mrf.mxu0
      %v6573 = vadd.f32 %v6460, %v6572
      %6574 = vmatmul.f32.gmra.mxu0 %v5401
      %v6575 = vpop.f32.mrf.mxu0
      %v6576 = vadd.f32 %v6463, %v6575
      %6577 = vmatmul.f32.gmra.mxu0 %v5402
      %v6578 = vpop.f32.mrf.mxu0
      %v6579 = vadd.f32 %v6466, %v6578
      %6580 = vmatmul.f32.gmra.mxu0 %v5403
      %v6581 = vpop.f32.mrf.mxu0
      %v6582 = vadd.f32 %v6469, %v6581
      %6583 = vmatmul.f32.gmra.mxu0 %v5404
      %v6584 = vpop.f32.mrf.mxu0
      %v6585 = vadd.f32 %v6472, %v6584
      %6586 = vmatmul.f32.gmra.mxu0 %v5405
      %v6587 = vpop.f32.mrf.mxu0
      %v6588 = vadd.f32 %v6475, %v6587
      %6589 = vmatmul.f32.gmra.mxu0 %v5406
      %v6590 = vpop.f32.mrf.mxu0
      %v6591 = vadd.f32 %v6478, %v6590
      %6592 = vmatmul.f32.gmra.mxu0 %v5407
      %v6593 = vpop.f32.mrf.mxu0
      %v6594 = vadd.f32 %v6481, %v6593
      %6595 = vmatmul.f32.gmra.mxu0 %v5408
      %v6596 = vpop.f32.mrf.mxu0
      %v6597 = vadd.f32 %v6484, %v6596
      %6598 = vmatmul.f32.gmra.mxu0 %v5409
      %v6599 = vpop.f32.mrf.mxu0
      %v6600 = vadd.f32 %v6487, %v6599
      %6601 = vmatmul.f32.gmra.mxu0 %v5410
      %v6602 = vpop.f32.mrf.mxu0
      %v6603 = vadd.f32 %v6490, %v6602
      %6604 = vmatmul.f32.gmra.mxu0 %v5411
      %v6605 = vpop.f32.mrf.mxu0
      %v6606 = vadd.f32 %v6493, %v6605
      %6607 = vmatmul.f32.gmra.mxu0 %v5412
      %v6608 = vpop.f32.mrf.mxu0
      %v6609 = vadd.f32 %v6496, %v6608
      %6610 = vmatmul.f32.gmra.mxu0 %v5413
      %v6611 = vpop.f32.mrf.mxu0
      %v6612 = vadd.f32 %v6499, %v6611
      %6613 = vmatmul.f32.gmra.mxu0 %v5414
      %v6614 = vpop.f32.mrf.mxu0
      %v6615 = vadd.f32 %v6502, %v6614
      %6616 = vmatmul.f32.gmra.mxu0 %v5415
      %v6617 = vpop.f32.mrf.mxu0
      %v6618 = vadd.f32 %v6505, %v6617
      %6619 = vmatmul.f32.gmra.mxu0 %v5416
      %v6620 = vpop.f32.mrf.mxu0
      %v6621 = vadd.f32 %v6508, %v6620
      %6622 = vmatmul.f32.gmra.mxu0 %v5417
      %v6623 = vpop.f32.mrf.mxu0
      %v6624 = vadd.f32 %v6511, %v6623
      %6625 = vmatmul.f32.gmra.mxu0 %v5418
      %v6626 = vpop.f32.mrf.mxu0
      %v6627 = vadd.f32 %v6514, %v6626
      %6628 = vmatmul.f32.gmra.mxu0 %v5419
      %v6629 = vpop.f32.mrf.mxu0
      %v6630 = vadd.f32 %v6517, %v6629
      %6631 = vmatmul.f32.gmra.mxu0 %v5420
      %v6632 = vpop.f32.mrf.mxu0
      %v6633 = vadd.f32 %v6520, %v6632
      %6634 = vdwg.mxu0
      %6635 = vmatpush.msra.mxu0 %v5628
      %6636 = vmatpush.msra.mxu0 %v5627
      %6637 = vmatpush.msra.mxu0 %v5626
      %6638 = vmatpush.msra.mxu0 %v5625
      %6639 = vmatpush.msra.mxu0 %v5624
      %6640 = vmatpush.msra.mxu0 %v5623
      %6641 = vmatpush.msra.mxu0 %v5622
      %6642 = vmatpush.msra.mxu0 %v5621
      %6643 = vmatpush.msra.mxu0 %v5620
      %6644 = vmatpush.msra.mxu0 %v5619
      %6645 = vmatpush.msra.mxu0 %v5618
      %6646 = vmatpush.msra.mxu0 %v5617
      %6647 = vmatpush.msra.mxu0 %v5616
      %6648 = vmatpush.msra.mxu0 %v5615
      %6649 = vmatpush.msra.mxu0 %v5614
      %6650 = vmatpush.msra.mxu0 %v5613
      %6651 = vmatmul.f32.gmra.mxu0 %v5453
      %v6652 = vpop.f32.mrf.mxu0
      %v6653 = vadd.f32 %v6540, %v6652
      %6654 = vmatmul.f32.gmra.mxu0 %v5454
      %v6655 = vpop.f32.mrf.mxu0
      %v6656 = vadd.f32 %v6543, %v6655
      %6657 = vmatmul.f32.gmra.mxu0 %v5455
      %v6658 = vpop.f32.mrf.mxu0
      %v6659 = vadd.f32 %v6546, %v6658
      %6660 = vmatmul.f32.gmra.mxu0 %v5456
      %v6661 = vpop.f32.mrf.mxu0
      %v6662 = vadd.f32 %v6549, %v6661
      %6663 = vmatmul.f32.gmra.mxu0 %v5457
      %v6664 = vpop.f32.mrf.mxu0
      %v6665 = vadd.f32 %v6552, %v6664
      %6666 = vmatmul.f32.gmra.mxu0 %v5458
      %v6667 = vpop.f32.mrf.mxu0
      %v6668 = vadd.f32 %v6555, %v6667
      %6669 = vmatmul.f32.gmra.mxu0 %v5459
      %v6670 = vpop.f32.mrf.mxu0
      %v6671 = vadd.f32 %v6558, %v6670
      %6672 = vmatmul.f32.gmra.mxu0 %v5460
      %v6673 = vpop.f32.mrf.mxu0
      %v6674 = vadd.f32 %v6561, %v6673
      %6675 = vmatmul.f32.gmra.mxu0 %v5461
      %v6676 = vpop.f32.mrf.mxu0
      %v6677 = vadd.f32 %v6564, %v6676
      %6678 = vmatmul.f32.gmra.mxu0 %v5462
      %v6679 = vpop.f32.mrf.mxu0
      %v6680 = vadd.f32 %v6567, %v6679
      %6681 = vmatmul.f32.gmra.mxu0 %v5463
      %v6682 = vpop.f32.mrf.mxu0
      %v6683 = vadd.f32 %v6570, %v6682
      %6684 = vmatmul.f32.gmra.mxu0 %v5464
      %v6685 = vpop.f32.mrf.mxu0
      %v6686 = vadd.f32 %v6573, %v6685
      %6687 = vmatmul.f32.gmra.mxu0 %v5465
      %v6688 = vpop.f32.mrf.mxu0
      %v6689 = vadd.f32 %v6576, %v6688
      %6690 = vmatmul.f32.gmra.mxu0 %v5466
      %v6691 = vpop.f32.mrf.mxu0
      %v6692 = vadd.f32 %v6579, %v6691
      %6693 = vmatmul.f32.gmra.mxu0 %v5467
      %v6694 = vpop.f32.mrf.mxu0
      %v6695 = vadd.f32 %v6582, %v6694
      %6696 = vmatmul.f32.gmra.mxu0 %v5468
      %v6697 = vpop.f32.mrf.mxu0
      %v6698 = vadd.f32 %v6585, %v6697
      %6699 = vmatmul.f32.gmra.mxu0 %v5469
      %v6700 = vpop.f32.mrf.mxu0
      %v6701 = vadd.f32 %v6588, %v6700
      %6702 = vmatmul.f32.gmra.mxu0 %v5470
      %v6703 = vpop.f32.mrf.mxu0
      %v6704 = vadd.f32 %v6591, %v6703
      %6705 = vmatmul.f32.gmra.mxu0 %v5471
      %v6706 = vpop.f32.mrf.mxu0
      %v6707 = vadd.f32 %v6594, %v6706
      %6708 = vmatmul.f32.gmra.mxu0 %v5472
      %v6709 = vpop.f32.mrf.mxu0
      %v6710 = vadd.f32 %v6597, %v6709
      %6711 = vmatmul.f32.gmra.mxu0 %v5473
      %v6712 = vpop.f32.mrf.mxu0
      %v6713 = vadd.f32 %v6600, %v6712
      %6714 = vmatmul.f32.gmra.mxu0 %v5474
      %v6715 = vpop.f32.mrf.mxu0
      %v6716 = vadd.f32 %v6603, %v6715
      %6717 = vmatmul.f32.gmra.mxu0 %v5475
      %v6718 = vpop.f32.mrf.mxu0
      %v6719 = vadd.f32 %v6606, %v6718
      %6720 = vmatmul.f32.gmra.mxu0 %v5476
      %v6721 = vpop.f32.mrf.mxu0
      %v6722 = vadd.f32 %v6609, %v6721
      %6723 = vmatmul.f32.gmra.mxu0 %v5477
      %v6724 = vpop.f32.mrf.mxu0
      %v6725 = vadd.f32 %v6612, %v6724
      %6726 = vmatmul.f32.gmra.mxu0 %v5478
      %v6727 = vpop.f32.mrf.mxu0
      %v6728 = vadd.f32 %v6615, %v6727
      %6729 = vmatmul.f32.gmra.mxu0 %v5479
      %v6730 = vpop.f32.mrf.mxu0
      %v6731 = vadd.f32 %v6618, %v6730
      %6732 = vmatmul.f32.gmra.mxu0 %v5480
      %v6733 = vpop.f32.mrf.mxu0
      %v6734 = vadd.f32 %v6621, %v6733
      %6735 = vmatmul.f32.gmra.mxu0 %v5481
      %v6736 = vpop.f32.mrf.mxu0
      %v6737 = vadd.f32 %v6624, %v6736
      %6738 = vmatmul.f32.gmra.mxu0 %v5482
      %v6739 = vpop.f32.mrf.mxu0
      %v6740 = vadd.f32 %v6627, %v6739
      %6741 = vmatmul.f32.gmra.mxu0 %v5483
      %v6742 = vpop.f32.mrf.mxu0
      %v6743 = vadd.f32 %v6630, %v6742
      %6744 = vmatmul.f32.gmra.mxu0 %v5484
      %v6745 = vpop.f32.mrf.mxu0
      %v6746 = vadd.f32 %v6633, %v6745
      %6747 = vdwg.mxu0
      %6748 = vmatpush.msra.mxu0 0.0
      %6749 = vmatpush.msra.mxu0 0.0
      %6750 = vmatpush.msra.mxu0 0.0
      %6751 = vmatpush.msra.mxu0 0.0
      %6752 = vmatpush.msra.mxu0 0.0
      %6753 = vmatpush.msra.mxu0 0.0
      %6754 = vmatpush.msra.mxu0 0.0
      %6755 = vmatpush.msra.mxu0 0.0
      %6756 = vmatpush.msra.mxu0 0.0
      %6757 = vmatpush.msra.mxu0 0.0
      %6758 = vmatpush.msra.mxu0 %v5634
      %6759 = vmatpush.msra.mxu0 %v5633
      %6760 = vmatpush.msra.mxu0 %v5632
      %6761 = vmatpush.msra.mxu0 %v5631
      %6762 = vmatpush.msra.mxu0 %v5630
      %6763 = vmatpush.msra.mxu0 %v5629
      %6764 = vmatmul.f32.gmra.mxu0 %v5636
      %v6765 = vpop.f32.mrf.mxu0
      %v6766 = vadd.f32 %v6653, %v6765
      %6767 = vmatmul.f32.gmra.mxu0 %v5639
      %v6768 = vpop.f32.mrf.mxu0
      %v6769 = vadd.f32 %v6656, %v6768
      %6770 = vmatmul.f32.gmra.mxu0 %v5642
      %v6771 = vpop.f32.mrf.mxu0
      %v6772 = vadd.f32 %v6659, %v6771
      %6773 = vmatmul.f32.gmra.mxu0 %v5645
      %v6774 = vpop.f32.mrf.mxu0
      %v6775 = vadd.f32 %v6662, %v6774
      %6776 = vmatmul.f32.gmra.mxu0 %v5648
      %v6777 = vpop.f32.mrf.mxu0
      %v6778 = vadd.f32 %v6665, %v6777
      %6779 = vmatmul.f32.gmra.mxu0 %v5651
      %v6780 = vpop.f32.mrf.mxu0
      %v6781 = vadd.f32 %v6668, %v6780
      %6782 = vmatmul.f32.gmra.mxu0 %v5654
      %v6783 = vpop.f32.mrf.mxu0
      %v6784 = vadd.f32 %v6671, %v6783
      %6785 = vmatmul.f32.gmra.mxu0 %v5657
      %v6786 = vpop.f32.mrf.mxu0
      %v6787 = vadd.f32 %v6674, %v6786
      %6788 = vmatmul.f32.gmra.mxu0 %v5660
      %v6789 = vpop.f32.mrf.mxu0
      %v6790 = vadd.f32 %v6677, %v6789
      %6791 = vmatmul.f32.gmra.mxu0 %v5663
      %v6792 = vpop.f32.mrf.mxu0
      %v6793 = vadd.f32 %v6680, %v6792
      %6794 = vmatmul.f32.gmra.mxu0 %v5666
      %v6795 = vpop.f32.mrf.mxu0
      %v6796 = vadd.f32 %v6683, %v6795
      %6797 = vmatmul.f32.gmra.mxu0 %v5669
      %v6798 = vpop.f32.mrf.mxu0
      %v6799 = vadd.f32 %v6686, %v6798
      %6800 = vmatmul.f32.gmra.mxu0 %v5672
      %v6801 = vpop.f32.mrf.mxu0
      %v6802 = vadd.f32 %v6689, %v6801
      %6803 = vmatmul.f32.gmra.mxu0 %v5675
      %v6804 = vpop.f32.mrf.mxu0
      %v6805 = vadd.f32 %v6692, %v6804
      %6806 = vmatmul.f32.gmra.mxu0 %v5678
      %v6807 = vpop.f32.mrf.mxu0
      %v6808 = vadd.f32 %v6695, %v6807
      %6809 = vmatmul.f32.gmra.mxu0 %v5681
      %v6810 = vpop.f32.mrf.mxu0
      %v6811 = vadd.f32 %v6698, %v6810
      %6812 = vmatmul.f32.gmra.mxu0 %v5684
      %v6813 = vpop.f32.mrf.mxu0
      %v6814 = vadd.f32 %v6701, %v6813
      %6815 = vmatmul.f32.gmra.mxu0 %v5687
      %v6816 = vpop.f32.mrf.mxu0
      %v6817 = vadd.f32 %v6704, %v6816
      %6818 = vmatmul.f32.gmra.mxu0 %v5690
      %v6819 = vpop.f32.mrf.mxu0
      %v6820 = vadd.f32 %v6707, %v6819
      %6821 = vmatmul.f32.gmra.mxu0 %v5693
      %v6822 = vpop.f32.mrf.mxu0
      %v6823 = vadd.f32 %v6710, %v6822
      %6824 = vmatmul.f32.gmra.mxu0 %v5696
      %v6825 = vpop.f32.mrf.mxu0
      %v6826 = vadd.f32 %v6713, %v6825
      %6827 = vmatmul.f32.gmra.mxu0 %v5699
      %v6828 = vpop.f32.mrf.mxu0
      %v6829 = vadd.f32 %v6716, %v6828
      %6830 = vmatmul.f32.gmra.mxu0 %v5702
      %v6831 = vpop.f32.mrf.mxu0
      %v6832 = vadd.f32 %v6719, %v6831
      %6833 = vmatmul.f32.gmra.mxu0 %v5705
      %v6834 = vpop.f32.mrf.mxu0
      %v6835 = vadd.f32 %v6722, %v6834
      %6836 = vmatmul.f32.gmra.mxu0 %v5708
      %v6837 = vpop.f32.mrf.mxu0
      %v6838 = vadd.f32 %v6725, %v6837
      %6839 = vmatmul.f32.gmra.mxu0 %v5711
      %v6840 = vpop.f32.mrf.mxu0
      %v6841 = vadd.f32 %v6728, %v6840
      %6842 = vmatmul.f32.gmra.mxu0 %v5714
      %v6843 = vpop.f32.mrf.mxu0
      %v6844 = vadd.f32 %v6731, %v6843
      %6845 = vmatmul.f32.gmra.mxu0 %v5717
      %v6846 = vpop.f32.mrf.mxu0
      %v6847 = vadd.f32 %v6734, %v6846
      %6848 = vmatmul.f32.gmra.mxu0 %v5720
      %v6849 = vpop.f32.mrf.mxu0
      %v6850 = vadd.f32 %v6737, %v6849
      %6851 = vmatmul.f32.gmra.mxu0 %v5723
      %v6852 = vpop.f32.mrf.mxu0
      %v6853 = vadd.f32 %v6740, %v6852
      %6854 = vmatmul.f32.gmra.mxu0 %v5726
      %v6855 = vpop.f32.mrf.mxu0
      %v6856 = vadd.f32 %v6743, %v6855
      %6857 = vmatmul.f32.gmra.mxu0 %v5729
      %v6858 = vpop.f32.mrf.mxu0
      %v6859 = vadd.f32 %v6746, %v6858
      %6860 = vdwg.mxu0
      %v6861 = vmax.f32 %v6766, 0.0
      %v6862 = vmax.f32 %v6769, 0.0
      %v6863 = vmax.f32 %v6772, 0.0
      %v6864 = vmax.f32 %v6775, 0.0
      %v6865 = vmax.f32 %v6778, 0.0
      %v6866 = vmax.f32 %v6781, 0.0
      %v6867 = vmax.f32 %v6784, 0.0
      %v6868 = vmax.f32 %v6787, 0.0
      %v6869 = vmax.f32 %v6790, 0.0
      %v6870 = vmax.f32 %v6793, 0.0
      %v6871 = vmax.f32 %v6796, 0.0
      %v6872 = vmax.f32 %v6799, 0.0
      %v6873 = vmax.f32 %v6802, 0.0
      %v6874 = vmax.f32 %v6805, 0.0
      %v6875 = vmax.f32 %v6808, 0.0
      %v6876 = vmax.f32 %v6811, 0.0
      %v6877 = vmax.f32 %v6814, 0.0
      %v6878 = vmax.f32 %v6817, 0.0
      %v6879 = vmax.f32 %v6820, 0.0
      %v6880 = vmax.f32 %v6823, 0.0
      %v6881 = vmax.f32 %v6826, 0.0
      %v6882 = vmax.f32 %v6829, 0.0
      %v6883 = vmax.f32 %v6832, 0.0
      %v6884 = vmax.f32 %v6835, 0.0
      %v6885 = vmax.f32 %v6838, 0.0
      %v6886 = vmax.f32 %v6841, 0.0
      %v6887 = vmax.f32 %v6844, 0.0
      %v6888 = vmax.f32 %v6847, 0.0
      %v6889 = vmax.f32 %v6850, 0.0
      %v6890 = vmax.f32 %v6853, 0.0
      %v6891 = vmax.f32 %v6856, 0.0
      %v6892 = vmax.f32 %v6859, 0.0
      %v6893 = vld [vmem:[#allocation3 + $0x7] sm:$0xff]
      %v6894 = vld [vmem:[#allocation3 + $0xf] sm:$0xff]
      %v6895 = vld [vmem:[#allocation3 + $0x27] sm:$0xff]
      %v6896 = vld [vmem:[#allocation3 + $0x2f] sm:$0xff]
      %v6897 = vld [vmem:[#allocation3 + $0x47] sm:$0xff]
      %v6898 = vld [vmem:[#allocation3 + $0x4f] sm:$0xff]
      %v6899 = vld [vmem:[#allocation3 + $0x67] sm:$0xff]
      %v6900 = vld [vmem:[#allocation3 + $0x6f] sm:$0xff]
      %v6901 = vld [vmem:[#allocation3 + $0x87] sm:$0xff]
      %v6902 = vld [vmem:[#allocation3 + $0x8f] sm:$0xff]
      %v6903 = vld [vmem:[#allocation3 + $0xa7] sm:$0xff]
      %v6904 = vld [vmem:[#allocation3 + $0xaf] sm:$0xff]
      %v6905 = vld [vmem:[#allocation3 + $0xc7] sm:$0xff]
      %v6906 = vld [vmem:[#allocation3 + $0xcf] sm:$0xff]
      %v6907 = vld [vmem:[#allocation3 + $0xe7] sm:$0xff]
      %v6908 = vld [vmem:[#allocation3 + $0xef] sm:$0xff]
      %v6909 = vld [vmem:[#allocation3 + $0x107] sm:$0xff]
      %v6910 = vld [vmem:[#allocation3 + $0x10f] sm:$0xff]
      %v6911 = vld [vmem:[#allocation3 + $0x127] sm:$0xff]
      %v6912 = vld [vmem:[#allocation3 + $0x12f] sm:$0xff]
      %v6913 = vld [vmem:[#allocation3 + $0x147] sm:$0xff]
      %v6914 = vld [vmem:[#allocation3 + $0x14f] sm:$0xff]
      %v6915 = vld [vmem:[#allocation3 + $0x167] sm:$0xff]
      %v6916 = vld [vmem:[#allocation3 + $0x16f] sm:$0xff]
      %v6917 = vld [vmem:[#allocation3 + $0x187] sm:$0xff]
      %v6918 = vld [vmem:[#allocation3 + $0x18f] sm:$0xff]
      %v6919 = vld [vmem:[#allocation3 + $0x1a7] sm:$0xff]
      %v6920 = vld [vmem:[#allocation3 + $0x1af] sm:$0xff]
      %v6921 = vld [vmem:[#allocation3 + $0x1c7] sm:$0xff]
      %v6922 = vld [vmem:[#allocation3 + $0x1cf] sm:$0xff]
      %v6923 = vld [vmem:[#allocation3 + $0x1e7] sm:$0xff]
      %v6924 = vld [vmem:[#allocation3 + $0x1ef] sm:$0xff]
      %v6925 = vld [vmem:[#allocation3 + $0x8] sm:$0xff]
      %v6926 = vld [vmem:[#allocation3 + $0x10] sm:$0xff]
      %v6927 = vld [vmem:[#allocation3 + $0x28] sm:$0xff]
      %v6928 = vld [vmem:[#allocation3 + $0x30] sm:$0xff]
      %v6929 = vld [vmem:[#allocation3 + $0x48] sm:$0xff]
      %v6930 = vld [vmem:[#allocation3 + $0x50] sm:$0xff]
      %v6931 = vld [vmem:[#allocation3 + $0x68] sm:$0xff]
      %v6932 = vld [vmem:[#allocation3 + $0x70] sm:$0xff]
      %v6933 = vld [vmem:[#allocation3 + $0x88] sm:$0xff]
      %v6934 = vld [vmem:[#allocation3 + $0x90] sm:$0xff]
      %v6935 = vld [vmem:[#allocation3 + $0xa8] sm:$0xff]
      %v6936 = vld [vmem:[#allocation3 + $0xb0] sm:$0xff]
      %v6937 = vld [vmem:[#allocation3 + $0xc8] sm:$0xff]
      %v6938 = vld [vmem:[#allocation3 + $0xd0] sm:$0xff]
      %v6939 = vld [vmem:[#allocation3 + $0xe8] sm:$0xff]
      %v6940 = vld [vmem:[#allocation3 + $0xf0] sm:$0xff]
      %v6941 = vld [vmem:[#allocation3 + $0x108] sm:$0xff]
      %v6942 = vld [vmem:[#allocation3 + $0x110] sm:$0xff]
      %v6943 = vld [vmem:[#allocation3 + $0x128] sm:$0xff]
      %v6944 = vld [vmem:[#allocation3 + $0x130] sm:$0xff]
      %v6945 = vld [vmem:[#allocation3 + $0x148] sm:$0xff]
      %v6946 = vld [vmem:[#allocation3 + $0x150] sm:$0xff]
      %v6947 = vld [vmem:[#allocation3 + $0x168] sm:$0xff]
      %v6948 = vld [vmem:[#allocation3 + $0x170] sm:$0xff]
      %v6949 = vld [vmem:[#allocation3 + $0x188] sm:$0xff]
      %v6950 = vld [vmem:[#allocation3 + $0x190] sm:$0xff]
      %v6951 = vld [vmem:[#allocation3 + $0x1a8] sm:$0xff]
      %v6952 = vld [vmem:[#allocation3 + $0x1b0] sm:$0xff]
      %v6953 = vld [vmem:[#allocation3 + $0x1c8] sm:$0xff]
      %v6954 = vld [vmem:[#allocation3 + $0x1d0] sm:$0xff]
      %v6955 = vld [vmem:[#allocation3 + $0x1e8] sm:$0xff]
      %v6956 = vld [vmem:[#allocation3 + $0x1f0] sm:$0xff]
      %v6957 = vld [vmem:[#allocation3 + $0x9] sm:$0xff]
      %v6958 = vld [vmem:[#allocation3 + $0x11] sm:$0xff]
      %v6959 = vld [vmem:[#allocation3 + $0x29] sm:$0xff]
      %v6960 = vld [vmem:[#allocation3 + $0x31] sm:$0xff]
      %v6961 = vld [vmem:[#allocation3 + $0x49] sm:$0xff]
      %v6962 = vld [vmem:[#allocation3 + $0x51] sm:$0xff]
      %v6963 = vld [vmem:[#allocation3 + $0x69] sm:$0xff]
      %v6964 = vld [vmem:[#allocation3 + $0x71] sm:$0xff]
      %v6965 = vld [vmem:[#allocation3 + $0x89] sm:$0xff]
      %v6966 = vld [vmem:[#allocation3 + $0x91] sm:$0xff]
      %v6967 = vld [vmem:[#allocation3 + $0xa9] sm:$0xff]
      %v6968 = vld [vmem:[#allocation3 + $0xb1] sm:$0xff]
      %v6969 = vld [vmem:[#allocation3 + $0xc9] sm:$0xff]
      %v6970 = vld [vmem:[#allocation3 + $0xd1] sm:$0xff]
      %v6971 = vld [vmem:[#allocation3 + $0xe9] sm:$0xff]
      %v6972 = vld [vmem:[#allocation3 + $0xf1] sm:$0xff]
      %v6973 = vld [vmem:[#allocation3 + $0x109] sm:$0xff]
      %v6974 = vld [vmem:[#allocation3 + $0x111] sm:$0xff]
      %v6975 = vld [vmem:[#allocation3 + $0x129] sm:$0xff]
      %v6976 = vld [vmem:[#allocation3 + $0x131] sm:$0xff]
      %v6977 = vld [vmem:[#allocation3 + $0x149] sm:$0xff]
      %v6978 = vld [vmem:[#allocation3 + $0x151] sm:$0xff]
      %v6979 = vld [vmem:[#allocation3 + $0x169] sm:$0xff]
      %v6980 = vld [vmem:[#allocation3 + $0x171] sm:$0xff]
      %v6981 = vld [vmem:[#allocation3 + $0x189] sm:$0xff]
      %v6982 = vld [vmem:[#allocation3 + $0x191] sm:$0xff]
      %v6983 = vld [vmem:[#allocation3 + $0x1a9] sm:$0xff]
      %v6984 = vld [vmem:[#allocation3 + $0x1b1] sm:$0xff]
      %v6985 = vld [vmem:[#allocation3 + $0x1c9] sm:$0xff]
      %v6986 = vld [vmem:[#allocation3 + $0x1d1] sm:$0xff]
      %v6987 = vld [vmem:[#allocation3 + $0x1e9] sm:$0xff]
      %v6988 = vld [vmem:[#allocation3 + $0x1f1] sm:$0xff]
      %v6989 = vld [vmem:[%s1252 + $0x7] sm:$0xff]
      %v6990 = vld [vmem:[%s1252 + $0xf] sm:$0xff]
      %v6991 = vld [vmem:[%s1252 + $0x27] sm:$0xff]
      %v6992 = vld [vmem:[%s1252 + $0x2f] sm:$0xff]
      %v6993 = vld [vmem:[%s1252 + $0x47] sm:$0xff]
      %v6994 = vld [vmem:[%s1252 + $0x4f] sm:$0xff]
      %v6995 = vld [vmem:[%s1252 + $0x67] sm:$0xff]
      %v6996 = vld [vmem:[%s1252 + $0x6f] sm:$0xff]
      %v6997 = vld [vmem:[%s1252 + $0x87] sm:$0xff]
      %v6998 = vld [vmem:[%s1252 + $0x8f] sm:$0xff]
      %v6999 = vld [vmem:[%s1252 + $0xa7] sm:$0xff]
      %v7000 = vld [vmem:[%s1252 + $0xaf] sm:$0xff]
      %v7001 = vld [vmem:[%s1252 + $0xc7] sm:$0xff]
      %v7002 = vld [vmem:[%s1252 + $0xcf] sm:$0xff]
      %v7003 = vld [vmem:[%s1252 + $0xe7] sm:$0xff]
      %v7004 = vld [vmem:[%s1252 + $0xef] sm:$0xff]
      %v7005 = vld [vmem:[%s1252 + $0x107] sm:$0xff]
      %v7006 = vld [vmem:[%s1252 + $0x10f] sm:$0xff]
      %v7007 = vld [vmem:[%s1252 + $0x127] sm:$0xff]
      %v7008 = vld [vmem:[%s1252 + $0x12f] sm:$0xff]
      %v7009 = vld [vmem:[%s1252 + $0x147] sm:$0xff]
      %v7010 = vld [vmem:[%s1252 + $0x14f] sm:$0xff]
      %v7011 = vld [vmem:[%s1252 + $0x167] sm:$0xff]
      %v7012 = vld [vmem:[%s1252 + $0x16f] sm:$0xff]
      %v7013 = vld [vmem:[%s1252 + $0x187] sm:$0xff]
      %v7014 = vld [vmem:[%s1252 + $0x18f] sm:$0xff]
      %v7015 = vld [vmem:[%s1252 + $0x1a7] sm:$0xff]
      %v7016 = vld [vmem:[%s1252 + $0x1af] sm:$0xff]
      %v7017 = vld [vmem:[%s1252 + $0x1c7] sm:$0xff]
      %v7018 = vld [vmem:[%s1252 + $0x1cf] sm:$0xff]
      %v7019 = vld [vmem:[%s1252 + $0x1e7] sm:$0xff]
      %v7020 = vld [vmem:[%s1252 + $0x1ef] sm:$0xff]
      %v7021 = vld [vmem:[%s1252 + $0x8] sm:$0xff]
      %v7022 = vld [vmem:[%s1252 + $0x10] sm:$0xff]
      %v7023 = vld [vmem:[%s1252 + $0x28] sm:$0xff]
      %v7024 = vld [vmem:[%s1252 + $0x30] sm:$0xff]
      %v7025 = vld [vmem:[%s1252 + $0x48] sm:$0xff]
      %v7026 = vld [vmem:[%s1252 + $0x50] sm:$0xff]
      %v7027 = vld [vmem:[%s1252 + $0x68] sm:$0xff]
      %v7028 = vld [vmem:[%s1252 + $0x70] sm:$0xff]
      %v7029 = vld [vmem:[%s1252 + $0x88] sm:$0xff]
      %v7030 = vld [vmem:[%s1252 + $0x90] sm:$0xff]
      %v7031 = vld [vmem:[%s1252 + $0xa8] sm:$0xff]
      %v7032 = vld [vmem:[%s1252 + $0xb0] sm:$0xff]
      %v7033 = vld [vmem:[%s1252 + $0xc8] sm:$0xff]
      %v7034 = vld [vmem:[%s1252 + $0xd0] sm:$0xff]
      %v7035 = vld [vmem:[%s1252 + $0xe8] sm:$0xff]
      %v7036 = vld [vmem:[%s1252 + $0xf0] sm:$0xff]
      %v7037 = vld [vmem:[%s1252 + $0x108] sm:$0xff]
      %v7038 = vld [vmem:[%s1252 + $0x110] sm:$0xff]
      %v7039 = vld [vmem:[%s1252 + $0x128] sm:$0xff]
      %v7040 = vld [vmem:[%s1252 + $0x130] sm:$0xff]
      %v7041 = vld [vmem:[%s1252 + $0x148] sm:$0xff]
      %v7042 = vld [vmem:[%s1252 + $0x150] sm:$0xff]
      %v7043 = vld [vmem:[%s1252 + $0x168] sm:$0xff]
      %v7044 = vld [vmem:[%s1252 + $0x170] sm:$0xff]
      %v7045 = vld [vmem:[%s1252 + $0x188] sm:$0xff]
      %v7046 = vld [vmem:[%s1252 + $0x190] sm:$0xff]
      %v7047 = vld [vmem:[%s1252 + $0x1a8] sm:$0xff]
      %v7048 = vld [vmem:[%s1252 + $0x1b0] sm:$0xff]
      %v7049 = vld [vmem:[%s1252 + $0x1c8] sm:$0xff]
      %v7050 = vld [vmem:[%s1252 + $0x1d0] sm:$0xff]
      %v7051 = vld [vmem:[%s1252 + $0x1e8] sm:$0xff]
      %v7052 = vld [vmem:[%s1252 + $0x1f0] sm:$0xff]
      %v7053 = vld [vmem:[%s1252 + $0x9] sm:$0xff]
      %v7054 = vld [vmem:[%s1252 + $0x11] sm:$0xff]
      %v7055 = vld [vmem:[%s1252 + $0x29] sm:$0xff]
      %v7056 = vld [vmem:[%s1252 + $0x31] sm:$0xff]
      %v7057 = vld [vmem:[%s1252 + $0x49] sm:$0xff]
      %v7058 = vld [vmem:[%s1252 + $0x51] sm:$0xff]
      %v7059 = vld [vmem:[%s1252 + $0x69] sm:$0xff]
      %v7060 = vld [vmem:[%s1252 + $0x71] sm:$0xff]
      %v7061 = vld [vmem:[%s1252 + $0x89] sm:$0xff]
      %v7062 = vld [vmem:[%s1252 + $0x91] sm:$0xff]
      %v7063 = vld [vmem:[%s1252 + $0xa9] sm:$0xff]
      %v7064 = vld [vmem:[%s1252 + $0xb1] sm:$0xff]
      %v7065 = vld [vmem:[%s1252 + $0xc9] sm:$0xff]
      %v7066 = vld [vmem:[%s1252 + $0xd1] sm:$0xff]
      %v7067 = vld [vmem:[%s1252 + $0xe9] sm:$0xff]
      %v7068 = vld [vmem:[%s1252 + $0xf1] sm:$0xff]
      %v7069 = vld [vmem:[%s1252 + $0x109] sm:$0xff]
      %v7070 = vld [vmem:[%s1252 + $0x111] sm:$0xff]
      %v7071 = vld [vmem:[%s1252 + $0x129] sm:$0xff]
      %v7072 = vld [vmem:[%s1252 + $0x131] sm:$0xff]
      %v7073 = vld [vmem:[%s1252 + $0x149] sm:$0xff]
      %v7074 = vld [vmem:[%s1252 + $0x151] sm:$0xff]
      %v7075 = vld [vmem:[%s1252 + $0x169] sm:$0xff]
      %v7076 = vld [vmem:[%s1252 + $0x171] sm:$0xff]
      %v7077 = vld [vmem:[%s1252 + $0x189] sm:$0xff]
      %v7078 = vld [vmem:[%s1252 + $0x191] sm:$0xff]
      %v7079 = vld [vmem:[%s1252 + $0x1a9] sm:$0xff]
      %v7080 = vld [vmem:[%s1252 + $0x1b1] sm:$0xff]
      %v7081 = vld [vmem:[%s1252 + $0x1c9] sm:$0xff]
      %v7082 = vld [vmem:[%s1252 + $0x1d1] sm:$0xff]
      %v7083 = vld [vmem:[%s1252 + $0x1e9] sm:$0xff]
      %v7084 = vld [vmem:[%s1252 + $0x1f1] sm:$0xff]
      %s7085 = scalar_lea.vmem [#allocation3], 64
      %v7086 = vld [vmem:[%s7085 + $0x7] sm:$0xff]
      %v7087 = vld [vmem:[%s7085 + $0xf] sm:$0xff]
      %v7088 = vld [vmem:[%s7085 + $0x27] sm:$0xff]
      %v7089 = vld [vmem:[%s7085 + $0x2f] sm:$0xff]
      %v7090 = vld [vmem:[%s7085 + $0x47] sm:$0xff]
      %v7091 = vld [vmem:[%s7085 + $0x4f] sm:$0xff]
      %v7092 = vld [vmem:[%s7085 + $0x67] sm:$0xff]
      %v7093 = vld [vmem:[%s7085 + $0x6f] sm:$0xff]
      %v7094 = vld [vmem:[%s7085 + $0x87] sm:$0xff]
      %v7095 = vld [vmem:[%s7085 + $0x8f] sm:$0xff]
      %v7096 = vld [vmem:[%s7085 + $0xa7] sm:$0xff]
      %v7097 = vld [vmem:[%s7085 + $0xaf] sm:$0xff]
      %v7098 = vld [vmem:[%s7085 + $0xc7] sm:$0xff]
      %v7099 = vld [vmem:[%s7085 + $0xcf] sm:$0xff]
      %v7100 = vld [vmem:[%s7085 + $0xe7] sm:$0xff]
      %v7101 = vld [vmem:[%s7085 + $0xef] sm:$0xff]
      %v7102 = vld [vmem:[%s7085 + $0x107] sm:$0xff]
      %v7103 = vld [vmem:[%s7085 + $0x10f] sm:$0xff]
      %v7104 = vld [vmem:[%s7085 + $0x127] sm:$0xff]
      %v7105 = vld [vmem:[%s7085 + $0x12f] sm:$0xff]
      %v7106 = vld [vmem:[%s7085 + $0x147] sm:$0xff]
      %v7107 = vld [vmem:[%s7085 + $0x14f] sm:$0xff]
      %v7108 = vld [vmem:[%s7085 + $0x167] sm:$0xff]
      %v7109 = vld [vmem:[%s7085 + $0x16f] sm:$0xff]
      %v7110 = vld [vmem:[%s7085 + $0x187] sm:$0xff]
      %v7111 = vld [vmem:[%s7085 + $0x18f] sm:$0xff]
      %v7112 = vld [vmem:[%s7085 + $0x1a7] sm:$0xff]
      %v7113 = vld [vmem:[%s7085 + $0x1af] sm:$0xff]
      %v7114 = vld [vmem:[%s7085 + $0x1c7] sm:$0xff]
      %v7115 = vld [vmem:[%s7085 + $0x1cf] sm:$0xff]
      %v7116 = vld [vmem:[%s7085 + $0x1e7] sm:$0xff]
      %v7117 = vld [vmem:[%s7085 + $0x1ef] sm:$0xff]
      %v7118 = vld [vmem:[%s7085 + $0x8] sm:$0xff]
      %v7119 = vld [vmem:[%s7085 + $0x10] sm:$0xff]
      %v7120 = vld [vmem:[%s7085 + $0x28] sm:$0xff]
      %v7121 = vld [vmem:[%s7085 + $0x30] sm:$0xff]
      %v7122 = vld [vmem:[%s7085 + $0x48] sm:$0xff]
      %v7123 = vld [vmem:[%s7085 + $0x50] sm:$0xff]
      %v7124 = vld [vmem:[%s7085 + $0x68] sm:$0xff]
      %v7125 = vld [vmem:[%s7085 + $0x70] sm:$0xff]
      %v7126 = vld [vmem:[%s7085 + $0x88] sm:$0xff]
      %v7127 = vld [vmem:[%s7085 + $0x90] sm:$0xff]
      %v7128 = vld [vmem:[%s7085 + $0xa8] sm:$0xff]
      %v7129 = vld [vmem:[%s7085 + $0xb0] sm:$0xff]
      %v7130 = vld [vmem:[%s7085 + $0xc8] sm:$0xff]
      %v7131 = vld [vmem:[%s7085 + $0xd0] sm:$0xff]
      %v7132 = vld [vmem:[%s7085 + $0xe8] sm:$0xff]
      %v7133 = vld [vmem:[%s7085 + $0xf0] sm:$0xff]
      %v7134 = vld [vmem:[%s7085 + $0x108] sm:$0xff]
      %v7135 = vld [vmem:[%s7085 + $0x110] sm:$0xff]
      %v7136 = vld [vmem:[%s7085 + $0x128] sm:$0xff]
      %v7137 = vld [vmem:[%s7085 + $0x130] sm:$0xff]
      %v7138 = vld [vmem:[%s7085 + $0x148] sm:$0xff]
      %v7139 = vld [vmem:[%s7085 + $0x150] sm:$0xff]
      %v7140 = vld [vmem:[%s7085 + $0x168] sm:$0xff]
      %v7141 = vld [vmem:[%s7085 + $0x170] sm:$0xff]
      %v7142 = vld [vmem:[%s7085 + $0x188] sm:$0xff]
      %v7143 = vld [vmem:[%s7085 + $0x190] sm:$0xff]
      %v7144 = vld [vmem:[%s7085 + $0x1a8] sm:$0xff]
      %v7145 = vld [vmem:[%s7085 + $0x1b0] sm:$0xff]
      %v7146 = vld [vmem:[%s7085 + $0x1c8] sm:$0xff]
      %v7147 = vld [vmem:[%s7085 + $0x1d0] sm:$0xff]
      %v7148 = vld [vmem:[%s7085 + $0x1e8] sm:$0xff]
      %v7149 = vld [vmem:[%s7085 + $0x1f0] sm:$0xff]
      %v7150 = vld [vmem:[%s7085 + $0x9] sm:$0xff]
      %v7151 = vld [vmem:[%s7085 + $0x11] sm:$0xff]
      %v7152 = vld [vmem:[%s7085 + $0x29] sm:$0xff]
      %v7153 = vld [vmem:[%s7085 + $0x31] sm:$0xff]
      %v7154 = vld [vmem:[%s7085 + $0x49] sm:$0xff]
      %v7155 = vld [vmem:[%s7085 + $0x51] sm:$0xff]
      %v7156 = vld [vmem:[%s7085 + $0x69] sm:$0xff]
      %v7157 = vld [vmem:[%s7085 + $0x71] sm:$0xff]
      %v7158 = vld [vmem:[%s7085 + $0x89] sm:$0xff]
      %v7159 = vld [vmem:[%s7085 + $0x91] sm:$0xff]
      %v7160 = vld [vmem:[%s7085 + $0xa9] sm:$0xff]
      %v7161 = vld [vmem:[%s7085 + $0xb1] sm:$0xff]
      %v7162 = vld [vmem:[%s7085 + $0xc9] sm:$0xff]
      %v7163 = vld [vmem:[%s7085 + $0xd1] sm:$0xff]
      %v7164 = vld [vmem:[%s7085 + $0xe9] sm:$0xff]
      %v7165 = vld [vmem:[%s7085 + $0xf1] sm:$0xff]
      %v7166 = vld [vmem:[%s7085 + $0x109] sm:$0xff]
      %v7167 = vld [vmem:[%s7085 + $0x111] sm:$0xff]
      %v7168 = vld [vmem:[%s7085 + $0x129] sm:$0xff]
      %v7169 = vld [vmem:[%s7085 + $0x131] sm:$0xff]
      %v7170 = vld [vmem:[%s7085 + $0x149] sm:$0xff]
      %v7171 = vld [vmem:[%s7085 + $0x151] sm:$0xff]
      %v7172 = vld [vmem:[%s7085 + $0x169] sm:$0xff]
      %v7173 = vld [vmem:[%s7085 + $0x171] sm:$0xff]
      %v7174 = vld [vmem:[%s7085 + $0x189] sm:$0xff]
      %v7175 = vld [vmem:[%s7085 + $0x191] sm:$0xff]
      %v7176 = vld [vmem:[%s7085 + $0x1a9] sm:$0xff]
      %v7177 = vld [vmem:[%s7085 + $0x1b1] sm:$0xff]
      %v7178 = vld [vmem:[%s7085 + $0x1c9] sm:$0xff]
      %v7179 = vld [vmem:[%s7085 + $0x1d1] sm:$0xff]
      %v7180 = vld [vmem:[%s7085 + $0x1e9] sm:$0xff]
      %v7181 = vld [vmem:[%s7085 + $0x1f1] sm:$0xff]
      %7214 = vrot.lane.b32.xlu0 %v6925, 64
      %v7215 = vpop.permute.xlu0 %7214
      %7216 = vrot.lane.b32.xlu0 %v6926, 64
      %v7217 = vpop.permute.xlu0 %7216
      %7218 = vrot.lane.b32.xlu0 %v6927, 64
      %v7219 = vpop.permute.xlu0 %7218
      %7220 = vrot.lane.b32.xlu0 %v6928, 64
      %v7221 = vpop.permute.xlu0 %7220
      %7222 = vrot.lane.b32.xlu0 %v6929, 64
      %v7223 = vpop.permute.xlu0 %7222
      %7224 = vrot.lane.b32.xlu0 %v6930, 64
      %v7225 = vpop.permute.xlu0 %7224
      %7226 = vrot.lane.b32.xlu0 %v6931, 64
      %v7227 = vpop.permute.xlu0 %7226
      %7228 = vrot.lane.b32.xlu0 %v6932, 64
      %v7229 = vpop.permute.xlu0 %7228
      %7230 = vrot.lane.b32.xlu0 %v6933, 64
      %v7231 = vpop.permute.xlu0 %7230
      %7232 = vrot.lane.b32.xlu0 %v6934, 64
      %v7233 = vpop.permute.xlu0 %7232
      %7234 = vrot.lane.b32.xlu0 %v6935, 64
      %v7235 = vpop.permute.xlu0 %7234
      %7236 = vrot.lane.b32.xlu0 %v6936, 64
      %v7237 = vpop.permute.xlu0 %7236
      %7238 = vrot.lane.b32.xlu0 %v6937, 64
      %v7239 = vpop.permute.xlu0 %7238
      %7240 = vrot.lane.b32.xlu0 %v6938, 64
      %v7241 = vpop.permute.xlu0 %7240
      %7242 = vrot.lane.b32.xlu0 %v6939, 64
      %v7243 = vpop.permute.xlu0 %7242
      %7244 = vrot.lane.b32.xlu0 %v6940, 64
      %v7245 = vpop.permute.xlu0 %7244
      %7246 = vrot.lane.b32.xlu0 %v6941, 64
      %v7247 = vpop.permute.xlu0 %7246
      %7248 = vrot.lane.b32.xlu0 %v6942, 64
      %v7249 = vpop.permute.xlu0 %7248
      %7250 = vrot.lane.b32.xlu0 %v6943, 64
      %v7251 = vpop.permute.xlu0 %7250
      %7252 = vrot.lane.b32.xlu0 %v6944, 64
      %v7253 = vpop.permute.xlu0 %7252
      %7254 = vrot.lane.b32.xlu0 %v6945, 64
      %v7255 = vpop.permute.xlu0 %7254
      %7256 = vrot.lane.b32.xlu0 %v6946, 64
      %v7257 = vpop.permute.xlu0 %7256
      %7258 = vrot.lane.b32.xlu0 %v6947, 64
      %v7259 = vpop.permute.xlu0 %7258
      %7260 = vrot.lane.b32.xlu0 %v6948, 64
      %v7261 = vpop.permute.xlu0 %7260
      %7262 = vrot.lane.b32.xlu0 %v6949, 64
      %v7263 = vpop.permute.xlu0 %7262
      %7264 = vrot.lane.b32.xlu0 %v6950, 64
      %v7265 = vpop.permute.xlu0 %7264
      %7266 = vrot.lane.b32.xlu0 %v6951, 64
      %v7267 = vpop.permute.xlu0 %7266
      %7268 = vrot.lane.b32.xlu0 %v6952, 64
      %v7269 = vpop.permute.xlu0 %7268
      %7270 = vrot.lane.b32.xlu0 %v6953, 64
      %v7271 = vpop.permute.xlu0 %7270
      %7272 = vrot.lane.b32.xlu0 %v6954, 64
      %v7273 = vpop.permute.xlu0 %7272
      %7274 = vrot.lane.b32.xlu0 %v6955, 64
      %v7275 = vpop.permute.xlu0 %7274
      %7276 = vrot.lane.b32.xlu0 %v6956, 64
      %v7277 = vpop.permute.xlu0 %7276
      %7342 = vrot.lane.b32.xlu0 %v6989, 64
      %v7343 = vpop.permute.xlu0 %7342
      %7344 = vrot.lane.b32.xlu0 %v6990, 64
      %v7345 = vpop.permute.xlu0 %7344
      %7346 = vrot.lane.b32.xlu0 %v6991, 64
      %v7347 = vpop.permute.xlu0 %7346
      %7348 = vrot.lane.b32.xlu0 %v6992, 64
      %v7349 = vpop.permute.xlu0 %7348
      %7350 = vrot.lane.b32.xlu0 %v6993, 64
      %v7351 = vpop.permute.xlu0 %7350
      %7352 = vrot.lane.b32.xlu0 %v6994, 64
      %v7353 = vpop.permute.xlu0 %7352
      %7354 = vrot.lane.b32.xlu0 %v6995, 64
      %v7355 = vpop.permute.xlu0 %7354
      %7356 = vrot.lane.b32.xlu0 %v6996, 64
      %v7357 = vpop.permute.xlu0 %7356
      %7358 = vrot.lane.b32.xlu0 %v6997, 64
      %v7359 = vpop.permute.xlu0 %7358
      %7360 = vrot.lane.b32.xlu0 %v6998, 64
      %v7361 = vpop.permute.xlu0 %7360
      %7362 = vrot.lane.b32.xlu0 %v6999, 64
      %v7363 = vpop.permute.xlu0 %7362
      %7364 = vrot.lane.b32.xlu0 %v7000, 64
      %v7365 = vpop.permute.xlu0 %7364
      %7366 = vrot.lane.b32.xlu0 %v7001, 64
      %v7367 = vpop.permute.xlu0 %7366
      %7368 = vrot.lane.b32.xlu0 %v7002, 64
      %v7369 = vpop.permute.xlu0 %7368
      %7370 = vrot.lane.b32.xlu0 %v7003, 64
      %v7371 = vpop.permute.xlu0 %7370
      %7372 = vrot.lane.b32.xlu0 %v7004, 64
      %v7373 = vpop.permute.xlu0 %7372
      %7374 = vrot.lane.b32.xlu0 %v7005, 64
      %v7375 = vpop.permute.xlu0 %7374
      %7376 = vrot.lane.b32.xlu0 %v7006, 64
      %v7377 = vpop.permute.xlu0 %7376
      %7378 = vrot.lane.b32.xlu0 %v7007, 64
      %v7379 = vpop.permute.xlu0 %7378
      %7380 = vrot.lane.b32.xlu0 %v7008, 64
      %v7381 = vpop.permute.xlu0 %7380
      %7382 = vrot.lane.b32.xlu0 %v7009, 64
      %v7383 = vpop.permute.xlu0 %7382
      %7384 = vrot.lane.b32.xlu0 %v7010, 64
      %v7385 = vpop.permute.xlu0 %7384
      %7386 = vrot.lane.b32.xlu0 %v7011, 64
      %v7387 = vpop.permute.xlu0 %7386
      %7388 = vrot.lane.b32.xlu0 %v7012, 64
      %v7389 = vpop.permute.xlu0 %7388
      %7390 = vrot.lane.b32.xlu0 %v7013, 64
      %v7391 = vpop.permute.xlu0 %7390
      %7392 = vrot.lane.b32.xlu0 %v7014, 64
      %v7393 = vpop.permute.xlu0 %7392
      %7394 = vrot.lane.b32.xlu0 %v7015, 64
      %v7395 = vpop.permute.xlu0 %7394
      %7396 = vrot.lane.b32.xlu0 %v7016, 64
      %v7397 = vpop.permute.xlu0 %7396
      %7398 = vrot.lane.b32.xlu0 %v7017, 64
      %v7399 = vpop.permute.xlu0 %7398
      %7400 = vrot.lane.b32.xlu0 %v7018, 64
      %v7401 = vpop.permute.xlu0 %7400
      %7402 = vrot.lane.b32.xlu0 %v7019, 64
      %v7403 = vpop.permute.xlu0 %7402
      %7404 = vrot.lane.b32.xlu0 %v7020, 64
      %v7405 = vpop.permute.xlu0 %7404
      %7470 = vrot.lane.b32.xlu0 %v7053, 64
      %v7471 = vpop.permute.xlu0 %7470
      %7472 = vrot.lane.b32.xlu0 %v7054, 64
      %v7473 = vpop.permute.xlu0 %7472
      %7474 = vrot.lane.b32.xlu0 %v7055, 64
      %v7475 = vpop.permute.xlu0 %7474
      %7476 = vrot.lane.b32.xlu0 %v7056, 64
      %v7477 = vpop.permute.xlu0 %7476
      %7478 = vrot.lane.b32.xlu0 %v7057, 64
      %v7479 = vpop.permute.xlu0 %7478
      %7480 = vrot.lane.b32.xlu0 %v7058, 64
      %v7481 = vpop.permute.xlu0 %7480
      %7482 = vrot.lane.b32.xlu0 %v7059, 64
      %v7483 = vpop.permute.xlu0 %7482
      %7484 = vrot.lane.b32.xlu0 %v7060, 64
      %v7485 = vpop.permute.xlu0 %7484
      %7486 = vrot.lane.b32.xlu0 %v7061, 64
      %v7487 = vpop.permute.xlu0 %7486
      %7488 = vrot.lane.b32.xlu0 %v7062, 64
      %v7489 = vpop.permute.xlu0 %7488
      %7490 = vrot.lane.b32.xlu0 %v7063, 64
      %v7491 = vpop.permute.xlu0 %7490
      %7492 = vrot.lane.b32.xlu0 %v7064, 64
      %v7493 = vpop.permute.xlu0 %7492
      %7494 = vrot.lane.b32.xlu0 %v7065, 64
      %v7495 = vpop.permute.xlu0 %7494
      %7496 = vrot.lane.b32.xlu0 %v7066, 64
      %v7497 = vpop.permute.xlu0 %7496
      %7498 = vrot.lane.b32.xlu0 %v7067, 64
      %v7499 = vpop.permute.xlu0 %7498
      %7500 = vrot.lane.b32.xlu0 %v7068, 64
      %v7501 = vpop.permute.xlu0 %7500
      %7502 = vrot.lane.b32.xlu0 %v7069, 64
      %v7503 = vpop.permute.xlu0 %7502
      %7504 = vrot.lane.b32.xlu0 %v7070, 64
      %v7505 = vpop.permute.xlu0 %7504
      %7506 = vrot.lane.b32.xlu0 %v7071, 64
      %v7507 = vpop.permute.xlu0 %7506
      %7508 = vrot.lane.b32.xlu0 %v7072, 64
      %v7509 = vpop.permute.xlu0 %7508
      %7510 = vrot.lane.b32.xlu0 %v7073, 64
      %v7511 = vpop.permute.xlu0 %7510
      %7512 = vrot.lane.b32.xlu0 %v7074, 64
      %v7513 = vpop.permute.xlu0 %7512
      %7514 = vrot.lane.b32.xlu0 %v7075, 64
      %v7515 = vpop.permute.xlu0 %7514
      %7516 = vrot.lane.b32.xlu0 %v7076, 64
      %v7517 = vpop.permute.xlu0 %7516
      %7518 = vrot.lane.b32.xlu0 %v7077, 64
      %v7519 = vpop.permute.xlu0 %7518
      %7520 = vrot.lane.b32.xlu0 %v7078, 64
      %v7521 = vpop.permute.xlu0 %7520
      %7522 = vrot.lane.b32.xlu0 %v7079, 64
      %v7523 = vpop.permute.xlu0 %7522
      %7524 = vrot.lane.b32.xlu0 %v7080, 64
      %v7525 = vpop.permute.xlu0 %7524
      %7526 = vrot.lane.b32.xlu0 %v7081, 64
      %v7527 = vpop.permute.xlu0 %7526
      %7528 = vrot.lane.b32.xlu0 %v7082, 64
      %v7529 = vpop.permute.xlu0 %7528
      %7530 = vrot.lane.b32.xlu0 %v7083, 64
      %v7531 = vpop.permute.xlu0 %7530
      %7532 = vrot.lane.b32.xlu0 %v7084, 64
      %v7533 = vpop.permute.xlu0 %7532
      %7598 = vrot.lane.b32.xlu0 %v7118, 64
      %v7599 = vpop.permute.xlu0 %7598
      %7600 = vrot.lane.b32.xlu0 %v7119, 64
      %v7601 = vpop.permute.xlu0 %7600
      %7602 = vrot.lane.b32.xlu0 %v7120, 64
      %v7603 = vpop.permute.xlu0 %7602
      %7604 = vrot.lane.b32.xlu0 %v7121, 64
      %v7605 = vpop.permute.xlu0 %7604
      %7606 = vrot.lane.b32.xlu0 %v7122, 64
      %v7607 = vpop.permute.xlu0 %7606
      %7608 = vrot.lane.b32.xlu0 %v7123, 64
      %v7609 = vpop.permute.xlu0 %7608
      %7610 = vrot.lane.b32.xlu0 %v7124, 64
      %v7611 = vpop.permute.xlu0 %7610
      %7612 = vrot.lane.b32.xlu0 %v7125, 64
      %v7613 = vpop.permute.xlu0 %7612
      %7614 = vrot.lane.b32.xlu0 %v7126, 64
      %v7615 = vpop.permute.xlu0 %7614
      %7616 = vrot.lane.b32.xlu0 %v7127, 64
      %v7617 = vpop.permute.xlu0 %7616
      %7618 = vrot.lane.b32.xlu0 %v7128, 64
      %v7619 = vpop.permute.xlu0 %7618
      %7620 = vrot.lane.b32.xlu0 %v7129, 64
      %v7621 = vpop.permute.xlu0 %7620
      %7622 = vrot.lane.b32.xlu0 %v7130, 64
      %v7623 = vpop.permute.xlu0 %7622
      %7624 = vrot.lane.b32.xlu0 %v7131, 64
      %v7625 = vpop.permute.xlu0 %7624
      %7626 = vrot.lane.b32.xlu0 %v7132, 64
      %v7627 = vpop.permute.xlu0 %7626
      %7628 = vrot.lane.b32.xlu0 %v7133, 64
      %v7629 = vpop.permute.xlu0 %7628
      %7630 = vrot.lane.b32.xlu0 %v7134, 64
      %v7631 = vpop.permute.xlu0 %7630
      %7632 = vrot.lane.b32.xlu0 %v7135, 64
      %v7633 = vpop.permute.xlu0 %7632
      %7634 = vrot.lane.b32.xlu0 %v7136, 64
      %v7635 = vpop.permute.xlu0 %7634
      %7636 = vrot.lane.b32.xlu0 %v7137, 64
      %v7637 = vpop.permute.xlu0 %7636
      %7638 = vrot.lane.b32.xlu0 %v7138, 64
      %v7639 = vpop.permute.xlu0 %7638
      %7640 = vrot.lane.b32.xlu0 %v7139, 64
      %v7641 = vpop.permute.xlu0 %7640
      %7642 = vrot.lane.b32.xlu0 %v7140, 64
      %v7643 = vpop.permute.xlu0 %7642
      %7644 = vrot.lane.b32.xlu0 %v7141, 64
      %v7645 = vpop.permute.xlu0 %7644
      %7646 = vrot.lane.b32.xlu0 %v7142, 64
      %v7647 = vpop.permute.xlu0 %7646
      %7648 = vrot.lane.b32.xlu0 %v7143, 64
      %v7649 = vpop.permute.xlu0 %7648
      %7650 = vrot.lane.b32.xlu0 %v7144, 64
      %v7651 = vpop.permute.xlu0 %7650
      %7652 = vrot.lane.b32.xlu0 %v7145, 64
      %v7653 = vpop.permute.xlu0 %7652
      %7654 = vrot.lane.b32.xlu0 %v7146, 64
      %v7655 = vpop.permute.xlu0 %7654
      %7656 = vrot.lane.b32.xlu0 %v7147, 64
      %v7657 = vpop.permute.xlu0 %7656
      %7658 = vrot.lane.b32.xlu0 %v7148, 64
      %v7659 = vpop.permute.xlu0 %7658
      %7660 = vrot.lane.b32.xlu0 %v7149, 64
      %v7661 = vpop.permute.xlu0 %7660
      %v7694 = vsel %vm1079, %v6893, %v7215
      %v7695 = vsel %vm1079, %v6894, %v7217
      %v7696 = vsel %vm1079, %v6895, %v7219
      %v7697 = vsel %vm1079, %v6896, %v7221
      %v7698 = vsel %vm1079, %v6897, %v7223
      %v7699 = vsel %vm1079, %v6898, %v7225
      %v7700 = vsel %vm1079, %v6899, %v7227
      %v7701 = vsel %vm1079, %v6900, %v7229
      %v7702 = vsel %vm1079, %v6901, %v7231
      %v7703 = vsel %vm1079, %v6902, %v7233
      %v7704 = vsel %vm1079, %v6903, %v7235
      %v7705 = vsel %vm1079, %v6904, %v7237
      %v7706 = vsel %vm1079, %v6905, %v7239
      %v7707 = vsel %vm1079, %v6906, %v7241
      %v7708 = vsel %vm1079, %v6907, %v7243
      %v7709 = vsel %vm1079, %v6908, %v7245
      %v7710 = vsel %vm1079, %v6909, %v7247
      %v7711 = vsel %vm1079, %v6910, %v7249
      %v7712 = vsel %vm1079, %v6911, %v7251
      %v7713 = vsel %vm1079, %v6912, %v7253
      %v7714 = vsel %vm1079, %v6913, %v7255
      %v7715 = vsel %vm1079, %v6914, %v7257
      %v7716 = vsel %vm1079, %v6915, %v7259
      %v7717 = vsel %vm1079, %v6916, %v7261
      %v7718 = vsel %vm1079, %v6917, %v7263
      %v7719 = vsel %vm1079, %v6918, %v7265
      %v7720 = vsel %vm1079, %v6919, %v7267
      %v7721 = vsel %vm1079, %v6920, %v7269
      %v7722 = vsel %vm1079, %v6921, %v7271
      %v7723 = vsel %vm1079, %v6922, %v7273
      %v7724 = vsel %vm1079, %v6923, %v7275
      %v7725 = vsel %vm1079, %v6924, %v7277
      %v7726 = vsel %vm1079, %v6957, %v7343
      %v7727 = vsel %vm1079, %v6958, %v7345
      %v7728 = vsel %vm1079, %v6959, %v7347
      %v7729 = vsel %vm1079, %v6960, %v7349
      %v7730 = vsel %vm1079, %v6961, %v7351
      %v7731 = vsel %vm1079, %v6962, %v7353
      %v7732 = vsel %vm1079, %v6963, %v7355
      %v7733 = vsel %vm1079, %v6964, %v7357
      %v7734 = vsel %vm1079, %v6965, %v7359
      %v7735 = vsel %vm1079, %v6966, %v7361
      %v7736 = vsel %vm1079, %v6967, %v7363
      %v7737 = vsel %vm1079, %v6968, %v7365
      %v7738 = vsel %vm1079, %v6969, %v7367
      %v7739 = vsel %vm1079, %v6970, %v7369
      %v7740 = vsel %vm1079, %v6971, %v7371
      %v7741 = vsel %vm1079, %v6972, %v7373
      %v7742 = vsel %vm1079, %v6973, %v7375
      %v7743 = vsel %vm1079, %v6974, %v7377
      %v7744 = vsel %vm1079, %v6975, %v7379
      %v7745 = vsel %vm1079, %v6976, %v7381
      %v7746 = vsel %vm1079, %v6977, %v7383
      %v7747 = vsel %vm1079, %v6978, %v7385
      %v7748 = vsel %vm1079, %v6979, %v7387
      %v7749 = vsel %vm1079, %v6980, %v7389
      %v7750 = vsel %vm1079, %v6981, %v7391
      %v7751 = vsel %vm1079, %v6982, %v7393
      %v7752 = vsel %vm1079, %v6983, %v7395
      %v7753 = vsel %vm1079, %v6984, %v7397
      %v7754 = vsel %vm1079, %v6985, %v7399
      %v7755 = vsel %vm1079, %v6986, %v7401
      %v7756 = vsel %vm1079, %v6987, %v7403
      %v7757 = vsel %vm1079, %v6988, %v7405
      %v7758 = vsel %vm1079, %v7021, %v7471
      %v7759 = vsel %vm1079, %v7022, %v7473
      %v7760 = vsel %vm1079, %v7023, %v7475
      %v7761 = vsel %vm1079, %v7024, %v7477
      %v7762 = vsel %vm1079, %v7025, %v7479
      %v7763 = vsel %vm1079, %v7026, %v7481
      %v7764 = vsel %vm1079, %v7027, %v7483
      %v7765 = vsel %vm1079, %v7028, %v7485
      %v7766 = vsel %vm1079, %v7029, %v7487
      %v7767 = vsel %vm1079, %v7030, %v7489
      %v7768 = vsel %vm1079, %v7031, %v7491
      %v7769 = vsel %vm1079, %v7032, %v7493
      %v7770 = vsel %vm1079, %v7033, %v7495
      %v7771 = vsel %vm1079, %v7034, %v7497
      %v7772 = vsel %vm1079, %v7035, %v7499
      %v7773 = vsel %vm1079, %v7036, %v7501
      %v7774 = vsel %vm1079, %v7037, %v7503
      %v7775 = vsel %vm1079, %v7038, %v7505
      %v7776 = vsel %vm1079, %v7039, %v7507
      %v7777 = vsel %vm1079, %v7040, %v7509
      %v7778 = vsel %vm1079, %v7041, %v7511
      %v7779 = vsel %vm1079, %v7042, %v7513
      %v7780 = vsel %vm1079, %v7043, %v7515
      %v7781 = vsel %vm1079, %v7044, %v7517
      %v7782 = vsel %vm1079, %v7045, %v7519
      %v7783 = vsel %vm1079, %v7046, %v7521
      %v7784 = vsel %vm1079, %v7047, %v7523
      %v7785 = vsel %vm1079, %v7048, %v7525
      %v7786 = vsel %vm1079, %v7049, %v7527
      %v7787 = vsel %vm1079, %v7050, %v7529
      %v7788 = vsel %vm1079, %v7051, %v7531
      %v7789 = vsel %vm1079, %v7052, %v7533
      %v7790 = vsel %vm1079, %v7086, %v7599
      %v7791 = vsel %vm1079, %v7087, %v7601
      %v7792 = vsel %vm1079, %v7088, %v7603
      %v7793 = vsel %vm1079, %v7089, %v7605
      %v7794 = vsel %vm1079, %v7090, %v7607
      %v7795 = vsel %vm1079, %v7091, %v7609
      %v7796 = vsel %vm1079, %v7092, %v7611
      %v7797 = vsel %vm1079, %v7093, %v7613
      %v7798 = vsel %vm1079, %v7094, %v7615
      %v7799 = vsel %vm1079, %v7095, %v7617
      %v7800 = vsel %vm1079, %v7096, %v7619
      %v7801 = vsel %vm1079, %v7097, %v7621
      %v7802 = vsel %vm1079, %v7098, %v7623
      %v7803 = vsel %vm1079, %v7099, %v7625
      %v7804 = vsel %vm1079, %v7100, %v7627
      %v7805 = vsel %vm1079, %v7101, %v7629
      %v7806 = vsel %vm1079, %v7102, %v7631
      %v7807 = vsel %vm1079, %v7103, %v7633
      %v7808 = vsel %vm1079, %v7104, %v7635
      %v7809 = vsel %vm1079, %v7105, %v7637
      %v7810 = vsel %vm1079, %v7106, %v7639
      %v7811 = vsel %vm1079, %v7107, %v7641
      %v7812 = vsel %vm1079, %v7108, %v7643
      %v7813 = vsel %vm1079, %v7109, %v7645
      %v7814 = vsel %vm1079, %v7110, %v7647
      %v7815 = vsel %vm1079, %v7111, %v7649
      %v7816 = vsel %vm1079, %v7112, %v7651
      %v7817 = vsel %vm1079, %v7113, %v7653
      %v7818 = vsel %vm1079, %v7114, %v7655
      %v7819 = vsel %vm1079, %v7115, %v7657
      %v7820 = vsel %vm1079, %v7116, %v7659
      %v7821 = vsel %vm1079, %v7117, %v7661
      %v7822 = vld [vmem:[%s5] sm:$0xff]
      %v7823 = vld [vmem:[%s5 + $0x8] sm:$0xff]
      %v7824 = vld [vmem:[%s5 + $0x10] sm:$0xff]
      %v7825 = vld [vmem:[%s5 + $0x18] sm:$0xff]
      %v7826 = vld [vmem:[%s5 + $0x20] sm:$0xff]
      %v7827 = vld [vmem:[%s5 + $0x28] sm:$0xff]
      %v7828 = vld [vmem:[%s5 + $0x30] sm:$0xff]
      %v7829 = vld [vmem:[%s5 + $0x38] sm:$0xff]
      %v7830 = vld [vmem:[%s5 + $0x40] sm:$0xff]
      %v7831 = vld [vmem:[%s5 + $0x48] sm:$0xff]
      %v7832 = vld [vmem:[%s5 + $0x50] sm:$0xff]
      %v7833 = vld [vmem:[%s5 + $0x58] sm:$0xff]
      %v7834 = vld [vmem:[%s5 + $0x60] sm:$0xff]
      %v7835 = vld [vmem:[%s5 + $0x68] sm:$0xff]
      %v7836 = vld [vmem:[%s5 + $0x70] sm:$0xff]
      %v7837 = vld [vmem:[%s5 + $0x78] sm:$0xff]
      %v7838 = vld [vmem:[%s5 + $0x80] sm:$0xff]
      %v7839 = vld [vmem:[%s5 + $0x88] sm:$0xff]
      %v7840 = vld [vmem:[%s5 + $0x90] sm:$0xff]
      %v7841 = vld [vmem:[%s5 + $0x98] sm:$0xff]
      %v7842 = vld [vmem:[%s5 + $0xa0] sm:$0xff]
      %v7843 = vld [vmem:[%s5 + $0xa8] sm:$0xff]
      %v7844 = vld [vmem:[%s5 + $0xb0] sm:$0xff]
      %v7845 = vld [vmem:[%s5 + $0xb8] sm:$0xff]
      %v7846 = vld [vmem:[%s5 + $0xc0] sm:$0xff]
      %v7847 = vld [vmem:[%s5 + $0xc8] sm:$0xff]
      %v7848 = vld [vmem:[%s5 + $0xd0] sm:$0xff]
      %v7849 = vld [vmem:[%s5 + $0xd8] sm:$0xff]
      %v7850 = vld [vmem:[%s5 + $0xe0] sm:$0xff]
      %v7851 = vld [vmem:[%s5 + $0xe8] sm:$0xff]
      %v7852 = vld [vmem:[%s5 + $0xf0] sm:$0xff]
      %v7853 = vld [vmem:[%s5 + $0xf8] sm:$0xff]
      %v7854 = vld [vmem:[%s5 + $0x100] sm:$0xff]
      %v7855 = vld [vmem:[%s5 + $0x108] sm:$0xff]
      %v7856 = vld [vmem:[%s5 + $0x110] sm:$0xff]
      %v7857 = vld [vmem:[%s5 + $0x118] sm:$0xff]
      %v7858 = vld [vmem:[%s5 + $0x120] sm:$0xff]
      %v7859 = vld [vmem:[%s5 + $0x128] sm:$0xff]
      %v7860 = vld [vmem:[%s5 + $0x130] sm:$0xff]
      %v7861 = vld [vmem:[%s5 + $0x138] sm:$0xff]
      %v7862 = vld [vmem:[%s5 + $0x140] sm:$0xff]
      %v7863 = vld [vmem:[%s5 + $0x148] sm:$0xff]
      %v7864 = vld [vmem:[%s5 + $0x150] sm:$0xff]
      %v7865 = vld [vmem:[%s5 + $0x158] sm:$0xff]
      %v7866 = vld [vmem:[%s5 + $0x160] sm:$0xff]
      %v7867 = vld [vmem:[%s5 + $0x168] sm:$0xff]
      %v7868 = vld [vmem:[%s5 + $0x170] sm:$0xff]
      %v7869 = vld [vmem:[%s5 + $0x178] sm:$0xff]
      %v7870 = vld [vmem:[%s5 + $0x180] sm:$0xff]
      %v7871 = vld [vmem:[%s5 + $0x188] sm:$0xff]
      %v7872 = vld [vmem:[%s5 + $0x190] sm:$0xff]
      %v7873 = vld [vmem:[%s5 + $0x198] sm:$0xff]
      %v7874 = vld [vmem:[%s5 + $0x1a0] sm:$0xff]
      %v7875 = vld [vmem:[%s5 + $0x1a8] sm:$0xff]
      %v7876 = vld [vmem:[%s5 + $0x1b0] sm:$0xff]
      %v7877 = vld [vmem:[%s5 + $0x1b8] sm:$0xff]
      %v7878 = vld [vmem:[%s5 + $0x1c0] sm:$0xff]
      %v7879 = vld [vmem:[%s5 + $0x1c8] sm:$0xff]
      %v7880 = vld [vmem:[%s5 + $0x1d0] sm:$0xff]
      %v7881 = vld [vmem:[%s5 + $0x1d8] sm:$0xff]
      %v7882 = vld [vmem:[%s5 + $0x1e0] sm:$0xff]
      %v7883 = vld [vmem:[%s5 + $0x1e8] sm:$0xff]
      %v7884 = vld [vmem:[%s5 + $0x1f0] sm:$0xff]
      %v7885 = vld [vmem:[%s5 + $0x1f8] sm:$0xff]
      %v7886 = vld [vmem:[%s5 + $0x200] sm:$0xff]
      %v7887 = vld [vmem:[%s5 + $0x208] sm:$0xff]
      %v7888 = vld [vmem:[%s5 + $0x210] sm:$0xff]
      %v7889 = vld [vmem:[%s5 + $0x218] sm:$0xff]
      %v7890 = vld [vmem:[%s5 + $0x220] sm:$0xff]
      %v7891 = vld [vmem:[%s5 + $0x228] sm:$0xff]
      %v7892 = vld [vmem:[%s5 + $0x230] sm:$0xff]
      %v7893 = vld [vmem:[%s5 + $0x238] sm:$0xff]
      %v7895 = vsel %vm1079, %v7150, 0
      %v7898 = vsel %vm1079, %v7151, 0
      %v7901 = vsel %vm1079, %v7152, 0
      %v7904 = vsel %vm1079, %v7153, 0
      %v7907 = vsel %vm1079, %v7154, 0
      %v7910 = vsel %vm1079, %v7155, 0
      %v7913 = vsel %vm1079, %v7156, 0
      %v7916 = vsel %vm1079, %v7157, 0
      %v7919 = vsel %vm1079, %v7158, 0
      %v7922 = vsel %vm1079, %v7159, 0
      %v7925 = vsel %vm1079, %v7160, 0
      %v7928 = vsel %vm1079, %v7161, 0
      %v7931 = vsel %vm1079, %v7162, 0
      %v7934 = vsel %vm1079, %v7163, 0
      %v7937 = vsel %vm1079, %v7164, 0
      %v7940 = vsel %vm1079, %v7165, 0
      %v7943 = vsel %vm1079, %v7166, 0
      %v7946 = vsel %vm1079, %v7167, 0
      %v7949 = vsel %vm1079, %v7168, 0
      %v7952 = vsel %vm1079, %v7169, 0
      %v7955 = vsel %vm1079, %v7170, 0
      %v7958 = vsel %vm1079, %v7171, 0
      %v7961 = vsel %vm1079, %v7172, 0
      %v7964 = vsel %vm1079, %v7173, 0
      %v7967 = vsel %vm1079, %v7174, 0
      %v7970 = vsel %vm1079, %v7175, 0
      %v7973 = vsel %vm1079, %v7176, 0
      %v7976 = vsel %vm1079, %v7177, 0
      %v7979 = vsel %vm1079, %v7178, 0
      %v7982 = vsel %vm1079, %v7179, 0
      %v7985 = vsel %vm1079, %v7180, 0
      %v7988 = vsel %vm1079, %v7181, 0
      %7990 = vmatpush.msra.mxu0 %v7837
      %7991 = vmatpush.msra.mxu0 %v7836
      %7992 = vmatpush.msra.mxu0 %v7835
      %7993 = vmatpush.msra.mxu0 %v7834
      %7994 = vmatpush.msra.mxu0 %v7833
      %7995 = vmatpush.msra.mxu0 %v7832
      %7996 = vmatpush.msra.mxu0 %v7831
      %7997 = vmatpush.msra.mxu0 %v7830
      %7998 = vmatpush.msra.mxu0 %v7829
      %7999 = vmatpush.msra.mxu0 %v7828
      %8000 = vmatpush.msra.mxu0 %v7827
      %8001 = vmatpush.msra.mxu0 %v7826
      %8002 = vmatpush.msra.mxu0 %v7825
      %8003 = vmatpush.msra.mxu0 %v7824
      %8004 = vmatpush.msra.mxu0 %v7823
      %8005 = vmatpush.msra.mxu0 %v7822
      %8006 = vmatmul.f32.gmra.mxu0 %v7694
      %v8007 = vpop.f32.mrf.mxu0
      %v8008 = vadd.f32 0.0, %v8007
      %8009 = vmatmul.f32.gmra.mxu0 %v7695
      %v8010 = vpop.f32.mrf.mxu0
      %v8011 = vadd.f32 0.0, %v8010
      %8012 = vmatmul.f32.gmra.mxu0 %v7696
      %v8013 = vpop.f32.mrf.mxu0
      %v8014 = vadd.f32 0.0, %v8013
      %8015 = vmatmul.f32.gmra.mxu0 %v7697
      %v8016 = vpop.f32.mrf.mxu0
      %v8017 = vadd.f32 0.0, %v8016
      %8018 = vmatmul.f32.gmra.mxu0 %v7698
      %v8019 = vpop.f32.mrf.mxu0
      %v8020 = vadd.f32 0.0, %v8019
      %8021 = vmatmul.f32.gmra.mxu0 %v7699
      %v8022 = vpop.f32.mrf.mxu0
      %v8023 = vadd.f32 0.0, %v8022
      %8024 = vmatmul.f32.gmra.mxu0 %v7700
      %v8025 = vpop.f32.mrf.mxu0
      %v8026 = vadd.f32 0.0, %v8025
      %8027 = vmatmul.f32.gmra.mxu0 %v7701
      %v8028 = vpop.f32.mrf.mxu0
      %v8029 = vadd.f32 0.0, %v8028
      %8030 = vmatmul.f32.gmra.mxu0 %v7702
      %v8031 = vpop.f32.mrf.mxu0
      %v8032 = vadd.f32 0.0, %v8031
      %8033 = vmatmul.f32.gmra.mxu0 %v7703
      %v8034 = vpop.f32.mrf.mxu0
      %v8035 = vadd.f32 0.0, %v8034
      %8036 = vmatmul.f32.gmra.mxu0 %v7704
      %v8037 = vpop.f32.mrf.mxu0
      %v8038 = vadd.f32 0.0, %v8037
      %8039 = vmatmul.f32.gmra.mxu0 %v7705
      %v8040 = vpop.f32.mrf.mxu0
      %v8041 = vadd.f32 0.0, %v8040
      %8042 = vmatmul.f32.gmra.mxu0 %v7706
      %v8043 = vpop.f32.mrf.mxu0
      %v8044 = vadd.f32 0.0, %v8043
      %8045 = vmatmul.f32.gmra.mxu0 %v7707
      %v8046 = vpop.f32.mrf.mxu0
      %v8047 = vadd.f32 0.0, %v8046
      %8048 = vmatmul.f32.gmra.mxu0 %v7708
      %v8049 = vpop.f32.mrf.mxu0
      %v8050 = vadd.f32 0.0, %v8049
      %8051 = vmatmul.f32.gmra.mxu0 %v7709
      %v8052 = vpop.f32.mrf.mxu0
      %v8053 = vadd.f32 0.0, %v8052
      %8054 = vmatmul.f32.gmra.mxu0 %v7710
      %v8055 = vpop.f32.mrf.mxu0
      %v8056 = vadd.f32 0.0, %v8055
      %8057 = vmatmul.f32.gmra.mxu0 %v7711
      %v8058 = vpop.f32.mrf.mxu0
      %v8059 = vadd.f32 0.0, %v8058
      %8060 = vmatmul.f32.gmra.mxu0 %v7712
      %v8061 = vpop.f32.mrf.mxu0
      %v8062 = vadd.f32 0.0, %v8061
      %8063 = vmatmul.f32.gmra.mxu0 %v7713
      %v8064 = vpop.f32.mrf.mxu0
      %v8065 = vadd.f32 0.0, %v8064
      %8066 = vmatmul.f32.gmra.mxu0 %v7714
      %v8067 = vpop.f32.mrf.mxu0
      %v8068 = vadd.f32 0.0, %v8067
      %8069 = vmatmul.f32.gmra.mxu0 %v7715
      %v8070 = vpop.f32.mrf.mxu0
      %v8071 = vadd.f32 0.0, %v8070
      %8072 = vmatmul.f32.gmra.mxu0 %v7716
      %v8073 = vpop.f32.mrf.mxu0
      %v8074 = vadd.f32 0.0, %v8073
      %8075 = vmatmul.f32.gmra.mxu0 %v7717
      %v8076 = vpop.f32.mrf.mxu0
      %v8077 = vadd.f32 0.0, %v8076
      %8078 = vmatmul.f32.gmra.mxu0 %v7718
      %v8079 = vpop.f32.mrf.mxu0
      %v8080 = vadd.f32 0.0, %v8079
      %8081 = vmatmul.f32.gmra.mxu0 %v7719
      %v8082 = vpop.f32.mrf.mxu0
      %v8083 = vadd.f32 0.0, %v8082
      %8084 = vmatmul.f32.gmra.mxu0 %v7720
      %v8085 = vpop.f32.mrf.mxu0
      %v8086 = vadd.f32 0.0, %v8085
      %8087 = vmatmul.f32.gmra.mxu0 %v7721
      %v8088 = vpop.f32.mrf.mxu0
      %v8089 = vadd.f32 0.0, %v8088
      %8090 = vmatmul.f32.gmra.mxu0 %v7722
      %v8091 = vpop.f32.mrf.mxu0
      %v8092 = vadd.f32 0.0, %v8091
      %8093 = vmatmul.f32.gmra.mxu0 %v7723
      %v8094 = vpop.f32.mrf.mxu0
      %v8095 = vadd.f32 0.0, %v8094
      %8096 = vmatmul.f32.gmra.mxu0 %v7724
      %v8097 = vpop.f32.mrf.mxu0
      %v8098 = vadd.f32 0.0, %v8097
      %8099 = vmatmul.f32.gmra.mxu0 %v7725
      %v8100 = vpop.f32.mrf.mxu0
      %v8101 = vadd.f32 0.0, %v8100
      %8102 = vdwg.mxu0
      %8103 = vmatpush.msra.mxu0 %v7853
      %8104 = vmatpush.msra.mxu0 %v7852
      %8105 = vmatpush.msra.mxu0 %v7851
      %8106 = vmatpush.msra.mxu0 %v7850
      %8107 = vmatpush.msra.mxu0 %v7849
      %8108 = vmatpush.msra.mxu0 %v7848
      %8109 = vmatpush.msra.mxu0 %v7847
      %8110 = vmatpush.msra.mxu0 %v7846
      %8111 = vmatpush.msra.mxu0 %v7845
      %8112 = vmatpush.msra.mxu0 %v7844
      %8113 = vmatpush.msra.mxu0 %v7843
      %8114 = vmatpush.msra.mxu0 %v7842
      %8115 = vmatpush.msra.mxu0 %v7841
      %8116 = vmatpush.msra.mxu0 %v7840
      %8117 = vmatpush.msra.mxu0 %v7839
      %8118 = vmatpush.msra.mxu0 %v7838
      %8119 = vmatmul.f32.gmra.mxu0 %v7726
      %v8120 = vpop.f32.mrf.mxu0
      %v8121 = vadd.f32 %v8008, %v8120
      %8122 = vmatmul.f32.gmra.mxu0 %v7727
      %v8123 = vpop.f32.mrf.mxu0
      %v8124 = vadd.f32 %v8011, %v8123
      %8125 = vmatmul.f32.gmra.mxu0 %v7728
      %v8126 = vpop.f32.mrf.mxu0
      %v8127 = vadd.f32 %v8014, %v8126
      %8128 = vmatmul.f32.gmra.mxu0 %v7729
      %v8129 = vpop.f32.mrf.mxu0
      %v8130 = vadd.f32 %v8017, %v8129
      %8131 = vmatmul.f32.gmra.mxu0 %v7730
      %v8132 = vpop.f32.mrf.mxu0
      %v8133 = vadd.f32 %v8020, %v8132
      %8134 = vmatmul.f32.gmra.mxu0 %v7731
      %v8135 = vpop.f32.mrf.mxu0
      %v8136 = vadd.f32 %v8023, %v8135
      %8137 = vmatmul.f32.gmra.mxu0 %v7732
      %v8138 = vpop.f32.mrf.mxu0
      %v8139 = vadd.f32 %v8026, %v8138
      %8140 = vmatmul.f32.gmra.mxu0 %v7733
      %v8141 = vpop.f32.mrf.mxu0
      %v8142 = vadd.f32 %v8029, %v8141
      %8143 = vmatmul.f32.gmra.mxu0 %v7734
      %v8144 = vpop.f32.mrf.mxu0
      %v8145 = vadd.f32 %v8032, %v8144
      %8146 = vmatmul.f32.gmra.mxu0 %v7735
      %v8147 = vpop.f32.mrf.mxu0
      %v8148 = vadd.f32 %v8035, %v8147
      %8149 = vmatmul.f32.gmra.mxu0 %v7736
      %v8150 = vpop.f32.mrf.mxu0
      %v8151 = vadd.f32 %v8038, %v8150
      %8152 = vmatmul.f32.gmra.mxu0 %v7737
      %v8153 = vpop.f32.mrf.mxu0
      %v8154 = vadd.f32 %v8041, %v8153
      %8155 = vmatmul.f32.gmra.mxu0 %v7738
      %v8156 = vpop.f32.mrf.mxu0
      %v8157 = vadd.f32 %v8044, %v8156
      %8158 = vmatmul.f32.gmra.mxu0 %v7739
      %v8159 = vpop.f32.mrf.mxu0
      %v8160 = vadd.f32 %v8047, %v8159
      %8161 = vmatmul.f32.gmra.mxu0 %v7740
      %v8162 = vpop.f32.mrf.mxu0
      %v8163 = vadd.f32 %v8050, %v8162
      %8164 = vmatmul.f32.gmra.mxu0 %v7741
      %v8165 = vpop.f32.mrf.mxu0
      %v8166 = vadd.f32 %v8053, %v8165
      %8167 = vmatmul.f32.gmra.mxu0 %v7742
      %v8168 = vpop.f32.mrf.mxu0
      %v8169 = vadd.f32 %v8056, %v8168
      %8170 = vmatmul.f32.gmra.mxu0 %v7743
      %v8171 = vpop.f32.mrf.mxu0
      %v8172 = vadd.f32 %v8059, %v8171
      %8173 = vmatmul.f32.gmra.mxu0 %v7744
      %v8174 = vpop.f32.mrf.mxu0
      %v8175 = vadd.f32 %v8062, %v8174
      %8176 = vmatmul.f32.gmra.mxu0 %v7745
      %v8177 = vpop.f32.mrf.mxu0
      %v8178 = vadd.f32 %v8065, %v8177
      %8179 = vmatmul.f32.gmra.mxu0 %v7746
      %v8180 = vpop.f32.mrf.mxu0
      %v8181 = vadd.f32 %v8068, %v8180
      %8182 = vmatmul.f32.gmra.mxu0 %v7747
      %v8183 = vpop.f32.mrf.mxu0
      %v8184 = vadd.f32 %v8071, %v8183
      %8185 = vmatmul.f32.gmra.mxu0 %v7748
      %v8186 = vpop.f32.mrf.mxu0
      %v8187 = vadd.f32 %v8074, %v8186
      %8188 = vmatmul.f32.gmra.mxu0 %v7749
      %v8189 = vpop.f32.mrf.mxu0
      %v8190 = vadd.f32 %v8077, %v8189
      %8191 = vmatmul.f32.gmra.mxu0 %v7750
      %v8192 = vpop.f32.mrf.mxu0
      %v8193 = vadd.f32 %v8080, %v8192
      %8194 = vmatmul.f32.gmra.mxu0 %v7751
      %v8195 = vpop.f32.mrf.mxu0
      %v8196 = vadd.f32 %v8083, %v8195
      %8197 = vmatmul.f32.gmra.mxu0 %v7752
      %v8198 = vpop.f32.mrf.mxu0
      %v8199 = vadd.f32 %v8086, %v8198
      %8200 = vmatmul.f32.gmra.mxu0 %v7753
      %v8201 = vpop.f32.mrf.mxu0
      %v8202 = vadd.f32 %v8089, %v8201
      %8203 = vmatmul.f32.gmra.mxu0 %v7754
      %v8204 = vpop.f32.mrf.mxu0
      %v8205 = vadd.f32 %v8092, %v8204
      %8206 = vmatmul.f32.gmra.mxu0 %v7755
      %v8207 = vpop.f32.mrf.mxu0
      %v8208 = vadd.f32 %v8095, %v8207
      %8209 = vmatmul.f32.gmra.mxu0 %v7756
      %v8210 = vpop.f32.mrf.mxu0
      %v8211 = vadd.f32 %v8098, %v8210
      %8212 = vmatmul.f32.gmra.mxu0 %v7757
      %v8213 = vpop.f32.mrf.mxu0
      %v8214 = vadd.f32 %v8101, %v8213
      %8215 = vdwg.mxu0
      %8216 = vmatpush.msra.mxu0 %v7869
      %8217 = vmatpush.msra.mxu0 %v7868
      %8218 = vmatpush.msra.mxu0 %v7867
      %8219 = vmatpush.msra.mxu0 %v7866
      %8220 = vmatpush.msra.mxu0 %v7865
      %8221 = vmatpush.msra.mxu0 %v7864
      %8222 = vmatpush.msra.mxu0 %v7863
      %8223 = vmatpush.msra.mxu0 %v7862
      %8224 = vmatpush.msra.mxu0 %v7861
      %8225 = vmatpush.msra.mxu0 %v7860
      %8226 = vmatpush.msra.mxu0 %v7859
      %8227 = vmatpush.msra.mxu0 %v7858
      %8228 = vmatpush.msra.mxu0 %v7857
      %8229 = vmatpush.msra.mxu0 %v7856
      %8230 = vmatpush.msra.mxu0 %v7855
      %8231 = vmatpush.msra.mxu0 %v7854
      %8232 = vmatmul.f32.gmra.mxu0 %v7758
      %v8233 = vpop.f32.mrf.mxu0
      %v8234 = vadd.f32 %v8121, %v8233
      %8235 = vmatmul.f32.gmra.mxu0 %v7759
      %v8236 = vpop.f32.mrf.mxu0
      %v8237 = vadd.f32 %v8124, %v8236
      %8238 = vmatmul.f32.gmra.mxu0 %v7760
      %v8239 = vpop.f32.mrf.mxu0
      %v8240 = vadd.f32 %v8127, %v8239
      %8241 = vmatmul.f32.gmra.mxu0 %v7761
      %v8242 = vpop.f32.mrf.mxu0
      %v8243 = vadd.f32 %v8130, %v8242
      %8244 = vmatmul.f32.gmra.mxu0 %v7762
      %v8245 = vpop.f32.mrf.mxu0
      %v8246 = vadd.f32 %v8133, %v8245
      %8247 = vmatmul.f32.gmra.mxu0 %v7763
      %v8248 = vpop.f32.mrf.mxu0
      %v8249 = vadd.f32 %v8136, %v8248
      %8250 = vmatmul.f32.gmra.mxu0 %v7764
      %v8251 = vpop.f32.mrf.mxu0
      %v8252 = vadd.f32 %v8139, %v8251
      %8253 = vmatmul.f32.gmra.mxu0 %v7765
      %v8254 = vpop.f32.mrf.mxu0
      %v8255 = vadd.f32 %v8142, %v8254
      %8256 = vmatmul.f32.gmra.mxu0 %v7766
      %v8257 = vpop.f32.mrf.mxu0
      %v8258 = vadd.f32 %v8145, %v8257
      %8259 = vmatmul.f32.gmra.mxu0 %v7767
      %v8260 = vpop.f32.mrf.mxu0
      %v8261 = vadd.f32 %v8148, %v8260
      %8262 = vmatmul.f32.gmra.mxu0 %v7768
      %v8263 = vpop.f32.mrf.mxu0
      %v8264 = vadd.f32 %v8151, %v8263
      %8265 = vmatmul.f32.gmra.mxu0 %v7769
      %v8266 = vpop.f32.mrf.mxu0
      %v8267 = vadd.f32 %v8154, %v8266
      %8268 = vmatmul.f32.gmra.mxu0 %v7770
      %v8269 = vpop.f32.mrf.mxu0
      %v8270 = vadd.f32 %v8157, %v8269
      %8271 = vmatmul.f32.gmra.mxu0 %v7771
      %v8272 = vpop.f32.mrf.mxu0
      %v8273 = vadd.f32 %v8160, %v8272
      %8274 = vmatmul.f32.gmra.mxu0 %v7772
      %v8275 = vpop.f32.mrf.mxu0
      %v8276 = vadd.f32 %v8163, %v8275
      %8277 = vmatmul.f32.gmra.mxu0 %v7773
      %v8278 = vpop.f32.mrf.mxu0
      %v8279 = vadd.f32 %v8166, %v8278
      %8280 = vmatmul.f32.gmra.mxu0 %v7774
      %v8281 = vpop.f32.mrf.mxu0
      %v8282 = vadd.f32 %v8169, %v8281
      %8283 = vmatmul.f32.gmra.mxu0 %v7775
      %v8284 = vpop.f32.mrf.mxu0
      %v8285 = vadd.f32 %v8172, %v8284
      %8286 = vmatmul.f32.gmra.mxu0 %v7776
      %v8287 = vpop.f32.mrf.mxu0
      %v8288 = vadd.f32 %v8175, %v8287
      %8289 = vmatmul.f32.gmra.mxu0 %v7777
      %v8290 = vpop.f32.mrf.mxu0
      %v8291 = vadd.f32 %v8178, %v8290
      %8292 = vmatmul.f32.gmra.mxu0 %v7778
      %v8293 = vpop.f32.mrf.mxu0
      %v8294 = vadd.f32 %v8181, %v8293
      %8295 = vmatmul.f32.gmra.mxu0 %v7779
      %v8296 = vpop.f32.mrf.mxu0
      %v8297 = vadd.f32 %v8184, %v8296
      %8298 = vmatmul.f32.gmra.mxu0 %v7780
      %v8299 = vpop.f32.mrf.mxu0
      %v8300 = vadd.f32 %v8187, %v8299
      %8301 = vmatmul.f32.gmra.mxu0 %v7781
      %v8302 = vpop.f32.mrf.mxu0
      %v8303 = vadd.f32 %v8190, %v8302
      %8304 = vmatmul.f32.gmra.mxu0 %v7782
      %v8305 = vpop.f32.mrf.mxu0
      %v8306 = vadd.f32 %v8193, %v8305
      %8307 = vmatmul.f32.gmra.mxu0 %v7783
      %v8308 = vpop.f32.mrf.mxu0
      %v8309 = vadd.f32 %v8196, %v8308
      %8310 = vmatmul.f32.gmra.mxu0 %v7784
      %v8311 = vpop.f32.mrf.mxu0
      %v8312 = vadd.f32 %v8199, %v8311
      %8313 = vmatmul.f32.gmra.mxu0 %v7785
      %v8314 = vpop.f32.mrf.mxu0
      %v8315 = vadd.f32 %v8202, %v8314
      %8316 = vmatmul.f32.gmra.mxu0 %v7786
      %v8317 = vpop.f32.mrf.mxu0
      %v8318 = vadd.f32 %v8205, %v8317
      %8319 = vmatmul.f32.gmra.mxu0 %v7787
      %v8320 = vpop.f32.mrf.mxu0
      %v8321 = vadd.f32 %v8208, %v8320
      %8322 = vmatmul.f32.gmra.mxu0 %v7788
      %v8323 = vpop.f32.mrf.mxu0
      %v8324 = vadd.f32 %v8211, %v8323
      %8325 = vmatmul.f32.gmra.mxu0 %v7789
      %v8326 = vpop.f32.mrf.mxu0
      %v8327 = vadd.f32 %v8214, %v8326
      %8328 = vdwg.mxu0
      %8329 = vmatpush.msra.mxu0 %v7885
      %8330 = vmatpush.msra.mxu0 %v7884
      %8331 = vmatpush.msra.mxu0 %v7883
      %8332 = vmatpush.msra.mxu0 %v7882
      %8333 = vmatpush.msra.mxu0 %v7881
      %8334 = vmatpush.msra.mxu0 %v7880
      %8335 = vmatpush.msra.mxu0 %v7879
      %8336 = vmatpush.msra.mxu0 %v7878
      %8337 = vmatpush.msra.mxu0 %v7877
      %8338 = vmatpush.msra.mxu0 %v7876
      %8339 = vmatpush.msra.mxu0 %v7875
      %8340 = vmatpush.msra.mxu0 %v7874
      %8341 = vmatpush.msra.mxu0 %v7873
      %8342 = vmatpush.msra.mxu0 %v7872
      %8343 = vmatpush.msra.mxu0 %v7871
      %8344 = vmatpush.msra.mxu0 %v7870
      %8345 = vmatmul.f32.gmra.mxu0 %v7790
      %v8346 = vpop.f32.mrf.mxu0
      %v8347 = vadd.f32 %v8234, %v8346
      %8348 = vmatmul.f32.gmra.mxu0 %v7791
      %v8349 = vpop.f32.mrf.mxu0
      %v8350 = vadd.f32 %v8237, %v8349
      %8351 = vmatmul.f32.gmra.mxu0 %v7792
      %v8352 = vpop.f32.mrf.mxu0
      %v8353 = vadd.f32 %v8240, %v8352
      %8354 = vmatmul.f32.gmra.mxu0 %v7793
      %v8355 = vpop.f32.mrf.mxu0
      %v8356 = vadd.f32 %v8243, %v8355
      %8357 = vmatmul.f32.gmra.mxu0 %v7794
      %v8358 = vpop.f32.mrf.mxu0
      %v8359 = vadd.f32 %v8246, %v8358
      %8360 = vmatmul.f32.gmra.mxu0 %v7795
      %v8361 = vpop.f32.mrf.mxu0
      %v8362 = vadd.f32 %v8249, %v8361
      %8363 = vmatmul.f32.gmra.mxu0 %v7796
      %v8364 = vpop.f32.mrf.mxu0
      %v8365 = vadd.f32 %v8252, %v8364
      %8366 = vmatmul.f32.gmra.mxu0 %v7797
      %v8367 = vpop.f32.mrf.mxu0
      %v8368 = vadd.f32 %v8255, %v8367
      %8369 = vmatmul.f32.gmra.mxu0 %v7798
      %v8370 = vpop.f32.mrf.mxu0
      %v8371 = vadd.f32 %v8258, %v8370
      %8372 = vmatmul.f32.gmra.mxu0 %v7799
      %v8373 = vpop.f32.mrf.mxu0
      %v8374 = vadd.f32 %v8261, %v8373
      %8375 = vmatmul.f32.gmra.mxu0 %v7800
      %v8376 = vpop.f32.mrf.mxu0
      %v8377 = vadd.f32 %v8264, %v8376
      %8378 = vmatmul.f32.gmra.mxu0 %v7801
      %v8379 = vpop.f32.mrf.mxu0
      %v8380 = vadd.f32 %v8267, %v8379
      %8381 = vmatmul.f32.gmra.mxu0 %v7802
      %v8382 = vpop.f32.mrf.mxu0
      %v8383 = vadd.f32 %v8270, %v8382
      %8384 = vmatmul.f32.gmra.mxu0 %v7803
      %v8385 = vpop.f32.mrf.mxu0
      %v8386 = vadd.f32 %v8273, %v8385
      %8387 = vmatmul.f32.gmra.mxu0 %v7804
      %v8388 = vpop.f32.mrf.mxu0
      %v8389 = vadd.f32 %v8276, %v8388
      %8390 = vmatmul.f32.gmra.mxu0 %v7805
      %v8391 = vpop.f32.mrf.mxu0
      %v8392 = vadd.f32 %v8279, %v8391
      %8393 = vmatmul.f32.gmra.mxu0 %v7806
      %v8394 = vpop.f32.mrf.mxu0
      %v8395 = vadd.f32 %v8282, %v8394
      %8396 = vmatmul.f32.gmra.mxu0 %v7807
      %v8397 = vpop.f32.mrf.mxu0
      %v8398 = vadd.f32 %v8285, %v8397
      %8399 = vmatmul.f32.gmra.mxu0 %v7808
      %v8400 = vpop.f32.mrf.mxu0
      %v8401 = vadd.f32 %v8288, %v8400
      %8402 = vmatmul.f32.gmra.mxu0 %v7809
      %v8403 = vpop.f32.mrf.mxu0
      %v8404 = vadd.f32 %v8291, %v8403
      %8405 = vmatmul.f32.gmra.mxu0 %v7810
      %v8406 = vpop.f32.mrf.mxu0
      %v8407 = vadd.f32 %v8294, %v8406
      %8408 = vmatmul.f32.gmra.mxu0 %v7811
      %v8409 = vpop.f32.mrf.mxu0
      %v8410 = vadd.f32 %v8297, %v8409
      %8411 = vmatmul.f32.gmra.mxu0 %v7812
      %v8412 = vpop.f32.mrf.mxu0
      %v8413 = vadd.f32 %v8300, %v8412
      %8414 = vmatmul.f32.gmra.mxu0 %v7813
      %v8415 = vpop.f32.mrf.mxu0
      %v8416 = vadd.f32 %v8303, %v8415
      %8417 = vmatmul.f32.gmra.mxu0 %v7814
      %v8418 = vpop.f32.mrf.mxu0
      %v8419 = vadd.f32 %v8306, %v8418
      %8420 = vmatmul.f32.gmra.mxu0 %v7815
      %v8421 = vpop.f32.mrf.mxu0
      %v8422 = vadd.f32 %v8309, %v8421
      %8423 = vmatmul.f32.gmra.mxu0 %v7816
      %v8424 = vpop.f32.mrf.mxu0
      %v8425 = vadd.f32 %v8312, %v8424
      %8426 = vmatmul.f32.gmra.mxu0 %v7817
      %v8427 = vpop.f32.mrf.mxu0
      %v8428 = vadd.f32 %v8315, %v8427
      %8429 = vmatmul.f32.gmra.mxu0 %v7818
      %v8430 = vpop.f32.mrf.mxu0
      %v8431 = vadd.f32 %v8318, %v8430
      %8432 = vmatmul.f32.gmra.mxu0 %v7819
      %v8433 = vpop.f32.mrf.mxu0
      %v8434 = vadd.f32 %v8321, %v8433
      %8435 = vmatmul.f32.gmra.mxu0 %v7820
      %v8436 = vpop.f32.mrf.mxu0
      %v8437 = vadd.f32 %v8324, %v8436
      %8438 = vmatmul.f32.gmra.mxu0 %v7821
      %v8439 = vpop.f32.mrf.mxu0
      %v8440 = vadd.f32 %v8327, %v8439
      %8441 = vdwg.mxu0
      %8442 = vmatpush.msra.mxu0 0.0
      %8443 = vmatpush.msra.mxu0 0.0
      %8444 = vmatpush.msra.mxu0 0.0
      %8445 = vmatpush.msra.mxu0 0.0
      %8446 = vmatpush.msra.mxu0 0.0
      %8447 = vmatpush.msra.mxu0 0.0
      %8448 = vmatpush.msra.mxu0 0.0
      %8449 = vmatpush.msra.mxu0 0.0
      %8450 = vmatpush.msra.mxu0 %v7893
      %8451 = vmatpush.msra.mxu0 %v7892
      %8452 = vmatpush.msra.mxu0 %v7891
      %8453 = vmatpush.msra.mxu0 %v7890
      %8454 = vmatpush.msra.mxu0 %v7889
      %8455 = vmatpush.msra.mxu0 %v7888
      %8456 = vmatpush.msra.mxu0 %v7887
      %8457 = vmatpush.msra.mxu0 %v7886
      %8458 = vmatmul.f32.gmra.mxu0 %v7895
      %v8459 = vpop.f32.mrf.mxu0
      %v8460 = vadd.f32 %v8347, %v8459
      %8461 = vmatmul.f32.gmra.mxu0 %v7898
      %v8462 = vpop.f32.mrf.mxu0
      %v8463 = vadd.f32 %v8350, %v8462
      %8464 = vmatmul.f32.gmra.mxu0 %v7901
      %v8465 = vpop.f32.mrf.mxu0
      %v8466 = vadd.f32 %v8353, %v8465
      %8467 = vmatmul.f32.gmra.mxu0 %v7904
      %v8468 = vpop.f32.mrf.mxu0
      %v8469 = vadd.f32 %v8356, %v8468
      %8470 = vmatmul.f32.gmra.mxu0 %v7907
      %v8471 = vpop.f32.mrf.mxu0
      %v8472 = vadd.f32 %v8359, %v8471
      %8473 = vmatmul.f32.gmra.mxu0 %v7910
      %v8474 = vpop.f32.mrf.mxu0
      %v8475 = vadd.f32 %v8362, %v8474
      %8476 = vmatmul.f32.gmra.mxu0 %v7913
      %v8477 = vpop.f32.mrf.mxu0
      %v8478 = vadd.f32 %v8365, %v8477
      %8479 = vmatmul.f32.gmra.mxu0 %v7916
      %v8480 = vpop.f32.mrf.mxu0
      %v8481 = vadd.f32 %v8368, %v8480
      %8482 = vmatmul.f32.gmra.mxu0 %v7919
      %v8483 = vpop.f32.mrf.mxu0
      %v8484 = vadd.f32 %v8371, %v8483
      %8485 = vmatmul.f32.gmra.mxu0 %v7922
      %v8486 = vpop.f32.mrf.mxu0
      %v8487 = vadd.f32 %v8374, %v8486
      %8488 = vmatmul.f32.gmra.mxu0 %v7925
      %v8489 = vpop.f32.mrf.mxu0
      %v8490 = vadd.f32 %v8377, %v8489
      %8491 = vmatmul.f32.gmra.mxu0 %v7928
      %v8492 = vpop.f32.mrf.mxu0
      %v8493 = vadd.f32 %v8380, %v8492
      %8494 = vmatmul.f32.gmra.mxu0 %v7931
      %v8495 = vpop.f32.mrf.mxu0
      %v8496 = vadd.f32 %v8383, %v8495
      %8497 = vmatmul.f32.gmra.mxu0 %v7934
      %v8498 = vpop.f32.mrf.mxu0
      %v8499 = vadd.f32 %v8386, %v8498
      %8500 = vmatmul.f32.gmra.mxu0 %v7937
      %v8501 = vpop.f32.mrf.mxu0
      %v8502 = vadd.f32 %v8389, %v8501
      %8503 = vmatmul.f32.gmra.mxu0 %v7940
      %v8504 = vpop.f32.mrf.mxu0
      %v8505 = vadd.f32 %v8392, %v8504
      %8506 = vmatmul.f32.gmra.mxu0 %v7943
      %v8507 = vpop.f32.mrf.mxu0
      %v8508 = vadd.f32 %v8395, %v8507
      %8509 = vmatmul.f32.gmra.mxu0 %v7946
      %v8510 = vpop.f32.mrf.mxu0
      %v8511 = vadd.f32 %v8398, %v8510
      %8512 = vmatmul.f32.gmra.mxu0 %v7949
      %v8513 = vpop.f32.mrf.mxu0
      %v8514 = vadd.f32 %v8401, %v8513
      %8515 = vmatmul.f32.gmra.mxu0 %v7952
      %v8516 = vpop.f32.mrf.mxu0
      %v8517 = vadd.f32 %v8404, %v8516
      %8518 = vmatmul.f32.gmra.mxu0 %v7955
      %v8519 = vpop.f32.mrf.mxu0
      %v8520 = vadd.f32 %v8407, %v8519
      %8521 = vmatmul.f32.gmra.mxu0 %v7958
      %v8522 = vpop.f32.mrf.mxu0
      %v8523 = vadd.f32 %v8410, %v8522
      %8524 = vmatmul.f32.gmra.mxu0 %v7961
      %v8525 = vpop.f32.mrf.mxu0
      %v8526 = vadd.f32 %v8413, %v8525
      %8527 = vmatmul.f32.gmra.mxu0 %v7964
      %v8528 = vpop.f32.mrf.mxu0
      %v8529 = vadd.f32 %v8416, %v8528
      %8530 = vmatmul.f32.gmra.mxu0 %v7967
      %v8531 = vpop.f32.mrf.mxu0
      %v8532 = vadd.f32 %v8419, %v8531
      %8533 = vmatmul.f32.gmra.mxu0 %v7970
      %v8534 = vpop.f32.mrf.mxu0
      %v8535 = vadd.f32 %v8422, %v8534
      %8536 = vmatmul.f32.gmra.mxu0 %v7973
      %v8537 = vpop.f32.mrf.mxu0
      %v8538 = vadd.f32 %v8425, %v8537
      %8539 = vmatmul.f32.gmra.mxu0 %v7976
      %v8540 = vpop.f32.mrf.mxu0
      %v8541 = vadd.f32 %v8428, %v8540
      %8542 = vmatmul.f32.gmra.mxu0 %v7979
      %v8543 = vpop.f32.mrf.mxu0
      %v8544 = vadd.f32 %v8431, %v8543
      %8545 = vmatmul.f32.gmra.mxu0 %v7982
      %v8546 = vpop.f32.mrf.mxu0
      %v8547 = vadd.f32 %v8434, %v8546
      %8548 = vmatmul.f32.gmra.mxu0 %v7985
      %v8549 = vpop.f32.mrf.mxu0
      %v8550 = vadd.f32 %v8437, %v8549
      %8551 = vmatmul.f32.gmra.mxu0 %v7988
      %v8552 = vpop.f32.mrf.mxu0
      %v8553 = vadd.f32 %v8440, %v8552
      %8554 = vdwg.mxu0
      %v8555 = vmax.f32 %v8460, 0.0
      %v8556 = vmax.f32 %v8463, 0.0
      %v8557 = vmax.f32 %v8466, 0.0
      %v8558 = vmax.f32 %v8469, 0.0
      %v8559 = vmax.f32 %v8472, 0.0
      %v8560 = vmax.f32 %v8475, 0.0
      %v8561 = vmax.f32 %v8478, 0.0
      %v8562 = vmax.f32 %v8481, 0.0
      %v8563 = vmax.f32 %v8484, 0.0
      %v8564 = vmax.f32 %v8487, 0.0
      %v8565 = vmax.f32 %v8490, 0.0
      %v8566 = vmax.f32 %v8493, 0.0
      %v8567 = vmax.f32 %v8496, 0.0
      %v8568 = vmax.f32 %v8499, 0.0
      %v8569 = vmax.f32 %v8502, 0.0
      %v8570 = vmax.f32 %v8505, 0.0
      %v8571 = vmax.f32 %v8508, 0.0
      %v8572 = vmax.f32 %v8511, 0.0
      %v8573 = vmax.f32 %v8514, 0.0
      %v8574 = vmax.f32 %v8517, 0.0
      %v8575 = vmax.f32 %v8520, 0.0
      %v8576 = vmax.f32 %v8523, 0.0
      %v8577 = vmax.f32 %v8526, 0.0
      %v8578 = vmax.f32 %v8529, 0.0
      %v8579 = vmax.f32 %v8532, 0.0
      %v8580 = vmax.f32 %v8535, 0.0
      %v8581 = vmax.f32 %v8538, 0.0
      %v8582 = vmax.f32 %v8541, 0.0
      %v8583 = vmax.f32 %v8544, 0.0
      %v8584 = vmax.f32 %v8547, 0.0
      %v8585 = vmax.f32 %v8550, 0.0
      %v8586 = vmax.f32 %v8553, 0.0
      %s8587 = scalar_lea.vmem [#allocation4], 32
      %8588 = vst.msk [vmem:[%s8587 + $0x8] sm:$0xff] %vm1126, %v8555
      %8589 = vst.msk [vmem:[%s8587 + $0x10] sm:$0xff] %vm1126, %v8556
      %8590 = vst.msk [vmem:[%s8587 + $0x28] sm:$0xff] %vm1126, %v8557
      %8591 = vst.msk [vmem:[%s8587 + $0x30] sm:$0xff] %vm1126, %v8558
      %8592 = vst.msk [vmem:[%s8587 + $0x48] sm:$0xff] %vm1126, %v8559
      %8593 = vst.msk [vmem:[%s8587 + $0x50] sm:$0xff] %vm1126, %v8560
      %8594 = vst.msk [vmem:[%s8587 + $0x68] sm:$0xff] %vm1126, %v8561
      %8595 = vst.msk [vmem:[%s8587 + $0x70] sm:$0xff] %vm1126, %v8562
      %8596 = vst.msk [vmem:[%s8587 + $0x88] sm:$0xff] %vm1126, %v8563
      %8597 = vst.msk [vmem:[%s8587 + $0x90] sm:$0xff] %vm1126, %v8564
      %8598 = vst.msk [vmem:[%s8587 + $0xa8] sm:$0xff] %vm1126, %v8565
      %8599 = vst.msk [vmem:[%s8587 + $0xb0] sm:$0xff] %vm1126, %v8566
      %8600 = vst.msk [vmem:[%s8587 + $0xc8] sm:$0xff] %vm1126, %v8567
      %8601 = vst.msk [vmem:[%s8587 + $0xd0] sm:$0xff] %vm1126, %v8568
      %8602 = vst.msk [vmem:[%s8587 + $0xe8] sm:$0xff] %vm1126, %v8569
      %8603 = vst.msk [vmem:[%s8587 + $0xf0] sm:$0xff] %vm1126, %v8570
      %8604 = vst.msk [vmem:[%s8587 + $0x108] sm:$0xff] %vm1126, %v8571
      %8605 = vst.msk [vmem:[%s8587 + $0x110] sm:$0xff] %vm1126, %v8572
      %8606 = vst.msk [vmem:[%s8587 + $0x128] sm:$0xff] %vm1126, %v8573
      %8607 = vst.msk [vmem:[%s8587 + $0x130] sm:$0xff] %vm1126, %v8574
      %8608 = vst.msk [vmem:[%s8587 + $0x148] sm:$0xff] %vm1126, %v8575
      %8609 = vst.msk [vmem:[%s8587 + $0x150] sm:$0xff] %vm1126, %v8576
      %8610 = vst.msk [vmem:[%s8587 + $0x168] sm:$0xff] %vm1126, %v8577
      %8611 = vst.msk [vmem:[%s8587 + $0x170] sm:$0xff] %vm1126, %v8578
      %8612 = vst.msk [vmem:[%s8587 + $0x188] sm:$0xff] %vm1126, %v8579
      %8613 = vst.msk [vmem:[%s8587 + $0x190] sm:$0xff] %vm1126, %v8580
      %8614 = vst.msk [vmem:[%s8587 + $0x1a8] sm:$0xff] %vm1126, %v8581
      %8615 = vst.msk [vmem:[%s8587 + $0x1b0] sm:$0xff] %vm1126, %v8582
      %8616 = vst.msk [vmem:[%s8587 + $0x1c8] sm:$0xff] %vm1126, %v8583
      %8617 = vst.msk [vmem:[%s8587 + $0x1d0] sm:$0xff] %vm1126, %v8584
      %8618 = vst.msk [vmem:[%s8587 + $0x1e8] sm:$0xff] %vm1126, %v8585
      %8619 = vst.msk [vmem:[%s8587 + $0x1f0] sm:$0xff] %vm1126, %v8586
      %v8620 = vld [vmem:[#allocation4 + $0x7] sm:$0xff]
      %v8621 = vld [vmem:[#allocation4 + $0xf] sm:$0xff]
      %v8622 = vld [vmem:[#allocation4 + $0x27] sm:$0xff]
      %v8623 = vld [vmem:[#allocation4 + $0x2f] sm:$0xff]
      %v8624 = vld [vmem:[#allocation4 + $0x47] sm:$0xff]
      %v8625 = vld [vmem:[#allocation4 + $0x4f] sm:$0xff]
      %v8626 = vld [vmem:[#allocation4 + $0x67] sm:$0xff]
      %v8627 = vld [vmem:[#allocation4 + $0x6f] sm:$0xff]
      %v8628 = vld [vmem:[#allocation4 + $0x87] sm:$0xff]
      %v8629 = vld [vmem:[#allocation4 + $0x8f] sm:$0xff]
      %v8630 = vld [vmem:[#allocation4 + $0xa7] sm:$0xff]
      %v8631 = vld [vmem:[#allocation4 + $0xaf] sm:$0xff]
      %v8632 = vld [vmem:[#allocation4 + $0xc7] sm:$0xff]
      %v8633 = vld [vmem:[#allocation4 + $0xcf] sm:$0xff]
      %v8634 = vld [vmem:[#allocation4 + $0xe7] sm:$0xff]
      %v8635 = vld [vmem:[#allocation4 + $0xef] sm:$0xff]
      %v8636 = vld [vmem:[#allocation4 + $0x107] sm:$0xff]
      %v8637 = vld [vmem:[#allocation4 + $0x10f] sm:$0xff]
      %v8638 = vld [vmem:[#allocation4 + $0x127] sm:$0xff]
      %v8639 = vld [vmem:[#allocation4 + $0x12f] sm:$0xff]
      %v8640 = vld [vmem:[#allocation4 + $0x147] sm:$0xff]
      %v8641 = vld [vmem:[#allocation4 + $0x14f] sm:$0xff]
      %v8642 = vld [vmem:[#allocation4 + $0x167] sm:$0xff]
      %v8643 = vld [vmem:[#allocation4 + $0x16f] sm:$0xff]
      %v8644 = vld [vmem:[#allocation4 + $0x187] sm:$0xff]
      %v8645 = vld [vmem:[#allocation4 + $0x18f] sm:$0xff]
      %v8646 = vld [vmem:[#allocation4 + $0x1a7] sm:$0xff]
      %v8647 = vld [vmem:[#allocation4 + $0x1af] sm:$0xff]
      %v8648 = vld [vmem:[#allocation4 + $0x1c7] sm:$0xff]
      %v8649 = vld [vmem:[#allocation4 + $0x1cf] sm:$0xff]
      %v8650 = vld [vmem:[#allocation4 + $0x1e7] sm:$0xff]
      %v8651 = vld [vmem:[#allocation4 + $0x1ef] sm:$0xff]
      %v8652 = vld [vmem:[#allocation4 + $0x8] sm:$0xff]
      %v8653 = vld [vmem:[#allocation4 + $0x10] sm:$0xff]
      %v8654 = vld [vmem:[#allocation4 + $0x28] sm:$0xff]
      %v8655 = vld [vmem:[#allocation4 + $0x30] sm:$0xff]
      %v8656 = vld [vmem:[#allocation4 + $0x48] sm:$0xff]
      %v8657 = vld [vmem:[#allocation4 + $0x50] sm:$0xff]
      %v8658 = vld [vmem:[#allocation4 + $0x68] sm:$0xff]
      %v8659 = vld [vmem:[#allocation4 + $0x70] sm:$0xff]
      %v8660 = vld [vmem:[#allocation4 + $0x88] sm:$0xff]
      %v8661 = vld [vmem:[#allocation4 + $0x90] sm:$0xff]
      %v8662 = vld [vmem:[#allocation4 + $0xa8] sm:$0xff]
      %v8663 = vld [vmem:[#allocation4 + $0xb0] sm:$0xff]
      %v8664 = vld [vmem:[#allocation4 + $0xc8] sm:$0xff]
      %v8665 = vld [vmem:[#allocation4 + $0xd0] sm:$0xff]
      %v8666 = vld [vmem:[#allocation4 + $0xe8] sm:$0xff]
      %v8667 = vld [vmem:[#allocation4 + $0xf0] sm:$0xff]
      %v8668 = vld [vmem:[#allocation4 + $0x108] sm:$0xff]
      %v8669 = vld [vmem:[#allocation4 + $0x110] sm:$0xff]
      %v8670 = vld [vmem:[#allocation4 + $0x128] sm:$0xff]
      %v8671 = vld [vmem:[#allocation4 + $0x130] sm:$0xff]
      %v8672 = vld [vmem:[#allocation4 + $0x148] sm:$0xff]
      %v8673 = vld [vmem:[#allocation4 + $0x150] sm:$0xff]
      %v8674 = vld [vmem:[#allocation4 + $0x168] sm:$0xff]
      %v8675 = vld [vmem:[#allocation4 + $0x170] sm:$0xff]
      %v8676 = vld [vmem:[#allocation4 + $0x188] sm:$0xff]
      %v8677 = vld [vmem:[#allocation4 + $0x190] sm:$0xff]
      %v8678 = vld [vmem:[#allocation4 + $0x1a8] sm:$0xff]
      %v8679 = vld [vmem:[#allocation4 + $0x1b0] sm:$0xff]
      %v8680 = vld [vmem:[#allocation4 + $0x1c8] sm:$0xff]
      %v8681 = vld [vmem:[#allocation4 + $0x1d0] sm:$0xff]
      %v8682 = vld [vmem:[#allocation4 + $0x1e8] sm:$0xff]
      %v8683 = vld [vmem:[#allocation4 + $0x1f0] sm:$0xff]
      %v8684 = vld [vmem:[#allocation4 + $0x9] sm:$0xff]
      %v8685 = vld [vmem:[#allocation4 + $0x11] sm:$0xff]
      %v8686 = vld [vmem:[#allocation4 + $0x29] sm:$0xff]
      %v8687 = vld [vmem:[#allocation4 + $0x31] sm:$0xff]
      %v8688 = vld [vmem:[#allocation4 + $0x49] sm:$0xff]
      %v8689 = vld [vmem:[#allocation4 + $0x51] sm:$0xff]
      %v8690 = vld [vmem:[#allocation4 + $0x69] sm:$0xff]
      %v8691 = vld [vmem:[#allocation4 + $0x71] sm:$0xff]
      %v8692 = vld [vmem:[#allocation4 + $0x89] sm:$0xff]
      %v8693 = vld [vmem:[#allocation4 + $0x91] sm:$0xff]
      %v8694 = vld [vmem:[#allocation4 + $0xa9] sm:$0xff]
      %v8695 = vld [vmem:[#allocation4 + $0xb1] sm:$0xff]
      %v8696 = vld [vmem:[#allocation4 + $0xc9] sm:$0xff]
      %v8697 = vld [vmem:[#allocation4 + $0xd1] sm:$0xff]
      %v8698 = vld [vmem:[#allocation4 + $0xe9] sm:$0xff]
      %v8699 = vld [vmem:[#allocation4 + $0xf1] sm:$0xff]
      %v8700 = vld [vmem:[#allocation4 + $0x109] sm:$0xff]
      %v8701 = vld [vmem:[#allocation4 + $0x111] sm:$0xff]
      %v8702 = vld [vmem:[#allocation4 + $0x129] sm:$0xff]
      %v8703 = vld [vmem:[#allocation4 + $0x131] sm:$0xff]
      %v8704 = vld [vmem:[#allocation4 + $0x149] sm:$0xff]
      %v8705 = vld [vmem:[#allocation4 + $0x151] sm:$0xff]
      %v8706 = vld [vmem:[#allocation4 + $0x169] sm:$0xff]
      %v8707 = vld [vmem:[#allocation4 + $0x171] sm:$0xff]
      %v8708 = vld [vmem:[#allocation4 + $0x189] sm:$0xff]
      %v8709 = vld [vmem:[#allocation4 + $0x191] sm:$0xff]
      %v8710 = vld [vmem:[#allocation4 + $0x1a9] sm:$0xff]
      %v8711 = vld [vmem:[#allocation4 + $0x1b1] sm:$0xff]
      %v8712 = vld [vmem:[#allocation4 + $0x1c9] sm:$0xff]
      %v8713 = vld [vmem:[#allocation4 + $0x1d1] sm:$0xff]
      %v8714 = vld [vmem:[#allocation4 + $0x1e9] sm:$0xff]
      %v8715 = vld [vmem:[#allocation4 + $0x1f1] sm:$0xff]
      %v8716 = vld [vmem:[%s8587 + $0x7] sm:$0xff]
      %v8717 = vld [vmem:[%s8587 + $0xf] sm:$0xff]
      %v8718 = vld [vmem:[%s8587 + $0x27] sm:$0xff]
      %v8719 = vld [vmem:[%s8587 + $0x2f] sm:$0xff]
      %v8720 = vld [vmem:[%s8587 + $0x47] sm:$0xff]
      %v8721 = vld [vmem:[%s8587 + $0x4f] sm:$0xff]
      %v8722 = vld [vmem:[%s8587 + $0x67] sm:$0xff]
      %v8723 = vld [vmem:[%s8587 + $0x6f] sm:$0xff]
      %v8724 = vld [vmem:[%s8587 + $0x87] sm:$0xff]
      %v8725 = vld [vmem:[%s8587 + $0x8f] sm:$0xff]
      %v8726 = vld [vmem:[%s8587 + $0xa7] sm:$0xff]
      %v8727 = vld [vmem:[%s8587 + $0xaf] sm:$0xff]
      %v8728 = vld [vmem:[%s8587 + $0xc7] sm:$0xff]
      %v8729 = vld [vmem:[%s8587 + $0xcf] sm:$0xff]
      %v8730 = vld [vmem:[%s8587 + $0xe7] sm:$0xff]
      %v8731 = vld [vmem:[%s8587 + $0xef] sm:$0xff]
      %v8732 = vld [vmem:[%s8587 + $0x107] sm:$0xff]
      %v8733 = vld [vmem:[%s8587 + $0x10f] sm:$0xff]
      %v8734 = vld [vmem:[%s8587 + $0x127] sm:$0xff]
      %v8735 = vld [vmem:[%s8587 + $0x12f] sm:$0xff]
      %v8736 = vld [vmem:[%s8587 + $0x147] sm:$0xff]
      %v8737 = vld [vmem:[%s8587 + $0x14f] sm:$0xff]
      %v8738 = vld [vmem:[%s8587 + $0x167] sm:$0xff]
      %v8739 = vld [vmem:[%s8587 + $0x16f] sm:$0xff]
      %v8740 = vld [vmem:[%s8587 + $0x187] sm:$0xff]
      %v8741 = vld [vmem:[%s8587 + $0x18f] sm:$0xff]
      %v8742 = vld [vmem:[%s8587 + $0x1a7] sm:$0xff]
      %v8743 = vld [vmem:[%s8587 + $0x1af] sm:$0xff]
      %v8744 = vld [vmem:[%s8587 + $0x1c7] sm:$0xff]
      %v8745 = vld [vmem:[%s8587 + $0x1cf] sm:$0xff]
      %v8746 = vld [vmem:[%s8587 + $0x1e7] sm:$0xff]
      %v8747 = vld [vmem:[%s8587 + $0x1ef] sm:$0xff]
      %v8748 = vld [vmem:[%s8587 + $0x8] sm:$0xff]
      %v8749 = vld [vmem:[%s8587 + $0x10] sm:$0xff]
      %v8750 = vld [vmem:[%s8587 + $0x28] sm:$0xff]
      %v8751 = vld [vmem:[%s8587 + $0x30] sm:$0xff]
      %v8752 = vld [vmem:[%s8587 + $0x48] sm:$0xff]
      %v8753 = vld [vmem:[%s8587 + $0x50] sm:$0xff]
      %v8754 = vld [vmem:[%s8587 + $0x68] sm:$0xff]
      %v8755 = vld [vmem:[%s8587 + $0x70] sm:$0xff]
      %v8756 = vld [vmem:[%s8587 + $0x88] sm:$0xff]
      %v8757 = vld [vmem:[%s8587 + $0x90] sm:$0xff]
      %v8758 = vld [vmem:[%s8587 + $0xa8] sm:$0xff]
      %v8759 = vld [vmem:[%s8587 + $0xb0] sm:$0xff]
      %v8760 = vld [vmem:[%s8587 + $0xc8] sm:$0xff]
      %v8761 = vld [vmem:[%s8587 + $0xd0] sm:$0xff]
      %v8762 = vld [vmem:[%s8587 + $0xe8] sm:$0xff]
      %v8763 = vld [vmem:[%s8587 + $0xf0] sm:$0xff]
      %v8764 = vld [vmem:[%s8587 + $0x108] sm:$0xff]
      %v8765 = vld [vmem:[%s8587 + $0x110] sm:$0xff]
      %v8766 = vld [vmem:[%s8587 + $0x128] sm:$0xff]
      %v8767 = vld [vmem:[%s8587 + $0x130] sm:$0xff]
      %v8768 = vld [vmem:[%s8587 + $0x148] sm:$0xff]
      %v8769 = vld [vmem:[%s8587 + $0x150] sm:$0xff]
      %v8770 = vld [vmem:[%s8587 + $0x168] sm:$0xff]
      %v8771 = vld [vmem:[%s8587 + $0x170] sm:$0xff]
      %v8772 = vld [vmem:[%s8587 + $0x188] sm:$0xff]
      %v8773 = vld [vmem:[%s8587 + $0x190] sm:$0xff]
      %v8774 = vld [vmem:[%s8587 + $0x1a8] sm:$0xff]
      %v8775 = vld [vmem:[%s8587 + $0x1b0] sm:$0xff]
      %v8776 = vld [vmem:[%s8587 + $0x1c8] sm:$0xff]
      %v8777 = vld [vmem:[%s8587 + $0x1d0] sm:$0xff]
      %v8778 = vld [vmem:[%s8587 + $0x1e8] sm:$0xff]
      %v8779 = vld [vmem:[%s8587 + $0x1f0] sm:$0xff]
      %v8780 = vld [vmem:[%s8587 + $0x9] sm:$0xff]
      %v8781 = vld [vmem:[%s8587 + $0x11] sm:$0xff]
      %v8782 = vld [vmem:[%s8587 + $0x29] sm:$0xff]
      %v8783 = vld [vmem:[%s8587 + $0x31] sm:$0xff]
      %v8784 = vld [vmem:[%s8587 + $0x49] sm:$0xff]
      %v8785 = vld [vmem:[%s8587 + $0x51] sm:$0xff]
      %v8786 = vld [vmem:[%s8587 + $0x69] sm:$0xff]
      %v8787 = vld [vmem:[%s8587 + $0x71] sm:$0xff]
      %v8788 = vld [vmem:[%s8587 + $0x89] sm:$0xff]
      %v8789 = vld [vmem:[%s8587 + $0x91] sm:$0xff]
      %v8790 = vld [vmem:[%s8587 + $0xa9] sm:$0xff]
      %v8791 = vld [vmem:[%s8587 + $0xb1] sm:$0xff]
      %v8792 = vld [vmem:[%s8587 + $0xc9] sm:$0xff]
      %v8793 = vld [vmem:[%s8587 + $0xd1] sm:$0xff]
      %v8794 = vld [vmem:[%s8587 + $0xe9] sm:$0xff]
      %v8795 = vld [vmem:[%s8587 + $0xf1] sm:$0xff]
      %v8796 = vld [vmem:[%s8587 + $0x109] sm:$0xff]
      %v8797 = vld [vmem:[%s8587 + $0x111] sm:$0xff]
      %v8798 = vld [vmem:[%s8587 + $0x129] sm:$0xff]
      %v8799 = vld [vmem:[%s8587 + $0x131] sm:$0xff]
      %v8800 = vld [vmem:[%s8587 + $0x149] sm:$0xff]
      %v8801 = vld [vmem:[%s8587 + $0x151] sm:$0xff]
      %v8802 = vld [vmem:[%s8587 + $0x169] sm:$0xff]
      %v8803 = vld [vmem:[%s8587 + $0x171] sm:$0xff]
      %v8804 = vld [vmem:[%s8587 + $0x189] sm:$0xff]
      %v8805 = vld [vmem:[%s8587 + $0x191] sm:$0xff]
      %v8806 = vld [vmem:[%s8587 + $0x1a9] sm:$0xff]
      %v8807 = vld [vmem:[%s8587 + $0x1b1] sm:$0xff]
      %v8808 = vld [vmem:[%s8587 + $0x1c9] sm:$0xff]
      %v8809 = vld [vmem:[%s8587 + $0x1d1] sm:$0xff]
      %v8810 = vld [vmem:[%s8587 + $0x1e9] sm:$0xff]
      %v8811 = vld [vmem:[%s8587 + $0x1f1] sm:$0xff]
      %s8812 = scalar_lea.vmem [#allocation4], 64
      %v8813 = vld [vmem:[%s8812 + $0x7] sm:$0xff]
      %v8814 = vld [vmem:[%s8812 + $0xf] sm:$0xff]
      %v8815 = vld [vmem:[%s8812 + $0x27] sm:$0xff]
      %v8816 = vld [vmem:[%s8812 + $0x2f] sm:$0xff]
      %v8817 = vld [vmem:[%s8812 + $0x47] sm:$0xff]
      %v8818 = vld [vmem:[%s8812 + $0x4f] sm:$0xff]
      %v8819 = vld [vmem:[%s8812 + $0x67] sm:$0xff]
      %v8820 = vld [vmem:[%s8812 + $0x6f] sm:$0xff]
      %v8821 = vld [vmem:[%s8812 + $0x87] sm:$0xff]
      %v8822 = vld [vmem:[%s8812 + $0x8f] sm:$0xff]
      %v8823 = vld [vmem:[%s8812 + $0xa7] sm:$0xff]
      %v8824 = vld [vmem:[%s8812 + $0xaf] sm:$0xff]
      %v8825 = vld [vmem:[%s8812 + $0xc7] sm:$0xff]
      %v8826 = vld [vmem:[%s8812 + $0xcf] sm:$0xff]
      %v8827 = vld [vmem:[%s8812 + $0xe7] sm:$0xff]
      %v8828 = vld [vmem:[%s8812 + $0xef] sm:$0xff]
      %v8829 = vld [vmem:[%s8812 + $0x107] sm:$0xff]
      %v8830 = vld [vmem:[%s8812 + $0x10f] sm:$0xff]
      %v8831 = vld [vmem:[%s8812 + $0x127] sm:$0xff]
      %v8832 = vld [vmem:[%s8812 + $0x12f] sm:$0xff]
      %v8833 = vld [vmem:[%s8812 + $0x147] sm:$0xff]
      %v8834 = vld [vmem:[%s8812 + $0x14f] sm:$0xff]
      %v8835 = vld [vmem:[%s8812 + $0x167] sm:$0xff]
      %v8836 = vld [vmem:[%s8812 + $0x16f] sm:$0xff]
      %v8837 = vld [vmem:[%s8812 + $0x187] sm:$0xff]
      %v8838 = vld [vmem:[%s8812 + $0x18f] sm:$0xff]
      %v8839 = vld [vmem:[%s8812 + $0x1a7] sm:$0xff]
      %v8840 = vld [vmem:[%s8812 + $0x1af] sm:$0xff]
      %v8841 = vld [vmem:[%s8812 + $0x1c7] sm:$0xff]
      %v8842 = vld [vmem:[%s8812 + $0x1cf] sm:$0xff]
      %v8843 = vld [vmem:[%s8812 + $0x1e7] sm:$0xff]
      %v8844 = vld [vmem:[%s8812 + $0x1ef] sm:$0xff]
      %v8845 = vld [vmem:[%s8812 + $0x8] sm:$0xff]
      %v8846 = vld [vmem:[%s8812 + $0x10] sm:$0xff]
      %v8847 = vld [vmem:[%s8812 + $0x28] sm:$0xff]
      %v8848 = vld [vmem:[%s8812 + $0x30] sm:$0xff]
      %v8849 = vld [vmem:[%s8812 + $0x48] sm:$0xff]
      %v8850 = vld [vmem:[%s8812 + $0x50] sm:$0xff]
      %v8851 = vld [vmem:[%s8812 + $0x68] sm:$0xff]
      %v8852 = vld [vmem:[%s8812 + $0x70] sm:$0xff]
      %v8853 = vld [vmem:[%s8812 + $0x88] sm:$0xff]
      %v8854 = vld [vmem:[%s8812 + $0x90] sm:$0xff]
      %v8855 = vld [vmem:[%s8812 + $0xa8] sm:$0xff]
      %v8856 = vld [vmem:[%s8812 + $0xb0] sm:$0xff]
      %v8857 = vld [vmem:[%s8812 + $0xc8] sm:$0xff]
      %v8858 = vld [vmem:[%s8812 + $0xd0] sm:$0xff]
      %v8859 = vld [vmem:[%s8812 + $0xe8] sm:$0xff]
      %v8860 = vld [vmem:[%s8812 + $0xf0] sm:$0xff]
      %v8861 = vld [vmem:[%s8812 + $0x108] sm:$0xff]
      %v8862 = vld [vmem:[%s8812 + $0x110] sm:$0xff]
      %v8863 = vld [vmem:[%s8812 + $0x128] sm:$0xff]
      %v8864 = vld [vmem:[%s8812 + $0x130] sm:$0xff]
      %v8865 = vld [vmem:[%s8812 + $0x148] sm:$0xff]
      %v8866 = vld [vmem:[%s8812 + $0x150] sm:$0xff]
      %v8867 = vld [vmem:[%s8812 + $0x168] sm:$0xff]
      %v8868 = vld [vmem:[%s8812 + $0x170] sm:$0xff]
      %v8869 = vld [vmem:[%s8812 + $0x188] sm:$0xff]
      %v8870 = vld [vmem:[%s8812 + $0x190] sm:$0xff]
      %v8871 = vld [vmem:[%s8812 + $0x1a8] sm:$0xff]
      %v8872 = vld [vmem:[%s8812 + $0x1b0] sm:$0xff]
      %v8873 = vld [vmem:[%s8812 + $0x1c8] sm:$0xff]
      %v8874 = vld [vmem:[%s8812 + $0x1d0] sm:$0xff]
      %v8875 = vld [vmem:[%s8812 + $0x1e8] sm:$0xff]
      %v8876 = vld [vmem:[%s8812 + $0x1f0] sm:$0xff]
      %v8877 = vld [vmem:[%s8812 + $0x9] sm:$0xff]
      %v8878 = vld [vmem:[%s8812 + $0x11] sm:$0xff]
      %v8879 = vld [vmem:[%s8812 + $0x29] sm:$0xff]
      %v8880 = vld [vmem:[%s8812 + $0x31] sm:$0xff]
      %v8881 = vld [vmem:[%s8812 + $0x49] sm:$0xff]
      %v8882 = vld [vmem:[%s8812 + $0x51] sm:$0xff]
      %v8883 = vld [vmem:[%s8812 + $0x69] sm:$0xff]
      %v8884 = vld [vmem:[%s8812 + $0x71] sm:$0xff]
      %v8885 = vld [vmem:[%s8812 + $0x89] sm:$0xff]
      %v8886 = vld [vmem:[%s8812 + $0x91] sm:$0xff]
      %v8887 = vld [vmem:[%s8812 + $0xa9] sm:$0xff]
      %v8888 = vld [vmem:[%s8812 + $0xb1] sm:$0xff]
      %v8889 = vld [vmem:[%s8812 + $0xc9] sm:$0xff]
      %v8890 = vld [vmem:[%s8812 + $0xd1] sm:$0xff]
      %v8891 = vld [vmem:[%s8812 + $0xe9] sm:$0xff]
      %v8892 = vld [vmem:[%s8812 + $0xf1] sm:$0xff]
      %v8893 = vld [vmem:[%s8812 + $0x109] sm:$0xff]
      %v8894 = vld [vmem:[%s8812 + $0x111] sm:$0xff]
      %v8895 = vld [vmem:[%s8812 + $0x129] sm:$0xff]
      %v8896 = vld [vmem:[%s8812 + $0x131] sm:$0xff]
      %v8897 = vld [vmem:[%s8812 + $0x149] sm:$0xff]
      %v8898 = vld [vmem:[%s8812 + $0x151] sm:$0xff]
      %v8899 = vld [vmem:[%s8812 + $0x169] sm:$0xff]
      %v8900 = vld [vmem:[%s8812 + $0x171] sm:$0xff]
      %v8901 = vld [vmem:[%s8812 + $0x189] sm:$0xff]
      %v8902 = vld [vmem:[%s8812 + $0x191] sm:$0xff]
      %v8903 = vld [vmem:[%s8812 + $0x1a9] sm:$0xff]
      %v8904 = vld [vmem:[%s8812 + $0x1b1] sm:$0xff]
      %v8905 = vld [vmem:[%s8812 + $0x1c9] sm:$0xff]
      %v8906 = vld [vmem:[%s8812 + $0x1d1] sm:$0xff]
      %v8907 = vld [vmem:[%s8812 + $0x1e9] sm:$0xff]
      %v8908 = vld [vmem:[%s8812 + $0x1f1] sm:$0xff]
      %8941 = vrot.lane.b32.xlu0 %v8652, 96
      %v8942 = vpop.permute.xlu0 %8941
      %8943 = vrot.lane.b32.xlu0 %v8653, 96
      %v8944 = vpop.permute.xlu0 %8943
      %8945 = vrot.lane.b32.xlu0 %v8654, 96
      %v8946 = vpop.permute.xlu0 %8945
      %8947 = vrot.lane.b32.xlu0 %v8655, 96
      %v8948 = vpop.permute.xlu0 %8947
      %8949 = vrot.lane.b32.xlu0 %v8656, 96
      %v8950 = vpop.permute.xlu0 %8949
      %8951 = vrot.lane.b32.xlu0 %v8657, 96
      %v8952 = vpop.permute.xlu0 %8951
      %8953 = vrot.lane.b32.xlu0 %v8658, 96
      %v8954 = vpop.permute.xlu0 %8953
      %8955 = vrot.lane.b32.xlu0 %v8659, 96
      %v8956 = vpop.permute.xlu0 %8955
      %8957 = vrot.lane.b32.xlu0 %v8660, 96
      %v8958 = vpop.permute.xlu0 %8957
      %8959 = vrot.lane.b32.xlu0 %v8661, 96
      %v8960 = vpop.permute.xlu0 %8959
      %8961 = vrot.lane.b32.xlu0 %v8662, 96
      %v8962 = vpop.permute.xlu0 %8961
      %8963 = vrot.lane.b32.xlu0 %v8663, 96
      %v8964 = vpop.permute.xlu0 %8963
      %8965 = vrot.lane.b32.xlu0 %v8664, 96
      %v8966 = vpop.permute.xlu0 %8965
      %8967 = vrot.lane.b32.xlu0 %v8665, 96
      %v8968 = vpop.permute.xlu0 %8967
      %8969 = vrot.lane.b32.xlu0 %v8666, 96
      %v8970 = vpop.permute.xlu0 %8969
      %8971 = vrot.lane.b32.xlu0 %v8667, 96
      %v8972 = vpop.permute.xlu0 %8971
      %8973 = vrot.lane.b32.xlu0 %v8668, 96
      %v8974 = vpop.permute.xlu0 %8973
      %8975 = vrot.lane.b32.xlu0 %v8669, 96
      %v8976 = vpop.permute.xlu0 %8975
      %8977 = vrot.lane.b32.xlu0 %v8670, 96
      %v8978 = vpop.permute.xlu0 %8977
      %8979 = vrot.lane.b32.xlu0 %v8671, 96
      %v8980 = vpop.permute.xlu0 %8979
      %8981 = vrot.lane.b32.xlu0 %v8672, 96
      %v8982 = vpop.permute.xlu0 %8981
      %8983 = vrot.lane.b32.xlu0 %v8673, 96
      %v8984 = vpop.permute.xlu0 %8983
      %8985 = vrot.lane.b32.xlu0 %v8674, 96
      %v8986 = vpop.permute.xlu0 %8985
      %8987 = vrot.lane.b32.xlu0 %v8675, 96
      %v8988 = vpop.permute.xlu0 %8987
      %8989 = vrot.lane.b32.xlu0 %v8676, 96
      %v8990 = vpop.permute.xlu0 %8989
      %8991 = vrot.lane.b32.xlu0 %v8677, 96
      %v8992 = vpop.permute.xlu0 %8991
      %8993 = vrot.lane.b32.xlu0 %v8678, 96
      %v8994 = vpop.permute.xlu0 %8993
      %8995 = vrot.lane.b32.xlu0 %v8679, 96
      %v8996 = vpop.permute.xlu0 %8995
      %8997 = vrot.lane.b32.xlu0 %v8680, 96
      %v8998 = vpop.permute.xlu0 %8997
      %8999 = vrot.lane.b32.xlu0 %v8681, 96
      %v9000 = vpop.permute.xlu0 %8999
      %9001 = vrot.lane.b32.xlu0 %v8682, 96
      %v9002 = vpop.permute.xlu0 %9001
      %9003 = vrot.lane.b32.xlu0 %v8683, 96
      %v9004 = vpop.permute.xlu0 %9003
      %9069 = vrot.lane.b32.xlu0 %v8684, 64
      %v9070 = vpop.permute.xlu0 %9069
      %9071 = vrot.lane.b32.xlu0 %v8685, 64
      %v9072 = vpop.permute.xlu0 %9071
      %9073 = vrot.lane.b32.xlu0 %v8686, 64
      %v9074 = vpop.permute.xlu0 %9073
      %9075 = vrot.lane.b32.xlu0 %v8687, 64
      %v9076 = vpop.permute.xlu0 %9075
      %9077 = vrot.lane.b32.xlu0 %v8688, 64
      %v9078 = vpop.permute.xlu0 %9077
      %9079 = vrot.lane.b32.xlu0 %v8689, 64
      %v9080 = vpop.permute.xlu0 %9079
      %9081 = vrot.lane.b32.xlu0 %v8690, 64
      %v9082 = vpop.permute.xlu0 %9081
      %9083 = vrot.lane.b32.xlu0 %v8691, 64
      %v9084 = vpop.permute.xlu0 %9083
      %9085 = vrot.lane.b32.xlu0 %v8692, 64
      %v9086 = vpop.permute.xlu0 %9085
      %9087 = vrot.lane.b32.xlu0 %v8693, 64
      %v9088 = vpop.permute.xlu0 %9087
      %9089 = vrot.lane.b32.xlu0 %v8694, 64
      %v9090 = vpop.permute.xlu0 %9089
      %9091 = vrot.lane.b32.xlu0 %v8695, 64
      %v9092 = vpop.permute.xlu0 %9091
      %9093 = vrot.lane.b32.xlu0 %v8696, 64
      %v9094 = vpop.permute.xlu0 %9093
      %9095 = vrot.lane.b32.xlu0 %v8697, 64
      %v9096 = vpop.permute.xlu0 %9095
      %9097 = vrot.lane.b32.xlu0 %v8698, 64
      %v9098 = vpop.permute.xlu0 %9097
      %9099 = vrot.lane.b32.xlu0 %v8699, 64
      %v9100 = vpop.permute.xlu0 %9099
      %9101 = vrot.lane.b32.xlu0 %v8700, 64
      %v9102 = vpop.permute.xlu0 %9101
      %9103 = vrot.lane.b32.xlu0 %v8701, 64
      %v9104 = vpop.permute.xlu0 %9103
      %9105 = vrot.lane.b32.xlu0 %v8702, 64
      %v9106 = vpop.permute.xlu0 %9105
      %9107 = vrot.lane.b32.xlu0 %v8703, 64
      %v9108 = vpop.permute.xlu0 %9107
      %9109 = vrot.lane.b32.xlu0 %v8704, 64
      %v9110 = vpop.permute.xlu0 %9109
      %9111 = vrot.lane.b32.xlu0 %v8705, 64
      %v9112 = vpop.permute.xlu0 %9111
      %9113 = vrot.lane.b32.xlu0 %v8706, 64
      %v9114 = vpop.permute.xlu0 %9113
      %9115 = vrot.lane.b32.xlu0 %v8707, 64
      %v9116 = vpop.permute.xlu0 %9115
      %9117 = vrot.lane.b32.xlu0 %v8708, 64
      %v9118 = vpop.permute.xlu0 %9117
      %9119 = vrot.lane.b32.xlu0 %v8709, 64
      %v9120 = vpop.permute.xlu0 %9119
      %9121 = vrot.lane.b32.xlu0 %v8710, 64
      %v9122 = vpop.permute.xlu0 %9121
      %9123 = vrot.lane.b32.xlu0 %v8711, 64
      %v9124 = vpop.permute.xlu0 %9123
      %9125 = vrot.lane.b32.xlu0 %v8712, 64
      %v9126 = vpop.permute.xlu0 %9125
      %9127 = vrot.lane.b32.xlu0 %v8713, 64
      %v9128 = vpop.permute.xlu0 %9127
      %9129 = vrot.lane.b32.xlu0 %v8714, 64
      %v9130 = vpop.permute.xlu0 %9129
      %9131 = vrot.lane.b32.xlu0 %v8715, 64
      %v9132 = vpop.permute.xlu0 %9131
      %9197 = vrot.lane.b32.xlu0 %v8716, 32
      %v9198 = vpop.permute.xlu0 %9197
      %9199 = vrot.lane.b32.xlu0 %v8717, 32
      %v9200 = vpop.permute.xlu0 %9199
      %9201 = vrot.lane.b32.xlu0 %v8718, 32
      %v9202 = vpop.permute.xlu0 %9201
      %9203 = vrot.lane.b32.xlu0 %v8719, 32
      %v9204 = vpop.permute.xlu0 %9203
      %9205 = vrot.lane.b32.xlu0 %v8720, 32
      %v9206 = vpop.permute.xlu0 %9205
      %9207 = vrot.lane.b32.xlu0 %v8721, 32
      %v9208 = vpop.permute.xlu0 %9207
      %9209 = vrot.lane.b32.xlu0 %v8722, 32
      %v9210 = vpop.permute.xlu0 %9209
      %9211 = vrot.lane.b32.xlu0 %v8723, 32
      %v9212 = vpop.permute.xlu0 %9211
      %9213 = vrot.lane.b32.xlu0 %v8724, 32
      %v9214 = vpop.permute.xlu0 %9213
      %9215 = vrot.lane.b32.xlu0 %v8725, 32
      %v9216 = vpop.permute.xlu0 %9215
      %9217 = vrot.lane.b32.xlu0 %v8726, 32
      %v9218 = vpop.permute.xlu0 %9217
      %9219 = vrot.lane.b32.xlu0 %v8727, 32
      %v9220 = vpop.permute.xlu0 %9219
      %9221 = vrot.lane.b32.xlu0 %v8728, 32
      %v9222 = vpop.permute.xlu0 %9221
      %9223 = vrot.lane.b32.xlu0 %v8729, 32
      %v9224 = vpop.permute.xlu0 %9223
      %9225 = vrot.lane.b32.xlu0 %v8730, 32
      %v9226 = vpop.permute.xlu0 %9225
      %9227 = vrot.lane.b32.xlu0 %v8731, 32
      %v9228 = vpop.permute.xlu0 %9227
      %9229 = vrot.lane.b32.xlu0 %v8732, 32
      %v9230 = vpop.permute.xlu0 %9229
      %9231 = vrot.lane.b32.xlu0 %v8733, 32
      %v9232 = vpop.permute.xlu0 %9231
      %9233 = vrot.lane.b32.xlu0 %v8734, 32
      %v9234 = vpop.permute.xlu0 %9233
      %9235 = vrot.lane.b32.xlu0 %v8735, 32
      %v9236 = vpop.permute.xlu0 %9235
      %9237 = vrot.lane.b32.xlu0 %v8736, 32
      %v9238 = vpop.permute.xlu0 %9237
      %9239 = vrot.lane.b32.xlu0 %v8737, 32
      %v9240 = vpop.permute.xlu0 %9239
      %9241 = vrot.lane.b32.xlu0 %v8738, 32
      %v9242 = vpop.permute.xlu0 %9241
      %9243 = vrot.lane.b32.xlu0 %v8739, 32
      %v9244 = vpop.permute.xlu0 %9243
      %9245 = vrot.lane.b32.xlu0 %v8740, 32
      %v9246 = vpop.permute.xlu0 %9245
      %9247 = vrot.lane.b32.xlu0 %v8741, 32
      %v9248 = vpop.permute.xlu0 %9247
      %9249 = vrot.lane.b32.xlu0 %v8742, 32
      %v9250 = vpop.permute.xlu0 %9249
      %9251 = vrot.lane.b32.xlu0 %v8743, 32
      %v9252 = vpop.permute.xlu0 %9251
      %9253 = vrot.lane.b32.xlu0 %v8744, 32
      %v9254 = vpop.permute.xlu0 %9253
      %9255 = vrot.lane.b32.xlu0 %v8745, 32
      %v9256 = vpop.permute.xlu0 %9255
      %9257 = vrot.lane.b32.xlu0 %v8746, 32
      %v9258 = vpop.permute.xlu0 %9257
      %9259 = vrot.lane.b32.xlu0 %v8747, 32
      %v9260 = vpop.permute.xlu0 %9259
      %9325 = vrot.lane.b32.xlu0 %v8780, 96
      %v9326 = vpop.permute.xlu0 %9325
      %9327 = vrot.lane.b32.xlu0 %v8781, 96
      %v9328 = vpop.permute.xlu0 %9327
      %9329 = vrot.lane.b32.xlu0 %v8782, 96
      %v9330 = vpop.permute.xlu0 %9329
      %9331 = vrot.lane.b32.xlu0 %v8783, 96
      %v9332 = vpop.permute.xlu0 %9331
      %9333 = vrot.lane.b32.xlu0 %v8784, 96
      %v9334 = vpop.permute.xlu0 %9333
      %9335 = vrot.lane.b32.xlu0 %v8785, 96
      %v9336 = vpop.permute.xlu0 %9335
      %9337 = vrot.lane.b32.xlu0 %v8786, 96
      %v9338 = vpop.permute.xlu0 %9337
      %9339 = vrot.lane.b32.xlu0 %v8787, 96
      %v9340 = vpop.permute.xlu0 %9339
      %9341 = vrot.lane.b32.xlu0 %v8788, 96
      %v9342 = vpop.permute.xlu0 %9341
      %9343 = vrot.lane.b32.xlu0 %v8789, 96
      %v9344 = vpop.permute.xlu0 %9343
      %9345 = vrot.lane.b32.xlu0 %v8790, 96
      %v9346 = vpop.permute.xlu0 %9345
      %9347 = vrot.lane.b32.xlu0 %v8791, 96
      %v9348 = vpop.permute.xlu0 %9347
      %9349 = vrot.lane.b32.xlu0 %v8792, 96
      %v9350 = vpop.permute.xlu0 %9349
      %9351 = vrot.lane.b32.xlu0 %v8793, 96
      %v9352 = vpop.permute.xlu0 %9351
      %9353 = vrot.lane.b32.xlu0 %v8794, 96
      %v9354 = vpop.permute.xlu0 %9353
      %9355 = vrot.lane.b32.xlu0 %v8795, 96
      %v9356 = vpop.permute.xlu0 %9355
      %9357 = vrot.lane.b32.xlu0 %v8796, 96
      %v9358 = vpop.permute.xlu0 %9357
      %9359 = vrot.lane.b32.xlu0 %v8797, 96
      %v9360 = vpop.permute.xlu0 %9359
      %9361 = vrot.lane.b32.xlu0 %v8798, 96
      %v9362 = vpop.permute.xlu0 %9361
      %9363 = vrot.lane.b32.xlu0 %v8799, 96
      %v9364 = vpop.permute.xlu0 %9363
      %9365 = vrot.lane.b32.xlu0 %v8800, 96
      %v9366 = vpop.permute.xlu0 %9365
      %9367 = vrot.lane.b32.xlu0 %v8801, 96
      %v9368 = vpop.permute.xlu0 %9367
      %9369 = vrot.lane.b32.xlu0 %v8802, 96
      %v9370 = vpop.permute.xlu0 %9369
      %9371 = vrot.lane.b32.xlu0 %v8803, 96
      %v9372 = vpop.permute.xlu0 %9371
      %9373 = vrot.lane.b32.xlu0 %v8804, 96
      %v9374 = vpop.permute.xlu0 %9373
      %9375 = vrot.lane.b32.xlu0 %v8805, 96
      %v9376 = vpop.permute.xlu0 %9375
      %9377 = vrot.lane.b32.xlu0 %v8806, 96
      %v9378 = vpop.permute.xlu0 %9377
      %9379 = vrot.lane.b32.xlu0 %v8807, 96
      %v9380 = vpop.permute.xlu0 %9379
      %9381 = vrot.lane.b32.xlu0 %v8808, 96
      %v9382 = vpop.permute.xlu0 %9381
      %9383 = vrot.lane.b32.xlu0 %v8809, 96
      %v9384 = vpop.permute.xlu0 %9383
      %9385 = vrot.lane.b32.xlu0 %v8810, 96
      %v9386 = vpop.permute.xlu0 %9385
      %9387 = vrot.lane.b32.xlu0 %v8811, 96
      %v9388 = vpop.permute.xlu0 %9387
      %9453 = vrot.lane.b32.xlu0 %v8813, 64
      %v9454 = vpop.permute.xlu0 %9453
      %9455 = vrot.lane.b32.xlu0 %v8814, 64
      %v9456 = vpop.permute.xlu0 %9455
      %9457 = vrot.lane.b32.xlu0 %v8815, 64
      %v9458 = vpop.permute.xlu0 %9457
      %9459 = vrot.lane.b32.xlu0 %v8816, 64
      %v9460 = vpop.permute.xlu0 %9459
      %9461 = vrot.lane.b32.xlu0 %v8817, 64
      %v9462 = vpop.permute.xlu0 %9461
      %9463 = vrot.lane.b32.xlu0 %v8818, 64
      %v9464 = vpop.permute.xlu0 %9463
      %9465 = vrot.lane.b32.xlu0 %v8819, 64
      %v9466 = vpop.permute.xlu0 %9465
      %9467 = vrot.lane.b32.xlu0 %v8820, 64
      %v9468 = vpop.permute.xlu0 %9467
      %9469 = vrot.lane.b32.xlu0 %v8821, 64
      %v9470 = vpop.permute.xlu0 %9469
      %9471 = vrot.lane.b32.xlu0 %v8822, 64
      %v9472 = vpop.permute.xlu0 %9471
      %9473 = vrot.lane.b32.xlu0 %v8823, 64
      %v9474 = vpop.permute.xlu0 %9473
      %9475 = vrot.lane.b32.xlu0 %v8824, 64
      %v9476 = vpop.permute.xlu0 %9475
      %9477 = vrot.lane.b32.xlu0 %v8825, 64
      %v9478 = vpop.permute.xlu0 %9477
      %9479 = vrot.lane.b32.xlu0 %v8826, 64
      %v9480 = vpop.permute.xlu0 %9479
      %9481 = vrot.lane.b32.xlu0 %v8827, 64
      %v9482 = vpop.permute.xlu0 %9481
      %9483 = vrot.lane.b32.xlu0 %v8828, 64
      %v9484 = vpop.permute.xlu0 %9483
      %9485 = vrot.lane.b32.xlu0 %v8829, 64
      %v9486 = vpop.permute.xlu0 %9485
      %9487 = vrot.lane.b32.xlu0 %v8830, 64
      %v9488 = vpop.permute.xlu0 %9487
      %9489 = vrot.lane.b32.xlu0 %v8831, 64
      %v9490 = vpop.permute.xlu0 %9489
      %9491 = vrot.lane.b32.xlu0 %v8832, 64
      %v9492 = vpop.permute.xlu0 %9491
      %9493 = vrot.lane.b32.xlu0 %v8833, 64
      %v9494 = vpop.permute.xlu0 %9493
      %9495 = vrot.lane.b32.xlu0 %v8834, 64
      %v9496 = vpop.permute.xlu0 %9495
      %9497 = vrot.lane.b32.xlu0 %v8835, 64
      %v9498 = vpop.permute.xlu0 %9497
      %9499 = vrot.lane.b32.xlu0 %v8836, 64
      %v9500 = vpop.permute.xlu0 %9499
      %9501 = vrot.lane.b32.xlu0 %v8837, 64
      %v9502 = vpop.permute.xlu0 %9501
      %9503 = vrot.lane.b32.xlu0 %v8838, 64
      %v9504 = vpop.permute.xlu0 %9503
      %9505 = vrot.lane.b32.xlu0 %v8839, 64
      %v9506 = vpop.permute.xlu0 %9505
      %9507 = vrot.lane.b32.xlu0 %v8840, 64
      %v9508 = vpop.permute.xlu0 %9507
      %9509 = vrot.lane.b32.xlu0 %v8841, 64
      %v9510 = vpop.permute.xlu0 %9509
      %9511 = vrot.lane.b32.xlu0 %v8842, 64
      %v9512 = vpop.permute.xlu0 %9511
      %9513 = vrot.lane.b32.xlu0 %v8843, 64
      %v9514 = vpop.permute.xlu0 %9513
      %9515 = vrot.lane.b32.xlu0 %v8844, 64
      %v9516 = vpop.permute.xlu0 %9515
      %9581 = vrot.lane.b32.xlu0 %v8845, 32
      %v9582 = vpop.permute.xlu0 %9581
      %9583 = vrot.lane.b32.xlu0 %v8846, 32
      %v9584 = vpop.permute.xlu0 %9583
      %9585 = vrot.lane.b32.xlu0 %v8847, 32
      %v9586 = vpop.permute.xlu0 %9585
      %9587 = vrot.lane.b32.xlu0 %v8848, 32
      %v9588 = vpop.permute.xlu0 %9587
      %9589 = vrot.lane.b32.xlu0 %v8849, 32
      %v9590 = vpop.permute.xlu0 %9589
      %9591 = vrot.lane.b32.xlu0 %v8850, 32
      %v9592 = vpop.permute.xlu0 %9591
      %9593 = vrot.lane.b32.xlu0 %v8851, 32
      %v9594 = vpop.permute.xlu0 %9593
      %9595 = vrot.lane.b32.xlu0 %v8852, 32
      %v9596 = vpop.permute.xlu0 %9595
      %9597 = vrot.lane.b32.xlu0 %v8853, 32
      %v9598 = vpop.permute.xlu0 %9597
      %9599 = vrot.lane.b32.xlu0 %v8854, 32
      %v9600 = vpop.permute.xlu0 %9599
      %9601 = vrot.lane.b32.xlu0 %v8855, 32
      %v9602 = vpop.permute.xlu0 %9601
      %9603 = vrot.lane.b32.xlu0 %v8856, 32
      %v9604 = vpop.permute.xlu0 %9603
      %9605 = vrot.lane.b32.xlu0 %v8857, 32
      %v9606 = vpop.permute.xlu0 %9605
      %9607 = vrot.lane.b32.xlu0 %v8858, 32
      %v9608 = vpop.permute.xlu0 %9607
      %9609 = vrot.lane.b32.xlu0 %v8859, 32
      %v9610 = vpop.permute.xlu0 %9609
      %9611 = vrot.lane.b32.xlu0 %v8860, 32
      %v9612 = vpop.permute.xlu0 %9611
      %9613 = vrot.lane.b32.xlu0 %v8861, 32
      %v9614 = vpop.permute.xlu0 %9613
      %9615 = vrot.lane.b32.xlu0 %v8862, 32
      %v9616 = vpop.permute.xlu0 %9615
      %9617 = vrot.lane.b32.xlu0 %v8863, 32
      %v9618 = vpop.permute.xlu0 %9617
      %9619 = vrot.lane.b32.xlu0 %v8864, 32
      %v9620 = vpop.permute.xlu0 %9619
      %9621 = vrot.lane.b32.xlu0 %v8865, 32
      %v9622 = vpop.permute.xlu0 %9621
      %9623 = vrot.lane.b32.xlu0 %v8866, 32
      %v9624 = vpop.permute.xlu0 %9623
      %9625 = vrot.lane.b32.xlu0 %v8867, 32
      %v9626 = vpop.permute.xlu0 %9625
      %9627 = vrot.lane.b32.xlu0 %v8868, 32
      %v9628 = vpop.permute.xlu0 %9627
      %9629 = vrot.lane.b32.xlu0 %v8869, 32
      %v9630 = vpop.permute.xlu0 %9629
      %9631 = vrot.lane.b32.xlu0 %v8870, 32
      %v9632 = vpop.permute.xlu0 %9631
      %9633 = vrot.lane.b32.xlu0 %v8871, 32
      %v9634 = vpop.permute.xlu0 %9633
      %9635 = vrot.lane.b32.xlu0 %v8872, 32
      %v9636 = vpop.permute.xlu0 %9635
      %9637 = vrot.lane.b32.xlu0 %v8873, 32
      %v9638 = vpop.permute.xlu0 %9637
      %9639 = vrot.lane.b32.xlu0 %v8874, 32
      %v9640 = vpop.permute.xlu0 %9639
      %9641 = vrot.lane.b32.xlu0 %v8875, 32
      %v9642 = vpop.permute.xlu0 %9641
      %9643 = vrot.lane.b32.xlu0 %v8876, 32
      %v9644 = vpop.permute.xlu0 %9643
      %v9677 = vsel %vm1126, %v8620, %v8942
      %v9678 = vsel %vm1126, %v8621, %v8944
      %v9679 = vsel %vm1126, %v8622, %v8946
      %v9680 = vsel %vm1126, %v8623, %v8948
      %v9681 = vsel %vm1126, %v8624, %v8950
      %v9682 = vsel %vm1126, %v8625, %v8952
      %v9683 = vsel %vm1126, %v8626, %v8954
      %v9684 = vsel %vm1126, %v8627, %v8956
      %v9685 = vsel %vm1126, %v8628, %v8958
      %v9686 = vsel %vm1126, %v8629, %v8960
      %v9687 = vsel %vm1126, %v8630, %v8962
      %v9688 = vsel %vm1126, %v8631, %v8964
      %v9689 = vsel %vm1126, %v8632, %v8966
      %v9690 = vsel %vm1126, %v8633, %v8968
      %v9691 = vsel %vm1126, %v8634, %v8970
      %v9692 = vsel %vm1126, %v8635, %v8972
      %v9693 = vsel %vm1126, %v8636, %v8974
      %v9694 = vsel %vm1126, %v8637, %v8976
      %v9695 = vsel %vm1126, %v8638, %v8978
      %v9696 = vsel %vm1126, %v8639, %v8980
      %v9697 = vsel %vm1126, %v8640, %v8982
      %v9698 = vsel %vm1126, %v8641, %v8984
      %v9699 = vsel %vm1126, %v8642, %v8986
      %v9700 = vsel %vm1126, %v8643, %v8988
      %v9701 = vsel %vm1126, %v8644, %v8990
      %v9702 = vsel %vm1126, %v8645, %v8992
      %v9703 = vsel %vm1126, %v8646, %v8994
      %v9704 = vsel %vm1126, %v8647, %v8996
      %v9705 = vsel %vm1126, %v8648, %v8998
      %v9706 = vsel %vm1126, %v8649, %v9000
      %v9707 = vsel %vm1126, %v8650, %v9002
      %v9708 = vsel %vm1126, %v8651, %v9004
      %v9709 = vsel %vm1079, %v8942, %v9070
      %v9710 = vsel %vm1079, %v8944, %v9072
      %v9711 = vsel %vm1079, %v8946, %v9074
      %v9712 = vsel %vm1079, %v8948, %v9076
      %v9713 = vsel %vm1079, %v8950, %v9078
      %v9714 = vsel %vm1079, %v8952, %v9080
      %v9715 = vsel %vm1079, %v8954, %v9082
      %v9716 = vsel %vm1079, %v8956, %v9084
      %v9717 = vsel %vm1079, %v8958, %v9086
      %v9718 = vsel %vm1079, %v8960, %v9088
      %v9719 = vsel %vm1079, %v8962, %v9090
      %v9720 = vsel %vm1079, %v8964, %v9092
      %v9721 = vsel %vm1079, %v8966, %v9094
      %v9722 = vsel %vm1079, %v8968, %v9096
      %v9723 = vsel %vm1079, %v8970, %v9098
      %v9724 = vsel %vm1079, %v8972, %v9100
      %v9725 = vsel %vm1079, %v8974, %v9102
      %v9726 = vsel %vm1079, %v8976, %v9104
      %v9727 = vsel %vm1079, %v8978, %v9106
      %v9728 = vsel %vm1079, %v8980, %v9108
      %v9729 = vsel %vm1079, %v8982, %v9110
      %v9730 = vsel %vm1079, %v8984, %v9112
      %v9731 = vsel %vm1079, %v8986, %v9114
      %v9732 = vsel %vm1079, %v8988, %v9116
      %v9733 = vsel %vm1079, %v8990, %v9118
      %v9734 = vsel %vm1079, %v8992, %v9120
      %v9735 = vsel %vm1079, %v8994, %v9122
      %v9736 = vsel %vm1079, %v8996, %v9124
      %v9737 = vsel %vm1079, %v8998, %v9126
      %v9738 = vsel %vm1079, %v9000, %v9128
      %v9739 = vsel %vm1079, %v9002, %v9130
      %v9740 = vsel %vm1079, %v9004, %v9132
      %v9741 = vsel %vm4075, %v9070, %v9198
      %v9742 = vsel %vm4075, %v9072, %v9200
      %v9743 = vsel %vm4075, %v9074, %v9202
      %v9744 = vsel %vm4075, %v9076, %v9204
      %v9745 = vsel %vm4075, %v9078, %v9206
      %v9746 = vsel %vm4075, %v9080, %v9208
      %v9747 = vsel %vm4075, %v9082, %v9210
      %v9748 = vsel %vm4075, %v9084, %v9212
      %v9749 = vsel %vm4075, %v9086, %v9214
      %v9750 = vsel %vm4075, %v9088, %v9216
      %v9751 = vsel %vm4075, %v9090, %v9218
      %v9752 = vsel %vm4075, %v9092, %v9220
      %v9753 = vsel %vm4075, %v9094, %v9222
      %v9754 = vsel %vm4075, %v9096, %v9224
      %v9755 = vsel %vm4075, %v9098, %v9226
      %v9756 = vsel %vm4075, %v9100, %v9228
      %v9757 = vsel %vm4075, %v9102, %v9230
      %v9758 = vsel %vm4075, %v9104, %v9232
      %v9759 = vsel %vm4075, %v9106, %v9234
      %v9760 = vsel %vm4075, %v9108, %v9236
      %v9761 = vsel %vm4075, %v9110, %v9238
      %v9762 = vsel %vm4075, %v9112, %v9240
      %v9763 = vsel %vm4075, %v9114, %v9242
      %v9764 = vsel %vm4075, %v9116, %v9244
      %v9765 = vsel %vm4075, %v9118, %v9246
      %v9766 = vsel %vm4075, %v9120, %v9248
      %v9767 = vsel %vm4075, %v9122, %v9250
      %v9768 = vsel %vm4075, %v9124, %v9252
      %v9769 = vsel %vm4075, %v9126, %v9254
      %v9770 = vsel %vm4075, %v9128, %v9256
      %v9771 = vsel %vm4075, %v9130, %v9258
      %v9772 = vsel %vm4075, %v9132, %v9260
      %v9773 = vsel %vm1126, %v8748, %v9326
      %v9774 = vsel %vm1126, %v8749, %v9328
      %v9775 = vsel %vm1126, %v8750, %v9330
      %v9776 = vsel %vm1126, %v8751, %v9332
      %v9777 = vsel %vm1126, %v8752, %v9334
      %v9778 = vsel %vm1126, %v8753, %v9336
      %v9779 = vsel %vm1126, %v8754, %v9338
      %v9780 = vsel %vm1126, %v8755, %v9340
      %v9781 = vsel %vm1126, %v8756, %v9342
      %v9782 = vsel %vm1126, %v8757, %v9344
      %v9783 = vsel %vm1126, %v8758, %v9346
      %v9784 = vsel %vm1126, %v8759, %v9348
      %v9785 = vsel %vm1126, %v8760, %v9350
      %v9786 = vsel %vm1126, %v8761, %v9352
      %v9787 = vsel %vm1126, %v8762, %v9354
      %v9788 = vsel %vm1126, %v8763, %v9356
      %v9789 = vsel %vm1126, %v8764, %v9358
      %v9790 = vsel %vm1126, %v8765, %v9360
      %v9791 = vsel %vm1126, %v8766, %v9362
      %v9792 = vsel %vm1126, %v8767, %v9364
      %v9793 = vsel %vm1126, %v8768, %v9366
      %v9794 = vsel %vm1126, %v8769, %v9368
      %v9795 = vsel %vm1126, %v8770, %v9370
      %v9796 = vsel %vm1126, %v8771, %v9372
      %v9797 = vsel %vm1126, %v8772, %v9374
      %v9798 = vsel %vm1126, %v8773, %v9376
      %v9799 = vsel %vm1126, %v8774, %v9378
      %v9800 = vsel %vm1126, %v8775, %v9380
      %v9801 = vsel %vm1126, %v8776, %v9382
      %v9802 = vsel %vm1126, %v8777, %v9384
      %v9803 = vsel %vm1126, %v8778, %v9386
      %v9804 = vsel %vm1126, %v8779, %v9388
      %v9805 = vsel %vm1079, %v9326, %v9454
      %v9806 = vsel %vm1079, %v9328, %v9456
      %v9807 = vsel %vm1079, %v9330, %v9458
      %v9808 = vsel %vm1079, %v9332, %v9460
      %v9809 = vsel %vm1079, %v9334, %v9462
      %v9810 = vsel %vm1079, %v9336, %v9464
      %v9811 = vsel %vm1079, %v9338, %v9466
      %v9812 = vsel %vm1079, %v9340, %v9468
      %v9813 = vsel %vm1079, %v9342, %v9470
      %v9814 = vsel %vm1079, %v9344, %v9472
      %v9815 = vsel %vm1079, %v9346, %v9474
      %v9816 = vsel %vm1079, %v9348, %v9476
      %v9817 = vsel %vm1079, %v9350, %v9478
      %v9818 = vsel %vm1079, %v9352, %v9480
      %v9819 = vsel %vm1079, %v9354, %v9482
      %v9820 = vsel %vm1079, %v9356, %v9484
      %v9821 = vsel %vm1079, %v9358, %v9486
      %v9822 = vsel %vm1079, %v9360, %v9488
      %v9823 = vsel %vm1079, %v9362, %v9490
      %v9824 = vsel %vm1079, %v9364, %v9492
      %v9825 = vsel %vm1079, %v9366, %v9494
      %v9826 = vsel %vm1079, %v9368, %v9496
      %v9827 = vsel %vm1079, %v9370, %v9498
      %v9828 = vsel %vm1079, %v9372, %v9500
      %v9829 = vsel %vm1079, %v9374, %v9502
      %v9830 = vsel %vm1079, %v9376, %v9504
      %v9831 = vsel %vm1079, %v9378, %v9506
      %v9832 = vsel %vm1079, %v9380, %v9508
      %v9833 = vsel %vm1079, %v9382, %v9510
      %v9834 = vsel %vm1079, %v9384, %v9512
      %v9835 = vsel %vm1079, %v9386, %v9514
      %v9836 = vsel %vm1079, %v9388, %v9516
      %v9837 = vsel %vm4075, %v9454, %v9582
      %v9838 = vsel %vm4075, %v9456, %v9584
      %v9839 = vsel %vm4075, %v9458, %v9586
      %v9840 = vsel %vm4075, %v9460, %v9588
      %v9841 = vsel %vm4075, %v9462, %v9590
      %v9842 = vsel %vm4075, %v9464, %v9592
      %v9843 = vsel %vm4075, %v9466, %v9594
      %v9844 = vsel %vm4075, %v9468, %v9596
      %v9845 = vsel %vm4075, %v9470, %v9598
      %v9846 = vsel %vm4075, %v9472, %v9600
      %v9847 = vsel %vm4075, %v9474, %v9602
      %v9848 = vsel %vm4075, %v9476, %v9604
      %v9849 = vsel %vm4075, %v9478, %v9606
      %v9850 = vsel %vm4075, %v9480, %v9608
      %v9851 = vsel %vm4075, %v9482, %v9610
      %v9852 = vsel %vm4075, %v9484, %v9612
      %v9853 = vsel %vm4075, %v9486, %v9614
      %v9854 = vsel %vm4075, %v9488, %v9616
      %v9855 = vsel %vm4075, %v9490, %v9618
      %v9856 = vsel %vm4075, %v9492, %v9620
      %v9857 = vsel %vm4075, %v9494, %v9622
      %v9858 = vsel %vm4075, %v9496, %v9624
      %v9859 = vsel %vm4075, %v9498, %v9626
      %v9860 = vsel %vm4075, %v9500, %v9628
      %v9861 = vsel %vm4075, %v9502, %v9630
      %v9862 = vsel %vm4075, %v9504, %v9632
      %v9863 = vsel %vm4075, %v9506, %v9634
      %v9864 = vsel %vm4075, %v9508, %v9636
      %v9865 = vsel %vm4075, %v9510, %v9638
      %v9866 = vsel %vm4075, %v9512, %v9640
      %v9867 = vsel %vm4075, %v9514, %v9642
      %v9868 = vsel %vm4075, %v9516, %v9644
      %v9869 = vld [vmem:[%s6] sm:$0xff]
      %v9870 = vld [vmem:[%s6 + $0x8] sm:$0xff]
      %v9871 = vld [vmem:[%s6 + $0x10] sm:$0xff]
      %v9872 = vld [vmem:[%s6 + $0x18] sm:$0xff]
      %v9873 = vld [vmem:[%s6 + $0x20] sm:$0xff]
      %v9874 = vld [vmem:[%s6 + $0x28] sm:$0xff]
      %v9875 = vld [vmem:[%s6 + $0x30] sm:$0xff]
      %v9876 = vld [vmem:[%s6 + $0x38] sm:$0xff]
      %v9877 = vld [vmem:[%s6 + $0x40] sm:$0xff]
      %v9878 = vld [vmem:[%s6 + $0x48] sm:$0xff]
      %v9879 = vld [vmem:[%s6 + $0x50] sm:$0xff]
      %v9880 = vld [vmem:[%s6 + $0x58] sm:$0xff]
      %v9881 = vld [vmem:[%s6 + $0x60] sm:$0xff]
      %v9882 = vld [vmem:[%s6 + $0x68] sm:$0xff]
      %v9883 = vld [vmem:[%s6 + $0x70] sm:$0xff]
      %v9884 = vld [vmem:[%s6 + $0x78] sm:$0xff]
      %v9885 = vld [vmem:[%s6 + $0x80] sm:$0xff]
      %v9886 = vld [vmem:[%s6 + $0x88] sm:$0xff]
      %v9887 = vld [vmem:[%s6 + $0x90] sm:$0xff]
      %v9888 = vld [vmem:[%s6 + $0x98] sm:$0xff]
      %v9889 = vld [vmem:[%s6 + $0xa0] sm:$0xff]
      %v9890 = vld [vmem:[%s6 + $0xa8] sm:$0xff]
      %v9891 = vld [vmem:[%s6 + $0xb0] sm:$0xff]
      %v9892 = vld [vmem:[%s6 + $0xb8] sm:$0xff]
      %v9893 = vld [vmem:[%s6 + $0xc0] sm:$0xff]
      %v9894 = vld [vmem:[%s6 + $0xc8] sm:$0xff]
      %v9895 = vld [vmem:[%s6 + $0xd0] sm:$0xff]
      %v9896 = vld [vmem:[%s6 + $0xd8] sm:$0xff]
      %v9897 = vld [vmem:[%s6 + $0xe0] sm:$0xff]
      %v9898 = vld [vmem:[%s6 + $0xe8] sm:$0xff]
      %v9899 = vld [vmem:[%s6 + $0xf0] sm:$0xff]
      %v9900 = vld [vmem:[%s6 + $0xf8] sm:$0xff]
      %v9901 = vld [vmem:[%s6 + $0x100] sm:$0xff]
      %v9902 = vld [vmem:[%s6 + $0x108] sm:$0xff]
      %v9903 = vld [vmem:[%s6 + $0x110] sm:$0xff]
      %v9904 = vld [vmem:[%s6 + $0x118] sm:$0xff]
      %v9905 = vld [vmem:[%s6 + $0x120] sm:$0xff]
      %v9906 = vld [vmem:[%s6 + $0x128] sm:$0xff]
      %v9907 = vld [vmem:[%s6 + $0x130] sm:$0xff]
      %v9908 = vld [vmem:[%s6 + $0x138] sm:$0xff]
      %v9909 = vld [vmem:[%s6 + $0x140] sm:$0xff]
      %v9910 = vld [vmem:[%s6 + $0x148] sm:$0xff]
      %v9911 = vld [vmem:[%s6 + $0x150] sm:$0xff]
      %v9912 = vld [vmem:[%s6 + $0x158] sm:$0xff]
      %v9913 = vld [vmem:[%s6 + $0x160] sm:$0xff]
      %v9914 = vld [vmem:[%s6 + $0x168] sm:$0xff]
      %v9915 = vld [vmem:[%s6 + $0x170] sm:$0xff]
      %v9916 = vld [vmem:[%s6 + $0x178] sm:$0xff]
      %v9917 = vld [vmem:[%s6 + $0x180] sm:$0xff]
      %v9918 = vld [vmem:[%s6 + $0x188] sm:$0xff]
      %v9919 = vld [vmem:[%s6 + $0x190] sm:$0xff]
      %v9920 = vld [vmem:[%s6 + $0x198] sm:$0xff]
      %v9921 = vld [vmem:[%s6 + $0x1a0] sm:$0xff]
      %v9922 = vld [vmem:[%s6 + $0x1a8] sm:$0xff]
      %v9923 = vld [vmem:[%s6 + $0x1b0] sm:$0xff]
      %v9924 = vld [vmem:[%s6 + $0x1b8] sm:$0xff]
      %v9925 = vld [vmem:[%s6 + $0x1c0] sm:$0xff]
      %v9926 = vld [vmem:[%s6 + $0x1c8] sm:$0xff]
      %v9927 = vld [vmem:[%s6 + $0x1d0] sm:$0xff]
      %v9928 = vld [vmem:[%s6 + $0x1d8] sm:$0xff]
      %v9929 = vld [vmem:[%s6 + $0x1e0] sm:$0xff]
      %v9930 = vld [vmem:[%s6 + $0x1e8] sm:$0xff]
      %v9931 = vld [vmem:[%s6 + $0x1f0] sm:$0xff]
      %v9932 = vld [vmem:[%s6 + $0x1f8] sm:$0xff]
      %v9933 = vld [vmem:[%s6 + $0x200] sm:$0xff]
      %v9934 = vld [vmem:[%s6 + $0x208] sm:$0xff]
      %v9935 = vld [vmem:[%s6 + $0x210] sm:$0xff]
      %v9936 = vld [vmem:[%s6 + $0x218] sm:$0xff]
      %v9937 = vld [vmem:[%s6 + $0x220] sm:$0xff]
      %v9938 = vld [vmem:[%s6 + $0x228] sm:$0xff]
      %v9939 = vld [vmem:[%s6 + $0x230] sm:$0xff]
      %v9940 = vld [vmem:[%s6 + $0x238] sm:$0xff]
      %v9941 = vld [vmem:[%s6 + $0x240] sm:$0xff]
      %v9942 = vld [vmem:[%s6 + $0x248] sm:$0xff]
      %v9943 = vld [vmem:[%s6 + $0x250] sm:$0xff]
      %v9944 = vld [vmem:[%s6 + $0x258] sm:$0xff]
      %v9945 = vld [vmem:[%s6 + $0x260] sm:$0xff]
      %v9946 = vld [vmem:[%s6 + $0x268] sm:$0xff]
      %v9947 = vld [vmem:[%s6 + $0x270] sm:$0xff]
      %v9948 = vld [vmem:[%s6 + $0x278] sm:$0xff]
      %v9949 = vld [vmem:[%s6 + $0x280] sm:$0xff]
      %v9950 = vld [vmem:[%s6 + $0x288] sm:$0xff]
      %v9951 = vld [vmem:[%s6 + $0x290] sm:$0xff]
      %v9952 = vld [vmem:[%s6 + $0x298] sm:$0xff]
      %v9953 = vld [vmem:[%s6 + $0x2a0] sm:$0xff]
      %v9954 = vld [vmem:[%s6 + $0x2a8] sm:$0xff]
      %v9955 = vld [vmem:[%s6 + $0x2b0] sm:$0xff]
      %v9956 = vld [vmem:[%s6 + $0x2b8] sm:$0xff]
      %v9957 = vld [vmem:[%s6 + $0x2c0] sm:$0xff]
      %v9958 = vld [vmem:[%s6 + $0x2c8] sm:$0xff]
      %v9959 = vld [vmem:[%s6 + $0x2d0] sm:$0xff]
      %v9960 = vld [vmem:[%s6 + $0x2d8] sm:$0xff]
      %v9961 = vld [vmem:[%s6 + $0x2e0] sm:$0xff]
      %v9962 = vld [vmem:[%s6 + $0x2e8] sm:$0xff]
      %v9963 = vld [vmem:[%s6 + $0x2f0] sm:$0xff]
      %v9964 = vld [vmem:[%s6 + $0x2f8] sm:$0xff]
      %v9965 = vld [vmem:[%s6 + $0x300] sm:$0xff]
      %v9966 = vld [vmem:[%s6 + $0x308] sm:$0xff]
      %v9967 = vld [vmem:[%s6 + $0x310] sm:$0xff]
      %v9968 = vld [vmem:[%s6 + $0x318] sm:$0xff]
      %v9969 = vld [vmem:[%s6 + $0x320] sm:$0xff]
      %v9970 = vld [vmem:[%s6 + $0x328] sm:$0xff]
      %v9971 = vld [vmem:[%s6 + $0x330] sm:$0xff]
      %v9972 = vld [vmem:[%s6 + $0x338] sm:$0xff]
      %v9973 = vld [vmem:[%s6 + $0x340] sm:$0xff]
      %v9974 = vld [vmem:[%s6 + $0x348] sm:$0xff]
      %v9975 = vld [vmem:[%s6 + $0x350] sm:$0xff]
      %v9976 = vld [vmem:[%s6 + $0x358] sm:$0xff]
      %v9978 = vsel %vm1126, %v8877, 0
      %v9981 = vsel %vm1126, %v8878, 0
      %v9984 = vsel %vm1126, %v8879, 0
      %v9987 = vsel %vm1126, %v8880, 0
      %v9990 = vsel %vm1126, %v8881, 0
      %v9993 = vsel %vm1126, %v8882, 0
      %v9996 = vsel %vm1126, %v8883, 0
      %v9999 = vsel %vm1126, %v8884, 0
      %v10002 = vsel %vm1126, %v8885, 0
      %v10005 = vsel %vm1126, %v8886, 0
      %v10008 = vsel %vm1126, %v8887, 0
      %v10011 = vsel %vm1126, %v8888, 0
      %v10014 = vsel %vm1126, %v8889, 0
      %v10017 = vsel %vm1126, %v8890, 0
      %v10020 = vsel %vm1126, %v8891, 0
      %v10023 = vsel %vm1126, %v8892, 0
      %v10026 = vsel %vm1126, %v8893, 0
      %v10029 = vsel %vm1126, %v8894, 0
      %v10032 = vsel %vm1126, %v8895, 0
      %v10035 = vsel %vm1126, %v8896, 0
      %v10038 = vsel %vm1126, %v8897, 0
      %v10041 = vsel %vm1126, %v8898, 0
      %v10044 = vsel %vm1126, %v8899, 0
      %v10047 = vsel %vm1126, %v8900, 0
      %v10050 = vsel %vm1126, %v8901, 0
      %v10053 = vsel %vm1126, %v8902, 0
      %v10056 = vsel %vm1126, %v8903, 0
      %v10059 = vsel %vm1126, %v8904, 0
      %v10062 = vsel %vm1126, %v8905, 0
      %v10065 = vsel %vm1126, %v8906, 0
      %v10068 = vsel %vm1126, %v8907, 0
      %v10071 = vsel %vm1126, %v8908, 0
      %10073 = vmatpush.msra.mxu0 %v9884
      %10074 = vmatpush.msra.mxu0 %v9883
      %10075 = vmatpush.msra.mxu0 %v9882
      %10076 = vmatpush.msra.mxu0 %v9881
      %10077 = vmatpush.msra.mxu0 %v9880
      %10078 = vmatpush.msra.mxu0 %v9879
      %10079 = vmatpush.msra.mxu0 %v9878
      %10080 = vmatpush.msra.mxu0 %v9877
      %10081 = vmatpush.msra.mxu0 %v9876
      %10082 = vmatpush.msra.mxu0 %v9875
      %10083 = vmatpush.msra.mxu0 %v9874
      %10084 = vmatpush.msra.mxu0 %v9873
      %10085 = vmatpush.msra.mxu0 %v9872
      %10086 = vmatpush.msra.mxu0 %v9871
      %10087 = vmatpush.msra.mxu0 %v9870
      %10088 = vmatpush.msra.mxu0 %v9869
      %10089 = vmatmul.f32.gmra.mxu0 %v9677
      %v10090 = vpop.f32.mrf.mxu0
      %v10091 = vadd.f32 0.0, %v10090
      %10092 = vmatmul.f32.gmra.mxu0 %v9678
      %v10093 = vpop.f32.mrf.mxu0
      %v10094 = vadd.f32 0.0, %v10093
      %10095 = vmatmul.f32.gmra.mxu0 %v9679
      %v10096 = vpop.f32.mrf.mxu0
      %v10097 = vadd.f32 0.0, %v10096
      %10098 = vmatmul.f32.gmra.mxu0 %v9680
      %v10099 = vpop.f32.mrf.mxu0
      %v10100 = vadd.f32 0.0, %v10099
      %10101 = vmatmul.f32.gmra.mxu0 %v9681
      %v10102 = vpop.f32.mrf.mxu0
      %v10103 = vadd.f32 0.0, %v10102
      %10104 = vmatmul.f32.gmra.mxu0 %v9682
      %v10105 = vpop.f32.mrf.mxu0
      %v10106 = vadd.f32 0.0, %v10105
      %10107 = vmatmul.f32.gmra.mxu0 %v9683
      %v10108 = vpop.f32.mrf.mxu0
      %v10109 = vadd.f32 0.0, %v10108
      %10110 = vmatmul.f32.gmra.mxu0 %v9684
      %v10111 = vpop.f32.mrf.mxu0
      %v10112 = vadd.f32 0.0, %v10111
      %10113 = vmatmul.f32.gmra.mxu0 %v9685
      %v10114 = vpop.f32.mrf.mxu0
      %v10115 = vadd.f32 0.0, %v10114
      %10116 = vmatmul.f32.gmra.mxu0 %v9686
      %v10117 = vpop.f32.mrf.mxu0
      %v10118 = vadd.f32 0.0, %v10117
      %10119 = vmatmul.f32.gmra.mxu0 %v9687
      %v10120 = vpop.f32.mrf.mxu0
      %v10121 = vadd.f32 0.0, %v10120
      %10122 = vmatmul.f32.gmra.mxu0 %v9688
      %v10123 = vpop.f32.mrf.mxu0
      %v10124 = vadd.f32 0.0, %v10123
      %10125 = vmatmul.f32.gmra.mxu0 %v9689
      %v10126 = vpop.f32.mrf.mxu0
      %v10127 = vadd.f32 0.0, %v10126
      %10128 = vmatmul.f32.gmra.mxu0 %v9690
      %v10129 = vpop.f32.mrf.mxu0
      %v10130 = vadd.f32 0.0, %v10129
      %10131 = vmatmul.f32.gmra.mxu0 %v9691
      %v10132 = vpop.f32.mrf.mxu0
      %v10133 = vadd.f32 0.0, %v10132
      %10134 = vmatmul.f32.gmra.mxu0 %v9692
      %v10135 = vpop.f32.mrf.mxu0
      %v10136 = vadd.f32 0.0, %v10135
      %10137 = vmatmul.f32.gmra.mxu0 %v9693
      %v10138 = vpop.f32.mrf.mxu0
      %v10139 = vadd.f32 0.0, %v10138
      %10140 = vmatmul.f32.gmra.mxu0 %v9694
      %v10141 = vpop.f32.mrf.mxu0
      %v10142 = vadd.f32 0.0, %v10141
      %10143 = vmatmul.f32.gmra.mxu0 %v9695
      %v10144 = vpop.f32.mrf.mxu0
      %v10145 = vadd.f32 0.0, %v10144
      %10146 = vmatmul.f32.gmra.mxu0 %v9696
      %v10147 = vpop.f32.mrf.mxu0
      %v10148 = vadd.f32 0.0, %v10147
      %10149 = vmatmul.f32.gmra.mxu0 %v9697
      %v10150 = vpop.f32.mrf.mxu0
      %v10151 = vadd.f32 0.0, %v10150
      %10152 = vmatmul.f32.gmra.mxu0 %v9698
      %v10153 = vpop.f32.mrf.mxu0
      %v10154 = vadd.f32 0.0, %v10153
      %10155 = vmatmul.f32.gmra.mxu0 %v9699
      %v10156 = vpop.f32.mrf.mxu0
      %v10157 = vadd.f32 0.0, %v10156
      %10158 = vmatmul.f32.gmra.mxu0 %v9700
      %v10159 = vpop.f32.mrf.mxu0
      %v10160 = vadd.f32 0.0, %v10159
      %10161 = vmatmul.f32.gmra.mxu0 %v9701
      %v10162 = vpop.f32.mrf.mxu0
      %v10163 = vadd.f32 0.0, %v10162
      %10164 = vmatmul.f32.gmra.mxu0 %v9702
      %v10165 = vpop.f32.mrf.mxu0
      %v10166 = vadd.f32 0.0, %v10165
      %10167 = vmatmul.f32.gmra.mxu0 %v9703
      %v10168 = vpop.f32.mrf.mxu0
      %v10169 = vadd.f32 0.0, %v10168
      %10170 = vmatmul.f32.gmra.mxu0 %v9704
      %v10171 = vpop.f32.mrf.mxu0
      %v10172 = vadd.f32 0.0, %v10171
      %10173 = vmatmul.f32.gmra.mxu0 %v9705
      %v10174 = vpop.f32.mrf.mxu0
      %v10175 = vadd.f32 0.0, %v10174
      %10176 = vmatmul.f32.gmra.mxu0 %v9706
      %v10177 = vpop.f32.mrf.mxu0
      %v10178 = vadd.f32 0.0, %v10177
      %10179 = vmatmul.f32.gmra.mxu0 %v9707
      %v10180 = vpop.f32.mrf.mxu0
      %v10181 = vadd.f32 0.0, %v10180
      %10182 = vmatmul.f32.gmra.mxu0 %v9708
      %v10183 = vpop.f32.mrf.mxu0
      %v10184 = vadd.f32 0.0, %v10183
      %10185 = vdwg.mxu0
      %10186 = vmatpush.msra.mxu0 %v9900
      %10187 = vmatpush.msra.mxu0 %v9899
      %10188 = vmatpush.msra.mxu0 %v9898
      %10189 = vmatpush.msra.mxu0 %v9897
      %10190 = vmatpush.msra.mxu0 %v9896
      %10191 = vmatpush.msra.mxu0 %v9895
      %10192 = vmatpush.msra.mxu0 %v9894
      %10193 = vmatpush.msra.mxu0 %v9893
      %10194 = vmatpush.msra.mxu0 %v9892
      %10195 = vmatpush.msra.mxu0 %v9891
      %10196 = vmatpush.msra.mxu0 %v9890
      %10197 = vmatpush.msra.mxu0 %v9889
      %10198 = vmatpush.msra.mxu0 %v9888
      %10199 = vmatpush.msra.mxu0 %v9887
      %10200 = vmatpush.msra.mxu0 %v9886
      %10201 = vmatpush.msra.mxu0 %v9885
      %10202 = vmatmul.f32.gmra.mxu0 %v9709
      %v10203 = vpop.f32.mrf.mxu0
      %v10204 = vadd.f32 %v10091, %v10203
      %10205 = vmatmul.f32.gmra.mxu0 %v9710
      %v10206 = vpop.f32.mrf.mxu0
      %v10207 = vadd.f32 %v10094, %v10206
      %10208 = vmatmul.f32.gmra.mxu0 %v9711
      %v10209 = vpop.f32.mrf.mxu0
      %v10210 = vadd.f32 %v10097, %v10209
      %10211 = vmatmul.f32.gmra.mxu0 %v9712
      %v10212 = vpop.f32.mrf.mxu0
      %v10213 = vadd.f32 %v10100, %v10212
      %10214 = vmatmul.f32.gmra.mxu0 %v9713
      %v10215 = vpop.f32.mrf.mxu0
      %v10216 = vadd.f32 %v10103, %v10215
      %10217 = vmatmul.f32.gmra.mxu0 %v9714
      %v10218 = vpop.f32.mrf.mxu0
      %v10219 = vadd.f32 %v10106, %v10218
      %10220 = vmatmul.f32.gmra.mxu0 %v9715
      %v10221 = vpop.f32.mrf.mxu0
      %v10222 = vadd.f32 %v10109, %v10221
      %10223 = vmatmul.f32.gmra.mxu0 %v9716
      %v10224 = vpop.f32.mrf.mxu0
      %v10225 = vadd.f32 %v10112, %v10224
      %10226 = vmatmul.f32.gmra.mxu0 %v9717
      %v10227 = vpop.f32.mrf.mxu0
      %v10228 = vadd.f32 %v10115, %v10227
      %10229 = vmatmul.f32.gmra.mxu0 %v9718
      %v10230 = vpop.f32.mrf.mxu0
      %v10231 = vadd.f32 %v10118, %v10230
      %10232 = vmatmul.f32.gmra.mxu0 %v9719
      %v10233 = vpop.f32.mrf.mxu0
      %v10234 = vadd.f32 %v10121, %v10233
      %10235 = vmatmul.f32.gmra.mxu0 %v9720
      %v10236 = vpop.f32.mrf.mxu0
      %v10237 = vadd.f32 %v10124, %v10236
      %10238 = vmatmul.f32.gmra.mxu0 %v9721
      %v10239 = vpop.f32.mrf.mxu0
      %v10240 = vadd.f32 %v10127, %v10239
      %10241 = vmatmul.f32.gmra.mxu0 %v9722
      %v10242 = vpop.f32.mrf.mxu0
      %v10243 = vadd.f32 %v10130, %v10242
      %10244 = vmatmul.f32.gmra.mxu0 %v9723
      %v10245 = vpop.f32.mrf.mxu0
      %v10246 = vadd.f32 %v10133, %v10245
      %10247 = vmatmul.f32.gmra.mxu0 %v9724
      %v10248 = vpop.f32.mrf.mxu0
      %v10249 = vadd.f32 %v10136, %v10248
      %10250 = vmatmul.f32.gmra.mxu0 %v9725
      %v10251 = vpop.f32.mrf.mxu0
      %v10252 = vadd.f32 %v10139, %v10251
      %10253 = vmatmul.f32.gmra.mxu0 %v9726
      %v10254 = vpop.f32.mrf.mxu0
      %v10255 = vadd.f32 %v10142, %v10254
      %10256 = vmatmul.f32.gmra.mxu0 %v9727
      %v10257 = vpop.f32.mrf.mxu0
      %v10258 = vadd.f32 %v10145, %v10257
      %10259 = vmatmul.f32.gmra.mxu0 %v9728
      %v10260 = vpop.f32.mrf.mxu0
      %v10261 = vadd.f32 %v10148, %v10260
      %10262 = vmatmul.f32.gmra.mxu0 %v9729
      %v10263 = vpop.f32.mrf.mxu0
      %v10264 = vadd.f32 %v10151, %v10263
      %10265 = vmatmul.f32.gmra.mxu0 %v9730
      %v10266 = vpop.f32.mrf.mxu0
      %v10267 = vadd.f32 %v10154, %v10266
      %10268 = vmatmul.f32.gmra.mxu0 %v9731
      %v10269 = vpop.f32.mrf.mxu0
      %v10270 = vadd.f32 %v10157, %v10269
      %10271 = vmatmul.f32.gmra.mxu0 %v9732
      %v10272 = vpop.f32.mrf.mxu0
      %v10273 = vadd.f32 %v10160, %v10272
      %10274 = vmatmul.f32.gmra.mxu0 %v9733
      %v10275 = vpop.f32.mrf.mxu0
      %v10276 = vadd.f32 %v10163, %v10275
      %10277 = vmatmul.f32.gmra.mxu0 %v9734
      %v10278 = vpop.f32.mrf.mxu0
      %v10279 = vadd.f32 %v10166, %v10278
      %10280 = vmatmul.f32.gmra.mxu0 %v9735
      %v10281 = vpop.f32.mrf.mxu0
      %v10282 = vadd.f32 %v10169, %v10281
      %10283 = vmatmul.f32.gmra.mxu0 %v9736
      %v10284 = vpop.f32.mrf.mxu0
      %v10285 = vadd.f32 %v10172, %v10284
      %10286 = vmatmul.f32.gmra.mxu0 %v9737
      %v10287 = vpop.f32.mrf.mxu0
      %v10288 = vadd.f32 %v10175, %v10287
      %10289 = vmatmul.f32.gmra.mxu0 %v9738
      %v10290 = vpop.f32.mrf.mxu0
      %v10291 = vadd.f32 %v10178, %v10290
      %10292 = vmatmul.f32.gmra.mxu0 %v9739
      %v10293 = vpop.f32.mrf.mxu0
      %v10294 = vadd.f32 %v10181, %v10293
      %10295 = vmatmul.f32.gmra.mxu0 %v9740
      %v10296 = vpop.f32.mrf.mxu0
      %v10297 = vadd.f32 %v10184, %v10296
      %10298 = vdwg.mxu0
      %10299 = vmatpush.msra.mxu0 %v9916
      %10300 = vmatpush.msra.mxu0 %v9915
      %10301 = vmatpush.msra.mxu0 %v9914
      %10302 = vmatpush.msra.mxu0 %v9913
      %10303 = vmatpush.msra.mxu0 %v9912
      %10304 = vmatpush.msra.mxu0 %v9911
      %10305 = vmatpush.msra.mxu0 %v9910
      %10306 = vmatpush.msra.mxu0 %v9909
      %10307 = vmatpush.msra.mxu0 %v9908
      %10308 = vmatpush.msra.mxu0 %v9907
      %10309 = vmatpush.msra.mxu0 %v9906
      %10310 = vmatpush.msra.mxu0 %v9905
      %10311 = vmatpush.msra.mxu0 %v9904
      %10312 = vmatpush.msra.mxu0 %v9903
      %10313 = vmatpush.msra.mxu0 %v9902
      %10314 = vmatpush.msra.mxu0 %v9901
      %10315 = vmatmul.f32.gmra.mxu0 %v9741
      %v10316 = vpop.f32.mrf.mxu0
      %v10317 = vadd.f32 %v10204, %v10316
      %10318 = vmatmul.f32.gmra.mxu0 %v9742
      %v10319 = vpop.f32.mrf.mxu0
      %v10320 = vadd.f32 %v10207, %v10319
      %10321 = vmatmul.f32.gmra.mxu0 %v9743
      %v10322 = vpop.f32.mrf.mxu0
      %v10323 = vadd.f32 %v10210, %v10322
      %10324 = vmatmul.f32.gmra.mxu0 %v9744
      %v10325 = vpop.f32.mrf.mxu0
      %v10326 = vadd.f32 %v10213, %v10325
      %10327 = vmatmul.f32.gmra.mxu0 %v9745
      %v10328 = vpop.f32.mrf.mxu0
      %v10329 = vadd.f32 %v10216, %v10328
      %10330 = vmatmul.f32.gmra.mxu0 %v9746
      %v10331 = vpop.f32.mrf.mxu0
      %v10332 = vadd.f32 %v10219, %v10331
      %10333 = vmatmul.f32.gmra.mxu0 %v9747
      %v10334 = vpop.f32.mrf.mxu0
      %v10335 = vadd.f32 %v10222, %v10334
      %10336 = vmatmul.f32.gmra.mxu0 %v9748
      %v10337 = vpop.f32.mrf.mxu0
      %v10338 = vadd.f32 %v10225, %v10337
      %10339 = vmatmul.f32.gmra.mxu0 %v9749
      %v10340 = vpop.f32.mrf.mxu0
      %v10341 = vadd.f32 %v10228, %v10340
      %10342 = vmatmul.f32.gmra.mxu0 %v9750
      %v10343 = vpop.f32.mrf.mxu0
      %v10344 = vadd.f32 %v10231, %v10343
      %10345 = vmatmul.f32.gmra.mxu0 %v9751
      %v10346 = vpop.f32.mrf.mxu0
      %v10347 = vadd.f32 %v10234, %v10346
      %10348 = vmatmul.f32.gmra.mxu0 %v9752
      %v10349 = vpop.f32.mrf.mxu0
      %v10350 = vadd.f32 %v10237, %v10349
      %10351 = vmatmul.f32.gmra.mxu0 %v9753
      %v10352 = vpop.f32.mrf.mxu0
      %v10353 = vadd.f32 %v10240, %v10352
      %10354 = vmatmul.f32.gmra.mxu0 %v9754
      %v10355 = vpop.f32.mrf.mxu0
      %v10356 = vadd.f32 %v10243, %v10355
      %10357 = vmatmul.f32.gmra.mxu0 %v9755
      %v10358 = vpop.f32.mrf.mxu0
      %v10359 = vadd.f32 %v10246, %v10358
      %10360 = vmatmul.f32.gmra.mxu0 %v9756
      %v10361 = vpop.f32.mrf.mxu0
      %v10362 = vadd.f32 %v10249, %v10361
      %10363 = vmatmul.f32.gmra.mxu0 %v9757
      %v10364 = vpop.f32.mrf.mxu0
      %v10365 = vadd.f32 %v10252, %v10364
      %10366 = vmatmul.f32.gmra.mxu0 %v9758
      %v10367 = vpop.f32.mrf.mxu0
      %v10368 = vadd.f32 %v10255, %v10367
      %10369 = vmatmul.f32.gmra.mxu0 %v9759
      %v10370 = vpop.f32.mrf.mxu0
      %v10371 = vadd.f32 %v10258, %v10370
      %10372 = vmatmul.f32.gmra.mxu0 %v9760
      %v10373 = vpop.f32.mrf.mxu0
      %v10374 = vadd.f32 %v10261, %v10373
      %10375 = vmatmul.f32.gmra.mxu0 %v9761
      %v10376 = vpop.f32.mrf.mxu0
      %v10377 = vadd.f32 %v10264, %v10376
      %10378 = vmatmul.f32.gmra.mxu0 %v9762
      %v10379 = vpop.f32.mrf.mxu0
      %v10380 = vadd.f32 %v10267, %v10379
      %10381 = vmatmul.f32.gmra.mxu0 %v9763
      %v10382 = vpop.f32.mrf.mxu0
      %v10383 = vadd.f32 %v10270, %v10382
      %10384 = vmatmul.f32.gmra.mxu0 %v9764
      %v10385 = vpop.f32.mrf.mxu0
      %v10386 = vadd.f32 %v10273, %v10385
      %10387 = vmatmul.f32.gmra.mxu0 %v9765
      %v10388 = vpop.f32.mrf.mxu0
      %v10389 = vadd.f32 %v10276, %v10388
      %10390 = vmatmul.f32.gmra.mxu0 %v9766
      %v10391 = vpop.f32.mrf.mxu0
      %v10392 = vadd.f32 %v10279, %v10391
      %10393 = vmatmul.f32.gmra.mxu0 %v9767
      %v10394 = vpop.f32.mrf.mxu0
      %v10395 = vadd.f32 %v10282, %v10394
      %10396 = vmatmul.f32.gmra.mxu0 %v9768
      %v10397 = vpop.f32.mrf.mxu0
      %v10398 = vadd.f32 %v10285, %v10397
      %10399 = vmatmul.f32.gmra.mxu0 %v9769
      %v10400 = vpop.f32.mrf.mxu0
      %v10401 = vadd.f32 %v10288, %v10400
      %10402 = vmatmul.f32.gmra.mxu0 %v9770
      %v10403 = vpop.f32.mrf.mxu0
      %v10404 = vadd.f32 %v10291, %v10403
      %10405 = vmatmul.f32.gmra.mxu0 %v9771
      %v10406 = vpop.f32.mrf.mxu0
      %v10407 = vadd.f32 %v10294, %v10406
      %10408 = vmatmul.f32.gmra.mxu0 %v9772
      %v10409 = vpop.f32.mrf.mxu0
      %v10410 = vadd.f32 %v10297, %v10409
      %10411 = vdwg.mxu0
      %10412 = vmatpush.msra.mxu0 %v9932
      %10413 = vmatpush.msra.mxu0 %v9931
      %10414 = vmatpush.msra.mxu0 %v9930
      %10415 = vmatpush.msra.mxu0 %v9929
      %10416 = vmatpush.msra.mxu0 %v9928
      %10417 = vmatpush.msra.mxu0 %v9927
      %10418 = vmatpush.msra.mxu0 %v9926
      %10419 = vmatpush.msra.mxu0 %v9925
      %10420 = vmatpush.msra.mxu0 %v9924
      %10421 = vmatpush.msra.mxu0 %v9923
      %10422 = vmatpush.msra.mxu0 %v9922
      %10423 = vmatpush.msra.mxu0 %v9921
      %10424 = vmatpush.msra.mxu0 %v9920
      %10425 = vmatpush.msra.mxu0 %v9919
      %10426 = vmatpush.msra.mxu0 %v9918
      %10427 = vmatpush.msra.mxu0 %v9917
      %10428 = vmatmul.f32.gmra.mxu0 %v9773
      %v10429 = vpop.f32.mrf.mxu0
      %v10430 = vadd.f32 %v10317, %v10429
      %10431 = vmatmul.f32.gmra.mxu0 %v9774
      %v10432 = vpop.f32.mrf.mxu0
      %v10433 = vadd.f32 %v10320, %v10432
      %10434 = vmatmul.f32.gmra.mxu0 %v9775
      %v10435 = vpop.f32.mrf.mxu0
      %v10436 = vadd.f32 %v10323, %v10435
      %10437 = vmatmul.f32.gmra.mxu0 %v9776
      %v10438 = vpop.f32.mrf.mxu0
      %v10439 = vadd.f32 %v10326, %v10438
      %10440 = vmatmul.f32.gmra.mxu0 %v9777
      %v10441 = vpop.f32.mrf.mxu0
      %v10442 = vadd.f32 %v10329, %v10441
      %10443 = vmatmul.f32.gmra.mxu0 %v9778
      %v10444 = vpop.f32.mrf.mxu0
      %v10445 = vadd.f32 %v10332, %v10444
      %10446 = vmatmul.f32.gmra.mxu0 %v9779
      %v10447 = vpop.f32.mrf.mxu0
      %v10448 = vadd.f32 %v10335, %v10447
      %10449 = vmatmul.f32.gmra.mxu0 %v9780
      %v10450 = vpop.f32.mrf.mxu0
      %v10451 = vadd.f32 %v10338, %v10450
      %10452 = vmatmul.f32.gmra.mxu0 %v9781
      %v10453 = vpop.f32.mrf.mxu0
      %v10454 = vadd.f32 %v10341, %v10453
      %10455 = vmatmul.f32.gmra.mxu0 %v9782
      %v10456 = vpop.f32.mrf.mxu0
      %v10457 = vadd.f32 %v10344, %v10456
      %10458 = vmatmul.f32.gmra.mxu0 %v9783
      %v10459 = vpop.f32.mrf.mxu0
      %v10460 = vadd.f32 %v10347, %v10459
      %10461 = vmatmul.f32.gmra.mxu0 %v9784
      %v10462 = vpop.f32.mrf.mxu0
      %v10463 = vadd.f32 %v10350, %v10462
      %10464 = vmatmul.f32.gmra.mxu0 %v9785
      %v10465 = vpop.f32.mrf.mxu0
      %v10466 = vadd.f32 %v10353, %v10465
      %10467 = vmatmul.f32.gmra.mxu0 %v9786
      %v10468 = vpop.f32.mrf.mxu0
      %v10469 = vadd.f32 %v10356, %v10468
      %10470 = vmatmul.f32.gmra.mxu0 %v9787
      %v10471 = vpop.f32.mrf.mxu0
      %v10472 = vadd.f32 %v10359, %v10471
      %10473 = vmatmul.f32.gmra.mxu0 %v9788
      %v10474 = vpop.f32.mrf.mxu0
      %v10475 = vadd.f32 %v10362, %v10474
      %10476 = vmatmul.f32.gmra.mxu0 %v9789
      %v10477 = vpop.f32.mrf.mxu0
      %v10478 = vadd.f32 %v10365, %v10477
      %10479 = vmatmul.f32.gmra.mxu0 %v9790
      %v10480 = vpop.f32.mrf.mxu0
      %v10481 = vadd.f32 %v10368, %v10480
      %10482 = vmatmul.f32.gmra.mxu0 %v9791
      %v10483 = vpop.f32.mrf.mxu0
      %v10484 = vadd.f32 %v10371, %v10483
      %10485 = vmatmul.f32.gmra.mxu0 %v9792
      %v10486 = vpop.f32.mrf.mxu0
      %v10487 = vadd.f32 %v10374, %v10486
      %10488 = vmatmul.f32.gmra.mxu0 %v9793
      %v10489 = vpop.f32.mrf.mxu0
      %v10490 = vadd.f32 %v10377, %v10489
      %10491 = vmatmul.f32.gmra.mxu0 %v9794
      %v10492 = vpop.f32.mrf.mxu0
      %v10493 = vadd.f32 %v10380, %v10492
      %10494 = vmatmul.f32.gmra.mxu0 %v9795
      %v10495 = vpop.f32.mrf.mxu0
      %v10496 = vadd.f32 %v10383, %v10495
      %10497 = vmatmul.f32.gmra.mxu0 %v9796
      %v10498 = vpop.f32.mrf.mxu0
      %v10499 = vadd.f32 %v10386, %v10498
      %10500 = vmatmul.f32.gmra.mxu0 %v9797
      %v10501 = vpop.f32.mrf.mxu0
      %v10502 = vadd.f32 %v10389, %v10501
      %10503 = vmatmul.f32.gmra.mxu0 %v9798
      %v10504 = vpop.f32.mrf.mxu0
      %v10505 = vadd.f32 %v10392, %v10504
      %10506 = vmatmul.f32.gmra.mxu0 %v9799
      %v10507 = vpop.f32.mrf.mxu0
      %v10508 = vadd.f32 %v10395, %v10507
      %10509 = vmatmul.f32.gmra.mxu0 %v9800
      %v10510 = vpop.f32.mrf.mxu0
      %v10511 = vadd.f32 %v10398, %v10510
      %10512 = vmatmul.f32.gmra.mxu0 %v9801
      %v10513 = vpop.f32.mrf.mxu0
      %v10514 = vadd.f32 %v10401, %v10513
      %10515 = vmatmul.f32.gmra.mxu0 %v9802
      %v10516 = vpop.f32.mrf.mxu0
      %v10517 = vadd.f32 %v10404, %v10516
      %10518 = vmatmul.f32.gmra.mxu0 %v9803
      %v10519 = vpop.f32.mrf.mxu0
      %v10520 = vadd.f32 %v10407, %v10519
      %10521 = vmatmul.f32.gmra.mxu0 %v9804
      %v10522 = vpop.f32.mrf.mxu0
      %v10523 = vadd.f32 %v10410, %v10522
      %10524 = vdwg.mxu0
      %10525 = vmatpush.msra.mxu0 %v9948
      %10526 = vmatpush.msra.mxu0 %v9947
      %10527 = vmatpush.msra.mxu0 %v9946
      %10528 = vmatpush.msra.mxu0 %v9945
      %10529 = vmatpush.msra.mxu0 %v9944
      %10530 = vmatpush.msra.mxu0 %v9943
      %10531 = vmatpush.msra.mxu0 %v9942
      %10532 = vmatpush.msra.mxu0 %v9941
      %10533 = vmatpush.msra.mxu0 %v9940
      %10534 = vmatpush.msra.mxu0 %v9939
      %10535 = vmatpush.msra.mxu0 %v9938
      %10536 = vmatpush.msra.mxu0 %v9937
      %10537 = vmatpush.msra.mxu0 %v9936
      %10538 = vmatpush.msra.mxu0 %v9935
      %10539 = vmatpush.msra.mxu0 %v9934
      %10540 = vmatpush.msra.mxu0 %v9933
      %10541 = vmatmul.f32.gmra.mxu0 %v9805
      %v10542 = vpop.f32.mrf.mxu0
      %v10543 = vadd.f32 %v10430, %v10542
      %10544 = vmatmul.f32.gmra.mxu0 %v9806
      %v10545 = vpop.f32.mrf.mxu0
      %v10546 = vadd.f32 %v10433, %v10545
      %10547 = vmatmul.f32.gmra.mxu0 %v9807
      %v10548 = vpop.f32.mrf.mxu0
      %v10549 = vadd.f32 %v10436, %v10548
      %10550 = vmatmul.f32.gmra.mxu0 %v9808
      %v10551 = vpop.f32.mrf.mxu0
      %v10552 = vadd.f32 %v10439, %v10551
      %10553 = vmatmul.f32.gmra.mxu0 %v9809
      %v10554 = vpop.f32.mrf.mxu0
      %v10555 = vadd.f32 %v10442, %v10554
      %10556 = vmatmul.f32.gmra.mxu0 %v9810
      %v10557 = vpop.f32.mrf.mxu0
      %v10558 = vadd.f32 %v10445, %v10557
      %10559 = vmatmul.f32.gmra.mxu0 %v9811
      %v10560 = vpop.f32.mrf.mxu0
      %v10561 = vadd.f32 %v10448, %v10560
      %10562 = vmatmul.f32.gmra.mxu0 %v9812
      %v10563 = vpop.f32.mrf.mxu0
      %v10564 = vadd.f32 %v10451, %v10563
      %10565 = vmatmul.f32.gmra.mxu0 %v9813
      %v10566 = vpop.f32.mrf.mxu0
      %v10567 = vadd.f32 %v10454, %v10566
      %10568 = vmatmul.f32.gmra.mxu0 %v9814
      %v10569 = vpop.f32.mrf.mxu0
      %v10570 = vadd.f32 %v10457, %v10569
      %10571 = vmatmul.f32.gmra.mxu0 %v9815
      %v10572 = vpop.f32.mrf.mxu0
      %v10573 = vadd.f32 %v10460, %v10572
      %10574 = vmatmul.f32.gmra.mxu0 %v9816
      %v10575 = vpop.f32.mrf.mxu0
      %v10576 = vadd.f32 %v10463, %v10575
      %10577 = vmatmul.f32.gmra.mxu0 %v9817
      %v10578 = vpop.f32.mrf.mxu0
      %v10579 = vadd.f32 %v10466, %v10578
      %10580 = vmatmul.f32.gmra.mxu0 %v9818
      %v10581 = vpop.f32.mrf.mxu0
      %v10582 = vadd.f32 %v10469, %v10581
      %10583 = vmatmul.f32.gmra.mxu0 %v9819
      %v10584 = vpop.f32.mrf.mxu0
      %v10585 = vadd.f32 %v10472, %v10584
      %10586 = vmatmul.f32.gmra.mxu0 %v9820
      %v10587 = vpop.f32.mrf.mxu0
      %v10588 = vadd.f32 %v10475, %v10587
      %10589 = vmatmul.f32.gmra.mxu0 %v9821
      %v10590 = vpop.f32.mrf.mxu0
      %v10591 = vadd.f32 %v10478, %v10590
      %10592 = vmatmul.f32.gmra.mxu0 %v9822
      %v10593 = vpop.f32.mrf.mxu0
      %v10594 = vadd.f32 %v10481, %v10593
      %10595 = vmatmul.f32.gmra.mxu0 %v9823
      %v10596 = vpop.f32.mrf.mxu0
      %v10597 = vadd.f32 %v10484, %v10596
      %10598 = vmatmul.f32.gmra.mxu0 %v9824
      %v10599 = vpop.f32.mrf.mxu0
      %v10600 = vadd.f32 %v10487, %v10599
      %10601 = vmatmul.f32.gmra.mxu0 %v9825
      %v10602 = vpop.f32.mrf.mxu0
      %v10603 = vadd.f32 %v10490, %v10602
      %10604 = vmatmul.f32.gmra.mxu0 %v9826
      %v10605 = vpop.f32.mrf.mxu0
      %v10606 = vadd.f32 %v10493, %v10605
      %10607 = vmatmul.f32.gmra.mxu0 %v9827
      %v10608 = vpop.f32.mrf.mxu0
      %v10609 = vadd.f32 %v10496, %v10608
      %10610 = vmatmul.f32.gmra.mxu0 %v9828
      %v10611 = vpop.f32.mrf.mxu0
      %v10612 = vadd.f32 %v10499, %v10611
      %10613 = vmatmul.f32.gmra.mxu0 %v9829
      %v10614 = vpop.f32.mrf.mxu0
      %v10615 = vadd.f32 %v10502, %v10614
      %10616 = vmatmul.f32.gmra.mxu0 %v9830
      %v10617 = vpop.f32.mrf.mxu0
      %v10618 = vadd.f32 %v10505, %v10617
      %10619 = vmatmul.f32.gmra.mxu0 %v9831
      %v10620 = vpop.f32.mrf.mxu0
      %v10621 = vadd.f32 %v10508, %v10620
      %10622 = vmatmul.f32.gmra.mxu0 %v9832
      %v10623 = vpop.f32.mrf.mxu0
      %v10624 = vadd.f32 %v10511, %v10623
      %10625 = vmatmul.f32.gmra.mxu0 %v9833
      %v10626 = vpop.f32.mrf.mxu0
      %v10627 = vadd.f32 %v10514, %v10626
      %10628 = vmatmul.f32.gmra.mxu0 %v9834
      %v10629 = vpop.f32.mrf.mxu0
      %v10630 = vadd.f32 %v10517, %v10629
      %10631 = vmatmul.f32.gmra.mxu0 %v9835
      %v10632 = vpop.f32.mrf.mxu0
      %v10633 = vadd.f32 %v10520, %v10632
      %10634 = vmatmul.f32.gmra.mxu0 %v9836
      %v10635 = vpop.f32.mrf.mxu0
      %v10636 = vadd.f32 %v10523, %v10635
      %10637 = vdwg.mxu0
      %10638 = vmatpush.msra.mxu0 %v9964
      %10639 = vmatpush.msra.mxu0 %v9963
      %10640 = vmatpush.msra.mxu0 %v9962
      %10641 = vmatpush.msra.mxu0 %v9961
      %10642 = vmatpush.msra.mxu0 %v9960
      %10643 = vmatpush.msra.mxu0 %v9959
      %10644 = vmatpush.msra.mxu0 %v9958
      %10645 = vmatpush.msra.mxu0 %v9957
      %10646 = vmatpush.msra.mxu0 %v9956
      %10647 = vmatpush.msra.mxu0 %v9955
      %10648 = vmatpush.msra.mxu0 %v9954
      %10649 = vmatpush.msra.mxu0 %v9953
      %10650 = vmatpush.msra.mxu0 %v9952
      %10651 = vmatpush.msra.mxu0 %v9951
      %10652 = vmatpush.msra.mxu0 %v9950
      %10653 = vmatpush.msra.mxu0 %v9949
      %10654 = vmatmul.f32.gmra.mxu0 %v9837
      %v10655 = vpop.f32.mrf.mxu0
      %v10656 = vadd.f32 %v10543, %v10655
      %10657 = vmatmul.f32.gmra.mxu0 %v9838
      %v10658 = vpop.f32.mrf.mxu0
      %v10659 = vadd.f32 %v10546, %v10658
      %10660 = vmatmul.f32.gmra.mxu0 %v9839
      %v10661 = vpop.f32.mrf.mxu0
      %v10662 = vadd.f32 %v10549, %v10661
      %10663 = vmatmul.f32.gmra.mxu0 %v9840
      %v10664 = vpop.f32.mrf.mxu0
      %v10665 = vadd.f32 %v10552, %v10664
      %10666 = vmatmul.f32.gmra.mxu0 %v9841
      %v10667 = vpop.f32.mrf.mxu0
      %v10668 = vadd.f32 %v10555, %v10667
      %10669 = vmatmul.f32.gmra.mxu0 %v9842
      %v10670 = vpop.f32.mrf.mxu0
      %v10671 = vadd.f32 %v10558, %v10670
      %10672 = vmatmul.f32.gmra.mxu0 %v9843
      %v10673 = vpop.f32.mrf.mxu0
      %v10674 = vadd.f32 %v10561, %v10673
      %10675 = vmatmul.f32.gmra.mxu0 %v9844
      %v10676 = vpop.f32.mrf.mxu0
      %v10677 = vadd.f32 %v10564, %v10676
      %10678 = vmatmul.f32.gmra.mxu0 %v9845
      %v10679 = vpop.f32.mrf.mxu0
      %v10680 = vadd.f32 %v10567, %v10679
      %10681 = vmatmul.f32.gmra.mxu0 %v9846
      %v10682 = vpop.f32.mrf.mxu0
      %v10683 = vadd.f32 %v10570, %v10682
      %10684 = vmatmul.f32.gmra.mxu0 %v9847
      %v10685 = vpop.f32.mrf.mxu0
      %v10686 = vadd.f32 %v10573, %v10685
      %10687 = vmatmul.f32.gmra.mxu0 %v9848
      %v10688 = vpop.f32.mrf.mxu0
      %v10689 = vadd.f32 %v10576, %v10688
      %10690 = vmatmul.f32.gmra.mxu0 %v9849
      %v10691 = vpop.f32.mrf.mxu0
      %v10692 = vadd.f32 %v10579, %v10691
      %10693 = vmatmul.f32.gmra.mxu0 %v9850
      %v10694 = vpop.f32.mrf.mxu0
      %v10695 = vadd.f32 %v10582, %v10694
      %10696 = vmatmul.f32.gmra.mxu0 %v9851
      %v10697 = vpop.f32.mrf.mxu0
      %v10698 = vadd.f32 %v10585, %v10697
      %10699 = vmatmul.f32.gmra.mxu0 %v9852
      %v10700 = vpop.f32.mrf.mxu0
      %v10701 = vadd.f32 %v10588, %v10700
      %10702 = vmatmul.f32.gmra.mxu0 %v9853
      %v10703 = vpop.f32.mrf.mxu0
      %v10704 = vadd.f32 %v10591, %v10703
      %10705 = vmatmul.f32.gmra.mxu0 %v9854
      %v10706 = vpop.f32.mrf.mxu0
      %v10707 = vadd.f32 %v10594, %v10706
      %10708 = vmatmul.f32.gmra.mxu0 %v9855
      %v10709 = vpop.f32.mrf.mxu0
      %v10710 = vadd.f32 %v10597, %v10709
      %10711 = vmatmul.f32.gmra.mxu0 %v9856
      %v10712 = vpop.f32.mrf.mxu0
      %v10713 = vadd.f32 %v10600, %v10712
      %10714 = vmatmul.f32.gmra.mxu0 %v9857
      %v10715 = vpop.f32.mrf.mxu0
      %v10716 = vadd.f32 %v10603, %v10715
      %10717 = vmatmul.f32.gmra.mxu0 %v9858
      %v10718 = vpop.f32.mrf.mxu0
      %v10719 = vadd.f32 %v10606, %v10718
      %10720 = vmatmul.f32.gmra.mxu0 %v9859
      %v10721 = vpop.f32.mrf.mxu0
      %v10722 = vadd.f32 %v10609, %v10721
      %10723 = vmatmul.f32.gmra.mxu0 %v9860
      %v10724 = vpop.f32.mrf.mxu0
      %v10725 = vadd.f32 %v10612, %v10724
      %10726 = vmatmul.f32.gmra.mxu0 %v9861
      %v10727 = vpop.f32.mrf.mxu0
      %v10728 = vadd.f32 %v10615, %v10727
      %10729 = vmatmul.f32.gmra.mxu0 %v9862
      %v10730 = vpop.f32.mrf.mxu0
      %v10731 = vadd.f32 %v10618, %v10730
      %10732 = vmatmul.f32.gmra.mxu0 %v9863
      %v10733 = vpop.f32.mrf.mxu0
      %v10734 = vadd.f32 %v10621, %v10733
      %10735 = vmatmul.f32.gmra.mxu0 %v9864
      %v10736 = vpop.f32.mrf.mxu0
      %v10737 = vadd.f32 %v10624, %v10736
      %10738 = vmatmul.f32.gmra.mxu0 %v9865
      %v10739 = vpop.f32.mrf.mxu0
      %v10740 = vadd.f32 %v10627, %v10739
      %10741 = vmatmul.f32.gmra.mxu0 %v9866
      %v10742 = vpop.f32.mrf.mxu0
      %v10743 = vadd.f32 %v10630, %v10742
      %10744 = vmatmul.f32.gmra.mxu0 %v9867
      %v10745 = vpop.f32.mrf.mxu0
      %v10746 = vadd.f32 %v10633, %v10745
      %10747 = vmatmul.f32.gmra.mxu0 %v9868
      %v10748 = vpop.f32.mrf.mxu0
      %v10749 = vadd.f32 %v10636, %v10748
      %10750 = vdwg.mxu0
      %10751 = vmatpush.msra.mxu0 0.0
      %10752 = vmatpush.msra.mxu0 0.0
      %10753 = vmatpush.msra.mxu0 0.0
      %10754 = vmatpush.msra.mxu0 0.0
      %10755 = vmatpush.msra.mxu0 %v9976
      %10756 = vmatpush.msra.mxu0 %v9975
      %10757 = vmatpush.msra.mxu0 %v9974
      %10758 = vmatpush.msra.mxu0 %v9973
      %10759 = vmatpush.msra.mxu0 %v9972
      %10760 = vmatpush.msra.mxu0 %v9971
      %10761 = vmatpush.msra.mxu0 %v9970
      %10762 = vmatpush.msra.mxu0 %v9969
      %10763 = vmatpush.msra.mxu0 %v9968
      %10764 = vmatpush.msra.mxu0 %v9967
      %10765 = vmatpush.msra.mxu0 %v9966
      %10766 = vmatpush.msra.mxu0 %v9965
      %10767 = vmatmul.f32.gmra.mxu0 %v9978
      %v10768 = vpop.f32.mrf.mxu0
      %v10769 = vadd.f32 %v10656, %v10768
      %10770 = vmatmul.f32.gmra.mxu0 %v9981
      %v10771 = vpop.f32.mrf.mxu0
      %v10772 = vadd.f32 %v10659, %v10771
      %10773 = vmatmul.f32.gmra.mxu0 %v9984
      %v10774 = vpop.f32.mrf.mxu0
      %v10775 = vadd.f32 %v10662, %v10774
      %10776 = vmatmul.f32.gmra.mxu0 %v9987
      %v10777 = vpop.f32.mrf.mxu0
      %v10778 = vadd.f32 %v10665, %v10777
      %10779 = vmatmul.f32.gmra.mxu0 %v9990
      %v10780 = vpop.f32.mrf.mxu0
      %v10781 = vadd.f32 %v10668, %v10780
      %10782 = vmatmul.f32.gmra.mxu0 %v9993
      %v10783 = vpop.f32.mrf.mxu0
      %v10784 = vadd.f32 %v10671, %v10783
      %10785 = vmatmul.f32.gmra.mxu0 %v9996
      %v10786 = vpop.f32.mrf.mxu0
      %v10787 = vadd.f32 %v10674, %v10786
      %10788 = vmatmul.f32.gmra.mxu0 %v9999
      %v10789 = vpop.f32.mrf.mxu0
      %v10790 = vadd.f32 %v10677, %v10789
      %10791 = vmatmul.f32.gmra.mxu0 %v10002
      %v10792 = vpop.f32.mrf.mxu0
      %v10793 = vadd.f32 %v10680, %v10792
      %10794 = vmatmul.f32.gmra.mxu0 %v10005
      %v10795 = vpop.f32.mrf.mxu0
      %v10796 = vadd.f32 %v10683, %v10795
      %10797 = vmatmul.f32.gmra.mxu0 %v10008
      %v10798 = vpop.f32.mrf.mxu0
      %v10799 = vadd.f32 %v10686, %v10798
      %10800 = vmatmul.f32.gmra.mxu0 %v10011
      %v10801 = vpop.f32.mrf.mxu0
      %v10802 = vadd.f32 %v10689, %v10801
      %10803 = vmatmul.f32.gmra.mxu0 %v10014
      %v10804 = vpop.f32.mrf.mxu0
      %v10805 = vadd.f32 %v10692, %v10804
      %10806 = vmatmul.f32.gmra.mxu0 %v10017
      %v10807 = vpop.f32.mrf.mxu0
      %v10808 = vadd.f32 %v10695, %v10807
      %10809 = vmatmul.f32.gmra.mxu0 %v10020
      %v10810 = vpop.f32.mrf.mxu0
      %v10811 = vadd.f32 %v10698, %v10810
      %10812 = vmatmul.f32.gmra.mxu0 %v10023
      %v10813 = vpop.f32.mrf.mxu0
      %v10814 = vadd.f32 %v10701, %v10813
      %10815 = vmatmul.f32.gmra.mxu0 %v10026
      %v10816 = vpop.f32.mrf.mxu0
      %v10817 = vadd.f32 %v10704, %v10816
      %10818 = vmatmul.f32.gmra.mxu0 %v10029
      %v10819 = vpop.f32.mrf.mxu0
      %v10820 = vadd.f32 %v10707, %v10819
      %10821 = vmatmul.f32.gmra.mxu0 %v10032
      %v10822 = vpop.f32.mrf.mxu0
      %v10823 = vadd.f32 %v10710, %v10822
      %10824 = vmatmul.f32.gmra.mxu0 %v10035
      %v10825 = vpop.f32.mrf.mxu0
      %v10826 = vadd.f32 %v10713, %v10825
      %10827 = vmatmul.f32.gmra.mxu0 %v10038
      %v10828 = vpop.f32.mrf.mxu0
      %v10829 = vadd.f32 %v10716, %v10828
      %10830 = vmatmul.f32.gmra.mxu0 %v10041
      %v10831 = vpop.f32.mrf.mxu0
      %v10832 = vadd.f32 %v10719, %v10831
      %10833 = vmatmul.f32.gmra.mxu0 %v10044
      %v10834 = vpop.f32.mrf.mxu0
      %v10835 = vadd.f32 %v10722, %v10834
      %10836 = vmatmul.f32.gmra.mxu0 %v10047
      %v10837 = vpop.f32.mrf.mxu0
      %v10838 = vadd.f32 %v10725, %v10837
      %10839 = vmatmul.f32.gmra.mxu0 %v10050
      %v10840 = vpop.f32.mrf.mxu0
      %v10841 = vadd.f32 %v10728, %v10840
      %10842 = vmatmul.f32.gmra.mxu0 %v10053
      %v10843 = vpop.f32.mrf.mxu0
      %v10844 = vadd.f32 %v10731, %v10843
      %10845 = vmatmul.f32.gmra.mxu0 %v10056
      %v10846 = vpop.f32.mrf.mxu0
      %v10847 = vadd.f32 %v10734, %v10846
      %10848 = vmatmul.f32.gmra.mxu0 %v10059
      %v10849 = vpop.f32.mrf.mxu0
      %v10850 = vadd.f32 %v10737, %v10849
      %10851 = vmatmul.f32.gmra.mxu0 %v10062
      %v10852 = vpop.f32.mrf.mxu0
      %v10853 = vadd.f32 %v10740, %v10852
      %10854 = vmatmul.f32.gmra.mxu0 %v10065
      %v10855 = vpop.f32.mrf.mxu0
      %v10856 = vadd.f32 %v10743, %v10855
      %10857 = vmatmul.f32.gmra.mxu0 %v10068
      %v10858 = vpop.f32.mrf.mxu0
      %v10859 = vadd.f32 %v10746, %v10858
      %10860 = vmatmul.f32.gmra.mxu0 %v10071
      %v10861 = vpop.f32.mrf.mxu0
      %v10862 = vadd.f32 %v10749, %v10861
      %10863 = vdwg.mxu0
      %v10864 = vmax.f32 %v10769, 0.0
      %v10865 = vmax.f32 %v10772, 0.0
      %v10866 = vmax.f32 %v10775, 0.0
      %v10867 = vmax.f32 %v10778, 0.0
      %v10868 = vmax.f32 %v10781, 0.0
      %v10869 = vmax.f32 %v10784, 0.0
      %v10870 = vmax.f32 %v10787, 0.0
      %v10871 = vmax.f32 %v10790, 0.0
      %v10872 = vmax.f32 %v10793, 0.0
      %v10873 = vmax.f32 %v10796, 0.0
      %v10874 = vmax.f32 %v10799, 0.0
      %v10875 = vmax.f32 %v10802, 0.0
      %v10876 = vmax.f32 %v10805, 0.0
      %v10877 = vmax.f32 %v10808, 0.0
      %v10878 = vmax.f32 %v10811, 0.0
      %v10879 = vmax.f32 %v10814, 0.0
      %v10880 = vmax.f32 %v10817, 0.0
      %v10881 = vmax.f32 %v10820, 0.0
      %v10882 = vmax.f32 %v10823, 0.0
      %v10883 = vmax.f32 %v10826, 0.0
      %v10884 = vmax.f32 %v10829, 0.0
      %v10885 = vmax.f32 %v10832, 0.0
      %v10886 = vmax.f32 %v10835, 0.0
      %v10887 = vmax.f32 %v10838, 0.0
      %v10888 = vmax.f32 %v10841, 0.0
      %v10889 = vmax.f32 %v10844, 0.0
      %v10890 = vmax.f32 %v10847, 0.0
      %v10891 = vmax.f32 %v10850, 0.0
      %v10892 = vmax.f32 %v10853, 0.0
      %v10893 = vmax.f32 %v10856, 0.0
      %v10894 = vmax.f32 %v10859, 0.0
      %v10895 = vmax.f32 %v10862, 0.0
      %v10896 = vld [vmem:[#allocation5 + $0x7] sm:$0xff]
      %v10897 = vld [vmem:[#allocation5 + $0xf] sm:$0xff]
      %v10898 = vld [vmem:[#allocation5 + $0x27] sm:$0xff]
      %v10899 = vld [vmem:[#allocation5 + $0x2f] sm:$0xff]
      %v10900 = vld [vmem:[#allocation5 + $0x47] sm:$0xff]
      %v10901 = vld [vmem:[#allocation5 + $0x4f] sm:$0xff]
      %v10902 = vld [vmem:[#allocation5 + $0x67] sm:$0xff]
      %v10903 = vld [vmem:[#allocation5 + $0x6f] sm:$0xff]
      %v10904 = vld [vmem:[#allocation5 + $0x87] sm:$0xff]
      %v10905 = vld [vmem:[#allocation5 + $0x8f] sm:$0xff]
      %v10906 = vld [vmem:[#allocation5 + $0xa7] sm:$0xff]
      %v10907 = vld [vmem:[#allocation5 + $0xaf] sm:$0xff]
      %v10908 = vld [vmem:[#allocation5 + $0xc7] sm:$0xff]
      %v10909 = vld [vmem:[#allocation5 + $0xcf] sm:$0xff]
      %v10910 = vld [vmem:[#allocation5 + $0xe7] sm:$0xff]
      %v10911 = vld [vmem:[#allocation5 + $0xef] sm:$0xff]
      %v10912 = vld [vmem:[#allocation5 + $0x107] sm:$0xff]
      %v10913 = vld [vmem:[#allocation5 + $0x10f] sm:$0xff]
      %v10914 = vld [vmem:[#allocation5 + $0x127] sm:$0xff]
      %v10915 = vld [vmem:[#allocation5 + $0x12f] sm:$0xff]
      %v10916 = vld [vmem:[#allocation5 + $0x147] sm:$0xff]
      %v10917 = vld [vmem:[#allocation5 + $0x14f] sm:$0xff]
      %v10918 = vld [vmem:[#allocation5 + $0x167] sm:$0xff]
      %v10919 = vld [vmem:[#allocation5 + $0x16f] sm:$0xff]
      %v10920 = vld [vmem:[#allocation5 + $0x187] sm:$0xff]
      %v10921 = vld [vmem:[#allocation5 + $0x18f] sm:$0xff]
      %v10922 = vld [vmem:[#allocation5 + $0x1a7] sm:$0xff]
      %v10923 = vld [vmem:[#allocation5 + $0x1af] sm:$0xff]
      %v10924 = vld [vmem:[#allocation5 + $0x1c7] sm:$0xff]
      %v10925 = vld [vmem:[#allocation5 + $0x1cf] sm:$0xff]
      %v10926 = vld [vmem:[#allocation5 + $0x1e7] sm:$0xff]
      %v10927 = vld [vmem:[#allocation5 + $0x1ef] sm:$0xff]
      %v10928 = vadd.f32 %v10896, 0.0
      %v10929 = vadd.f32 %v10897, 0.0
      %v10930 = vadd.f32 %v10898, 0.0
      %v10931 = vadd.f32 %v10899, 0.0
      %v10932 = vadd.f32 %v10900, 0.0
      %v10933 = vadd.f32 %v10901, 0.0
      %v10934 = vadd.f32 %v10902, 0.0
      %v10935 = vadd.f32 %v10903, 0.0
      %v10936 = vadd.f32 %v10904, 0.0
      %v10937 = vadd.f32 %v10905, 0.0
      %v10938 = vadd.f32 %v10906, 0.0
      %v10939 = vadd.f32 %v10907, 0.0
      %v10940 = vadd.f32 %v10908, 0.0
      %v10941 = vadd.f32 %v10909, 0.0
      %v10942 = vadd.f32 %v10910, 0.0
      %v10943 = vadd.f32 %v10911, 0.0
      %v10944 = vadd.f32 %v10912, 0.0
      %v10945 = vadd.f32 %v10913, 0.0
      %v10946 = vadd.f32 %v10914, 0.0
      %v10947 = vadd.f32 %v10915, 0.0
      %v10948 = vadd.f32 %v10916, 0.0
      %v10949 = vadd.f32 %v10917, 0.0
      %v10950 = vadd.f32 %v10918, 0.0
      %v10951 = vadd.f32 %v10919, 0.0
      %v10952 = vadd.f32 %v10920, 0.0
      %v10953 = vadd.f32 %v10921, 0.0
      %v10954 = vadd.f32 %v10922, 0.0
      %v10955 = vadd.f32 %v10923, 0.0
      %v10956 = vadd.f32 %v10924, 0.0
      %v10957 = vadd.f32 %v10925, 0.0
      %v10958 = vadd.f32 %v10926, 0.0
      %v10959 = vadd.f32 %v10927, 0.0
      %v10960 = vld [vmem:[#allocation5 + $0x8] sm:$0xff]
      %v10961 = vld [vmem:[#allocation5 + $0x10] sm:$0xff]
      %v10962 = vld [vmem:[#allocation5 + $0x28] sm:$0xff]
      %v10963 = vld [vmem:[#allocation5 + $0x30] sm:$0xff]
      %v10964 = vld [vmem:[#allocation5 + $0x48] sm:$0xff]
      %v10965 = vld [vmem:[#allocation5 + $0x50] sm:$0xff]
      %v10966 = vld [vmem:[#allocation5 + $0x68] sm:$0xff]
      %v10967 = vld [vmem:[#allocation5 + $0x70] sm:$0xff]
      %v10968 = vld [vmem:[#allocation5 + $0x88] sm:$0xff]
      %v10969 = vld [vmem:[#allocation5 + $0x90] sm:$0xff]
      %v10970 = vld [vmem:[#allocation5 + $0xa8] sm:$0xff]
      %v10971 = vld [vmem:[#allocation5 + $0xb0] sm:$0xff]
      %v10972 = vld [vmem:[#allocation5 + $0xc8] sm:$0xff]
      %v10973 = vld [vmem:[#allocation5 + $0xd0] sm:$0xff]
      %v10974 = vld [vmem:[#allocation5 + $0xe8] sm:$0xff]
      %v10975 = vld [vmem:[#allocation5 + $0xf0] sm:$0xff]
      %v10976 = vld [vmem:[#allocation5 + $0x108] sm:$0xff]
      %v10977 = vld [vmem:[#allocation5 + $0x110] sm:$0xff]
      %v10978 = vld [vmem:[#allocation5 + $0x128] sm:$0xff]
      %v10979 = vld [vmem:[#allocation5 + $0x130] sm:$0xff]
      %v10980 = vld [vmem:[#allocation5 + $0x148] sm:$0xff]
      %v10981 = vld [vmem:[#allocation5 + $0x150] sm:$0xff]
      %v10982 = vld [vmem:[#allocation5 + $0x168] sm:$0xff]
      %v10983 = vld [vmem:[#allocation5 + $0x170] sm:$0xff]
      %v10984 = vld [vmem:[#allocation5 + $0x188] sm:$0xff]
      %v10985 = vld [vmem:[#allocation5 + $0x190] sm:$0xff]
      %v10986 = vld [vmem:[#allocation5 + $0x1a8] sm:$0xff]
      %v10987 = vld [vmem:[#allocation5 + $0x1b0] sm:$0xff]
      %v10988 = vld [vmem:[#allocation5 + $0x1c8] sm:$0xff]
      %v10989 = vld [vmem:[#allocation5 + $0x1d0] sm:$0xff]
      %v10990 = vld [vmem:[#allocation5 + $0x1e8] sm:$0xff]
      %v10991 = vld [vmem:[#allocation5 + $0x1f0] sm:$0xff]
      %v10992 = vadd.f32 %v10928, %v10960
      %v10993 = vadd.f32 %v10929, %v10961
      %v10994 = vadd.f32 %v10930, %v10962
      %v10995 = vadd.f32 %v10931, %v10963
      %v10996 = vadd.f32 %v10932, %v10964
      %v10997 = vadd.f32 %v10933, %v10965
      %v10998 = vadd.f32 %v10934, %v10966
      %v10999 = vadd.f32 %v10935, %v10967
      %v11000 = vadd.f32 %v10936, %v10968
      %v11001 = vadd.f32 %v10937, %v10969
      %v11002 = vadd.f32 %v10938, %v10970
      %v11003 = vadd.f32 %v10939, %v10971
      %v11004 = vadd.f32 %v10940, %v10972
      %v11005 = vadd.f32 %v10941, %v10973
      %v11006 = vadd.f32 %v10942, %v10974
      %v11007 = vadd.f32 %v10943, %v10975
      %v11008 = vadd.f32 %v10944, %v10976
      %v11009 = vadd.f32 %v10945, %v10977
      %v11010 = vadd.f32 %v10946, %v10978
      %v11011 = vadd.f32 %v10947, %v10979
      %v11012 = vadd.f32 %v10948, %v10980
      %v11013 = vadd.f32 %v10949, %v10981
      %v11014 = vadd.f32 %v10950, %v10982
      %v11015 = vadd.f32 %v10951, %v10983
      %v11016 = vadd.f32 %v10952, %v10984
      %v11017 = vadd.f32 %v10953, %v10985
      %v11018 = vadd.f32 %v10954, %v10986
      %v11019 = vadd.f32 %v10955, %v10987
      %v11020 = vadd.f32 %v10956, %v10988
      %v11021 = vadd.f32 %v10957, %v10989
      %v11022 = vadd.f32 %v10958, %v10990
      %v11023 = vadd.f32 %v10959, %v10991
      %v11024 = vld [vmem:[#allocation5 + $0x9] sm:$0xff]
      %v11025 = vld [vmem:[#allocation5 + $0x11] sm:$0xff]
      %v11026 = vld [vmem:[#allocation5 + $0x29] sm:$0xff]
      %v11027 = vld [vmem:[#allocation5 + $0x31] sm:$0xff]
      %v11028 = vld [vmem:[#allocation5 + $0x49] sm:$0xff]
      %v11029 = vld [vmem:[#allocation5 + $0x51] sm:$0xff]
      %v11030 = vld [vmem:[#allocation5 + $0x69] sm:$0xff]
      %v11031 = vld [vmem:[#allocation5 + $0x71] sm:$0xff]
      %v11032 = vld [vmem:[#allocation5 + $0x89] sm:$0xff]
      %v11033 = vld [vmem:[#allocation5 + $0x91] sm:$0xff]
      %v11034 = vld [vmem:[#allocation5 + $0xa9] sm:$0xff]
      %v11035 = vld [vmem:[#allocation5 + $0xb1] sm:$0xff]
      %v11036 = vld [vmem:[#allocation5 + $0xc9] sm:$0xff]
      %v11037 = vld [vmem:[#allocation5 + $0xd1] sm:$0xff]
      %v11038 = vld [vmem:[#allocation5 + $0xe9] sm:$0xff]
      %v11039 = vld [vmem:[#allocation5 + $0xf1] sm:$0xff]
      %v11040 = vld [vmem:[#allocation5 + $0x109] sm:$0xff]
      %v11041 = vld [vmem:[#allocation5 + $0x111] sm:$0xff]
      %v11042 = vld [vmem:[#allocation5 + $0x129] sm:$0xff]
      %v11043 = vld [vmem:[#allocation5 + $0x131] sm:$0xff]
      %v11044 = vld [vmem:[#allocation5 + $0x149] sm:$0xff]
      %v11045 = vld [vmem:[#allocation5 + $0x151] sm:$0xff]
      %v11046 = vld [vmem:[#allocation5 + $0x169] sm:$0xff]
      %v11047 = vld [vmem:[#allocation5 + $0x171] sm:$0xff]
      %v11048 = vld [vmem:[#allocation5 + $0x189] sm:$0xff]
      %v11049 = vld [vmem:[#allocation5 + $0x191] sm:$0xff]
      %v11050 = vld [vmem:[#allocation5 + $0x1a9] sm:$0xff]
      %v11051 = vld [vmem:[#allocation5 + $0x1b1] sm:$0xff]
      %v11052 = vld [vmem:[#allocation5 + $0x1c9] sm:$0xff]
      %v11053 = vld [vmem:[#allocation5 + $0x1d1] sm:$0xff]
      %v11054 = vld [vmem:[#allocation5 + $0x1e9] sm:$0xff]
      %v11055 = vld [vmem:[#allocation5 + $0x1f1] sm:$0xff]
      %v11056 = vadd.f32 %v10992, %v11024
      %v11057 = vadd.f32 %v10993, %v11025
      %v11058 = vadd.f32 %v10994, %v11026
      %v11059 = vadd.f32 %v10995, %v11027
      %v11060 = vadd.f32 %v10996, %v11028
      %v11061 = vadd.f32 %v10997, %v11029
      %v11062 = vadd.f32 %v10998, %v11030
      %v11063 = vadd.f32 %v10999, %v11031
      %v11064 = vadd.f32 %v11000, %v11032
      %v11065 = vadd.f32 %v11001, %v11033
      %v11066 = vadd.f32 %v11002, %v11034
      %v11067 = vadd.f32 %v11003, %v11035
      %v11068 = vadd.f32 %v11004, %v11036
      %v11069 = vadd.f32 %v11005, %v11037
      %v11070 = vadd.f32 %v11006, %v11038
      %v11071 = vadd.f32 %v11007, %v11039
      %v11072 = vadd.f32 %v11008, %v11040
      %v11073 = vadd.f32 %v11009, %v11041
      %v11074 = vadd.f32 %v11010, %v11042
      %v11075 = vadd.f32 %v11011, %v11043
      %v11076 = vadd.f32 %v11012, %v11044
      %v11077 = vadd.f32 %v11013, %v11045
      %v11078 = vadd.f32 %v11014, %v11046
      %v11079 = vadd.f32 %v11015, %v11047
      %v11080 = vadd.f32 %v11016, %v11048
      %v11081 = vadd.f32 %v11017, %v11049
      %v11082 = vadd.f32 %v11018, %v11050
      %v11083 = vadd.f32 %v11019, %v11051
      %v11084 = vadd.f32 %v11020, %v11052
      %v11085 = vadd.f32 %v11021, %v11053
      %v11086 = vadd.f32 %v11022, %v11054
      %v11087 = vadd.f32 %v11023, %v11055
      %v11088 = vld [vmem:[%s1285 + $0x7] sm:$0xff]
      %v11089 = vld [vmem:[%s1285 + $0xf] sm:$0xff]
      %v11090 = vld [vmem:[%s1285 + $0x27] sm:$0xff]
      %v11091 = vld [vmem:[%s1285 + $0x2f] sm:$0xff]
      %v11092 = vld [vmem:[%s1285 + $0x47] sm:$0xff]
      %v11093 = vld [vmem:[%s1285 + $0x4f] sm:$0xff]
      %v11094 = vld [vmem:[%s1285 + $0x67] sm:$0xff]
      %v11095 = vld [vmem:[%s1285 + $0x6f] sm:$0xff]
      %v11096 = vld [vmem:[%s1285 + $0x87] sm:$0xff]
      %v11097 = vld [vmem:[%s1285 + $0x8f] sm:$0xff]
      %v11098 = vld [vmem:[%s1285 + $0xa7] sm:$0xff]
      %v11099 = vld [vmem:[%s1285 + $0xaf] sm:$0xff]
      %v11100 = vld [vmem:[%s1285 + $0xc7] sm:$0xff]
      %v11101 = vld [vmem:[%s1285 + $0xcf] sm:$0xff]
      %v11102 = vld [vmem:[%s1285 + $0xe7] sm:$0xff]
      %v11103 = vld [vmem:[%s1285 + $0xef] sm:$0xff]
      %v11104 = vld [vmem:[%s1285 + $0x107] sm:$0xff]
      %v11105 = vld [vmem:[%s1285 + $0x10f] sm:$0xff]
      %v11106 = vld [vmem:[%s1285 + $0x127] sm:$0xff]
      %v11107 = vld [vmem:[%s1285 + $0x12f] sm:$0xff]
      %v11108 = vld [vmem:[%s1285 + $0x147] sm:$0xff]
      %v11109 = vld [vmem:[%s1285 + $0x14f] sm:$0xff]
      %v11110 = vld [vmem:[%s1285 + $0x167] sm:$0xff]
      %v11111 = vld [vmem:[%s1285 + $0x16f] sm:$0xff]
      %v11112 = vld [vmem:[%s1285 + $0x187] sm:$0xff]
      %v11113 = vld [vmem:[%s1285 + $0x18f] sm:$0xff]
      %v11114 = vld [vmem:[%s1285 + $0x1a7] sm:$0xff]
      %v11115 = vld [vmem:[%s1285 + $0x1af] sm:$0xff]
      %v11116 = vld [vmem:[%s1285 + $0x1c7] sm:$0xff]
      %v11117 = vld [vmem:[%s1285 + $0x1cf] sm:$0xff]
      %v11118 = vld [vmem:[%s1285 + $0x1e7] sm:$0xff]
      %v11119 = vld [vmem:[%s1285 + $0x1ef] sm:$0xff]
      %v11120 = vadd.f32 %v11056, %v11088
      %v11121 = vadd.f32 %v11057, %v11089
      %v11122 = vadd.f32 %v11058, %v11090
      %v11123 = vadd.f32 %v11059, %v11091
      %v11124 = vadd.f32 %v11060, %v11092
      %v11125 = vadd.f32 %v11061, %v11093
      %v11126 = vadd.f32 %v11062, %v11094
      %v11127 = vadd.f32 %v11063, %v11095
      %v11128 = vadd.f32 %v11064, %v11096
      %v11129 = vadd.f32 %v11065, %v11097
      %v11130 = vadd.f32 %v11066, %v11098
      %v11131 = vadd.f32 %v11067, %v11099
      %v11132 = vadd.f32 %v11068, %v11100
      %v11133 = vadd.f32 %v11069, %v11101
      %v11134 = vadd.f32 %v11070, %v11102
      %v11135 = vadd.f32 %v11071, %v11103
      %v11136 = vadd.f32 %v11072, %v11104
      %v11137 = vadd.f32 %v11073, %v11105
      %v11138 = vadd.f32 %v11074, %v11106
      %v11139 = vadd.f32 %v11075, %v11107
      %v11140 = vadd.f32 %v11076, %v11108
      %v11141 = vadd.f32 %v11077, %v11109
      %v11142 = vadd.f32 %v11078, %v11110
      %v11143 = vadd.f32 %v11079, %v11111
      %v11144 = vadd.f32 %v11080, %v11112
      %v11145 = vadd.f32 %v11081, %v11113
      %v11146 = vadd.f32 %v11082, %v11114
      %v11147 = vadd.f32 %v11083, %v11115
      %v11148 = vadd.f32 %v11084, %v11116
      %v11149 = vadd.f32 %v11085, %v11117
      %v11150 = vadd.f32 %v11086, %v11118
      %v11151 = vadd.f32 %v11087, %v11119
      %v11152 = vld [vmem:[%s1285 + $0x8] sm:$0xff]
      %v11153 = vld [vmem:[%s1285 + $0x10] sm:$0xff]
      %v11154 = vld [vmem:[%s1285 + $0x28] sm:$0xff]
      %v11155 = vld [vmem:[%s1285 + $0x30] sm:$0xff]
      %v11156 = vld [vmem:[%s1285 + $0x48] sm:$0xff]
      %v11157 = vld [vmem:[%s1285 + $0x50] sm:$0xff]
      %v11158 = vld [vmem:[%s1285 + $0x68] sm:$0xff]
      %v11159 = vld [vmem:[%s1285 + $0x70] sm:$0xff]
      %v11160 = vld [vmem:[%s1285 + $0x88] sm:$0xff]
      %v11161 = vld [vmem:[%s1285 + $0x90] sm:$0xff]
      %v11162 = vld [vmem:[%s1285 + $0xa8] sm:$0xff]
      %v11163 = vld [vmem:[%s1285 + $0xb0] sm:$0xff]
      %v11164 = vld [vmem:[%s1285 + $0xc8] sm:$0xff]
      %v11165 = vld [vmem:[%s1285 + $0xd0] sm:$0xff]
      %v11166 = vld [vmem:[%s1285 + $0xe8] sm:$0xff]
      %v11167 = vld [vmem:[%s1285 + $0xf0] sm:$0xff]
      %v11168 = vld [vmem:[%s1285 + $0x108] sm:$0xff]
      %v11169 = vld [vmem:[%s1285 + $0x110] sm:$0xff]
      %v11170 = vld [vmem:[%s1285 + $0x128] sm:$0xff]
      %v11171 = vld [vmem:[%s1285 + $0x130] sm:$0xff]
      %v11172 = vld [vmem:[%s1285 + $0x148] sm:$0xff]
      %v11173 = vld [vmem:[%s1285 + $0x150] sm:$0xff]
      %v11174 = vld [vmem:[%s1285 + $0x168] sm:$0xff]
      %v11175 = vld [vmem:[%s1285 + $0x170] sm:$0xff]
      %v11176 = vld [vmem:[%s1285 + $0x188] sm:$0xff]
      %v11177 = vld [vmem:[%s1285 + $0x190] sm:$0xff]
      %v11178 = vld [vmem:[%s1285 + $0x1a8] sm:$0xff]
      %v11179 = vld [vmem:[%s1285 + $0x1b0] sm:$0xff]
      %v11180 = vld [vmem:[%s1285 + $0x1c8] sm:$0xff]
      %v11181 = vld [vmem:[%s1285 + $0x1d0] sm:$0xff]
      %v11182 = vld [vmem:[%s1285 + $0x1e8] sm:$0xff]
      %v11183 = vld [vmem:[%s1285 + $0x1f0] sm:$0xff]
      %v11184 = vadd.f32 %v11120, %v11152
      %v11185 = vadd.f32 %v11121, %v11153
      %v11186 = vadd.f32 %v11122, %v11154
      %v11187 = vadd.f32 %v11123, %v11155
      %v11188 = vadd.f32 %v11124, %v11156
      %v11189 = vadd.f32 %v11125, %v11157
      %v11190 = vadd.f32 %v11126, %v11158
      %v11191 = vadd.f32 %v11127, %v11159
      %v11192 = vadd.f32 %v11128, %v11160
      %v11193 = vadd.f32 %v11129, %v11161
      %v11194 = vadd.f32 %v11130, %v11162
      %v11195 = vadd.f32 %v11131, %v11163
      %v11196 = vadd.f32 %v11132, %v11164
      %v11197 = vadd.f32 %v11133, %v11165
      %v11198 = vadd.f32 %v11134, %v11166
      %v11199 = vadd.f32 %v11135, %v11167
      %v11200 = vadd.f32 %v11136, %v11168
      %v11201 = vadd.f32 %v11137, %v11169
      %v11202 = vadd.f32 %v11138, %v11170
      %v11203 = vadd.f32 %v11139, %v11171
      %v11204 = vadd.f32 %v11140, %v11172
      %v11205 = vadd.f32 %v11141, %v11173
      %v11206 = vadd.f32 %v11142, %v11174
      %v11207 = vadd.f32 %v11143, %v11175
      %v11208 = vadd.f32 %v11144, %v11176
      %v11209 = vadd.f32 %v11145, %v11177
      %v11210 = vadd.f32 %v11146, %v11178
      %v11211 = vadd.f32 %v11147, %v11179
      %v11212 = vadd.f32 %v11148, %v11180
      %v11213 = vadd.f32 %v11149, %v11181
      %v11214 = vadd.f32 %v11150, %v11182
      %v11215 = vadd.f32 %v11151, %v11183
      %v11216 = vld [vmem:[%s1285 + $0x9] sm:$0xff]
      %v11217 = vld [vmem:[%s1285 + $0x11] sm:$0xff]
      %v11218 = vld [vmem:[%s1285 + $0x29] sm:$0xff]
      %v11219 = vld [vmem:[%s1285 + $0x31] sm:$0xff]
      %v11220 = vld [vmem:[%s1285 + $0x49] sm:$0xff]
      %v11221 = vld [vmem:[%s1285 + $0x51] sm:$0xff]
      %v11222 = vld [vmem:[%s1285 + $0x69] sm:$0xff]
      %v11223 = vld [vmem:[%s1285 + $0x71] sm:$0xff]
      %v11224 = vld [vmem:[%s1285 + $0x89] sm:$0xff]
      %v11225 = vld [vmem:[%s1285 + $0x91] sm:$0xff]
      %v11226 = vld [vmem:[%s1285 + $0xa9] sm:$0xff]
      %v11227 = vld [vmem:[%s1285 + $0xb1] sm:$0xff]
      %v11228 = vld [vmem:[%s1285 + $0xc9] sm:$0xff]
      %v11229 = vld [vmem:[%s1285 + $0xd1] sm:$0xff]
      %v11230 = vld [vmem:[%s1285 + $0xe9] sm:$0xff]
      %v11231 = vld [vmem:[%s1285 + $0xf1] sm:$0xff]
      %v11232 = vld [vmem:[%s1285 + $0x109] sm:$0xff]
      %v11233 = vld [vmem:[%s1285 + $0x111] sm:$0xff]
      %v11234 = vld [vmem:[%s1285 + $0x129] sm:$0xff]
      %v11235 = vld [vmem:[%s1285 + $0x131] sm:$0xff]
      %v11236 = vld [vmem:[%s1285 + $0x149] sm:$0xff]
      %v11237 = vld [vmem:[%s1285 + $0x151] sm:$0xff]
      %v11238 = vld [vmem:[%s1285 + $0x169] sm:$0xff]
      %v11239 = vld [vmem:[%s1285 + $0x171] sm:$0xff]
      %v11240 = vld [vmem:[%s1285 + $0x189] sm:$0xff]
      %v11241 = vld [vmem:[%s1285 + $0x191] sm:$0xff]
      %v11242 = vld [vmem:[%s1285 + $0x1a9] sm:$0xff]
      %v11243 = vld [vmem:[%s1285 + $0x1b1] sm:$0xff]
      %v11244 = vld [vmem:[%s1285 + $0x1c9] sm:$0xff]
      %v11245 = vld [vmem:[%s1285 + $0x1d1] sm:$0xff]
      %v11246 = vld [vmem:[%s1285 + $0x1e9] sm:$0xff]
      %v11247 = vld [vmem:[%s1285 + $0x1f1] sm:$0xff]
      %v11248 = vadd.f32 %v11184, %v11216
      %v11249 = vadd.f32 %v11185, %v11217
      %v11250 = vadd.f32 %v11186, %v11218
      %v11251 = vadd.f32 %v11187, %v11219
      %v11252 = vadd.f32 %v11188, %v11220
      %v11253 = vadd.f32 %v11189, %v11221
      %v11254 = vadd.f32 %v11190, %v11222
      %v11255 = vadd.f32 %v11191, %v11223
      %v11256 = vadd.f32 %v11192, %v11224
      %v11257 = vadd.f32 %v11193, %v11225
      %v11258 = vadd.f32 %v11194, %v11226
      %v11259 = vadd.f32 %v11195, %v11227
      %v11260 = vadd.f32 %v11196, %v11228
      %v11261 = vadd.f32 %v11197, %v11229
      %v11262 = vadd.f32 %v11198, %v11230
      %v11263 = vadd.f32 %v11199, %v11231
      %v11264 = vadd.f32 %v11200, %v11232
      %v11265 = vadd.f32 %v11201, %v11233
      %v11266 = vadd.f32 %v11202, %v11234
      %v11267 = vadd.f32 %v11203, %v11235
      %v11268 = vadd.f32 %v11204, %v11236
      %v11269 = vadd.f32 %v11205, %v11237
      %v11270 = vadd.f32 %v11206, %v11238
      %v11271 = vadd.f32 %v11207, %v11239
      %v11272 = vadd.f32 %v11208, %v11240
      %v11273 = vadd.f32 %v11209, %v11241
      %v11274 = vadd.f32 %v11210, %v11242
      %v11275 = vadd.f32 %v11211, %v11243
      %v11276 = vadd.f32 %v11212, %v11244
      %v11277 = vadd.f32 %v11213, %v11245
      %v11278 = vadd.f32 %v11214, %v11246
      %v11279 = vadd.f32 %v11215, %v11247
      %s11280 = scalar_lea.vmem [#allocation5], 64
      %v11281 = vld [vmem:[%s11280 + $0x7] sm:$0xff]
      %v11282 = vld [vmem:[%s11280 + $0xf] sm:$0xff]
      %v11283 = vld [vmem:[%s11280 + $0x27] sm:$0xff]
      %v11284 = vld [vmem:[%s11280 + $0x2f] sm:$0xff]
      %v11285 = vld [vmem:[%s11280 + $0x47] sm:$0xff]
      %v11286 = vld [vmem:[%s11280 + $0x4f] sm:$0xff]
      %v11287 = vld [vmem:[%s11280 + $0x67] sm:$0xff]
      %v11288 = vld [vmem:[%s11280 + $0x6f] sm:$0xff]
      %v11289 = vld [vmem:[%s11280 + $0x87] sm:$0xff]
      %v11290 = vld [vmem:[%s11280 + $0x8f] sm:$0xff]
      %v11291 = vld [vmem:[%s11280 + $0xa7] sm:$0xff]
      %v11292 = vld [vmem:[%s11280 + $0xaf] sm:$0xff]
      %v11293 = vld [vmem:[%s11280 + $0xc7] sm:$0xff]
      %v11294 = vld [vmem:[%s11280 + $0xcf] sm:$0xff]
      %v11295 = vld [vmem:[%s11280 + $0xe7] sm:$0xff]
      %v11296 = vld [vmem:[%s11280 + $0xef] sm:$0xff]
      %v11297 = vld [vmem:[%s11280 + $0x107] sm:$0xff]
      %v11298 = vld [vmem:[%s11280 + $0x10f] sm:$0xff]
      %v11299 = vld [vmem:[%s11280 + $0x127] sm:$0xff]
      %v11300 = vld [vmem:[%s11280 + $0x12f] sm:$0xff]
      %v11301 = vld [vmem:[%s11280 + $0x147] sm:$0xff]
      %v11302 = vld [vmem:[%s11280 + $0x14f] sm:$0xff]
      %v11303 = vld [vmem:[%s11280 + $0x167] sm:$0xff]
      %v11304 = vld [vmem:[%s11280 + $0x16f] sm:$0xff]
      %v11305 = vld [vmem:[%s11280 + $0x187] sm:$0xff]
      %v11306 = vld [vmem:[%s11280 + $0x18f] sm:$0xff]
      %v11307 = vld [vmem:[%s11280 + $0x1a7] sm:$0xff]
      %v11308 = vld [vmem:[%s11280 + $0x1af] sm:$0xff]
      %v11309 = vld [vmem:[%s11280 + $0x1c7] sm:$0xff]
      %v11310 = vld [vmem:[%s11280 + $0x1cf] sm:$0xff]
      %v11311 = vld [vmem:[%s11280 + $0x1e7] sm:$0xff]
      %v11312 = vld [vmem:[%s11280 + $0x1ef] sm:$0xff]
      %v11313 = vadd.f32 %v11248, %v11281
      %v11314 = vadd.f32 %v11249, %v11282
      %v11315 = vadd.f32 %v11250, %v11283
      %v11316 = vadd.f32 %v11251, %v11284
      %v11317 = vadd.f32 %v11252, %v11285
      %v11318 = vadd.f32 %v11253, %v11286
      %v11319 = vadd.f32 %v11254, %v11287
      %v11320 = vadd.f32 %v11255, %v11288
      %v11321 = vadd.f32 %v11256, %v11289
      %v11322 = vadd.f32 %v11257, %v11290
      %v11323 = vadd.f32 %v11258, %v11291
      %v11324 = vadd.f32 %v11259, %v11292
      %v11325 = vadd.f32 %v11260, %v11293
      %v11326 = vadd.f32 %v11261, %v11294
      %v11327 = vadd.f32 %v11262, %v11295
      %v11328 = vadd.f32 %v11263, %v11296
      %v11329 = vadd.f32 %v11264, %v11297
      %v11330 = vadd.f32 %v11265, %v11298
      %v11331 = vadd.f32 %v11266, %v11299
      %v11332 = vadd.f32 %v11267, %v11300
      %v11333 = vadd.f32 %v11268, %v11301
      %v11334 = vadd.f32 %v11269, %v11302
      %v11335 = vadd.f32 %v11270, %v11303
      %v11336 = vadd.f32 %v11271, %v11304
      %v11337 = vadd.f32 %v11272, %v11305
      %v11338 = vadd.f32 %v11273, %v11306
      %v11339 = vadd.f32 %v11274, %v11307
      %v11340 = vadd.f32 %v11275, %v11308
      %v11341 = vadd.f32 %v11276, %v11309
      %v11342 = vadd.f32 %v11277, %v11310
      %v11343 = vadd.f32 %v11278, %v11311
      %v11344 = vadd.f32 %v11279, %v11312
      %v11345 = vld [vmem:[%s11280 + $0x8] sm:$0xff]
      %v11346 = vld [vmem:[%s11280 + $0x10] sm:$0xff]
      %v11347 = vld [vmem:[%s11280 + $0x28] sm:$0xff]
      %v11348 = vld [vmem:[%s11280 + $0x30] sm:$0xff]
      %v11349 = vld [vmem:[%s11280 + $0x48] sm:$0xff]
      %v11350 = vld [vmem:[%s11280 + $0x50] sm:$0xff]
      %v11351 = vld [vmem:[%s11280 + $0x68] sm:$0xff]
      %v11352 = vld [vmem:[%s11280 + $0x70] sm:$0xff]
      %v11353 = vld [vmem:[%s11280 + $0x88] sm:$0xff]
      %v11354 = vld [vmem:[%s11280 + $0x90] sm:$0xff]
      %v11355 = vld [vmem:[%s11280 + $0xa8] sm:$0xff]
      %v11356 = vld [vmem:[%s11280 + $0xb0] sm:$0xff]
      %v11357 = vld [vmem:[%s11280 + $0xc8] sm:$0xff]
      %v11358 = vld [vmem:[%s11280 + $0xd0] sm:$0xff]
      %v11359 = vld [vmem:[%s11280 + $0xe8] sm:$0xff]
      %v11360 = vld [vmem:[%s11280 + $0xf0] sm:$0xff]
      %v11361 = vld [vmem:[%s11280 + $0x108] sm:$0xff]
      %v11362 = vld [vmem:[%s11280 + $0x110] sm:$0xff]
      %v11363 = vld [vmem:[%s11280 + $0x128] sm:$0xff]
      %v11364 = vld [vmem:[%s11280 + $0x130] sm:$0xff]
      %v11365 = vld [vmem:[%s11280 + $0x148] sm:$0xff]
      %v11366 = vld [vmem:[%s11280 + $0x150] sm:$0xff]
      %v11367 = vld [vmem:[%s11280 + $0x168] sm:$0xff]
      %v11368 = vld [vmem:[%s11280 + $0x170] sm:$0xff]
      %v11369 = vld [vmem:[%s11280 + $0x188] sm:$0xff]
      %v11370 = vld [vmem:[%s11280 + $0x190] sm:$0xff]
      %v11371 = vld [vmem:[%s11280 + $0x1a8] sm:$0xff]
      %v11372 = vld [vmem:[%s11280 + $0x1b0] sm:$0xff]
      %v11373 = vld [vmem:[%s11280 + $0x1c8] sm:$0xff]
      %v11374 = vld [vmem:[%s11280 + $0x1d0] sm:$0xff]
      %v11375 = vld [vmem:[%s11280 + $0x1e8] sm:$0xff]
      %v11376 = vld [vmem:[%s11280 + $0x1f0] sm:$0xff]
      %v11377 = vadd.f32 %v11313, %v11345
      %v11378 = vadd.f32 %v11314, %v11346
      %v11379 = vadd.f32 %v11315, %v11347
      %v11380 = vadd.f32 %v11316, %v11348
      %v11381 = vadd.f32 %v11317, %v11349
      %v11382 = vadd.f32 %v11318, %v11350
      %v11383 = vadd.f32 %v11319, %v11351
      %v11384 = vadd.f32 %v11320, %v11352
      %v11385 = vadd.f32 %v11321, %v11353
      %v11386 = vadd.f32 %v11322, %v11354
      %v11387 = vadd.f32 %v11323, %v11355
      %v11388 = vadd.f32 %v11324, %v11356
      %v11389 = vadd.f32 %v11325, %v11357
      %v11390 = vadd.f32 %v11326, %v11358
      %v11391 = vadd.f32 %v11327, %v11359
      %v11392 = vadd.f32 %v11328, %v11360
      %v11393 = vadd.f32 %v11329, %v11361
      %v11394 = vadd.f32 %v11330, %v11362
      %v11395 = vadd.f32 %v11331, %v11363
      %v11396 = vadd.f32 %v11332, %v11364
      %v11397 = vadd.f32 %v11333, %v11365
      %v11398 = vadd.f32 %v11334, %v11366
      %v11399 = vadd.f32 %v11335, %v11367
      %v11400 = vadd.f32 %v11336, %v11368
      %v11401 = vadd.f32 %v11337, %v11369
      %v11402 = vadd.f32 %v11338, %v11370
      %v11403 = vadd.f32 %v11339, %v11371
      %v11404 = vadd.f32 %v11340, %v11372
      %v11405 = vadd.f32 %v11341, %v11373
      %v11406 = vadd.f32 %v11342, %v11374
      %v11407 = vadd.f32 %v11343, %v11375
      %v11408 = vadd.f32 %v11344, %v11376
      %v11409 = vld [vmem:[%s11280 + $0x9] sm:$0xff]
      %v11410 = vld [vmem:[%s11280 + $0x11] sm:$0xff]
      %v11411 = vld [vmem:[%s11280 + $0x29] sm:$0xff]
      %v11412 = vld [vmem:[%s11280 + $0x31] sm:$0xff]
      %v11413 = vld [vmem:[%s11280 + $0x49] sm:$0xff]
      %v11414 = vld [vmem:[%s11280 + $0x51] sm:$0xff]
      %v11415 = vld [vmem:[%s11280 + $0x69] sm:$0xff]
      %v11416 = vld [vmem:[%s11280 + $0x71] sm:$0xff]
      %v11417 = vld [vmem:[%s11280 + $0x89] sm:$0xff]
      %v11418 = vld [vmem:[%s11280 + $0x91] sm:$0xff]
      %v11419 = vld [vmem:[%s11280 + $0xa9] sm:$0xff]
      %v11420 = vld [vmem:[%s11280 + $0xb1] sm:$0xff]
      %v11421 = vld [vmem:[%s11280 + $0xc9] sm:$0xff]
      %v11422 = vld [vmem:[%s11280 + $0xd1] sm:$0xff]
      %v11423 = vld [vmem:[%s11280 + $0xe9] sm:$0xff]
      %v11424 = vld [vmem:[%s11280 + $0xf1] sm:$0xff]
      %v11425 = vld [vmem:[%s11280 + $0x109] sm:$0xff]
      %v11426 = vld [vmem:[%s11280 + $0x111] sm:$0xff]
      %v11427 = vld [vmem:[%s11280 + $0x129] sm:$0xff]
      %v11428 = vld [vmem:[%s11280 + $0x131] sm:$0xff]
      %v11429 = vld [vmem:[%s11280 + $0x149] sm:$0xff]
      %v11430 = vld [vmem:[%s11280 + $0x151] sm:$0xff]
      %v11431 = vld [vmem:[%s11280 + $0x169] sm:$0xff]
      %v11432 = vld [vmem:[%s11280 + $0x171] sm:$0xff]
      %v11433 = vld [vmem:[%s11280 + $0x189] sm:$0xff]
      %v11434 = vld [vmem:[%s11280 + $0x191] sm:$0xff]
      %v11435 = vld [vmem:[%s11280 + $0x1a9] sm:$0xff]
      %v11436 = vld [vmem:[%s11280 + $0x1b1] sm:$0xff]
      %v11437 = vld [vmem:[%s11280 + $0x1c9] sm:$0xff]
      %v11438 = vld [vmem:[%s11280 + $0x1d1] sm:$0xff]
      %v11439 = vld [vmem:[%s11280 + $0x1e9] sm:$0xff]
      %v11440 = vld [vmem:[%s11280 + $0x1f1] sm:$0xff]
      %v11441 = vadd.f32 %v11377, %v11409
      %v11442 = vadd.f32 %v11378, %v11410
      %v11443 = vadd.f32 %v11379, %v11411
      %v11444 = vadd.f32 %v11380, %v11412
      %v11445 = vadd.f32 %v11381, %v11413
      %v11446 = vadd.f32 %v11382, %v11414
      %v11447 = vadd.f32 %v11383, %v11415
      %v11448 = vadd.f32 %v11384, %v11416
      %v11449 = vadd.f32 %v11385, %v11417
      %v11450 = vadd.f32 %v11386, %v11418
      %v11451 = vadd.f32 %v11387, %v11419
      %v11452 = vadd.f32 %v11388, %v11420
      %v11453 = vadd.f32 %v11389, %v11421
      %v11454 = vadd.f32 %v11390, %v11422
      %v11455 = vadd.f32 %v11391, %v11423
      %v11456 = vadd.f32 %v11392, %v11424
      %v11457 = vadd.f32 %v11393, %v11425
      %v11458 = vadd.f32 %v11394, %v11426
      %v11459 = vadd.f32 %v11395, %v11427
      %v11460 = vadd.f32 %v11396, %v11428
      %v11461 = vadd.f32 %v11397, %v11429
      %v11462 = vadd.f32 %v11398, %v11430
      %v11463 = vadd.f32 %v11399, %v11431
      %v11464 = vadd.f32 %v11400, %v11432
      %v11465 = vadd.f32 %v11401, %v11433
      %v11466 = vadd.f32 %v11402, %v11434
      %v11467 = vadd.f32 %v11403, %v11435
      %v11468 = vadd.f32 %v11404, %v11436
      %v11469 = vadd.f32 %v11405, %v11437
      %v11470 = vadd.f32 %v11406, %v11438
      %v11471 = vadd.f32 %v11407, %v11439
      %v11472 = vadd.f32 %v11408, %v11440
      %v11473 = vmul.f32 %v11441, 0.11111111
      %v11474 = vmul.f32 %v11442, 0.11111111
      %v11475 = vmul.f32 %v11443, 0.11111111
      %v11476 = vmul.f32 %v11444, 0.11111111
      %v11477 = vmul.f32 %v11445, 0.11111111
      %v11478 = vmul.f32 %v11446, 0.11111111
      %v11479 = vmul.f32 %v11447, 0.11111111
      %v11480 = vmul.f32 %v11448, 0.11111111
      %v11481 = vmul.f32 %v11449, 0.11111111
      %v11482 = vmul.f32 %v11450, 0.11111111
      %v11483 = vmul.f32 %v11451, 0.11111111
      %v11484 = vmul.f32 %v11452, 0.11111111
      %v11485 = vmul.f32 %v11453, 0.11111111
      %v11486 = vmul.f32 %v11454, 0.11111111
      %v11487 = vmul.f32 %v11455, 0.11111111
      %v11488 = vmul.f32 %v11456, 0.11111111
      %v11489 = vmul.f32 %v11457, 0.11111111
      %v11490 = vmul.f32 %v11458, 0.11111111
      %v11491 = vmul.f32 %v11459, 0.11111111
      %v11492 = vmul.f32 %v11460, 0.11111111
      %v11493 = vmul.f32 %v11461, 0.11111111
      %v11494 = vmul.f32 %v11462, 0.11111111
      %v11495 = vmul.f32 %v11463, 0.11111111
      %v11496 = vmul.f32 %v11464, 0.11111111
      %v11497 = vmul.f32 %v11465, 0.11111111
      %v11498 = vmul.f32 %v11466, 0.11111111
      %v11499 = vmul.f32 %v11467, 0.11111111
      %v11500 = vmul.f32 %v11468, 0.11111111
      %v11501 = vmul.f32 %v11469, 0.11111111
      %v11502 = vmul.f32 %v11470, 0.11111111
      %v11503 = vmul.f32 %v11471, 0.11111111
      %v11504 = vmul.f32 %v11472, 0.11111111
      %v11505 = vld [vmem:[%s7] sm:$0x1]
      %v11507 = vsel %vm476, %v11505, 0
      %v11510 = vsel %vm476, %v11473, 0
      %v11513 = vsel %vm476, %v11474, 0
      %v11516 = vsel %vm476, %v11475, 0
      %v11519 = vsel %vm476, %v11476, 0
      %v11522 = vsel %vm476, %v11477, 0
      %v11525 = vsel %vm476, %v11478, 0
      %v11528 = vsel %vm476, %v11479, 0
      %v11531 = vsel %vm476, %v11480, 0
      %v11534 = vsel %vm476, %v11481, 0
      %v11537 = vsel %vm476, %v11482, 0
      %v11540 = vsel %vm476, %v11483, 0
      %v11543 = vsel %vm476, %v11484, 0
      %v11546 = vsel %vm476, %v11485, 0
      %v11549 = vsel %vm476, %v11486, 0
      %v11552 = vsel %vm476, %v11487, 0
      %v11555 = vsel %vm476, %v11488, 0
      %v11558 = vsel %vm476, %v11489, 0
      %v11561 = vsel %vm476, %v11490, 0
      %v11564 = vsel %vm476, %v11491, 0
      %v11567 = vsel %vm476, %v11492, 0
      %v11570 = vsel %vm476, %v11493, 0
      %v11573 = vsel %vm476, %v11494, 0
      %v11576 = vsel %vm476, %v11495, 0
      %v11579 = vsel %vm476, %v11496, 0
      %v11582 = vsel %vm476, %v11497, 0
      %v11585 = vsel %vm476, %v11498, 0
      %v11588 = vsel %vm476, %v11499, 0
      %v11591 = vsel %vm476, %v11500, 0
      %v11594 = vsel %vm476, %v11501, 0
      %v11597 = vsel %vm476, %v11502, 0
      %v11600 = vsel %vm476, %v11503, 0
      %v11603 = vsel %vm476, %v11504, 0
      %11605 = vmatpush.xpose.msra.mxu0 %v11555
      %11606 = vmatpush.xpose.msra.mxu0 %v11552
      %11607 = vmatpush.xpose.msra.mxu0 %v11549
      %11608 = vmatpush.xpose.msra.mxu0 %v11546
      %11609 = vmatpush.xpose.msra.mxu0 %v11543
      %11610 = vmatpush.xpose.msra.mxu0 %v11540
      %11611 = vmatpush.xpose.msra.mxu0 %v11537
      %11612 = vmatpush.xpose.msra.mxu0 %v11534
      %11613 = vmatpush.xpose.msra.mxu0 %v11531
      %11614 = vmatpush.xpose.msra.mxu0 %v11528
      %11615 = vmatpush.xpose.msra.mxu0 %v11525
      %11616 = vmatpush.xpose.msra.mxu0 %v11522
      %11617 = vmatpush.xpose.msra.mxu0 %v11519
      %11618 = vmatpush.xpose.msra.mxu0 %v11516
      %11619 = vmatpush.xpose.msra.mxu0 %v11513
      %11620 = vmatpush.xpose.msra.mxu0 %v11510
      %11621 = vmatmul.f32.gmra.mxu0 %v11507
      %v11622 = vpop.f32.mrf.mxu0
      %v11623 = vadd.f32 0.0, %v11622
      %11624 = vdwg.mxu0
      %11625 = vmatpush.xpose.msra.mxu0 %v11603
      %11626 = vmatpush.xpose.msra.mxu0 %v11600
      %11627 = vmatpush.xpose.msra.mxu0 %v11597
      %11628 = vmatpush.xpose.msra.mxu0 %v11594
      %11629 = vmatpush.xpose.msra.mxu0 %v11591
      %11630 = vmatpush.xpose.msra.mxu0 %v11588
      %11631 = vmatpush.xpose.msra.mxu0 %v11585
      %11632 = vmatpush.xpose.msra.mxu0 %v11582
      %11633 = vmatpush.xpose.msra.mxu0 %v11579
      %11634 = vmatpush.xpose.msra.mxu0 %v11576
      %11635 = vmatpush.xpose.msra.mxu0 %v11573
      %11636 = vmatpush.xpose.msra.mxu0 %v11570
      %11637 = vmatpush.xpose.msra.mxu0 %v11567
      %11638 = vmatpush.xpose.msra.mxu0 %v11564
      %11639 = vmatpush.xpose.msra.mxu0 %v11561
      %11640 = vmatpush.xpose.msra.mxu0 %v11558
      %11641 = vmatmul.f32.gmra.mxu0 %v11507
      %v11642 = vpop.f32.mrf.mxu0
      %v11643 = vadd.f32 0.0, %v11642
      %11644 = vdwg.mxu0
      %v11645 = vmax.f32 %v11623, 0.0
      %v11646 = vmax.f32 %v11643, 0.0
      %v11647 = vld [vmem:[%s8] sm:$0x1]
      %v11648 = vld [vmem:[%s9] sm:$0x1]
      %v11650 = vsel %vm1079, %v11648, 0
      %v11653 = vsel %vm1079, %v6861, 0
      %v11656 = vsel %vm1079, %v6862, 0
      %v11659 = vsel %vm1079, %v6863, 0
      %v11662 = vsel %vm1079, %v6864, 0
      %v11665 = vsel %vm1079, %v6865, 0
      %v11668 = vsel %vm1079, %v6866, 0
      %v11671 = vsel %vm1079, %v6867, 0
      %v11674 = vsel %vm1079, %v6868, 0
      %v11677 = vsel %vm1079, %v6869, 0
      %v11680 = vsel %vm1079, %v6870, 0
      %v11683 = vsel %vm1079, %v6871, 0
      %v11686 = vsel %vm1079, %v6872, 0
      %v11689 = vsel %vm1079, %v6873, 0
      %v11692 = vsel %vm1079, %v6874, 0
      %v11695 = vsel %vm1079, %v6875, 0
      %v11698 = vsel %vm1079, %v6876, 0
      %v11701 = vsel %vm1079, %v6877, 0
      %v11704 = vsel %vm1079, %v6878, 0
      %v11707 = vsel %vm1079, %v6879, 0
      %v11710 = vsel %vm1079, %v6880, 0
      %v11713 = vsel %vm1079, %v6881, 0
      %v11716 = vsel %vm1079, %v6882, 0
      %v11719 = vsel %vm1079, %v6883, 0
      %v11722 = vsel %vm1079, %v6884, 0
      %v11725 = vsel %vm1079, %v6885, 0
      %v11728 = vsel %vm1079, %v6886, 0
      %v11731 = vsel %vm1079, %v6887, 0
      %v11734 = vsel %vm1079, %v6888, 0
      %v11737 = vsel %vm1079, %v6889, 0
      %v11740 = vsel %vm1079, %v6890, 0
      %v11743 = vsel %vm1079, %v6891, 0
      %v11746 = vsel %vm1079, %v6892, 0
      %11748 = vmatpush.xpose.msra.mxu0 %v11698
      %11749 = vmatpush.xpose.msra.mxu0 %v11695
      %11750 = vmatpush.xpose.msra.mxu0 %v11692
      %11751 = vmatpush.xpose.msra.mxu0 %v11689
      %11752 = vmatpush.xpose.msra.mxu0 %v11686
      %11753 = vmatpush.xpose.msra.mxu0 %v11683
      %11754 = vmatpush.xpose.msra.mxu0 %v11680
      %11755 = vmatpush.xpose.msra.mxu0 %v11677
      %11756 = vmatpush.xpose.msra.mxu0 %v11674
      %11757 = vmatpush.xpose.msra.mxu0 %v11671
      %11758 = vmatpush.xpose.msra.mxu0 %v11668
      %11759 = vmatpush.xpose.msra.mxu0 %v11665
      %11760 = vmatpush.xpose.msra.mxu0 %v11662
      %11761 = vmatpush.xpose.msra.mxu0 %v11659
      %11762 = vmatpush.xpose.msra.mxu0 %v11656
      %11763 = vmatpush.xpose.msra.mxu0 %v11653
      %11764 = vmatmul.f32.gmra.mxu0 %v11650
      %v11765 = vpop.f32.mrf.mxu0
      %v11766 = vadd.f32 0.0, %v11765
      %11767 = vdwg.mxu0
      %11768 = vmatpush.xpose.msra.mxu0 %v11746
      %11769 = vmatpush.xpose.msra.mxu0 %v11743
      %11770 = vmatpush.xpose.msra.mxu0 %v11740
      %11771 = vmatpush.xpose.msra.mxu0 %v11737
      %11772 = vmatpush.xpose.msra.mxu0 %v11734
      %11773 = vmatpush.xpose.msra.mxu0 %v11731
      %11774 = vmatpush.xpose.msra.mxu0 %v11728
      %11775 = vmatpush.xpose.msra.mxu0 %v11725
      %11776 = vmatpush.xpose.msra.mxu0 %v11722
      %11777 = vmatpush.xpose.msra.mxu0 %v11719
      %11778 = vmatpush.xpose.msra.mxu0 %v11716
      %11779 = vmatpush.xpose.msra.mxu0 %v11713
      %11780 = vmatpush.xpose.msra.mxu0 %v11710
      %11781 = vmatpush.xpose.msra.mxu0 %v11707
      %11782 = vmatpush.xpose.msra.mxu0 %v11704
      %11783 = vmatpush.xpose.msra.mxu0 %v11701
      %11784 = vmatmul.f32.gmra.mxu0 %v11650
      %v11785 = vpop.f32.mrf.mxu0
      %v11786 = vadd.f32 0.0, %v11785
      %11787 = vdwg.mxu0
      %v11789 = vsel %vm1079, %v11647, 0
      %v11792 = vsel %vm1079, %v690, 0
      %v11795 = vsel %vm1079, %v691, 0
      %v11798 = vsel %vm1079, %v692, 0
      %v11801 = vsel %vm1079, %v693, 0
      %v11804 = vsel %vm1079, %v694, 0
      %v11807 = vsel %vm1079, %v695, 0
      %v11810 = vsel %vm1079, %v696, 0
      %v11813 = vsel %vm1079, %v697, 0
      %v11816 = vsel %vm1079, %v698, 0
      %v11819 = vsel %vm1079, %v699, 0
      %v11822 = vsel %vm1079, %v700, 0
      %v11825 = vsel %vm1079, %v701, 0
      %v11828 = vsel %vm1079, %v702, 0
      %v11831 = vsel %vm1079, %v703, 0
      %v11834 = vsel %vm1079, %v704, 0
      %v11837 = vsel %vm1079, %v705, 0
      %v11840 = vsel %vm1079, %v706, 0
      %v11843 = vsel %vm1079, %v707, 0
      %v11846 = vsel %vm1079, %v708, 0
      %v11849 = vsel %vm1079, %v709, 0
      %v11852 = vsel %vm1079, %v710, 0
      %v11855 = vsel %vm1079, %v711, 0
      %v11858 = vsel %vm1079, %v712, 0
      %v11861 = vsel %vm1079, %v713, 0
      %v11864 = vsel %vm1079, %v714, 0
      %v11867 = vsel %vm1079, %v715, 0
      %v11870 = vsel %vm1079, %v716, 0
      %v11873 = vsel %vm1079, %v717, 0
      %v11876 = vsel %vm1079, %v718, 0
      %v11879 = vsel %vm1079, %v719, 0
      %v11882 = vsel %vm1079, %v720, 0
      %v11885 = vsel %vm1079, %v721, 0
      %11887 = vmatpush.xpose.msra.mxu0 %v11837
      %11888 = vmatpush.xpose.msra.mxu0 %v11834
      %11889 = vmatpush.xpose.msra.mxu0 %v11831
      %11890 = vmatpush.xpose.msra.mxu0 %v11828
      %11891 = vmatpush.xpose.msra.mxu0 %v11825
      %11892 = vmatpush.xpose.msra.mxu0 %v11822
      %11893 = vmatpush.xpose.msra.mxu0 %v11819
      %11894 = vmatpush.xpose.msra.mxu0 %v11816
      %11895 = vmatpush.xpose.msra.mxu0 %v11813
      %11896 = vmatpush.xpose.msra.mxu0 %v11810
      %11897 = vmatpush.xpose.msra.mxu0 %v11807
      %11898 = vmatpush.xpose.msra.mxu0 %v11804
      %11899 = vmatpush.xpose.msra.mxu0 %v11801
      %11900 = vmatpush.xpose.msra.mxu0 %v11798
      %11901 = vmatpush.xpose.msra.mxu0 %v11795
      %11902 = vmatpush.xpose.msra.mxu0 %v11792
      %11903 = vmatmul.f32.gmra.mxu0 %v11789
      %v11904 = vpop.f32.mrf.mxu0
      %v11905 = vadd.f32 %v11766, %v11904
      %11906 = vdwg.mxu0
      %11907 = vmatpush.xpose.msra.mxu0 %v11885
      %11908 = vmatpush.xpose.msra.mxu0 %v11882
      %11909 = vmatpush.xpose.msra.mxu0 %v11879
      %11910 = vmatpush.xpose.msra.mxu0 %v11876
      %11911 = vmatpush.xpose.msra.mxu0 %v11873
      %11912 = vmatpush.xpose.msra.mxu0 %v11870
      %11913 = vmatpush.xpose.msra.mxu0 %v11867
      %11914 = vmatpush.xpose.msra.mxu0 %v11864
      %11915 = vmatpush.xpose.msra.mxu0 %v11861
      %11916 = vmatpush.xpose.msra.mxu0 %v11858
      %11917 = vmatpush.xpose.msra.mxu0 %v11855
      %11918 = vmatpush.xpose.msra.mxu0 %v11852
      %11919 = vmatpush.xpose.msra.mxu0 %v11849
      %11920 = vmatpush.xpose.msra.mxu0 %v11846
      %11921 = vmatpush.xpose.msra.mxu0 %v11843
      %11922 = vmatpush.xpose.msra.mxu0 %v11840
      %11923 = vmatmul.f32.gmra.mxu0 %v11789
      %v11924 = vpop.f32.mrf.mxu0
      %v11925 = vadd.f32 %v11786, %v11924
      %11926 = vdwg.mxu0
      %v11927 = vld [vmem:[%s10] sm:$0x1]
      %v11929 = vsel %vm1126, %v11927, 0
      %v11932 = vsel %vm1126, %v10864, 0
      %v11935 = vsel %vm1126, %v10865, 0
      %v11938 = vsel %vm1126, %v10866, 0
      %v11941 = vsel %vm1126, %v10867, 0
      %v11944 = vsel %vm1126, %v10868, 0
      %v11947 = vsel %vm1126, %v10869, 0
      %v11950 = vsel %vm1126, %v10870, 0
      %v11953 = vsel %vm1126, %v10871, 0
      %v11956 = vsel %vm1126, %v10872, 0
      %v11959 = vsel %vm1126, %v10873, 0
      %v11962 = vsel %vm1126, %v10874, 0
      %v11965 = vsel %vm1126, %v10875, 0
      %v11968 = vsel %vm1126, %v10876, 0
      %v11971 = vsel %vm1126, %v10877, 0
      %v11974 = vsel %vm1126, %v10878, 0
      %v11977 = vsel %vm1126, %v10879, 0
      %v11980 = vsel %vm1126, %v10880, 0
      %v11983 = vsel %vm1126, %v10881, 0
      %v11986 = vsel %vm1126, %v10882, 0
      %v11989 = vsel %vm1126, %v10883, 0
      %v11992 = vsel %vm1126, %v10884, 0
      %v11995 = vsel %vm1126, %v10885, 0
      %v11998 = vsel %vm1126, %v10886, 0
      %v12001 = vsel %vm1126, %v10887, 0
      %v12004 = vsel %vm1126, %v10888, 0
      %v12007 = vsel %vm1126, %v10889, 0
      %v12010 = vsel %vm1126, %v10890, 0
      %v12013 = vsel %vm1126, %v10891, 0
      %v12016 = vsel %vm1126, %v10892, 0
      %v12019 = vsel %vm1126, %v10893, 0
      %v12022 = vsel %vm1126, %v10894, 0
      %v12025 = vsel %vm1126, %v10895, 0
      %12027 = vmatpush.xpose.msra.mxu0 %v11977
      %12028 = vmatpush.xpose.msra.mxu0 %v11974
      %12029 = vmatpush.xpose.msra.mxu0 %v11971
      %12030 = vmatpush.xpose.msra.mxu0 %v11968
      %12031 = vmatpush.xpose.msra.mxu0 %v11965
      %12032 = vmatpush.xpose.msra.mxu0 %v11962
      %12033 = vmatpush.xpose.msra.mxu0 %v11959
      %12034 = vmatpush.xpose.msra.mxu0 %v11956
      %12035 = vmatpush.xpose.msra.mxu0 %v11953
      %12036 = vmatpush.xpose.msra.mxu0 %v11950
      %12037 = vmatpush.xpose.msra.mxu0 %v11947
      %12038 = vmatpush.xpose.msra.mxu0 %v11944
      %12039 = vmatpush.xpose.msra.mxu0 %v11941
      %12040 = vmatpush.xpose.msra.mxu0 %v11938
      %12041 = vmatpush.xpose.msra.mxu0 %v11935
      %12042 = vmatpush.xpose.msra.mxu0 %v11932
      %12043 = vmatmul.f32.gmra.mxu0 %v11929
      %v12044 = vpop.f32.mrf.mxu0
      %v12045 = vadd.f32 0.0, %v12044
      %12046 = vdwg.mxu0
      %12047 = vmatpush.xpose.msra.mxu0 %v12025
      %12048 = vmatpush.xpose.msra.mxu0 %v12022
      %12049 = vmatpush.xpose.msra.mxu0 %v12019
      %12050 = vmatpush.xpose.msra.mxu0 %v12016
      %12051 = vmatpush.xpose.msra.mxu0 %v12013
      %12052 = vmatpush.xpose.msra.mxu0 %v12010
      %12053 = vmatpush.xpose.msra.mxu0 %v12007
      %12054 = vmatpush.xpose.msra.mxu0 %v12004
      %12055 = vmatpush.xpose.msra.mxu0 %v12001
      %12056 = vmatpush.xpose.msra.mxu0 %v11998
      %12057 = vmatpush.xpose.msra.mxu0 %v11995
      %12058 = vmatpush.xpose.msra.mxu0 %v11992
      %12059 = vmatpush.xpose.msra.mxu0 %v11989
      %12060 = vmatpush.xpose.msra.mxu0 %v11986
      %12061 = vmatpush.xpose.msra.mxu0 %v11983
      %12062 = vmatpush.xpose.msra.mxu0 %v11980
      %12063 = vmatmul.f32.gmra.mxu0 %v11929
      %v12064 = vpop.f32.mrf.mxu0
      %v12065 = vadd.f32 0.0, %v12064
      %12066 = vdwg.mxu0
      %v12067 = vadd.f32 %v11905, %v12045
      %v12068 = vadd.f32 %v11925, %v12065
      %v12069 = vld [vmem:[#allocation6] sm:$0x1]
      %12071 = vset.pattern.permute.xlu0 0
      %12072 = vperm.xlu0 %12071, %v12069
      %v12073 = vpop.permute.xlu0 %12072
      %v12075 = vperm.slane %v12073, 0
      %v12076 = vmul.f32 %v11645, %v12075
      %v12077 = vmul.f32 %v11646, %v12075
      %v12078 = vadd.f32 %v12067, %v12076
      %v12079 = vadd.f32 %v12068, %v12077
      %v12080 = vld [vmem:[#allocation7] sm:$0x1]
      %12082 = vset.pattern.permute.xlu0 0
      %12083 = vperm.xlu0 %12082, %v12080
      %v12084 = vpop.permute.xlu0 %12083
      %v12086 = vperm.slane %v12084, 0
      %v12087 = vadd.f32 %v12078, %v12086
      %v12088 = vadd.f32 %v12079, %v12086
      %v12091 = vrot.slane %v12088, 7
      %vm12092 = vcmask 1040384
      %v12093 = vsel %vm12092, %v12087, %v12091
      %v12095 = vlaneseq
      %vm12096 = vcmp.ge.s32.totalorder %v12095, 0
      %vm12097 = vcmp.lt.s32.totalorder %v12095, 256
      %vm12098 = vmand %vm12096, %vm12097
      %12099 = vst.msk [vmem:[%s442] sm:$0x3] %vm12098, %v12093
      %p12100 = scmp.lt.s32.totalorder %s28, 1
      %s12101 = scalar_select %p12100, %s28, 1
      %s12102 = smul.addr %s12101, 2
      %s12103 = scalar_lea.vmem %s13, %s12102
      // Predicated region
      $region73: #{inception_module1_forward.1} parent=71 // pred_check
        %p12104 = pneg %p324
      $region74: #{inception_module1_forward.1} parent=71 // pred_check_branch
        %12106 = sbr.rel (%p12104) target = $region76
      $region75: #{inception_module1_forward.1} parent=71 // pred_region
        _
      $region76: #{inception_module1_forward.1} parent=71 // pred_fallthru
        _
    $region72: #{inception_module1_forward.1} parent=5 // pred_fallthru
      _
    %p12107 = scmp.le.s32.totalorder 2, %s23
    // Predicated region
    $region77: #{inception_module1_forward.1} parent=5 // pred_check
      %p12108 = pneg %p12107
    $region78: #{inception_module1_forward.1} parent=5 // pred_check_branch
      %12110 = sbr.rel (%p12108) target = $region80
    $region79: #{inception_module1_forward.1} parent=5 // pred_region
      %s12111 = ssub.s32 %s23, 2
      // Predicated region
      $region81: #{inception_module1_forward.1} parent=79 // pred_check
        %p12112 = pneg %p330
      $region82: #{inception_module1_forward.1} parent=79 // pred_check_branch
        %12114 = sbr.rel (%p12112) target = $region84
      $region83: #{inception_module1_forward.1} parent=79 // pred_region
        %p12115 = scmp.lt.s32.totalorder %s29, 1
        %s12116 = scalar_select %p12115, %s29, 1
        %s12117 = smul.addr %s12116, 2
        %s12118 = scalar_lea.vmem %s13, %s12117
      $region84: #{inception_module1_forward.1} parent=79 // pred_fallthru
        _
    $region80: #{inception_module1_forward.1} parent=5 // pred_fallthru
      _
  $region6: #{inception_module1_forward.1} parent=0 // loop_footer
    %s27 = sadd.s32 1, %s23
  $region7: #{inception_module1_forward.1} parent=0 // loop_footer_branch
    %22 = sbr.rel target = $region3
  $region8: #{inception_module1_forward.1} parent=0 // loop_exit
    _

</llo_original>
